<compile_context>
chip_gen: v7x
topology: tpu7x:2x2x1
jax: 0.10.0
libtpu: 0.0.40
codegen_flags: <defaults>
</compile_context>

<pallas_src>
import math

import jax
import jax.numpy as jnp
from jax import lax
from jax.experimental import pallas as pl
from jax.experimental.pallas import tpu as pltpu

_LN_EPS = 1e-5        # torch nn.LayerNorm default
_NORM_EPS = 1e-12     # torch F.normalize default
_SINK_REG = 0.1       # entropic regularization for Sinkhorn (ot.emd surrogate)
_SINK_WARMUP = 2      # full log-domain iterations (stabilization)
_SINK_CHUNKS = 4      # chunks of scaling-domain iterations
_SINK_INNER = 10      # scaling iterations per chunk  (total ~= 2 + 40)
_TINY = 1e-30         # guards against degenerate zero denominators


def _gelu(z):
    # exact (erf-based) GELU, matching torch.nn.functional.gelu / nn.GELU defaults
    return 0.5 * z * (1.0 + lax.erf(z * jnp.float32(1.0 / math.sqrt(2.0))))


def _layernorm(z, w, b):
    mu = jnp.mean(z, axis=-1, keepdims=True)
    var = jnp.mean((z - mu) ** 2, axis=-1, keepdims=True)
    return (z - mu) * lax.rsqrt(var + _LN_EPS) * w + b


def _lse(z, axis):
    m = jnp.max(z, axis=axis, keepdims=True)
    return m + jnp.log(jnp.sum(jnp.exp(z - m), axis=axis, keepdims=True))


def _sinkhorn_plan(cost_s, n):
    """Entropic-OT transport plan with uniform marginals.

    cost_s = standardized cost / eps (pre-scaled -> no divides in the loop).
    Two log-domain warm-up iterations stabilize the potentials; then chunks of
    scaling-domain iterations run against kt = exp(f + g - cost_s) with
    absorption between chunks.  Inside a chunk each update is a single MXU
    matvec ([1,n] @ [n,n]) plus an EUP approx-reciprocal, keeping the strictly
    serial chain off the VPU/XLU."""
    log_marg = -jnp.log(jnp.float32(n))

    def warm_body(_, fg):
        f, g = fg
        f = log_marg - _lse(g - cost_s, axis=1)      # [n, 1]
        g = log_marg - _lse(f - cost_s, axis=0)      # [1, n]
        return f, g

    f0 = jnp.zeros((n, 1), jnp.float32)
    g0 = jnp.zeros((1, n), jnp.float32)
    f, g = lax.fori_loop(0, _SINK_WARMUP, warm_body, (f0, g0), unroll=True)

    inv_n = jnp.float32(1.0 / n)

    def chunk_body(_, fg):
        f, g = fg
        kt = jnp.exp(f + g - cost_s)                 # [n, n] matrix exp, hoisted
        ktT = kt.T                                   # hoisted off the per-iter chain

        def inner_body(_, uv):
            u, v = uv                                # both [1, n] row vectors
            # (K v)_i = sum_j kt[i,j] v[j]  -> plain [1,n]@[n,n] against kt^T
            ku = jnp.dot(v, ktT, preferred_element_type=jnp.float32)
            u = inv_n * pl.reciprocal(jnp.maximum(ku, _TINY), approx=True)
            # (K^T u)_j = sum_i kt[i,j] u[i] -> plain [1,n]@[n,n] against kt
            kv = jnp.dot(u, kt, preferred_element_type=jnp.float32)
            v = inv_n * pl.reciprocal(jnp.maximum(kv, _TINY), approx=True)
            return u, v

        ones_row = jnp.ones((1, n), jnp.float32)
        u, v = lax.fori_loop(0, _SINK_INNER, inner_body, (ones_row, ones_row),
                             unroll=True)
        # absorb scalings back into the (eps-scaled) potentials
        f = f + jnp.log(jnp.maximum(u, _TINY)).T     # [n, 1]
        g = g + jnp.log(jnp.maximum(v, _TINY))       # [1, n]
        return f, g

    f, g = lax.fori_loop(0, _SINK_CHUNKS, chunk_body, (f, g), unroll=True)
    return jnp.exp(f + g - cost_s)                   # [n, n] transport plan


def _tgab_kernel(x_ref, task_ref, wqkv_ref, w_ref, vec_ref, rescale_ref, out_ref):
    # x_ref, task_ref : [n, c] f32      (task == guided_emb, NOT layer-normed)
    # wqkv_ref        : [1, c, cpad]    fused (Wq | Wk | Wv | 0-pad), stored [in, out]
    # w_ref           : [1, 5, c, c]    rows: Wproj, Wpos1, Wpos2, Wff1, Wff2
    # vec_ref         : [1, 9, c]       rows: ln1_w, ln1_b, b_proj, b_pos1, b_pos2,
    #                                         ln2_w, ln2_b, b_ff1, b_ff2
    # rescale_ref     : [num_blocks, 1] SMEM (heads == 1 -> scalar per block)
    # out_ref         : [n, c]          carried across the block grid axis
    blk = pl.program_id(0)

    @pl.when(blk == 0)
    def _():
        out_ref[...] = x_ref[...].astype(jnp.float32)

    x = out_ref[...]                                  # residual stream (VMEM-resident)
    task = task_ref[...].astype(jnp.float32)
    n, c = x.shape

    wqkv = wqkv_ref[0]                                # [c, cpad]
    wrest = w_ref[0]                                  # [5, c, c]
    vec = vec_ref[0]                                  # [9, c]
    ln1_w, ln1_b = vec[0:1, :], vec[1:2, :]
    b_proj = vec[2:3, :]
    b_p1, b_p2 = vec[3:4, :], vec[4:5, :]
    ln2_w, ln2_b = vec[5:6, :], vec[6:7, :]
    b_f1, b_f2 = vec[7:8, :], vec[8:9, :]
    rescale = rescale_ref[blk, 0]

    # ---------------- PreNorm + TG_MSA ----------------
    xn = _layernorm(x, ln1_w, ln1_b)

    qkv = jnp.dot(xn, wqkv, preferred_element_type=jnp.float32)     # [n, cpad] full-lane
    q = qkv[:, 0 * c:1 * c]
    k = qkv[:, 1 * c:2 * c]
    v = qkv[:, 2 * c:3 * c]

    # ot.dist cost matrix: M[i, j] = || task[i] - v[j] ||^2 (sqeuclidean),
    # standardized in one pass (population std) and pre-scaled by 1/eps for Sinkhorn.
    t_sq = jnp.sum(task * task, axis=-1, keepdims=True)             # [n, 1]
    v_sq = jnp.sum(v * v, axis=-1, keepdims=True)                   # [n, 1]
    cross = lax.dot_general(task, v, (((1,), (1,)), ((), ())),      # task @ v.T
                            preferred_element_type=jnp.float32)     # [n, n]
    cost = t_sq + v_sq.T - 2.0 * cross
    m_mean = jnp.mean(cost)
    m_sq = jnp.mean(cost * cost)
    var = jnp.maximum(m_sq - m_mean * m_mean, _TINY)
    cost_s = (cost - m_mean) * (lax.rsqrt(var) * jnp.float32(1.0 / _SINK_REG))

    # TODO(synk): exact ot.emd (network-simplex LP) has no Pallas equivalent; the
    # uniform-marginal transport plan is approximated with stabilized entropic Sinkhorn.
    ges = _sinkhorn_plan(cost_s, n)                                  # [n, n]

    # guided_emb = Ges @ task_x * v
    guided = jnp.dot(ges, task, preferred_element_type=jnp.float32) * v   # [n, c]

    # channel attention (heads == 1): F.normalize of q, k over the token axis,
    # fused into the [c, c] matrix as row/column scalings (no [n,c] passes).
    eps2 = jnp.float32(_NORM_EPS * _NORM_EPS)
    inv_q = lax.rsqrt(jnp.maximum(jnp.sum(q * q, axis=0, keepdims=True), eps2))  # [1,c]
    inv_k = lax.rsqrt(jnp.maximum(jnp.sum(k * k, axis=0, keepdims=True), eps2))  # [1,c]
    raw = jnp.dot(k.T, q, preferred_element_type=jnp.float32)        # [c, c] = k^T q
    attn = raw * (inv_k.T * (inv_q * rescale))                       # row * col scale
    attn = attn - jnp.max(attn, axis=-1, keepdims=True)
    attn = jnp.exp(attn)
    attn = attn * pl.reciprocal(jnp.sum(attn, axis=-1, keepdims=True), approx=True)

    # x = attn @ guided_emb^T  (token-major: guided @ attn.T, rhs-contracted)
    x_msa = lax.dot_general(guided, attn, (((1,), (1,)), ((), ())),
                            preferred_element_type=jnp.float32)      # [n, c]
    out_c = jnp.dot(x_msa, wrest[0], preferred_element_type=jnp.float32) + b_proj
    out_p = jnp.dot(
        _gelu(jnp.dot(v, wrest[1], preferred_element_type=jnp.float32) + b_p1),
        wrest[2], preferred_element_type=jnp.float32) + b_p2

    x1 = x + out_c + out_p                                           # attention residual

    # ---------------- PreNorm + FeedForward ----------------
    xn2 = _layernorm(x1, ln2_w, ln2_b)
    ff = jnp.dot(
        _gelu(jnp.dot(xn2, wrest[3], preferred_element_type=jnp.float32) + b_f1),
        wrest[4], preferred_element_type=jnp.float32) + b_f2
    out_ref[...] = x1 + ff                                           # ff residual


def _tgab_call(x, task, wqkv, wrest, vecs, rescale):
    n, c = x.shape
    nb, _, cpad = wqkv.shape

    # Advisory cost hint: long-latency, near-zero-bandwidth custom call.
    n_iters = _SINK_CHUNKS * _SINK_INNER
    flops = nb * (
        2 * n * c * cpad                    # fused qkv
        + 2 * n * c * n                     # cost cross term
        + n_iters * 4 * n * n               # Sinkhorn matvec pair per iteration
        + (_SINK_WARMUP + _SINK_CHUNKS + 1) * 6 * n * n   # warm-up / kt / plan passes
        + 2 * n * n * c                     # ges @ task
        + 2 * n * c * c                     # k^T q
        + 2 * n * c * c                     # guided @ attn^T
        + 5 * 2 * n * c * c                 # proj / pos / ff matmuls
    )
    transcendentals = nb * (
        (_SINK_WARMUP + _SINK_CHUNKS + 1) * n * n   # matrix exps
        + 6 * n * c                                 # gelu erf + softmax-ish
    )
    bytes_accessed = (
        3 * n * c * 4
        + nb * (c * cpad + 5 * c * c + 9 * c + 1) * 4
    )
    ce = pl.CostEstimate(flops=int(flops),
                         transcendentals=int(transcendentals),
                         bytes_accessed=int(bytes_accessed))

    return pl.pallas_call(
        _tgab_kernel,
        out_shape=jax.ShapeDtypeStruct((n, c), jnp.float32),
        grid_spec=pltpu.PrefetchScalarGridSpec(
            num_scalar_prefetch=0,
            grid=(nb,),
            in_specs=[
                pl.BlockSpec((n, c), lambda b: (0, 0)),              # x (used at blk 0)
                pl.BlockSpec((n, c), lambda b: (0, 0)),              # task / guided_emb
                pl.BlockSpec((1, c, cpad), lambda b: (b, 0, 0)),     # fused Wqkv (padded)
                pl.BlockSpec((1, 5, c, c), lambda b: (b, 0, 0, 0)),  # proj/pos/ff weights
                pl.BlockSpec((1, 9, c), lambda b: (b, 0, 0)),        # LN / bias vectors
                pl.BlockSpec(memory_space=pltpu.MemorySpace.SMEM),   # rescale per block
            ],
            out_specs=pl.BlockSpec((n, c), lambda b: (0, 0)),        # x carried in VMEM
        ),
        compiler_params=pltpu.CompilerParams(
            dimension_semantics=("arbitrary",)),
        cost_estimate=ce,
    )(x, task, wqkv, wrest, vecs, rescale)


def _init_block_params(key, dim):
    """Deterministic init mirroring the module shapes (heads=1, dim_head=dim)."""
    ks = jax.random.split(key, 13)
    bound = 1.0 / math.sqrt(dim)

    def u(k, shape):
        return jax.random.uniform(k, shape, jnp.float32, -bound, bound)

    w_q, w_k, w_v = u(ks[0], (dim, dim)), u(ks[1], (dim, dim)), u(ks[2], (dim, dim))
    w_proj, b_proj = u(ks[3], (dim, dim)), u(ks[4], (dim,))
    w_p1, b_p1 = u(ks[5], (dim, dim)), u(ks[6], (dim,))
    w_p2, b_p2 = u(ks[7], (dim, dim)), u(ks[8], (dim,))
    w_f1, b_f1 = u(ks[9], (dim, dim)), u(ks[10], (dim,))
    w_f2, b_f2 = u(ks[11], (dim, dim)), u(ks[12], (dim,))
    ln1_w = jnp.ones((dim,), jnp.float32)
    ln1_b = jnp.zeros((dim,), jnp.float32)
    ln2_w = jnp.ones((dim,), jnp.float32)
    ln2_b = jnp.zeros((dim,), jnp.float32)
    rescale = jnp.ones((1,), jnp.float32)   # nn.Parameter(torch.ones(heads,1,1)), heads=1

    # Fused Wq|Wk|Wv, zero-padded to a multiple of 128 output lanes (unmasked stores).
    cpad = max(128, ((3 * dim + 127) // 128) * 128)
    wqkv = jnp.concatenate([w_q, w_k, w_v], axis=1)                  # [dim, 3*dim]
    wqkv = jnp.pad(wqkv, ((0, 0), (0, cpad - 3 * dim)))              # [dim, cpad]

    wrest = jnp.stack([w_proj, w_p1, w_p2, w_f1, w_f2])              # [5, dim, dim]
    vecs = jnp.stack([ln1_w, ln1_b, b_proj, b_p1, b_p2,
                      ln2_w, ln2_b, b_f1, b_f2])                     # [9, dim]
    return wqkv, wrest, vecs, rescale


def tgab_forward(x, guided_emb, params):
    """x: [b, n, c]; guided_emb: [b, n, heads*dim_head] == [b, n, c]; b must be 1."""
    wqkv, wrest, vecs, rescale = params
    b, n, c = x.shape
    # TODO(synk): reference TG_MSA (ot.dist on .squeeze()) requires batch == 1;
    # a parallel batch/head grid axis (v7x dual-TC) would only apply for b > 1.
    assert b == 1, "reference TG_MSA (ot.dist .squeeze()) requires batch == 1"
    out = _tgab_call(x[0], guided_emb[0], wqkv, wrest, vecs, rescale)
    return out[None]


if __name__ == "__main__":
    # TGAB(dim=32, dim_head=32, heads=1, num_blocks=2)
    b, n, dim, num_blocks = 1, 64, 32, 2

    key = jax.random.PRNGKey(0)
    k_x, k_g, k_p = jax.random.split(key, 3)
    x = jax.random.normal(k_x, (b, n, dim), jnp.float32)
    guided_emb = jax.random.normal(k_g, (b, n, dim), jnp.float32)

    block_keys = jax.random.split(k_p, num_blocks)
    per_block = [_init_block_params(bk, dim) for bk in block_keys]
    params = (
        jnp.stack([p[0] for p in per_block]),   # [nb, dim, cpad]
        jnp.stack([p[1] for p in per_block]),   # [nb, 5, dim, dim]
        jnp.stack([p[2] for p in per_block]),   # [nb, 9, dim]
        jnp.stack([p[3] for p in per_block]),   # [nb, 1]
    )

    out = tgab_forward(x, guided_emb, params)
    out = jax.block_until_ready(out)
    assert out.shape == (b, n, dim) and jnp.all(jnp.isfinite(out))
    print("KERNEL_OK")
</pallas_src>

<mosaic_0001>
module attributes {stable_mosaic.version = 11 : i64} {
  func.func @_tgab_kernel(%arg0: i32, %arg1: memref<64x32xf32, #tpu.memory_space<vmem>>, %arg2: memref<64x32xf32, #tpu.memory_space<vmem>>, %arg3: memref<1x32x128xf32, #tpu.memory_space<vmem>>, %arg4: memref<1x5x32x32xf32, #tpu.memory_space<vmem>>, %arg5: memref<1x9x32xf32, #tpu.memory_space<vmem>>, %arg6: memref<2x1xf32, #tpu.memory_space<smem>>, %arg7: memref<64x32xf32, #tpu.memory_space<vmem>>) attributes {dimension_semantics = [#tpu.dimension_semantics<arbitrary>], iteration_bounds = array<i64: 2>, scalar_prefetch = 0 : i64, scratch_operands = 0 : i64, tpu.core_type = #tpu.core_type<tc>, window_params = [{pipeline_mode = #tpu.pipeline_mode<synchronous>, transform_indices = @transform_0, window_bounds = array<i64: 64, 32>}, {pipeline_mode = #tpu.pipeline_mode<synchronous>, transform_indices = @transform_1, window_bounds = array<i64: 64, 32>}, {transform_indices = @transform_2, window_bounds = array<i64: 1, 32, 128>}, {transform_indices = @transform_3, window_bounds = array<i64: 1, 5, 32, 32>}, {transform_indices = @transform_4, window_bounds = array<i64: 1, 9, 32>}, {transform_indices = @transform_5, window_bounds = array<i64: 2, 1>}, {pipeline_mode = #tpu.pipeline_mode<synchronous>, transform_indices = @transform_6, window_bounds = array<i64: 64, 32>}]} {
    %c0_i32 = arith.constant 0 : i32
    %0 = arith.cmpi eq, %arg0, %c0_i32 : i32
    %1 = arith.extui %0 : i1 to i32
    %c0_i32_0 = arith.constant 0 : i32
    %2 = arith.cmpi ne, %1, %c0_i32_0 : i32
    scf.if %2 {
      %c0_279 = arith.constant 0 : index
      %c0_280 = arith.constant 0 : index
      %788 = vector.load %arg1[%c0_279, %c0_280] : memref<64x32xf32, #tpu.memory_space<vmem>>, vector<64x32xf32>
      %c0_281 = arith.constant 0 : index
      %c0_282 = arith.constant 0 : index
      %789 = vector.load %arg7[%c0_281, %c0_282] : memref<64x32xf32, #tpu.memory_space<vmem>>, vector<64x32xf32>
      tpu.vector_store %arg7[%c0_281, %c0_282], %788 {strides = array<i32>} : memref<64x32xf32, #tpu.memory_space<vmem>>, vector<64x32xf32>,
    } else {
    }
    %c0 = arith.constant 0 : index
    %c0_1 = arith.constant 0 : index
    %3 = vector.load %arg7[%c0, %c0_1] : memref<64x32xf32, #tpu.memory_space<vmem>>, vector<64x32xf32>
    %c0_2 = arith.constant 0 : index
    %c0_3 = arith.constant 0 : index
    %4 = vector.load %arg2[%c0_2, %c0_3] : memref<64x32xf32, #tpu.memory_space<vmem>>, vector<64x32xf32>
    %c0_4 = arith.constant 0 : index
    %c0_5 = arith.constant 0 : index
    %c0_6 = arith.constant 0 : index
    %5 = vector.load %arg3[%c0_4, %c0_5, %c0_6] : memref<1x32x128xf32, #tpu.memory_space<vmem>>, vector<1x32x128xf32>
    %6 = vector.shape_cast %5 : vector<1x32x128xf32> to vector<32x128xf32>
    %c0_7 = arith.constant 0 : index
    %c0_8 = arith.constant 0 : index
    %c0_9 = arith.constant 0 : index
    %c0_10 = arith.constant 0 : index
    %7 = vector.load %arg4[%c0_7, %c0_8, %c0_9, %c0_10] : memref<1x5x32x32xf32, #tpu.memory_space<vmem>>, vector<1x5x32x32xf32>
    %8 = vector.shape_cast %7 : vector<1x5x32x32xf32> to vector<5x32x32xf32>
    %c0_11 = arith.constant 0 : index
    %c0_12 = arith.constant 0 : index
    %c0_13 = arith.constant 0 : index
    %9 = vector.load %arg5[%c0_11, %c0_12, %c0_13] : memref<1x9x32xf32, #tpu.memory_space<vmem>>, vector<1x9x32xf32>
    %10 = vector.shape_cast %9 : vector<1x9x32xf32> to vector<9x32xf32>
    %11 = vector.extract_strided_slice %10 {offsets = [0, 0], sizes = [1, 32], strides = [1, 1]} : vector<9x32xf32> to vector<1x32xf32>
    %12 = vector.extract_strided_slice %10 {offsets = [1, 0], sizes = [1, 32], strides = [1, 1]} : vector<9x32xf32> to vector<1x32xf32>
    %13 = vector.extract_strided_slice %10 {offsets = [2, 0], sizes = [1, 32], strides = [1, 1]} : vector<9x32xf32> to vector<1x32xf32>
    %14 = vector.extract_strided_slice %10 {offsets = [3, 0], sizes = [1, 32], strides = [1, 1]} : vector<9x32xf32> to vector<1x32xf32>
    %15 = vector.extract_strided_slice %10 {offsets = [4, 0], sizes = [1, 32], strides = [1, 1]} : vector<9x32xf32> to vector<1x32xf32>
    %16 = vector.extract_strided_slice %10 {offsets = [5, 0], sizes = [1, 32], strides = [1, 1]} : vector<9x32xf32> to vector<1x32xf32>
    %17 = vector.extract_strided_slice %10 {offsets = [6, 0], sizes = [1, 32], strides = [1, 1]} : vector<9x32xf32> to vector<1x32xf32>
    %18 = vector.extract_strided_slice %10 {offsets = [7, 0], sizes = [1, 32], strides = [1, 1]} : vector<9x32xf32> to vector<1x32xf32>
    %19 = vector.extract_strided_slice %10 {offsets = [8, 0], sizes = [1, 32], strides = [1, 1]} : vector<9x32xf32> to vector<1x32xf32>
    %20 = arith.index_cast %arg0 : i32 to index
    %c0_14 = arith.constant 0 : index
    %21 = memref.load %arg6[%20, %c0_14] : memref<2x1xf32, #tpu.memory_space<smem>>
    %cst = arith.constant dense<0.000000e+00> : vector<64xf32>
    %22 = vector.multi_reduction <add>, %3, %cst [1] : vector<64x32xf32> to vector<64xf32>
    %23 = vector.shape_cast %22 : vector<64xf32> to vector<64x1xf32>
    %cst_15 = arith.constant 3.200000e+01 : f32
    %24 = vector.broadcast %cst_15 : f32 to vector<64x1xf32>
    %25 = arith.divf %23, %24 : vector<64x1xf32>
    %26 = vector.broadcast %25 : vector<64x1xf32> to vector<64x32xf32>
    %27 = arith.subf %3, %26 : vector<64x32xf32>
    %28 = arith.mulf %27, %27 : vector<64x32xf32>
    %cst_16 = arith.constant dense<0.000000e+00> : vector<64xf32>
    %29 = vector.multi_reduction <add>, %28, %cst_16 [1] : vector<64x32xf32> to vector<64xf32>
    %30 = vector.shape_cast %29 : vector<64xf32> to vector<64x1xf32>
    %cst_17 = arith.constant 3.200000e+01 : f32
    %31 = vector.broadcast %cst_17 : f32 to vector<64x1xf32>
    %32 = arith.divf %30, %31 : vector<64x1xf32>
    %33 = vector.broadcast %25 : vector<64x1xf32> to vector<64x32xf32>
    %34 = arith.subf %3, %33 : vector<64x32xf32>
    %cst_18 = arith.constant 9.99999974E-6 : f32
    %35 = vector.broadcast %cst_18 : f32 to vector<64x1xf32>
    %36 = arith.addf %32, %35 : vector<64x1xf32>
    %37 = math.rsqrt %36 : vector<64x1xf32>
    %38 = vector.broadcast %37 : vector<64x1xf32> to vector<64x32xf32>
    %39 = arith.mulf %34, %38 : vector<64x32xf32>
    %40 = vector.broadcast %11 : vector<1x32xf32> to vector<64x32xf32>
    %41 = arith.mulf %39, %40 : vector<64x32xf32>
    %42 = vector.broadcast %12 : vector<1x32xf32> to vector<64x32xf32>
    %43 = arith.addf %41, %42 : vector<64x32xf32>
    %cst_19 = arith.constant dense<0.000000e+00> : vector<64x128xf32>
    %44 = tpu.matmul %43, %6, %cst_19 {dimension_numbers = #tpu.dot_dimension_numbers<[1], [0], [0], [1], [0, 0, 1, 1], [], []>} : vector<64x32xf32>, vector<32x128xf32>, vector<64x128xf32> -> vector<64x128xf32>
    %45 = vector.extract_strided_slice %44 {offsets = [0, 0], sizes = [64, 32], strides = [1, 1]} : vector<64x128xf32> to vector<64x32xf32>
    %46 = vector.extract_strided_slice %44 {offsets = [0, 32], sizes = [64, 32], strides = [1, 1]} : vector<64x128xf32> to vector<64x32xf32>
    %47 = vector.extract_strided_slice %44 {offsets = [0, 64], sizes = [64, 32], strides = [1, 1]} : vector<64x128xf32> to vector<64x32xf32>
    %48 = arith.mulf %4, %4 : vector<64x32xf32>
    %cst_20 = arith.constant dense<0.000000e+00> : vector<64xf32>
    %49 = vector.multi_reduction <add>, %48, %cst_20 [1] : vector<64x32xf32> to vector<64xf32>
    %50 = vector.shape_cast %49 : vector<64xf32> to vector<64x1xf32>
    %51 = arith.mulf %47, %47 : vector<64x32xf32>
    %cst_21 = arith.constant dense<0.000000e+00> : vector<64xf32>
    %52 = vector.multi_reduction <add>, %51, %cst_21 [1] : vector<64x32xf32> to vector<64xf32>
    %53 = vector.shape_cast %52 : vector<64xf32> to vector<64x1xf32>
    %cst_22 = arith.constant dense<0.000000e+00> : vector<64x64xf32>
    %54 = tpu.matmul %4, %47, %cst_22 {dimension_numbers = #tpu.dot_dimension_numbers<[1], [1], [0], [0], [0, 0, 1, 0], [], []>} : vector<64x32xf32>, vector<64x32xf32>, vector<64x64xf32> -> vector<64x64xf32>
    %55 = tpu.transpose %53, [1, 0] : vector<64x1xf32> -> vector<1x64xf32>
    %56 = vector.broadcast %50 : vector<64x1xf32> to vector<64x64xf32>
    %57 = vector.broadcast %55 : vector<1x64xf32> to vector<64x64xf32>
    %58 = arith.addf %56, %57 : vector<64x64xf32>
    %cst_23 = arith.constant 2.000000e+00 : f32
    %59 = vector.broadcast %cst_23 : f32 to vector<64x64xf32>
    %60 = arith.mulf %59, %54 : vector<64x64xf32>
    %61 = arith.subf %58, %60 : vector<64x64xf32>
    %62 = vector.shape_cast %61 : vector<64x64xf32> to vector<1x64x64xf32>
    %cst_24 = arith.constant dense<0.000000e+00> : vector<1xf32>
    %63 = vector.multi_reduction <add>, %62, %cst_24 [1, 2] : vector<1x64x64xf32> to vector<1xf32>
    %64 = vector.shape_cast %63 : vector<1xf32> to vector<1x1x1xf32>
    %65 = vector.extract %64[0, 0, 0] : f32 from vector<1x1x1xf32>
    %cst_25 = arith.constant 4.096000e+03 : f32
    %66 = arith.divf %65, %cst_25 : f32
    %67 = arith.mulf %61, %61 : vector<64x64xf32>
    %68 = vector.shape_cast %67 : vector<64x64xf32> to vector<1x64x64xf32>
    %cst_26 = arith.constant dense<0.000000e+00> : vector<1xf32>
    %69 = vector.multi_reduction <add>, %68, %cst_26 [1, 2] : vector<1x64x64xf32> to vector<1xf32>
    %70 = vector.shape_cast %69 : vector<1xf32> to vector<1x1x1xf32>
    %71 = vector.extract %70[0, 0, 0] : f32 from vector<1x1x1xf32>
    %cst_27 = arith.constant 4.096000e+03 : f32
    %72 = arith.divf %71, %cst_27 : f32
    %73 = arith.mulf %66, %66 : f32
    %74 = arith.subf %72, %73 : f32
    %cst_28 = arith.constant 1.000000e-30 : f32
    %75 = arith.maximumf %74, %cst_28 : f32
    %76 = vector.broadcast %66 : f32 to vector<64x64xf32>
    %77 = arith.subf %61, %76 : vector<64x64xf32>
    %78 = math.rsqrt %75 : f32
    %cst_29 = arith.constant 1.000000e+01 : f32
    %79 = arith.mulf %78, %cst_29 : f32
    %80 = vector.broadcast %79 : f32 to vector<64x64xf32>
    %81 = arith.mulf %77, %80 : vector<64x64xf32>
    %cst_30 = arith.constant 6.400000e+01 : f32
    %82 = math.log %cst_30 : f32
    %cst_31 = arith.constant 0.000000e+00 : f32
    %83 = arith.subf %cst_31, %82 : f32
    %cst_32 = arith.constant 0.000000e+00 : f32
    %84 = vector.broadcast %cst_32 : f32 to vector<64x1xf32>
    %cst_33 = arith.constant 0.000000e+00 : f32
    %85 = vector.broadcast %cst_33 : f32 to vector<1x64xf32>
    %c0_i32_34 = arith.constant 0 : i32
    %86 = vector.broadcast %85 : vector<1x64xf32> to vector<64x64xf32>
    %87 = arith.subf %86, %81 : vector<64x64xf32>
    %cst_35 = arith.constant dense<0xFF800000> : vector<64xf32>
    %88 = vector.multi_reduction <maximumf>, %87, %cst_35 [1] : vector<64x64xf32> to vector<64xf32>
    %89 = vector.shape_cast %88 : vector<64xf32> to vector<64x1xf32>
    %90 = vector.broadcast %89 : vector<64x1xf32> to vector<64x64xf32>
    %91 = arith.subf %87, %90 : vector<64x64xf32>
    %92 = math.exp %91 : vector<64x64xf32>
    %cst_36 = arith.constant dense<0.000000e+00> : vector<64xf32>
    %93 = vector.multi_reduction <add>, %92, %cst_36 [1] : vector<64x64xf32> to vector<64xf32>
    %94 = vector.shape_cast %93 : vector<64xf32> to vector<64x1xf32>
    %95 = math.log %94 : vector<64x1xf32>
    %96 = arith.addf %89, %95 : vector<64x1xf32>
    %97 = vector.broadcast %83 : f32 to vector<64x1xf32>
    %98 = arith.subf %97, %96 : vector<64x1xf32>
    %99 = vector.broadcast %98 : vector<64x1xf32> to vector<64x64xf32>
    %100 = arith.subf %99, %81 : vector<64x64xf32>
    %cst_37 = arith.constant dense<0xFF800000> : vector<64xf32>
    %101 = vector.multi_reduction <maximumf>, %100, %cst_37 [0] : vector<64x64xf32> to vector<64xf32>
    %102 = vector.shape_cast %101 : vector<64xf32> to vector<1x64xf32>
    %103 = vector.broadcast %102 : vector<1x64xf32> to vector<64x64xf32>
    %104 = arith.subf %100, %103 : vector<64x64xf32>
    %105 = math.exp %104 : vector<64x64xf32>
    %cst_38 = arith.constant dense<0.000000e+00> : vector<64xf32>
    %106 = vector.multi_reduction <add>, %105, %cst_38 [0] : vector<64x64xf32> to vector<64xf32>
    %107 = vector.shape_cast %106 : vector<64xf32> to vector<1x64xf32>
    %108 = math.log %107 : vector<1x64xf32>
    %109 = arith.addf %102, %108 : vector<1x64xf32>
    %110 = vector.broadcast %83 : f32 to vector<1x64xf32>
    %111 = arith.subf %110, %109 : vector<1x64xf32>
    %c1_i32 = arith.constant 1 : i32
    %112 = vector.broadcast %111 : vector<1x64xf32> to vector<64x64xf32>
    %113 = arith.subf %112, %81 : vector<64x64xf32>
    %cst_39 = arith.constant dense<0xFF800000> : vector<64xf32>
    %114 = vector.multi_reduction <maximumf>, %113, %cst_39 [1] : vector<64x64xf32> to vector<64xf32>
    %115 = vector.shape_cast %114 : vector<64xf32> to vector<64x1xf32>
    %116 = vector.broadcast %115 : vector<64x1xf32> to vector<64x64xf32>
    %117 = arith.subf %113, %116 : vector<64x64xf32>
    %118 = math.exp %117 : vector<64x64xf32>
    %cst_40 = arith.constant dense<0.000000e+00> : vector<64xf32>
    %119 = vector.multi_reduction <add>, %118, %cst_40 [1] : vector<64x64xf32> to vector<64xf32>
    %120 = vector.shape_cast %119 : vector<64xf32> to vector<64x1xf32>
    %121 = math.log %120 : vector<64x1xf32>
    %122 = arith.addf %115, %121 : vector<64x1xf32>
    %123 = vector.broadcast %83 : f32 to vector<64x1xf32>
    %124 = arith.subf %123, %122 : vector<64x1xf32>
    %125 = vector.broadcast %124 : vector<64x1xf32> to vector<64x64xf32>
    %126 = arith.subf %125, %81 : vector<64x64xf32>
    %cst_41 = arith.constant dense<0xFF800000> : vector<64xf32>
    %127 = vector.multi_reduction <maximumf>, %126, %cst_41 [0] : vector<64x64xf32> to vector<64xf32>
    %128 = vector.shape_cast %127 : vector<64xf32> to vector<1x64xf32>
    %129 = vector.broadcast %128 : vector<1x64xf32> to vector<64x64xf32>
    %130 = arith.subf %126, %129 : vector<64x64xf32>
    %131 = math.exp %130 : vector<64x64xf32>
    %cst_42 = arith.constant dense<0.000000e+00> : vector<64xf32>
    %132 = vector.multi_reduction <add>, %131, %cst_42 [0] : vector<64x64xf32> to vector<64xf32>
    %133 = vector.shape_cast %132 : vector<64xf32> to vector<1x64xf32>
    %134 = math.log %133 : vector<1x64xf32>
    %135 = arith.addf %128, %134 : vector<1x64xf32>
    %136 = vector.broadcast %83 : f32 to vector<1x64xf32>
    %137 = arith.subf %136, %135 : vector<1x64xf32>
    %cst_43 = arith.constant 1.562500e-02 : f32
    %c0_i32_44 = arith.constant 0 : i32
    %138 = vector.broadcast %124 : vector<64x1xf32> to vector<64x64xf32>
    %139 = vector.broadcast %137 : vector<1x64xf32> to vector<64x64xf32>
    %140 = arith.addf %138, %139 : vector<64x64xf32>
    %141 = arith.subf %140, %81 : vector<64x64xf32>
    %142 = math.exp %141 : vector<64x64xf32>
    %143 = tpu.transpose %142, [1, 0] : vector<64x64xf32> -> vector<64x64xf32>
    %cst_45 = arith.constant 1.000000e+00 : f32
    %144 = vector.broadcast %cst_45 : f32 to vector<1x64xf32>
    %c0_i32_46 = arith.constant 0 : i32
    %cst_47 = arith.constant dense<0.000000e+00> : vector<1x64xf32>
    %145 = tpu.matmul %144, %143, %cst_47 {dimension_numbers = #tpu.dot_dimension_numbers<[1], [0], [0], [1], [0, 0, 1, 1], [], []>} : vector<1x64xf32>, vector<64x64xf32>, vector<1x64xf32> -> vector<1x64xf32>
    %cst_48 = arith.constant 1.000000e-30 : f32
    %146 = vector.broadcast %cst_48 : f32 to vector<1x64xf32>
    %147 = arith.maximumf %145, %146 : vector<1x64xf32>
    %148 = tpu.reciprocal %147 {approx = true} : vector<1x64xf32> -> vector<1x64xf32>
    %149 = vector.broadcast %cst_43 : f32 to vector<1x64xf32>
    %150 = arith.mulf %149, %148 : vector<1x64xf32>
    %cst_49 = arith.constant dense<0.000000e+00> : vector<1x64xf32>
    %151 = tpu.matmul %150, %142, %cst_49 {dimension_numbers = #tpu.dot_dimension_numbers<[1], [0], [0], [1], [0, 0, 1, 1], [], []>} : vector<1x64xf32>, vector<64x64xf32>, vector<1x64xf32> -> vector<1x64xf32>
    %cst_50 = arith.constant 1.000000e-30 : f32
    %152 = vector.broadcast %cst_50 : f32 to vector<1x64xf32>
    %153 = arith.maximumf %151, %152 : vector<1x64xf32>
    %154 = tpu.reciprocal %153 {approx = true} : vector<1x64xf32> -> vector<1x64xf32>
    %155 = vector.broadcast %cst_43 : f32 to vector<1x64xf32>
    %156 = arith.mulf %155, %154 : vector<1x64xf32>
    %c1_i32_51 = arith.constant 1 : i32
    %cst_52 = arith.constant dense<0.000000e+00> : vector<1x64xf32>
    %157 = tpu.matmul %156, %143, %cst_52 {dimension_numbers = #tpu.dot_dimension_numbers<[1], [0], [0], [1], [0, 0, 1, 1], [], []>} : vector<1x64xf32>, vector<64x64xf32>, vector<1x64xf32> -> vector<1x64xf32>
    %cst_53 = arith.constant 1.000000e-30 : f32
    %158 = vector.broadcast %cst_53 : f32 to vector<1x64xf32>
    %159 = arith.maximumf %157, %158 : vector<1x64xf32>
    %160 = tpu.reciprocal %159 {approx = true} : vector<1x64xf32> -> vector<1x64xf32>
    %161 = vector.broadcast %cst_43 : f32 to vector<1x64xf32>
    %162 = arith.mulf %161, %160 : vector<1x64xf32>
    %cst_54 = arith.constant dense<0.000000e+00> : vector<1x64xf32>
    %163 = tpu.matmul %162, %142, %cst_54 {dimension_numbers = #tpu.dot_dimension_numbers<[1], [0], [0], [1], [0, 0, 1, 1], [], []>} : vector<1x64xf32>, vector<64x64xf32>, vector<1x64xf32> -> vector<1x64xf32>
    %cst_55 = arith.constant 1.000000e-30 : f32
    %164 = vector.broadcast %cst_55 : f32 to vector<1x64xf32>
    %165 = arith.maximumf %163, %164 : vector<1x64xf32>
    %166 = tpu.reciprocal %165 {approx = true} : vector<1x64xf32> -> vector<1x64xf32>
    %167 = vector.broadcast %cst_43 : f32 to vector<1x64xf32>
    %168 = arith.mulf %167, %166 : vector<1x64xf32>
    %c2_i32 = arith.constant 2 : i32
    %cst_56 = arith.constant dense<0.000000e+00> : vector<1x64xf32>
    %169 = tpu.matmul %168, %143, %cst_56 {dimension_numbers = #tpu.dot_dimension_numbers<[1], [0], [0], [1], [0, 0, 1, 1], [], []>} : vector<1x64xf32>, vector<64x64xf32>, vector<1x64xf32> -> vector<1x64xf32>
    %cst_57 = arith.constant 1.000000e-30 : f32
    %170 = vector.broadcast %cst_57 : f32 to vector<1x64xf32>
    %171 = arith.maximumf %169, %170 : vector<1x64xf32>
    %172 = tpu.reciprocal %171 {approx = true} : vector<1x64xf32> -> vector<1x64xf32>
    %173 = vector.broadcast %cst_43 : f32 to vector<1x64xf32>
    %174 = arith.mulf %173, %172 : vector<1x64xf32>
    %cst_58 = arith.constant dense<0.000000e+00> : vector<1x64xf32>
    %175 = tpu.matmul %174, %142, %cst_58 {dimension_numbers = #tpu.dot_dimension_numbers<[1], [0], [0], [1], [0, 0, 1, 1], [], []>} : vector<1x64xf32>, vector<64x64xf32>, vector<1x64xf32> -> vector<1x64xf32>
    %cst_59 = arith.constant 1.000000e-30 : f32
    %176 = vector.broadcast %cst_59 : f32 to vector<1x64xf32>
    %177 = arith.maximumf %175, %176 : vector<1x64xf32>
    %178 = tpu.reciprocal %177 {approx = true} : vector<1x64xf32> -> vector<1x64xf32>
    %179 = vector.broadcast %cst_43 : f32 to vector<1x64xf32>
    %180 = arith.mulf %179, %178 : vector<1x64xf32>
    %c3_i32 = arith.constant 3 : i32
    %cst_60 = arith.constant dense<0.000000e+00> : vector<1x64xf32>
    %181 = tpu.matmul %180, %143, %cst_60 {dimension_numbers = #tpu.dot_dimension_numbers<[1], [0], [0], [1], [0, 0, 1, 1], [], []>} : vector<1x64xf32>, vector<64x64xf32>, vector<1x64xf32> -> vector<1x64xf32>
    %cst_61 = arith.constant 1.000000e-30 : f32
    %182 = vector.broadcast %cst_61 : f32 to vector<1x64xf32>
    %183 = arith.maximumf %181, %182 : vector<1x64xf32>
    %184 = tpu.reciprocal %183 {approx = true} : vector<1x64xf32> -> vector<1x64xf32>
    %185 = vector.broadcast %cst_43 : f32 to vector<1x64xf32>
    %186 = arith.mulf %185, %184 : vector<1x64xf32>
    %cst_62 = arith.constant dense<0.000000e+00> : vector<1x64xf32>
    %187 = tpu.matmul %186, %142, %cst_62 {dimension_numbers = #tpu.dot_dimension_numbers<[1], [0], [0], [1], [0, 0, 1, 1], [], []>} : vector<1x64xf32>, vector<64x64xf32>, vector<1x64xf32> -> vector<1x64xf32>
    %cst_63 = arith.constant 1.000000e-30 : f32
    %188 = vector.broadcast %cst_63 : f32 to vector<1x64xf32>
    %189 = arith.maximumf %187, %188 : vector<1x64xf32>
    %190 = tpu.reciprocal %189 {approx = true} : vector<1x64xf32> -> vector<1x64xf32>
    %191 = vector.broadcast %cst_43 : f32 to vector<1x64xf32>
    %192 = arith.mulf %191, %190 : vector<1x64xf32>
    %c4_i32 = arith.constant 4 : i32
    %cst_64 = arith.constant dense<0.000000e+00> : vector<1x64xf32>
    %193 = tpu.matmul %192, %143, %cst_64 {dimension_numbers = #tpu.dot_dimension_numbers<[1], [0], [0], [1], [0, 0, 1, 1], [], []>} : vector<1x64xf32>, vector<64x64xf32>, vector<1x64xf32> -> vector<1x64xf32>
    %cst_65 = arith.constant 1.000000e-30 : f32
    %194 = vector.broadcast %cst_65 : f32 to vector<1x64xf32>
    %195 = arith.maximumf %193, %194 : vector<1x64xf32>
    %196 = tpu.reciprocal %195 {approx = true} : vector<1x64xf32> -> vector<1x64xf32>
    %197 = vector.broadcast %cst_43 : f32 to vector<1x64xf32>
    %198 = arith.mulf %197, %196 : vector<1x64xf32>
    %cst_66 = arith.constant dense<0.000000e+00> : vector<1x64xf32>
    %199 = tpu.matmul %198, %142, %cst_66 {dimension_numbers = #tpu.dot_dimension_numbers<[1], [0], [0], [1], [0, 0, 1, 1], [], []>} : vector<1x64xf32>, vector<64x64xf32>, vector<1x64xf32> -> vector<1x64xf32>
    %cst_67 = arith.constant 1.000000e-30 : f32
    %200 = vector.broadcast %cst_67 : f32 to vector<1x64xf32>
    %201 = arith.maximumf %199, %200 : vector<1x64xf32>
    %202 = tpu.reciprocal %201 {approx = true} : vector<1x64xf32> -> vector<1x64xf32>
    %203 = vector.broadcast %cst_43 : f32 to vector<1x64xf32>
    %204 = arith.mulf %203, %202 : vector<1x64xf32>
    %c5_i32 = arith.constant 5 : i32
    %cst_68 = arith.constant dense<0.000000e+00> : vector<1x64xf32>
    %205 = tpu.matmul %204, %143, %cst_68 {dimension_numbers = #tpu.dot_dimension_numbers<[1], [0], [0], [1], [0, 0, 1, 1], [], []>} : vector<1x64xf32>, vector<64x64xf32>, vector<1x64xf32> -> vector<1x64xf32>
    %cst_69 = arith.constant 1.000000e-30 : f32
    %206 = vector.broadcast %cst_69 : f32 to vector<1x64xf32>
    %207 = arith.maximumf %205, %206 : vector<1x64xf32>
    %208 = tpu.reciprocal %207 {approx = true} : vector<1x64xf32> -> vector<1x64xf32>
    %209 = vector.broadcast %cst_43 : f32 to vector<1x64xf32>
    %210 = arith.mulf %209, %208 : vector<1x64xf32>
    %cst_70 = arith.constant dense<0.000000e+00> : vector<1x64xf32>
    %211 = tpu.matmul %210, %142, %cst_70 {dimension_numbers = #tpu.dot_dimension_numbers<[1], [0], [0], [1], [0, 0, 1, 1], [], []>} : vector<1x64xf32>, vector<64x64xf32>, vector<1x64xf32> -> vector<1x64xf32>
    %cst_71 = arith.constant 1.000000e-30 : f32
    %212 = vector.broadcast %cst_71 : f32 to vector<1x64xf32>
    %213 = arith.maximumf %211, %212 : vector<1x64xf32>
    %214 = tpu.reciprocal %213 {approx = true} : vector<1x64xf32> -> vector<1x64xf32>
    %215 = vector.broadcast %cst_43 : f32 to vector<1x64xf32>
    %216 = arith.mulf %215, %214 : vector<1x64xf32>
    %c6_i32 = arith.constant 6 : i32
    %cst_72 = arith.constant dense<0.000000e+00> : vector<1x64xf32>
    %217 = tpu.matmul %216, %143, %cst_72 {dimension_numbers = #tpu.dot_dimension_numbers<[1], [0], [0], [1], [0, 0, 1, 1], [], []>} : vector<1x64xf32>, vector<64x64xf32>, vector<1x64xf32> -> vector<1x64xf32>
    %cst_73 = arith.constant 1.000000e-30 : f32
    %218 = vector.broadcast %cst_73 : f32 to vector<1x64xf32>
    %219 = arith.maximumf %217, %218 : vector<1x64xf32>
    %220 = tpu.reciprocal %219 {approx = true} : vector<1x64xf32> -> vector<1x64xf32>
    %221 = vector.broadcast %cst_43 : f32 to vector<1x64xf32>
    %222 = arith.mulf %221, %220 : vector<1x64xf32>
    %cst_74 = arith.constant dense<0.000000e+00> : vector<1x64xf32>
    %223 = tpu.matmul %222, %142, %cst_74 {dimension_numbers = #tpu.dot_dimension_numbers<[1], [0], [0], [1], [0, 0, 1, 1], [], []>} : vector<1x64xf32>, vector<64x64xf32>, vector<1x64xf32> -> vector<1x64xf32>
    %cst_75 = arith.constant 1.000000e-30 : f32
    %224 = vector.broadcast %cst_75 : f32 to vector<1x64xf32>
    %225 = arith.maximumf %223, %224 : vector<1x64xf32>
    %226 = tpu.reciprocal %225 {approx = true} : vector<1x64xf32> -> vector<1x64xf32>
    %227 = vector.broadcast %cst_43 : f32 to vector<1x64xf32>
    %228 = arith.mulf %227, %226 : vector<1x64xf32>
    %c7_i32 = arith.constant 7 : i32
    %cst_76 = arith.constant dense<0.000000e+00> : vector<1x64xf32>
    %229 = tpu.matmul %228, %143, %cst_76 {dimension_numbers = #tpu.dot_dimension_numbers<[1], [0], [0], [1], [0, 0, 1, 1], [], []>} : vector<1x64xf32>, vector<64x64xf32>, vector<1x64xf32> -> vector<1x64xf32>
    %cst_77 = arith.constant 1.000000e-30 : f32
    %230 = vector.broadcast %cst_77 : f32 to vector<1x64xf32>
    %231 = arith.maximumf %229, %230 : vector<1x64xf32>
    %232 = tpu.reciprocal %231 {approx = true} : vector<1x64xf32> -> vector<1x64xf32>
    %233 = vector.broadcast %cst_43 : f32 to vector<1x64xf32>
    %234 = arith.mulf %233, %232 : vector<1x64xf32>
    %cst_78 = arith.constant dense<0.000000e+00> : vector<1x64xf32>
    %235 = tpu.matmul %234, %142, %cst_78 {dimension_numbers = #tpu.dot_dimension_numbers<[1], [0], [0], [1], [0, 0, 1, 1], [], []>} : vector<1x64xf32>, vector<64x64xf32>, vector<1x64xf32> -> vector<1x64xf32>
    %cst_79 = arith.constant 1.000000e-30 : f32
    %236 = vector.broadcast %cst_79 : f32 to vector<1x64xf32>
    %237 = arith.maximumf %235, %236 : vector<1x64xf32>
    %238 = tpu.reciprocal %237 {approx = true} : vector<1x64xf32> -> vector<1x64xf32>
    %239 = vector.broadcast %cst_43 : f32 to vector<1x64xf32>
    %240 = arith.mulf %239, %238 : vector<1x64xf32>
    %c8_i32 = arith.constant 8 : i32
    %cst_80 = arith.constant dense<0.000000e+00> : vector<1x64xf32>
    %241 = tpu.matmul %240, %143, %cst_80 {dimension_numbers = #tpu.dot_dimension_numbers<[1], [0], [0], [1], [0, 0, 1, 1], [], []>} : vector<1x64xf32>, vector<64x64xf32>, vector<1x64xf32> -> vector<1x64xf32>
    %cst_81 = arith.constant 1.000000e-30 : f32
    %242 = vector.broadcast %cst_81 : f32 to vector<1x64xf32>
    %243 = arith.maximumf %241, %242 : vector<1x64xf32>
    %244 = tpu.reciprocal %243 {approx = true} : vector<1x64xf32> -> vector<1x64xf32>
    %245 = vector.broadcast %cst_43 : f32 to vector<1x64xf32>
    %246 = arith.mulf %245, %244 : vector<1x64xf32>
    %cst_82 = arith.constant dense<0.000000e+00> : vector<1x64xf32>
    %247 = tpu.matmul %246, %142, %cst_82 {dimension_numbers = #tpu.dot_dimension_numbers<[1], [0], [0], [1], [0, 0, 1, 1], [], []>} : vector<1x64xf32>, vector<64x64xf32>, vector<1x64xf32> -> vector<1x64xf32>
    %cst_83 = arith.constant 1.000000e-30 : f32
    %248 = vector.broadcast %cst_83 : f32 to vector<1x64xf32>
    %249 = arith.maximumf %247, %248 : vector<1x64xf32>
    %250 = tpu.reciprocal %249 {approx = true} : vector<1x64xf32> -> vector<1x64xf32>
    %251 = vector.broadcast %cst_43 : f32 to vector<1x64xf32>
    %252 = arith.mulf %251, %250 : vector<1x64xf32>
    %c9_i32 = arith.constant 9 : i32
    %cst_84 = arith.constant dense<0.000000e+00> : vector<1x64xf32>
    %253 = tpu.matmul %252, %143, %cst_84 {dimension_numbers = #tpu.dot_dimension_numbers<[1], [0], [0], [1], [0, 0, 1, 1], [], []>} : vector<1x64xf32>, vector<64x64xf32>, vector<1x64xf32> -> vector<1x64xf32>
    %cst_85 = arith.constant 1.000000e-30 : f32
    %254 = vector.broadcast %cst_85 : f32 to vector<1x64xf32>
    %255 = arith.maximumf %253, %254 : vector<1x64xf32>
    %256 = tpu.reciprocal %255 {approx = true} : vector<1x64xf32> -> vector<1x64xf32>
    %257 = vector.broadcast %cst_43 : f32 to vector<1x64xf32>
    %258 = arith.mulf %257, %256 : vector<1x64xf32>
    %cst_86 = arith.constant dense<0.000000e+00> : vector<1x64xf32>
    %259 = tpu.matmul %258, %142, %cst_86 {dimension_numbers = #tpu.dot_dimension_numbers<[1], [0], [0], [1], [0, 0, 1, 1], [], []>} : vector<1x64xf32>, vector<64x64xf32>, vector<1x64xf32> -> vector<1x64xf32>
    %cst_87 = arith.constant 1.000000e-30 : f32
    %260 = vector.broadcast %cst_87 : f32 to vector<1x64xf32>
    %261 = arith.maximumf %259, %260 : vector<1x64xf32>
    %262 = tpu.reciprocal %261 {approx = true} : vector<1x64xf32> -> vector<1x64xf32>
    %263 = vector.broadcast %cst_43 : f32 to vector<1x64xf32>
    %264 = arith.mulf %263, %262 : vector<1x64xf32>
    %cst_88 = arith.constant 1.000000e-30 : f32
    %265 = vector.broadcast %cst_88 : f32 to vector<1x64xf32>
    %266 = arith.maximumf %258, %265 : vector<1x64xf32>
    %267 = math.log %266 : vector<1x64xf32>
    %268 = tpu.transpose %267, [1, 0] : vector<1x64xf32> -> vector<64x1xf32>
    %269 = arith.addf %124, %268 : vector<64x1xf32>
    %cst_89 = arith.constant 1.000000e-30 : f32
    %270 = vector.broadcast %cst_89 : f32 to vector<1x64xf32>
    %271 = arith.maximumf %264, %270 : vector<1x64xf32>
    %272 = math.log %271 : vector<1x64xf32>
    %273 = arith.addf %137, %272 : vector<1x64xf32>
    %c1_i32_90 = arith.constant 1 : i32
    %274 = vector.broadcast %269 : vector<64x1xf32> to vector<64x64xf32>
    %275 = vector.broadcast %273 : vector<1x64xf32> to vector<64x64xf32>
    %276 = arith.addf %274, %275 : vector<64x64xf32>
    %277 = arith.subf %276, %81 : vector<64x64xf32>
    %278 = math.exp %277 : vector<64x64xf32>
    %279 = tpu.transpose %278, [1, 0] : vector<64x64xf32> -> vector<64x64xf32>
    %cst_91 = arith.constant 1.000000e+00 : f32
    %280 = vector.broadcast %cst_91 : f32 to vector<1x64xf32>
    %c0_i32_92 = arith.constant 0 : i32
    %cst_93 = arith.constant dense<0.000000e+00> : vector<1x64xf32>
    %281 = tpu.matmul %280, %279, %cst_93 {dimension_numbers = #tpu.dot_dimension_numbers<[1], [0], [0], [1], [0, 0, 1, 1], [], []>} : vector<1x64xf32>, vector<64x64xf32>, vector<1x64xf32> -> vector<1x64xf32>
    %cst_94 = arith.constant 1.000000e-30 : f32
    %282 = vector.broadcast %cst_94 : f32 to vector<1x64xf32>
    %283 = arith.maximumf %281, %282 : vector<1x64xf32>
    %284 = tpu.reciprocal %283 {approx = true} : vector<1x64xf32> -> vector<1x64xf32>
    %285 = vector.broadcast %cst_43 : f32 to vector<1x64xf32>
    %286 = arith.mulf %285, %284 : vector<1x64xf32>
    %cst_95 = arith.constant dense<0.000000e+00> : vector<1x64xf32>
    %287 = tpu.matmul %286, %278, %cst_95 {dimension_numbers = #tpu.dot_dimension_numbers<[1], [0], [0], [1], [0, 0, 1, 1], [], []>} : vector<1x64xf32>, vector<64x64xf32>, vector<1x64xf32> -> vector<1x64xf32>
    %cst_96 = arith.constant 1.000000e-30 : f32
    %288 = vector.broadcast %cst_96 : f32 to vector<1x64xf32>
    %289 = arith.maximumf %287, %288 : vector<1x64xf32>
    %290 = tpu.reciprocal %289 {approx = true} : vector<1x64xf32> -> vector<1x64xf32>
    %291 = vector.broadcast %cst_43 : f32 to vector<1x64xf32>
    %292 = arith.mulf %291, %290 : vector<1x64xf32>
    %c1_i32_97 = arith.constant 1 : i32
    %cst_98 = arith.constant dense<0.000000e+00> : vector<1x64xf32>
    %293 = tpu.matmul %292, %279, %cst_98 {dimension_numbers = #tpu.dot_dimension_numbers<[1], [0], [0], [1], [0, 0, 1, 1], [], []>} : vector<1x64xf32>, vector<64x64xf32>, vector<1x64xf32> -> vector<1x64xf32>
    %cst_99 = arith.constant 1.000000e-30 : f32
    %294 = vector.broadcast %cst_99 : f32 to vector<1x64xf32>
    %295 = arith.maximumf %293, %294 : vector<1x64xf32>
    %296 = tpu.reciprocal %295 {approx = true} : vector<1x64xf32> -> vector<1x64xf32>
    %297 = vector.broadcast %cst_43 : f32 to vector<1x64xf32>
    %298 = arith.mulf %297, %296 : vector<1x64xf32>
    %cst_100 = arith.constant dense<0.000000e+00> : vector<1x64xf32>
    %299 = tpu.matmul %298, %278, %cst_100 {dimension_numbers = #tpu.dot_dimension_numbers<[1], [0], [0], [1], [0, 0, 1, 1], [], []>} : vector<1x64xf32>, vector<64x64xf32>, vector<1x64xf32> -> vector<1x64xf32>
    %cst_101 = arith.constant 1.000000e-30 : f32
    %300 = vector.broadcast %cst_101 : f32 to vector<1x64xf32>
    %301 = arith.maximumf %299, %300 : vector<1x64xf32>
    %302 = tpu.reciprocal %301 {approx = true} : vector<1x64xf32> -> vector<1x64xf32>
    %303 = vector.broadcast %cst_43 : f32 to vector<1x64xf32>
    %304 = arith.mulf %303, %302 : vector<1x64xf32>
    %c2_i32_102 = arith.constant 2 : i32
    %cst_103 = arith.constant dense<0.000000e+00> : vector<1x64xf32>
    %305 = tpu.matmul %304, %279, %cst_103 {dimension_numbers = #tpu.dot_dimension_numbers<[1], [0], [0], [1], [0, 0, 1, 1], [], []>} : vector<1x64xf32>, vector<64x64xf32>, vector<1x64xf32> -> vector<1x64xf32>
    %cst_104 = arith.constant 1.000000e-30 : f32
    %306 = vector.broadcast %cst_104 : f32 to vector<1x64xf32>
    %307 = arith.maximumf %305, %306 : vector<1x64xf32>
    %308 = tpu.reciprocal %307 {approx = true} : vector<1x64xf32> -> vector<1x64xf32>
    %309 = vector.broadcast %cst_43 : f32 to vector<1x64xf32>
    %310 = arith.mulf %309, %308 : vector<1x64xf32>
    %cst_105 = arith.constant dense<0.000000e+00> : vector<1x64xf32>
    %311 = tpu.matmul %310, %278, %cst_105 {dimension_numbers = #tpu.dot_dimension_numbers<[1], [0], [0], [1], [0, 0, 1, 1], [], []>} : vector<1x64xf32>, vector<64x64xf32>, vector<1x64xf32> -> vector<1x64xf32>
    %cst_106 = arith.constant 1.000000e-30 : f32
    %312 = vector.broadcast %cst_106 : f32 to vector<1x64xf32>
    %313 = arith.maximumf %311, %312 : vector<1x64xf32>
    %314 = tpu.reciprocal %313 {approx = true} : vector<1x64xf32> -> vector<1x64xf32>
    %315 = vector.broadcast %cst_43 : f32 to vector<1x64xf32>
    %316 = arith.mulf %315, %314 : vector<1x64xf32>
    %c3_i32_107 = arith.constant 3 : i32
    %cst_108 = arith.constant dense<0.000000e+00> : vector<1x64xf32>
    %317 = tpu.matmul %316, %279, %cst_108 {dimension_numbers = #tpu.dot_dimension_numbers<[1], [0], [0], [1], [0, 0, 1, 1], [], []>} : vector<1x64xf32>, vector<64x64xf32>, vector<1x64xf32> -> vector<1x64xf32>
    %cst_109 = arith.constant 1.000000e-30 : f32
    %318 = vector.broadcast %cst_109 : f32 to vector<1x64xf32>
    %319 = arith.maximumf %317, %318 : vector<1x64xf32>
    %320 = tpu.reciprocal %319 {approx = true} : vector<1x64xf32> -> vector<1x64xf32>
    %321 = vector.broadcast %cst_43 : f32 to vector<1x64xf32>
    %322 = arith.mulf %321, %320 : vector<1x64xf32>
    %cst_110 = arith.constant dense<0.000000e+00> : vector<1x64xf32>
    %323 = tpu.matmul %322, %278, %cst_110 {dimension_numbers = #tpu.dot_dimension_numbers<[1], [0], [0], [1], [0, 0, 1, 1], [], []>} : vector<1x64xf32>, vector<64x64xf32>, vector<1x64xf32> -> vector<1x64xf32>
    %cst_111 = arith.constant 1.000000e-30 : f32
    %324 = vector.broadcast %cst_111 : f32 to vector<1x64xf32>
    %325 = arith.maximumf %323, %324 : vector<1x64xf32>
    %326 = tpu.reciprocal %325 {approx = true} : vector<1x64xf32> -> vector<1x64xf32>
    %327 = vector.broadcast %cst_43 : f32 to vector<1x64xf32>
    %328 = arith.mulf %327, %326 : vector<1x64xf32>
    %c4_i32_112 = arith.constant 4 : i32
    %cst_113 = arith.constant dense<0.000000e+00> : vector<1x64xf32>
    %329 = tpu.matmul %328, %279, %cst_113 {dimension_numbers = #tpu.dot_dimension_numbers<[1], [0], [0], [1], [0, 0, 1, 1], [], []>} : vector<1x64xf32>, vector<64x64xf32>, vector<1x64xf32> -> vector<1x64xf32>
    %cst_114 = arith.constant 1.000000e-30 : f32
    %330 = vector.broadcast %cst_114 : f32 to vector<1x64xf32>
    %331 = arith.maximumf %329, %330 : vector<1x64xf32>
    %332 = tpu.reciprocal %331 {approx = true} : vector<1x64xf32> -> vector<1x64xf32>
    %333 = vector.broadcast %cst_43 : f32 to vector<1x64xf32>
    %334 = arith.mulf %333, %332 : vector<1x64xf32>
    %cst_115 = arith.constant dense<0.000000e+00> : vector<1x64xf32>
    %335 = tpu.matmul %334, %278, %cst_115 {dimension_numbers = #tpu.dot_dimension_numbers<[1], [0], [0], [1], [0, 0, 1, 1], [], []>} : vector<1x64xf32>, vector<64x64xf32>, vector<1x64xf32> -> vector<1x64xf32>
    %cst_116 = arith.constant 1.000000e-30 : f32
    %336 = vector.broadcast %cst_116 : f32 to vector<1x64xf32>
    %337 = arith.maximumf %335, %336 : vector<1x64xf32>
    %338 = tpu.reciprocal %337 {approx = true} : vector<1x64xf32> -> vector<1x64xf32>
    %339 = vector.broadcast %cst_43 : f32 to vector<1x64xf32>
    %340 = arith.mulf %339, %338 : vector<1x64xf32>
    %c5_i32_117 = arith.constant 5 : i32
    %cst_118 = arith.constant dense<0.000000e+00> : vector<1x64xf32>
    %341 = tpu.matmul %340, %279, %cst_118 {dimension_numbers = #tpu.dot_dimension_numbers<[1], [0], [0], [1], [0, 0, 1, 1], [], []>} : vector<1x64xf32>, vector<64x64xf32>, vector<1x64xf32> -> vector<1x64xf32>
    %cst_119 = arith.constant 1.000000e-30 : f32
    %342 = vector.broadcast %cst_119 : f32 to vector<1x64xf32>
    %343 = arith.maximumf %341, %342 : vector<1x64xf32>
    %344 = tpu.reciprocal %343 {approx = true} : vector<1x64xf32> -> vector<1x64xf32>
    %345 = vector.broadcast %cst_43 : f32 to vector<1x64xf32>
    %346 = arith.mulf %345, %344 : vector<1x64xf32>
    %cst_120 = arith.constant dense<0.000000e+00> : vector<1x64xf32>
    %347 = tpu.matmul %346, %278, %cst_120 {dimension_numbers = #tpu.dot_dimension_numbers<[1], [0], [0], [1], [0, 0, 1, 1], [], []>} : vector<1x64xf32>, vector<64x64xf32>, vector<1x64xf32> -> vector<1x64xf32>
    %cst_121 = arith.constant 1.000000e-30 : f32
    %348 = vector.broadcast %cst_121 : f32 to vector<1x64xf32>
    %349 = arith.maximumf %347, %348 : vector<1x64xf32>
    %350 = tpu.reciprocal %349 {approx = true} : vector<1x64xf32> -> vector<1x64xf32>
    %351 = vector.broadcast %cst_43 : f32 to vector<1x64xf32>
    %352 = arith.mulf %351, %350 : vector<1x64xf32>
    %c6_i32_122 = arith.constant 6 : i32
    %cst_123 = arith.constant dense<0.000000e+00> : vector<1x64xf32>
    %353 = tpu.matmul %352, %279, %cst_123 {dimension_numbers = #tpu.dot_dimension_numbers<[1], [0], [0], [1], [0, 0, 1, 1], [], []>} : vector<1x64xf32>, vector<64x64xf32>, vector<1x64xf32> -> vector<1x64xf32>
    %cst_124 = arith.constant 1.000000e-30 : f32
    %354 = vector.broadcast %cst_124 : f32 to vector<1x64xf32>
    %355 = arith.maximumf %353, %354 : vector<1x64xf32>
    %356 = tpu.reciprocal %355 {approx = true} : vector<1x64xf32> -> vector<1x64xf32>
    %357 = vector.broadcast %cst_43 : f32 to vector<1x64xf32>
    %358 = arith.mulf %357, %356 : vector<1x64xf32>
    %cst_125 = arith.constant dense<0.000000e+00> : vector<1x64xf32>
    %359 = tpu.matmul %358, %278, %cst_125 {dimension_numbers = #tpu.dot_dimension_numbers<[1], [0], [0], [1], [0, 0, 1, 1], [], []>} : vector<1x64xf32>, vector<64x64xf32>, vector<1x64xf32> -> vector<1x64xf32>
    %cst_126 = arith.constant 1.000000e-30 : f32
    %360 = vector.broadcast %cst_126 : f32 to vector<1x64xf32>
    %361 = arith.maximumf %359, %360 : vector<1x64xf32>
    %362 = tpu.reciprocal %361 {approx = true} : vector<1x64xf32> -> vector<1x64xf32>
    %363 = vector.broadcast %cst_43 : f32 to vector<1x64xf32>
    %364 = arith.mulf %363, %362 : vector<1x64xf32>
    %c7_i32_127 = arith.constant 7 : i32
    %cst_128 = arith.constant dense<0.000000e+00> : vector<1x64xf32>
    %365 = tpu.matmul %364, %279, %cst_128 {dimension_numbers = #tpu.dot_dimension_numbers<[1], [0], [0], [1], [0, 0, 1, 1], [], []>} : vector<1x64xf32>, vector<64x64xf32>, vector<1x64xf32> -> vector<1x64xf32>
    %cst_129 = arith.constant 1.000000e-30 : f32
    %366 = vector.broadcast %cst_129 : f32 to vector<1x64xf32>
    %367 = arith.maximumf %365, %366 : vector<1x64xf32>
    %368 = tpu.reciprocal %367 {approx = true} : vector<1x64xf32> -> vector<1x64xf32>
    %369 = vector.broadcast %cst_43 : f32 to vector<1x64xf32>
    %370 = arith.mulf %369, %368 : vector<1x64xf32>
    %cst_130 = arith.constant dense<0.000000e+00> : vector<1x64xf32>
    %371 = tpu.matmul %370, %278, %cst_130 {dimension_numbers = #tpu.dot_dimension_numbers<[1], [0], [0], [1], [0, 0, 1, 1], [], []>} : vector<1x64xf32>, vector<64x64xf32>, vector<1x64xf32> -> vector<1x64xf32>
    %cst_131 = arith.constant 1.000000e-30 : f32
    %372 = vector.broadcast %cst_131 : f32 to vector<1x64xf32>
    %373 = arith.maximumf %371, %372 : vector<1x64xf32>
    %374 = tpu.reciprocal %373 {approx = true} : vector<1x64xf32> -> vector<1x64xf32>
    %375 = vector.broadcast %cst_43 : f32 to vector<1x64xf32>
    %376 = arith.mulf %375, %374 : vector<1x64xf32>
    %c8_i32_132 = arith.constant 8 : i32
    %cst_133 = arith.constant dense<0.000000e+00> : vector<1x64xf32>
    %377 = tpu.matmul %376, %279, %cst_133 {dimension_numbers = #tpu.dot_dimension_numbers<[1], [0], [0], [1], [0, 0, 1, 1], [], []>} : vector<1x64xf32>, vector<64x64xf32>, vector<1x64xf32> -> vector<1x64xf32>
    %cst_134 = arith.constant 1.000000e-30 : f32
    %378 = vector.broadcast %cst_134 : f32 to vector<1x64xf32>
    %379 = arith.maximumf %377, %378 : vector<1x64xf32>
    %380 = tpu.reciprocal %379 {approx = true} : vector<1x64xf32> -> vector<1x64xf32>
    %381 = vector.broadcast %cst_43 : f32 to vector<1x64xf32>
    %382 = arith.mulf %381, %380 : vector<1x64xf32>
    %cst_135 = arith.constant dense<0.000000e+00> : vector<1x64xf32>
    %383 = tpu.matmul %382, %278, %cst_135 {dimension_numbers = #tpu.dot_dimension_numbers<[1], [0], [0], [1], [0, 0, 1, 1], [], []>} : vector<1x64xf32>, vector<64x64xf32>, vector<1x64xf32> -> vector<1x64xf32>
    %cst_136 = arith.constant 1.000000e-30 : f32
    %384 = vector.broadcast %cst_136 : f32 to vector<1x64xf32>
    %385 = arith.maximumf %383, %384 : vector<1x64xf32>
    %386 = tpu.reciprocal %385 {approx = true} : vector<1x64xf32> -> vector<1x64xf32>
    %387 = vector.broadcast %cst_43 : f32 to vector<1x64xf32>
    %388 = arith.mulf %387, %386 : vector<1x64xf32>
    %c9_i32_137 = arith.constant 9 : i32
    %cst_138 = arith.constant dense<0.000000e+00> : vector<1x64xf32>
    %389 = tpu.matmul %388, %279, %cst_138 {dimension_numbers = #tpu.dot_dimension_numbers<[1], [0], [0], [1], [0, 0, 1, 1], [], []>} : vector<1x64xf32>, vector<64x64xf32>, vector<1x64xf32> -> vector<1x64xf32>
    %cst_139 = arith.constant 1.000000e-30 : f32
    %390 = vector.broadcast %cst_139 : f32 to vector<1x64xf32>
    %391 = arith.maximumf %389, %390 : vector<1x64xf32>
    %392 = tpu.reciprocal %391 {approx = true} : vector<1x64xf32> -> vector<1x64xf32>
    %393 = vector.broadcast %cst_43 : f32 to vector<1x64xf32>
    %394 = arith.mulf %393, %392 : vector<1x64xf32>
    %cst_140 = arith.constant dense<0.000000e+00> : vector<1x64xf32>
    %395 = tpu.matmul %394, %278, %cst_140 {dimension_numbers = #tpu.dot_dimension_numbers<[1], [0], [0], [1], [0, 0, 1, 1], [], []>} : vector<1x64xf32>, vector<64x64xf32>, vector<1x64xf32> -> vector<1x64xf32>
    %cst_141 = arith.constant 1.000000e-30 : f32
    %396 = vector.broadcast %cst_141 : f32 to vector<1x64xf32>
    %397 = arith.maximumf %395, %396 : vector<1x64xf32>
    %398 = tpu.reciprocal %397 {approx = true} : vector<1x64xf32> -> vector<1x64xf32>
    %399 = vector.broadcast %cst_43 : f32 to vector<1x64xf32>
    %400 = arith.mulf %399, %398 : vector<1x64xf32>
    %cst_142 = arith.constant 1.000000e-30 : f32
    %401 = vector.broadcast %cst_142 : f32 to vector<1x64xf32>
    %402 = arith.maximumf %394, %401 : vector<1x64xf32>
    %403 = math.log %402 : vector<1x64xf32>
    %404 = tpu.transpose %403, [1, 0] : vector<1x64xf32> -> vector<64x1xf32>
    %405 = arith.addf %269, %404 : vector<64x1xf32>
    %cst_143 = arith.constant 1.000000e-30 : f32
    %406 = vector.broadcast %cst_143 : f32 to vector<1x64xf32>
    %407 = arith.maximumf %400, %406 : vector<1x64xf32>
    %408 = math.log %407 : vector<1x64xf32>
    %409 = arith.addf %273, %408 : vector<1x64xf32>
    %c2_i32_144 = arith.constant 2 : i32
    %410 = vector.broadcast %405 : vector<64x1xf32> to vector<64x64xf32>
    %411 = vector.broadcast %409 : vector<1x64xf32> to vector<64x64xf32>
    %412 = arith.addf %410, %411 : vector<64x64xf32>
    %413 = arith.subf %412, %81 : vector<64x64xf32>
    %414 = math.exp %413 : vector<64x64xf32>
    %415 = tpu.transpose %414, [1, 0] : vector<64x64xf32> -> vector<64x64xf32>
    %cst_145 = arith.constant 1.000000e+00 : f32
    %416 = vector.broadcast %cst_145 : f32 to vector<1x64xf32>
    %c0_i32_146 = arith.constant 0 : i32
    %cst_147 = arith.constant dense<0.000000e+00> : vector<1x64xf32>
    %417 = tpu.matmul %416, %415, %cst_147 {dimension_numbers = #tpu.dot_dimension_numbers<[1], [0], [0], [1], [0, 0, 1, 1], [], []>} : vector<1x64xf32>, vector<64x64xf32>, vector<1x64xf32> -> vector<1x64xf32>
    %cst_148 = arith.constant 1.000000e-30 : f32
    %418 = vector.broadcast %cst_148 : f32 to vector<1x64xf32>
    %419 = arith.maximumf %417, %418 : vector<1x64xf32>
    %420 = tpu.reciprocal %419 {approx = true} : vector<1x64xf32> -> vector<1x64xf32>
    %421 = vector.broadcast %cst_43 : f32 to vector<1x64xf32>
    %422 = arith.mulf %421, %420 : vector<1x64xf32>
    %cst_149 = arith.constant dense<0.000000e+00> : vector<1x64xf32>
    %423 = tpu.matmul %422, %414, %cst_149 {dimension_numbers = #tpu.dot_dimension_numbers<[1], [0], [0], [1], [0, 0, 1, 1], [], []>} : vector<1x64xf32>, vector<64x64xf32>, vector<1x64xf32> -> vector<1x64xf32>
    %cst_150 = arith.constant 1.000000e-30 : f32
    %424 = vector.broadcast %cst_150 : f32 to vector<1x64xf32>
    %425 = arith.maximumf %423, %424 : vector<1x64xf32>
    %426 = tpu.reciprocal %425 {approx = true} : vector<1x64xf32> -> vector<1x64xf32>
    %427 = vector.broadcast %cst_43 : f32 to vector<1x64xf32>
    %428 = arith.mulf %427, %426 : vector<1x64xf32>
    %c1_i32_151 = arith.constant 1 : i32
    %cst_152 = arith.constant dense<0.000000e+00> : vector<1x64xf32>
    %429 = tpu.matmul %428, %415, %cst_152 {dimension_numbers = #tpu.dot_dimension_numbers<[1], [0], [0], [1], [0, 0, 1, 1], [], []>} : vector<1x64xf32>, vector<64x64xf32>, vector<1x64xf32> -> vector<1x64xf32>
    %cst_153 = arith.constant 1.000000e-30 : f32
    %430 = vector.broadcast %cst_153 : f32 to vector<1x64xf32>
    %431 = arith.maximumf %429, %430 : vector<1x64xf32>
    %432 = tpu.reciprocal %431 {approx = true} : vector<1x64xf32> -> vector<1x64xf32>
    %433 = vector.broadcast %cst_43 : f32 to vector<1x64xf32>
    %434 = arith.mulf %433, %432 : vector<1x64xf32>
    %cst_154 = arith.constant dense<0.000000e+00> : vector<1x64xf32>
    %435 = tpu.matmul %434, %414, %cst_154 {dimension_numbers = #tpu.dot_dimension_numbers<[1], [0], [0], [1], [0, 0, 1, 1], [], []>} : vector<1x64xf32>, vector<64x64xf32>, vector<1x64xf32> -> vector<1x64xf32>
    %cst_155 = arith.constant 1.000000e-30 : f32
    %436 = vector.broadcast %cst_155 : f32 to vector<1x64xf32>
    %437 = arith.maximumf %435, %436 : vector<1x64xf32>
    %438 = tpu.reciprocal %437 {approx = true} : vector<1x64xf32> -> vector<1x64xf32>
    %439 = vector.broadcast %cst_43 : f32 to vector<1x64xf32>
    %440 = arith.mulf %439, %438 : vector<1x64xf32>
    %c2_i32_156 = arith.constant 2 : i32
    %cst_157 = arith.constant dense<0.000000e+00> : vector<1x64xf32>
    %441 = tpu.matmul %440, %415, %cst_157 {dimension_numbers = #tpu.dot_dimension_numbers<[1], [0], [0], [1], [0, 0, 1, 1], [], []>} : vector<1x64xf32>, vector<64x64xf32>, vector<1x64xf32> -> vector<1x64xf32>
    %cst_158 = arith.constant 1.000000e-30 : f32
    %442 = vector.broadcast %cst_158 : f32 to vector<1x64xf32>
    %443 = arith.maximumf %441, %442 : vector<1x64xf32>
    %444 = tpu.reciprocal %443 {approx = true} : vector<1x64xf32> -> vector<1x64xf32>
    %445 = vector.broadcast %cst_43 : f32 to vector<1x64xf32>
    %446 = arith.mulf %445, %444 : vector<1x64xf32>
    %cst_159 = arith.constant dense<0.000000e+00> : vector<1x64xf32>
    %447 = tpu.matmul %446, %414, %cst_159 {dimension_numbers = #tpu.dot_dimension_numbers<[1], [0], [0], [1], [0, 0, 1, 1], [], []>} : vector<1x64xf32>, vector<64x64xf32>, vector<1x64xf32> -> vector<1x64xf32>
    %cst_160 = arith.constant 1.000000e-30 : f32
    %448 = vector.broadcast %cst_160 : f32 to vector<1x64xf32>
    %449 = arith.maximumf %447, %448 : vector<1x64xf32>
    %450 = tpu.reciprocal %449 {approx = true} : vector<1x64xf32> -> vector<1x64xf32>
    %451 = vector.broadcast %cst_43 : f32 to vector<1x64xf32>
    %452 = arith.mulf %451, %450 : vector<1x64xf32>
    %c3_i32_161 = arith.constant 3 : i32
    %cst_162 = arith.constant dense<0.000000e+00> : vector<1x64xf32>
    %453 = tpu.matmul %452, %415, %cst_162 {dimension_numbers = #tpu.dot_dimension_numbers<[1], [0], [0], [1], [0, 0, 1, 1], [], []>} : vector<1x64xf32>, vector<64x64xf32>, vector<1x64xf32> -> vector<1x64xf32>
    %cst_163 = arith.constant 1.000000e-30 : f32
    %454 = vector.broadcast %cst_163 : f32 to vector<1x64xf32>
    %455 = arith.maximumf %453, %454 : vector<1x64xf32>
    %456 = tpu.reciprocal %455 {approx = true} : vector<1x64xf32> -> vector<1x64xf32>
    %457 = vector.broadcast %cst_43 : f32 to vector<1x64xf32>
    %458 = arith.mulf %457, %456 : vector<1x64xf32>
    %cst_164 = arith.constant dense<0.000000e+00> : vector<1x64xf32>
    %459 = tpu.matmul %458, %414, %cst_164 {dimension_numbers = #tpu.dot_dimension_numbers<[1], [0], [0], [1], [0, 0, 1, 1], [], []>} : vector<1x64xf32>, vector<64x64xf32>, vector<1x64xf32> -> vector<1x64xf32>
    %cst_165 = arith.constant 1.000000e-30 : f32
    %460 = vector.broadcast %cst_165 : f32 to vector<1x64xf32>
    %461 = arith.maximumf %459, %460 : vector<1x64xf32>
    %462 = tpu.reciprocal %461 {approx = true} : vector<1x64xf32> -> vector<1x64xf32>
    %463 = vector.broadcast %cst_43 : f32 to vector<1x64xf32>
    %464 = arith.mulf %463, %462 : vector<1x64xf32>
    %c4_i32_166 = arith.constant 4 : i32
    %cst_167 = arith.constant dense<0.000000e+00> : vector<1x64xf32>
    %465 = tpu.matmul %464, %415, %cst_167 {dimension_numbers = #tpu.dot_dimension_numbers<[1], [0], [0], [1], [0, 0, 1, 1], [], []>} : vector<1x64xf32>, vector<64x64xf32>, vector<1x64xf32> -> vector<1x64xf32>
    %cst_168 = arith.constant 1.000000e-30 : f32
    %466 = vector.broadcast %cst_168 : f32 to vector<1x64xf32>
    %467 = arith.maximumf %465, %466 : vector<1x64xf32>
    %468 = tpu.reciprocal %467 {approx = true} : vector<1x64xf32> -> vector<1x64xf32>
    %469 = vector.broadcast %cst_43 : f32 to vector<1x64xf32>
    %470 = arith.mulf %469, %468 : vector<1x64xf32>
    %cst_169 = arith.constant dense<0.000000e+00> : vector<1x64xf32>
    %471 = tpu.matmul %470, %414, %cst_169 {dimension_numbers = #tpu.dot_dimension_numbers<[1], [0], [0], [1], [0, 0, 1, 1], [], []>} : vector<1x64xf32>, vector<64x64xf32>, vector<1x64xf32> -> vector<1x64xf32>
    %cst_170 = arith.constant 1.000000e-30 : f32
    %472 = vector.broadcast %cst_170 : f32 to vector<1x64xf32>
    %473 = arith.maximumf %471, %472 : vector<1x64xf32>
    %474 = tpu.reciprocal %473 {approx = true} : vector<1x64xf32> -> vector<1x64xf32>
    %475 = vector.broadcast %cst_43 : f32 to vector<1x64xf32>
    %476 = arith.mulf %475, %474 : vector<1x64xf32>
    %c5_i32_171 = arith.constant 5 : i32
    %cst_172 = arith.constant dense<0.000000e+00> : vector<1x64xf32>
    %477 = tpu.matmul %476, %415, %cst_172 {dimension_numbers = #tpu.dot_dimension_numbers<[1], [0], [0], [1], [0, 0, 1, 1], [], []>} : vector<1x64xf32>, vector<64x64xf32>, vector<1x64xf32> -> vector<1x64xf32>
    %cst_173 = arith.constant 1.000000e-30 : f32
    %478 = vector.broadcast %cst_173 : f32 to vector<1x64xf32>
    %479 = arith.maximumf %477, %478 : vector<1x64xf32>
    %480 = tpu.reciprocal %479 {approx = true} : vector<1x64xf32> -> vector<1x64xf32>
    %481 = vector.broadcast %cst_43 : f32 to vector<1x64xf32>
    %482 = arith.mulf %481, %480 : vector<1x64xf32>
    %cst_174 = arith.constant dense<0.000000e+00> : vector<1x64xf32>
    %483 = tpu.matmul %482, %414, %cst_174 {dimension_numbers = #tpu.dot_dimension_numbers<[1], [0], [0], [1], [0, 0, 1, 1], [], []>} : vector<1x64xf32>, vector<64x64xf32>, vector<1x64xf32> -> vector<1x64xf32>
    %cst_175 = arith.constant 1.000000e-30 : f32
    %484 = vector.broadcast %cst_175 : f32 to vector<1x64xf32>
    %485 = arith.maximumf %483, %484 : vector<1x64xf32>
    %486 = tpu.reciprocal %485 {approx = true} : vector<1x64xf32> -> vector<1x64xf32>
    %487 = vector.broadcast %cst_43 : f32 to vector<1x64xf32>
    %488 = arith.mulf %487, %486 : vector<1x64xf32>
    %c6_i32_176 = arith.constant 6 : i32
    %cst_177 = arith.constant dense<0.000000e+00> : vector<1x64xf32>
    %489 = tpu.matmul %488, %415, %cst_177 {dimension_numbers = #tpu.dot_dimension_numbers<[1], [0], [0], [1], [0, 0, 1, 1], [], []>} : vector<1x64xf32>, vector<64x64xf32>, vector<1x64xf32> -> vector<1x64xf32>
    %cst_178 = arith.constant 1.000000e-30 : f32
    %490 = vector.broadcast %cst_178 : f32 to vector<1x64xf32>
    %491 = arith.maximumf %489, %490 : vector<1x64xf32>
    %492 = tpu.reciprocal %491 {approx = true} : vector<1x64xf32> -> vector<1x64xf32>
    %493 = vector.broadcast %cst_43 : f32 to vector<1x64xf32>
    %494 = arith.mulf %493, %492 : vector<1x64xf32>
    %cst_179 = arith.constant dense<0.000000e+00> : vector<1x64xf32>
    %495 = tpu.matmul %494, %414, %cst_179 {dimension_numbers = #tpu.dot_dimension_numbers<[1], [0], [0], [1], [0, 0, 1, 1], [], []>} : vector<1x64xf32>, vector<64x64xf32>, vector<1x64xf32> -> vector<1x64xf32>
    %cst_180 = arith.constant 1.000000e-30 : f32
    %496 = vector.broadcast %cst_180 : f32 to vector<1x64xf32>
    %497 = arith.maximumf %495, %496 : vector<1x64xf32>
    %498 = tpu.reciprocal %497 {approx = true} : vector<1x64xf32> -> vector<1x64xf32>
    %499 = vector.broadcast %cst_43 : f32 to vector<1x64xf32>
    %500 = arith.mulf %499, %498 : vector<1x64xf32>
    %c7_i32_181 = arith.constant 7 : i32
    %cst_182 = arith.constant dense<0.000000e+00> : vector<1x64xf32>
    %501 = tpu.matmul %500, %415, %cst_182 {dimension_numbers = #tpu.dot_dimension_numbers<[1], [0], [0], [1], [0, 0, 1, 1], [], []>} : vector<1x64xf32>, vector<64x64xf32>, vector<1x64xf32> -> vector<1x64xf32>
    %cst_183 = arith.constant 1.000000e-30 : f32
    %502 = vector.broadcast %cst_183 : f32 to vector<1x64xf32>
    %503 = arith.maximumf %501, %502 : vector<1x64xf32>
    %504 = tpu.reciprocal %503 {approx = true} : vector<1x64xf32> -> vector<1x64xf32>
    %505 = vector.broadcast %cst_43 : f32 to vector<1x64xf32>
    %506 = arith.mulf %505, %504 : vector<1x64xf32>
    %cst_184 = arith.constant dense<0.000000e+00> : vector<1x64xf32>
    %507 = tpu.matmul %506, %414, %cst_184 {dimension_numbers = #tpu.dot_dimension_numbers<[1], [0], [0], [1], [0, 0, 1, 1], [], []>} : vector<1x64xf32>, vector<64x64xf32>, vector<1x64xf32> -> vector<1x64xf32>
    %cst_185 = arith.constant 1.000000e-30 : f32
    %508 = vector.broadcast %cst_185 : f32 to vector<1x64xf32>
    %509 = arith.maximumf %507, %508 : vector<1x64xf32>
    %510 = tpu.reciprocal %509 {approx = true} : vector<1x64xf32> -> vector<1x64xf32>
    %511 = vector.broadcast %cst_43 : f32 to vector<1x64xf32>
    %512 = arith.mulf %511, %510 : vector<1x64xf32>
    %c8_i32_186 = arith.constant 8 : i32
    %cst_187 = arith.constant dense<0.000000e+00> : vector<1x64xf32>
    %513 = tpu.matmul %512, %415, %cst_187 {dimension_numbers = #tpu.dot_dimension_numbers<[1], [0], [0], [1], [0, 0, 1, 1], [], []>} : vector<1x64xf32>, vector<64x64xf32>, vector<1x64xf32> -> vector<1x64xf32>
    %cst_188 = arith.constant 1.000000e-30 : f32
    %514 = vector.broadcast %cst_188 : f32 to vector<1x64xf32>
    %515 = arith.maximumf %513, %514 : vector<1x64xf32>
    %516 = tpu.reciprocal %515 {approx = true} : vector<1x64xf32> -> vector<1x64xf32>
    %517 = vector.broadcast %cst_43 : f32 to vector<1x64xf32>
    %518 = arith.mulf %517, %516 : vector<1x64xf32>
    %cst_189 = arith.constant dense<0.000000e+00> : vector<1x64xf32>
    %519 = tpu.matmul %518, %414, %cst_189 {dimension_numbers = #tpu.dot_dimension_numbers<[1], [0], [0], [1], [0, 0, 1, 1], [], []>} : vector<1x64xf32>, vector<64x64xf32>, vector<1x64xf32> -> vector<1x64xf32>
    %cst_190 = arith.constant 1.000000e-30 : f32
    %520 = vector.broadcast %cst_190 : f32 to vector<1x64xf32>
    %521 = arith.maximumf %519, %520 : vector<1x64xf32>
    %522 = tpu.reciprocal %521 {approx = true} : vector<1x64xf32> -> vector<1x64xf32>
    %523 = vector.broadcast %cst_43 : f32 to vector<1x64xf32>
    %524 = arith.mulf %523, %522 : vector<1x64xf32>
    %c9_i32_191 = arith.constant 9 : i32
    %cst_192 = arith.constant dense<0.000000e+00> : vector<1x64xf32>
    %525 = tpu.matmul %524, %415, %cst_192 {dimension_numbers = #tpu.dot_dimension_numbers<[1], [0], [0], [1], [0, 0, 1, 1], [], []>} : vector<1x64xf32>, vector<64x64xf32>, vector<1x64xf32> -> vector<1x64xf32>
    %cst_193 = arith.constant 1.000000e-30 : f32
    %526 = vector.broadcast %cst_193 : f32 to vector<1x64xf32>
    %527 = arith.maximumf %525, %526 : vector<1x64xf32>
    %528 = tpu.reciprocal %527 {approx = true} : vector<1x64xf32> -> vector<1x64xf32>
    %529 = vector.broadcast %cst_43 : f32 to vector<1x64xf32>
    %530 = arith.mulf %529, %528 : vector<1x64xf32>
    %cst_194 = arith.constant dense<0.000000e+00> : vector<1x64xf32>
    %531 = tpu.matmul %530, %414, %cst_194 {dimension_numbers = #tpu.dot_dimension_numbers<[1], [0], [0], [1], [0, 0, 1, 1], [], []>} : vector<1x64xf32>, vector<64x64xf32>, vector<1x64xf32> -> vector<1x64xf32>
    %cst_195 = arith.constant 1.000000e-30 : f32
    %532 = vector.broadcast %cst_195 : f32 to vector<1x64xf32>
    %533 = arith.maximumf %531, %532 : vector<1x64xf32>
    %534 = tpu.reciprocal %533 {approx = true} : vector<1x64xf32> -> vector<1x64xf32>
    %535 = vector.broadcast %cst_43 : f32 to vector<1x64xf32>
    %536 = arith.mulf %535, %534 : vector<1x64xf32>
    %cst_196 = arith.constant 1.000000e-30 : f32
    %537 = vector.broadcast %cst_196 : f32 to vector<1x64xf32>
    %538 = arith.maximumf %530, %537 : vector<1x64xf32>
    %539 = math.log %538 : vector<1x64xf32>
    %540 = tpu.transpose %539, [1, 0] : vector<1x64xf32> -> vector<64x1xf32>
    %541 = arith.addf %405, %540 : vector<64x1xf32>
    %cst_197 = arith.constant 1.000000e-30 : f32
    %542 = vector.broadcast %cst_197 : f32 to vector<1x64xf32>
    %543 = arith.maximumf %536, %542 : vector<1x64xf32>
    %544 = math.log %543 : vector<1x64xf32>
    %545 = arith.addf %409, %544 : vector<1x64xf32>
    %c3_i32_198 = arith.constant 3 : i32
    %546 = vector.broadcast %541 : vector<64x1xf32> to vector<64x64xf32>
    %547 = vector.broadcast %545 : vector<1x64xf32> to vector<64x64xf32>
    %548 = arith.addf %546, %547 : vector<64x64xf32>
    %549 = arith.subf %548, %81 : vector<64x64xf32>
    %550 = math.exp %549 : vector<64x64xf32>
    %551 = tpu.transpose %550, [1, 0] : vector<64x64xf32> -> vector<64x64xf32>
    %cst_199 = arith.constant 1.000000e+00 : f32
    %552 = vector.broadcast %cst_199 : f32 to vector<1x64xf32>
    %c0_i32_200 = arith.constant 0 : i32
    %cst_201 = arith.constant dense<0.000000e+00> : vector<1x64xf32>
    %553 = tpu.matmul %552, %551, %cst_201 {dimension_numbers = #tpu.dot_dimension_numbers<[1], [0], [0], [1], [0, 0, 1, 1], [], []>} : vector<1x64xf32>, vector<64x64xf32>, vector<1x64xf32> -> vector<1x64xf32>
    %cst_202 = arith.constant 1.000000e-30 : f32
    %554 = vector.broadcast %cst_202 : f32 to vector<1x64xf32>
    %555 = arith.maximumf %553, %554 : vector<1x64xf32>
    %556 = tpu.reciprocal %555 {approx = true} : vector<1x64xf32> -> vector<1x64xf32>
    %557 = vector.broadcast %cst_43 : f32 to vector<1x64xf32>
    %558 = arith.mulf %557, %556 : vector<1x64xf32>
    %cst_203 = arith.constant dense<0.000000e+00> : vector<1x64xf32>
    %559 = tpu.matmul %558, %550, %cst_203 {dimension_numbers = #tpu.dot_dimension_numbers<[1], [0], [0], [1], [0, 0, 1, 1], [], []>} : vector<1x64xf32>, vector<64x64xf32>, vector<1x64xf32> -> vector<1x64xf32>
    %cst_204 = arith.constant 1.000000e-30 : f32
    %560 = vector.broadcast %cst_204 : f32 to vector<1x64xf32>
    %561 = arith.maximumf %559, %560 : vector<1x64xf32>
    %562 = tpu.reciprocal %561 {approx = true} : vector<1x64xf32> -> vector<1x64xf32>
    %563 = vector.broadcast %cst_43 : f32 to vector<1x64xf32>
    %564 = arith.mulf %563, %562 : vector<1x64xf32>
    %c1_i32_205 = arith.constant 1 : i32
    %cst_206 = arith.constant dense<0.000000e+00> : vector<1x64xf32>
    %565 = tpu.matmul %564, %551, %cst_206 {dimension_numbers = #tpu.dot_dimension_numbers<[1], [0], [0], [1], [0, 0, 1, 1], [], []>} : vector<1x64xf32>, vector<64x64xf32>, vector<1x64xf32> -> vector<1x64xf32>
    %cst_207 = arith.constant 1.000000e-30 : f32
    %566 = vector.broadcast %cst_207 : f32 to vector<1x64xf32>
    %567 = arith.maximumf %565, %566 : vector<1x64xf32>
    %568 = tpu.reciprocal %567 {approx = true} : vector<1x64xf32> -> vector<1x64xf32>
    %569 = vector.broadcast %cst_43 : f32 to vector<1x64xf32>
    %570 = arith.mulf %569, %568 : vector<1x64xf32>
    %cst_208 = arith.constant dense<0.000000e+00> : vector<1x64xf32>
    %571 = tpu.matmul %570, %550, %cst_208 {dimension_numbers = #tpu.dot_dimension_numbers<[1], [0], [0], [1], [0, 0, 1, 1], [], []>} : vector<1x64xf32>, vector<64x64xf32>, vector<1x64xf32> -> vector<1x64xf32>
    %cst_209 = arith.constant 1.000000e-30 : f32
    %572 = vector.broadcast %cst_209 : f32 to vector<1x64xf32>
    %573 = arith.maximumf %571, %572 : vector<1x64xf32>
    %574 = tpu.reciprocal %573 {approx = true} : vector<1x64xf32> -> vector<1x64xf32>
    %575 = vector.broadcast %cst_43 : f32 to vector<1x64xf32>
    %576 = arith.mulf %575, %574 : vector<1x64xf32>
    %c2_i32_210 = arith.constant 2 : i32
    %cst_211 = arith.constant dense<0.000000e+00> : vector<1x64xf32>
    %577 = tpu.matmul %576, %551, %cst_211 {dimension_numbers = #tpu.dot_dimension_numbers<[1], [0], [0], [1], [0, 0, 1, 1], [], []>} : vector<1x64xf32>, vector<64x64xf32>, vector<1x64xf32> -> vector<1x64xf32>
    %cst_212 = arith.constant 1.000000e-30 : f32
    %578 = vector.broadcast %cst_212 : f32 to vector<1x64xf32>
    %579 = arith.maximumf %577, %578 : vector<1x64xf32>
    %580 = tpu.reciprocal %579 {approx = true} : vector<1x64xf32> -> vector<1x64xf32>
    %581 = vector.broadcast %cst_43 : f32 to vector<1x64xf32>
    %582 = arith.mulf %581, %580 : vector<1x64xf32>
    %cst_213 = arith.constant dense<0.000000e+00> : vector<1x64xf32>
    %583 = tpu.matmul %582, %550, %cst_213 {dimension_numbers = #tpu.dot_dimension_numbers<[1], [0], [0], [1], [0, 0, 1, 1], [], []>} : vector<1x64xf32>, vector<64x64xf32>, vector<1x64xf32> -> vector<1x64xf32>
    %cst_214 = arith.constant 1.000000e-30 : f32
    %584 = vector.broadcast %cst_214 : f32 to vector<1x64xf32>
    %585 = arith.maximumf %583, %584 : vector<1x64xf32>
    %586 = tpu.reciprocal %585 {approx = true} : vector<1x64xf32> -> vector<1x64xf32>
    %587 = vector.broadcast %cst_43 : f32 to vector<1x64xf32>
    %588 = arith.mulf %587, %586 : vector<1x64xf32>
    %c3_i32_215 = arith.constant 3 : i32
    %cst_216 = arith.constant dense<0.000000e+00> : vector<1x64xf32>
    %589 = tpu.matmul %588, %551, %cst_216 {dimension_numbers = #tpu.dot_dimension_numbers<[1], [0], [0], [1], [0, 0, 1, 1], [], []>} : vector<1x64xf32>, vector<64x64xf32>, vector<1x64xf32> -> vector<1x64xf32>
    %cst_217 = arith.constant 1.000000e-30 : f32
    %590 = vector.broadcast %cst_217 : f32 to vector<1x64xf32>
    %591 = arith.maximumf %589, %590 : vector<1x64xf32>
    %592 = tpu.reciprocal %591 {approx = true} : vector<1x64xf32> -> vector<1x64xf32>
    %593 = vector.broadcast %cst_43 : f32 to vector<1x64xf32>
    %594 = arith.mulf %593, %592 : vector<1x64xf32>
    %cst_218 = arith.constant dense<0.000000e+00> : vector<1x64xf32>
    %595 = tpu.matmul %594, %550, %cst_218 {dimension_numbers = #tpu.dot_dimension_numbers<[1], [0], [0], [1], [0, 0, 1, 1], [], []>} : vector<1x64xf32>, vector<64x64xf32>, vector<1x64xf32> -> vector<1x64xf32>
    %cst_219 = arith.constant 1.000000e-30 : f32
    %596 = vector.broadcast %cst_219 : f32 to vector<1x64xf32>
    %597 = arith.maximumf %595, %596 : vector<1x64xf32>
    %598 = tpu.reciprocal %597 {approx = true} : vector<1x64xf32> -> vector<1x64xf32>
    %599 = vector.broadcast %cst_43 : f32 to vector<1x64xf32>
    %600 = arith.mulf %599, %598 : vector<1x64xf32>
    %c4_i32_220 = arith.constant 4 : i32
    %cst_221 = arith.constant dense<0.000000e+00> : vector<1x64xf32>
    %601 = tpu.matmul %600, %551, %cst_221 {dimension_numbers = #tpu.dot_dimension_numbers<[1], [0], [0], [1], [0, 0, 1, 1], [], []>} : vector<1x64xf32>, vector<64x64xf32>, vector<1x64xf32> -> vector<1x64xf32>
    %cst_222 = arith.constant 1.000000e-30 : f32
    %602 = vector.broadcast %cst_222 : f32 to vector<1x64xf32>
    %603 = arith.maximumf %601, %602 : vector<1x64xf32>
    %604 = tpu.reciprocal %603 {approx = true} : vector<1x64xf32> -> vector<1x64xf32>
    %605 = vector.broadcast %cst_43 : f32 to vector<1x64xf32>
    %606 = arith.mulf %605, %604 : vector<1x64xf32>
    %cst_223 = arith.constant dense<0.000000e+00> : vector<1x64xf32>
    %607 = tpu.matmul %606, %550, %cst_223 {dimension_numbers = #tpu.dot_dimension_numbers<[1], [0], [0], [1], [0, 0, 1, 1], [], []>} : vector<1x64xf32>, vector<64x64xf32>, vector<1x64xf32> -> vector<1x64xf32>
    %cst_224 = arith.constant 1.000000e-30 : f32
    %608 = vector.broadcast %cst_224 : f32 to vector<1x64xf32>
    %609 = arith.maximumf %607, %608 : vector<1x64xf32>
    %610 = tpu.reciprocal %609 {approx = true} : vector<1x64xf32> -> vector<1x64xf32>
    %611 = vector.broadcast %cst_43 : f32 to vector<1x64xf32>
    %612 = arith.mulf %611, %610 : vector<1x64xf32>
    %c5_i32_225 = arith.constant 5 : i32
    %cst_226 = arith.constant dense<0.000000e+00> : vector<1x64xf32>
    %613 = tpu.matmul %612, %551, %cst_226 {dimension_numbers = #tpu.dot_dimension_numbers<[1], [0], [0], [1], [0, 0, 1, 1], [], []>} : vector<1x64xf32>, vector<64x64xf32>, vector<1x64xf32> -> vector<1x64xf32>
    %cst_227 = arith.constant 1.000000e-30 : f32
    %614 = vector.broadcast %cst_227 : f32 to vector<1x64xf32>
    %615 = arith.maximumf %613, %614 : vector<1x64xf32>
    %616 = tpu.reciprocal %615 {approx = true} : vector<1x64xf32> -> vector<1x64xf32>
    %617 = vector.broadcast %cst_43 : f32 to vector<1x64xf32>
    %618 = arith.mulf %617, %616 : vector<1x64xf32>
    %cst_228 = arith.constant dense<0.000000e+00> : vector<1x64xf32>
    %619 = tpu.matmul %618, %550, %cst_228 {dimension_numbers = #tpu.dot_dimension_numbers<[1], [0], [0], [1], [0, 0, 1, 1], [], []>} : vector<1x64xf32>, vector<64x64xf32>, vector<1x64xf32> -> vector<1x64xf32>
    %cst_229 = arith.constant 1.000000e-30 : f32
    %620 = vector.broadcast %cst_229 : f32 to vector<1x64xf32>
    %621 = arith.maximumf %619, %620 : vector<1x64xf32>
    %622 = tpu.reciprocal %621 {approx = true} : vector<1x64xf32> -> vector<1x64xf32>
    %623 = vector.broadcast %cst_43 : f32 to vector<1x64xf32>
    %624 = arith.mulf %623, %622 : vector<1x64xf32>
    %c6_i32_230 = arith.constant 6 : i32
    %cst_231 = arith.constant dense<0.000000e+00> : vector<1x64xf32>
    %625 = tpu.matmul %624, %551, %cst_231 {dimension_numbers = #tpu.dot_dimension_numbers<[1], [0], [0], [1], [0, 0, 1, 1], [], []>} : vector<1x64xf32>, vector<64x64xf32>, vector<1x64xf32> -> vector<1x64xf32>
    %cst_232 = arith.constant 1.000000e-30 : f32
    %626 = vector.broadcast %cst_232 : f32 to vector<1x64xf32>
    %627 = arith.maximumf %625, %626 : vector<1x64xf32>
    %628 = tpu.reciprocal %627 {approx = true} : vector<1x64xf32> -> vector<1x64xf32>
    %629 = vector.broadcast %cst_43 : f32 to vector<1x64xf32>
    %630 = arith.mulf %629, %628 : vector<1x64xf32>
    %cst_233 = arith.constant dense<0.000000e+00> : vector<1x64xf32>
    %631 = tpu.matmul %630, %550, %cst_233 {dimension_numbers = #tpu.dot_dimension_numbers<[1], [0], [0], [1], [0, 0, 1, 1], [], []>} : vector<1x64xf32>, vector<64x64xf32>, vector<1x64xf32> -> vector<1x64xf32>
    %cst_234 = arith.constant 1.000000e-30 : f32
    %632 = vector.broadcast %cst_234 : f32 to vector<1x64xf32>
    %633 = arith.maximumf %631, %632 : vector<1x64xf32>
    %634 = tpu.reciprocal %633 {approx = true} : vector<1x64xf32> -> vector<1x64xf32>
    %635 = vector.broadcast %cst_43 : f32 to vector<1x64xf32>
    %636 = arith.mulf %635, %634 : vector<1x64xf32>
    %c7_i32_235 = arith.constant 7 : i32
    %cst_236 = arith.constant dense<0.000000e+00> : vector<1x64xf32>
    %637 = tpu.matmul %636, %551, %cst_236 {dimension_numbers = #tpu.dot_dimension_numbers<[1], [0], [0], [1], [0, 0, 1, 1], [], []>} : vector<1x64xf32>, vector<64x64xf32>, vector<1x64xf32> -> vector<1x64xf32>
    %cst_237 = arith.constant 1.000000e-30 : f32
    %638 = vector.broadcast %cst_237 : f32 to vector<1x64xf32>
    %639 = arith.maximumf %637, %638 : vector<1x64xf32>
    %640 = tpu.reciprocal %639 {approx = true} : vector<1x64xf32> -> vector<1x64xf32>
    %641 = vector.broadcast %cst_43 : f32 to vector<1x64xf32>
    %642 = arith.mulf %641, %640 : vector<1x64xf32>
    %cst_238 = arith.constant dense<0.000000e+00> : vector<1x64xf32>
    %643 = tpu.matmul %642, %550, %cst_238 {dimension_numbers = #tpu.dot_dimension_numbers<[1], [0], [0], [1], [0, 0, 1, 1], [], []>} : vector<1x64xf32>, vector<64x64xf32>, vector<1x64xf32> -> vector<1x64xf32>
    %cst_239 = arith.constant 1.000000e-30 : f32
    %644 = vector.broadcast %cst_239 : f32 to vector<1x64xf32>
    %645 = arith.maximumf %643, %644 : vector<1x64xf32>
    %646 = tpu.reciprocal %645 {approx = true} : vector<1x64xf32> -> vector<1x64xf32>
    %647 = vector.broadcast %cst_43 : f32 to vector<1x64xf32>
    %648 = arith.mulf %647, %646 : vector<1x64xf32>
    %c8_i32_240 = arith.constant 8 : i32
    %cst_241 = arith.constant dense<0.000000e+00> : vector<1x64xf32>
    %649 = tpu.matmul %648, %551, %cst_241 {dimension_numbers = #tpu.dot_dimension_numbers<[1], [0], [0], [1], [0, 0, 1, 1], [], []>} : vector<1x64xf32>, vector<64x64xf32>, vector<1x64xf32> -> vector<1x64xf32>
    %cst_242 = arith.constant 1.000000e-30 : f32
    %650 = vector.broadcast %cst_242 : f32 to vector<1x64xf32>
    %651 = arith.maximumf %649, %650 : vector<1x64xf32>
    %652 = tpu.reciprocal %651 {approx = true} : vector<1x64xf32> -> vector<1x64xf32>
    %653 = vector.broadcast %cst_43 : f32 to vector<1x64xf32>
    %654 = arith.mulf %653, %652 : vector<1x64xf32>
    %cst_243 = arith.constant dense<0.000000e+00> : vector<1x64xf32>
    %655 = tpu.matmul %654, %550, %cst_243 {dimension_numbers = #tpu.dot_dimension_numbers<[1], [0], [0], [1], [0, 0, 1, 1], [], []>} : vector<1x64xf32>, vector<64x64xf32>, vector<1x64xf32> -> vector<1x64xf32>
    %cst_244 = arith.constant 1.000000e-30 : f32
    %656 = vector.broadcast %cst_244 : f32 to vector<1x64xf32>
    %657 = arith.maximumf %655, %656 : vector<1x64xf32>
    %658 = tpu.reciprocal %657 {approx = true} : vector<1x64xf32> -> vector<1x64xf32>
    %659 = vector.broadcast %cst_43 : f32 to vector<1x64xf32>
    %660 = arith.mulf %659, %658 : vector<1x64xf32>
    %c9_i32_245 = arith.constant 9 : i32
    %cst_246 = arith.constant dense<0.000000e+00> : vector<1x64xf32>
    %661 = tpu.matmul %660, %551, %cst_246 {dimension_numbers = #tpu.dot_dimension_numbers<[1], [0], [0], [1], [0, 0, 1, 1], [], []>} : vector<1x64xf32>, vector<64x64xf32>, vector<1x64xf32> -> vector<1x64xf32>
    %cst_247 = arith.constant 1.000000e-30 : f32
    %662 = vector.broadcast %cst_247 : f32 to vector<1x64xf32>
    %663 = arith.maximumf %661, %662 : vector<1x64xf32>
    %664 = tpu.reciprocal %663 {approx = true} : vector<1x64xf32> -> vector<1x64xf32>
    %665 = vector.broadcast %cst_43 : f32 to vector<1x64xf32>
    %666 = arith.mulf %665, %664 : vector<1x64xf32>
    %cst_248 = arith.constant dense<0.000000e+00> : vector<1x64xf32>
    %667 = tpu.matmul %666, %550, %cst_248 {dimension_numbers = #tpu.dot_dimension_numbers<[1], [0], [0], [1], [0, 0, 1, 1], [], []>} : vector<1x64xf32>, vector<64x64xf32>, vector<1x64xf32> -> vector<1x64xf32>
    %cst_249 = arith.constant 1.000000e-30 : f32
    %668 = vector.broadcast %cst_249 : f32 to vector<1x64xf32>
    %669 = arith.maximumf %667, %668 : vector<1x64xf32>
    %670 = tpu.reciprocal %669 {approx = true} : vector<1x64xf32> -> vector<1x64xf32>
    %671 = vector.broadcast %cst_43 : f32 to vector<1x64xf32>
    %672 = arith.mulf %671, %670 : vector<1x64xf32>
    %cst_250 = arith.constant 1.000000e-30 : f32
    %673 = vector.broadcast %cst_250 : f32 to vector<1x64xf32>
    %674 = arith.maximumf %666, %673 : vector<1x64xf32>
    %675 = math.log %674 : vector<1x64xf32>
    %676 = tpu.transpose %675, [1, 0] : vector<1x64xf32> -> vector<64x1xf32>
    %677 = arith.addf %541, %676 : vector<64x1xf32>
    %cst_251 = arith.constant 1.000000e-30 : f32
    %678 = vector.broadcast %cst_251 : f32 to vector<1x64xf32>
    %679 = arith.maximumf %672, %678 : vector<1x64xf32>
    %680 = math.log %679 : vector<1x64xf32>
    %681 = arith.addf %545, %680 : vector<1x64xf32>
    %682 = vector.broadcast %677 : vector<64x1xf32> to vector<64x64xf32>
    %683 = vector.broadcast %681 : vector<1x64xf32> to vector<64x64xf32>
    %684 = arith.addf %682, %683 : vector<64x64xf32>
    %685 = arith.subf %684, %81 : vector<64x64xf32>
    %686 = math.exp %685 : vector<64x64xf32>
    %cst_252 = arith.constant dense<0.000000e+00> : vector<64x32xf32>
    %687 = tpu.matmul %686, %4, %cst_252 {dimension_numbers = #tpu.dot_dimension_numbers<[1], [0], [0], [1], [0, 0, 1, 1], [], []>} : vector<64x64xf32>, vector<64x32xf32>, vector<64x32xf32> -> vector<64x32xf32>
    %688 = arith.mulf %687, %47 : vector<64x32xf32>
    %689 = arith.mulf %45, %45 : vector<64x32xf32>
    %cst_253 = arith.constant dense<0.000000e+00> : vector<32xf32>
    %690 = vector.multi_reduction <add>, %689, %cst_253 [0] : vector<64x32xf32> to vector<32xf32>
    %691 = vector.shape_cast %690 : vector<32xf32> to vector<1x32xf32>
    %cst_254 = arith.constant 1.000000e-24 : f32
    %692 = vector.broadcast %cst_254 : f32 to vector<1x32xf32>
    %693 = arith.maximumf %691, %692 : vector<1x32xf32>
    %694 = math.rsqrt %693 : vector<1x32xf32>
    %695 = arith.mulf %46, %46 : vector<64x32xf32>
    %cst_255 = arith.constant dense<0.000000e+00> : vector<32xf32>
    %696 = vector.multi_reduction <add>, %695, %cst_255 [0] : vector<64x32xf32> to vector<32xf32>
    %697 = vector.shape_cast %696 : vector<32xf32> to vector<1x32xf32>
    %cst_256 = arith.constant 1.000000e-24 : f32
    %698 = vector.broadcast %cst_256 : f32 to vector<1x32xf32>
    %699 = arith.maximumf %697, %698 : vector<1x32xf32>
    %700 = math.rsqrt %699 : vector<1x32xf32>
    %701 = tpu.transpose %46, [1, 0] : vector<64x32xf32> -> vector<32x64xf32>
    %cst_257 = arith.constant dense<0.000000e+00> : vector<32x32xf32>
    %702 = tpu.matmul %701, %45, %cst_257 {dimension_numbers = #tpu.dot_dimension_numbers<[1], [0], [0], [1], [0, 0, 1, 1], [], []>} : vector<32x64xf32>, vector<64x32xf32>, vector<32x32xf32> -> vector<32x32xf32>
    %703 = tpu.transpose %700, [1, 0] : vector<1x32xf32> -> vector<32x1xf32>
    %704 = vector.broadcast %21 : f32 to vector<1x32xf32>
    %705 = arith.mulf %694, %704 : vector<1x32xf32>
    %706 = vector.broadcast %703 : vector<32x1xf32> to vector<32x32xf32>
    %707 = vector.broadcast %705 : vector<1x32xf32> to vector<32x32xf32>
    %708 = arith.mulf %706, %707 : vector<32x32xf32>
    %709 = arith.mulf %702, %708 : vector<32x32xf32>
    %cst_258 = arith.constant dense<0xFF800000> : vector<32xf32>
    %710 = vector.multi_reduction <maximumf>, %709, %cst_258 [1] : vector<32x32xf32> to vector<32xf32>
    %711 = vector.shape_cast %710 : vector<32xf32> to vector<32x1xf32>
    %712 = vector.broadcast %711 : vector<32x1xf32> to vector<32x32xf32>
    %713 = arith.subf %709, %712 : vector<32x32xf32>
    %714 = math.exp %713 : vector<32x32xf32>
    %cst_259 = arith.constant dense<0.000000e+00> : vector<32xf32>
    %715 = vector.multi_reduction <add>, %714, %cst_259 [1] : vector<32x32xf32> to vector<32xf32>
    %716 = vector.shape_cast %715 : vector<32xf32> to vector<32x1xf32>
    %717 = tpu.reciprocal %716 {approx = true} : vector<32x1xf32> -> vector<32x1xf32>
    %718 = vector.broadcast %717 : vector<32x1xf32> to vector<32x32xf32>
    %719 = arith.mulf %714, %718 : vector<32x32xf32>
    %cst_260 = arith.constant dense<0.000000e+00> : vector<64x32xf32>
    %720 = tpu.matmul %688, %719, %cst_260 {dimension_numbers = #tpu.dot_dimension_numbers<[1], [1], [0], [0], [0, 0, 1, 0], [], []>} : vector<64x32xf32>, vector<32x32xf32>, vector<64x32xf32> -> vector<64x32xf32>
    %721 = vector.extract_strided_slice %8 {offsets = [0, 0, 0], sizes = [1, 32, 32], strides = [1, 1, 1]} : vector<5x32x32xf32> to vector<1x32x32xf32>
    %722 = vector.shape_cast %721 : vector<1x32x32xf32> to vector<32x32xf32>
    %cst_261 = arith.constant dense<0.000000e+00> : vector<64x32xf32>
    %723 = tpu.matmul %720, %722, %cst_261 {dimension_numbers = #tpu.dot_dimension_numbers<[1], [0], [0], [1], [0, 0, 1, 1], [], []>} : vector<64x32xf32>, vector<32x32xf32>, vector<64x32xf32> -> vector<64x32xf32>
    %724 = vector.broadcast %13 : vector<1x32xf32> to vector<64x32xf32>
    %725 = arith.addf %723, %724 : vector<64x32xf32>
    %726 = vector.extract_strided_slice %8 {offsets = [1, 0, 0], sizes = [1, 32, 32], strides = [1, 1, 1]} : vector<5x32x32xf32> to vector<1x32x32xf32>
    %727 = vector.shape_cast %726 : vector<1x32x32xf32> to vector<32x32xf32>
    %cst_262 = arith.constant dense<0.000000e+00> : vector<64x32xf32>
    %728 = tpu.matmul %47, %727, %cst_262 {dimension_numbers = #tpu.dot_dimension_numbers<[1], [0], [0], [1], [0, 0, 1, 1], [], []>} : vector<64x32xf32>, vector<32x32xf32>, vector<64x32xf32> -> vector<64x32xf32>
    %729 = vector.broadcast %14 : vector<1x32xf32> to vector<64x32xf32>
    %730 = arith.addf %728, %729 : vector<64x32xf32>
    %cst_263 = arith.constant 5.000000e-01 : f32
    %731 = vector.broadcast %cst_263 : f32 to vector<64x32xf32>
    %732 = arith.mulf %731, %730 : vector<64x32xf32>
    %cst_264 = arith.constant 0.707106769 : f32
    %733 = vector.broadcast %cst_264 : f32 to vector<64x32xf32>
    %734 = arith.mulf %730, %733 : vector<64x32xf32>
    %735 = math.erf %734 : vector<64x32xf32>
    %cst_265 = arith.constant 1.000000e+00 : f32
    %736 = vector.broadcast %cst_265 : f32 to vector<64x32xf32>
    %737 = arith.addf %736, %735 : vector<64x32xf32>
    %738 = arith.mulf %732, %737 : vector<64x32xf32>
    %739 = vector.extract_strided_slice %8 {offsets = [2, 0, 0], sizes = [1, 32, 32], strides = [1, 1, 1]} : vector<5x32x32xf32> to vector<1x32x32xf32>
    %740 = vector.shape_cast %739 : vector<1x32x32xf32> to vector<32x32xf32>
    %cst_266 = arith.constant dense<0.000000e+00> : vector<64x32xf32>
    %741 = tpu.matmul %738, %740, %cst_266 {dimension_numbers = #tpu.dot_dimension_numbers<[1], [0], [0], [1], [0, 0, 1, 1], [], []>} : vector<64x32xf32>, vector<32x32xf32>, vector<64x32xf32> -> vector<64x32xf32>
    %742 = vector.broadcast %15 : vector<1x32xf32> to vector<64x32xf32>
    %743 = arith.addf %741, %742 : vector<64x32xf32>
    %744 = arith.addf %3, %725 : vector<64x32xf32>
    %745 = arith.addf %744, %743 : vector<64x32xf32>
    %cst_267 = arith.constant dense<0.000000e+00> : vector<64xf32>
    %746 = vector.multi_reduction <add>, %745, %cst_267 [1] : vector<64x32xf32> to vector<64xf32>
    %747 = vector.shape_cast %746 : vector<64xf32> to vector<64x1xf32>
    %cst_268 = arith.constant 3.200000e+01 : f32
    %748 = vector.broadcast %cst_268 : f32 to vector<64x1xf32>
    %749 = arith.divf %747, %748 : vector<64x1xf32>
    %750 = vector.broadcast %749 : vector<64x1xf32> to vector<64x32xf32>
    %751 = arith.subf %745, %750 : vector<64x32xf32>
    %752 = arith.mulf %751, %751 : vector<64x32xf32>
    %cst_269 = arith.constant dense<0.000000e+00> : vector<64xf32>
    %753 = vector.multi_reduction <add>, %752, %cst_269 [1] : vector<64x32xf32> to vector<64xf32>
    %754 = vector.shape_cast %753 : vector<64xf32> to vector<64x1xf32>
    %cst_270 = arith.constant 3.200000e+01 : f32
    %755 = vector.broadcast %cst_270 : f32 to vector<64x1xf32>
    %756 = arith.divf %754, %755 : vector<64x1xf32>
    %757 = vector.broadcast %749 : vector<64x1xf32> to vector<64x32xf32>
    %758 = arith.subf %745, %757 : vector<64x32xf32>
    %cst_271 = arith.constant 9.99999974E-6 : f32
    %759 = vector.broadcast %cst_271 : f32 to vector<64x1xf32>
    %760 = arith.addf %756, %759 : vector<64x1xf32>
    %761 = math.rsqrt %760 : vector<64x1xf32>
    %762 = vector.broadcast %761 : vector<64x1xf32> to vector<64x32xf32>
    %763 = arith.mulf %758, %762 : vector<64x32xf32>
    %764 = vector.broadcast %16 : vector<1x32xf32> to vector<64x32xf32>
    %765 = arith.mulf %763, %764 : vector<64x32xf32>
    %766 = vector.broadcast %17 : vector<1x32xf32> to vector<64x32xf32>
    %767 = arith.addf %765, %766 : vector<64x32xf32>
    %768 = vector.extract_strided_slice %8 {offsets = [3, 0, 0], sizes = [1, 32, 32], strides = [1, 1, 1]} : vector<5x32x32xf32> to vector<1x32x32xf32>
    %769 = vector.shape_cast %768 : vector<1x32x32xf32> to vector<32x32xf32>
    %cst_272 = arith.constant dense<0.000000e+00> : vector<64x32xf32>
    %770 = tpu.matmul %767, %769, %cst_272 {dimension_numbers = #tpu.dot_dimension_numbers<[1], [0], [0], [1], [0, 0, 1, 1], [], []>} : vector<64x32xf32>, vector<32x32xf32>, vector<64x32xf32> -> vector<64x32xf32>
    %771 = vector.broadcast %18 : vector<1x32xf32> to vector<64x32xf32>
    %772 = arith.addf %770, %771 : vector<64x32xf32>
    %cst_273 = arith.constant 5.000000e-01 : f32
    %773 = vector.broadcast %cst_273 : f32 to vector<64x32xf32>
    %774 = arith.mulf %773, %772 : vector<64x32xf32>
    %cst_274 = arith.constant 0.707106769 : f32
    %775 = vector.broadcast %cst_274 : f32 to vector<64x32xf32>
    %776 = arith.mulf %772, %775 : vector<64x32xf32>
    %777 = math.erf %776 : vector<64x32xf32>
    %cst_275 = arith.constant 1.000000e+00 : f32
    %778 = vector.broadcast %cst_275 : f32 to vector<64x32xf32>
    %779 = arith.addf %778, %777 : vector<64x32xf32>
    %780 = arith.mulf %774, %779 : vector<64x32xf32>
    %781 = vector.extract_strided_slice %8 {offsets = [4, 0, 0], sizes = [1, 32, 32], strides = [1, 1, 1]} : vector<5x32x32xf32> to vector<1x32x32xf32>
    %782 = vector.shape_cast %781 : vector<1x32x32xf32> to vector<32x32xf32>
    %cst_276 = arith.constant dense<0.000000e+00> : vector<64x32xf32>
    %783 = tpu.matmul %780, %782, %cst_276 {dimension_numbers = #tpu.dot_dimension_numbers<[1], [0], [0], [1], [0, 0, 1, 1], [], []>} : vector<64x32xf32>, vector<32x32xf32>, vector<64x32xf32> -> vector<64x32xf32>
    %784 = vector.broadcast %19 : vector<1x32xf32> to vector<64x32xf32>
    %785 = arith.addf %783, %784 : vector<64x32xf32>
    %786 = arith.addf %745, %785 : vector<64x32xf32>
    %c0_277 = arith.constant 0 : index
    %c0_278 = arith.constant 0 : index
    %787 = vector.load %arg7[%c0_277, %c0_278] : memref<64x32xf32, #tpu.memory_space<vmem>>, vector<64x32xf32>
    tpu.vector_store %arg7[%c0_277, %c0_278], %786 {strides = array<i32>} : memref<64x32xf32, #tpu.memory_space<vmem>>, vector<64x32xf32>,
    return
  }
  func.func @transform_0(%arg0: i32) -> (i32, i32) {
    %c0_i32 = arith.constant 0 : i32
    %c0_i32_0 = arith.constant 0 : i32
    %c0_i32_1 = arith.constant 0 : i32
    return %c0_i32, %c0_i32_0 : i32, i32
  }
  func.func @transform_1(%arg0: i32) -> (i32, i32) {
    %c0_i32 = arith.constant 0 : i32
    %c0_i32_0 = arith.constant 0 : i32
    %c0_i32_1 = arith.constant 0 : i32
    return %c0_i32, %c0_i32_0 : i32, i32
  }
  func.func @transform_2(%arg0: i32) -> (i32, i32, i32) {
    %c0_i32 = arith.constant 0 : i32
    %c0_i32_0 = arith.constant 0 : i32
    %c0_i32_1 = arith.constant 0 : i32
    return %arg0, %c0_i32, %c0_i32_0 : i32, i32, i32
  }
  func.func @transform_3(%arg0: i32) -> (i32, i32, i32, i32) {
    %c0_i32 = arith.constant 0 : i32
    %c0_i32_0 = arith.constant 0 : i32
    %c0_i32_1 = arith.constant 0 : i32
    %c0_i32_2 = arith.constant 0 : i32
    return %arg0, %c0_i32, %c0_i32_0, %c0_i32_1 : i32, i32, i32, i32
  }
  func.func @transform_4(%arg0: i32) -> (i32, i32, i32) {
    %c0_i32 = arith.constant 0 : i32
    %c0_i32_0 = arith.constant 0 : i32
    %c0_i32_1 = arith.constant 0 : i32
    return %arg0, %c0_i32, %c0_i32_0 : i32, i32, i32
  }
  func.func @transform_5(%arg0: i32) -> (i32, i32) {
    %c0_i32 = arith.constant 0 : i32
    %c0_i32_0 = arith.constant 0 : i32
    %c0_i32_1 = arith.constant 0 : i32
    return %c0_i32, %c0_i32_0 : i32, i32
  }
  func.func @transform_6(%arg0: i32) -> (i32, i32) {
    %c0_i32 = arith.constant 0 : i32
    %c0_i32_0 = arith.constant 0 : i32
    %c0_i32_1 = arith.constant 0 : i32
    return %c0_i32, %c0_i32_0 : i32, i32
  }
}

</mosaic_0001>

<llo_original>
// kernel: tpu_custom_call.1
$region0: #{tpu_custom_call.1}
  #allocation0 [shape = 'u32[]', space=smem, size = 0x4, offset = 0x4, fixed_abs, tag = 'smem constant byte address 0x4 - core index']
  #allocation1 [shape = 'u32[144,128]{1,0:T(1,128)}', space=vmem, size = 0x12000, scoped, tag = 'internal scratch']
  %s0 = inlined_call_operand.vmem [shape: f32[64,32], index: 0, kind: input, shape index: {}]
  %s1 = inlined_call_operand.vmem [shape: f32[64,32], index: 1, kind: input, shape index: {}]
  %s2 = inlined_call_operand.vmem [shape: f32[2,32,128], index: 2, kind: input, shape index: {}]
  %s3 = inlined_call_operand.hbm [shape: f32[2,5,32,32], index: 3, kind: input, shape index: {}]
  %s4 = inlined_call_operand.vmem [shape: f32[2,9,32], index: 4, kind: input, shape index: {}]
  %s5 = inlined_call_operand.vmem [shape: f32[2,1], index: 5, kind: input, shape index: {}]
  %s6 = inlined_call_operand.vmem [shape: f32[64,32], index: 6, kind: output, shape index: {}]
  %s7 = sld [smem:[#allocation0]]
  $region69: #{tpu_custom_call.1} parent=0
    _
  %s9 = ssub.s32 1, %s7
  %s10 = scalar_select 0, %s9, %s7
  $region1: #{tpu_custom_call.1} parent=0
    #allocation2 [shape = 'u8[163840]{0}', space=vmem, size = 0x28000, scoped, tag = 'input window, operand 3']
    #allocation3 [shape = 's32[2]{0}', space=sflag, size = 0x8, scoped, tag = 'scoped memory for tpu_custom_call.1']
    #allocation4 [shape = 's32[2]{0}', space=sflag, size = 0x8, scoped, tag = 'scoped memory for tpu_custom_call.1']
    #allocation5 [shape = 'u8[1024]{0}', space=smem, size = 0x400, scoped, tag = 'input window, operand 5, single buffered']
    %11 = vsyncpa [#allocation3], 0
    %s12 = scalar_lea.sflag [#allocation3], 1
    %13 = vsyncpa %s12, 0
    %14 = vsyncpa [#allocation4], 0
    loop: start=0, step=1, limit=4
    $region2: #{tpu_custom_call.1} parent=1 // loop_pre_header
      _
    $region3: #{tpu_custom_call.1} parent=1 // loop_header
      %s16 = sphi 0, %s20
      %p17 = scmp.ge.s32.totalorder %s16, 4
      %s24 = sphi 0, %s24
      %s26 = sphi 0, %s24
      %s27 = sphi 0, %s26
      %s41 = sphi 0, %s27
      %s45 = sphi 0, %s45
      %s47 = sphi 0, %s45
      %s48 = sphi 0, %s47
      %s62 = sphi 0, %s48
      %s68 = sphi 0, %s70
      %s71 = sphi 0, %s68
      %s72 = sphi 0, %s71
      %s88 = sphi 0, %s72
      %s94 = sphi 0, %s96
      %s97 = sphi 0, %s94
      %s98 = sphi 0, %s97
      %s114 = sphi 0, %s98
      %s120 = sphi 0, %s122
      %s123 = sphi 0, %s120
      %s124 = sphi 0, %s123
      %s140 = sphi 0, %s124
      %s144 = sphi 0, %s144
      %s146 = sphi 0, %s144
      %s147 = sphi 0, %s146
      %s161 = sphi 0, %s147
      %s165 = sphi 0, %s165
      %s167 = sphi 0, %s165
      %s168 = sphi 0, %s167
      %s182 = sphi 0, %s168
    $region4: #{tpu_custom_call.1} parent=1 // loop_header_branch
      %19 = sbr.rel (%p17) target = $region8
    $region5: #{tpu_custom_call.1} parent=1 // loop_body
      %s21 = ssub.s32 %s16, 1
      %s22 = ssub.s32 %s16, 2
      %s23 = sadd.s32 %s16, 1
      %s25 = sadd.s32 %s24, 1
      %p28 = scmp.eq.s32.totalorder %s16, 1
      %p29 = scmp.ne.s32.totalorder %s24, %s26
      %p30 = scmp.eq.s32.totalorder %s16, 0
      %p31 = por %p29, %p30
      %p32 = scmp.ne.s32.totalorder %s24, %s26
      %p33 = scmp.eq.s32.totalorder %s21, 1
      %p34 = por %p32, %p33
      %p35 = scmp.ne.s32.totalorder %s26, %s27
      %p36 = scmp.eq.s32.totalorder %s21, 0
      %p37 = por %p35, %p36
      %p38 = scmp.ne.s32.totalorder %s26, %s27
      %p39 = scmp.eq.s32.totalorder %s22, 1
      %p40 = por %p38, %p39
      %p42 = scmp.ne.s32.totalorder %s27, %s41
      %p43 = scmp.eq.s32.totalorder %s22, 0
      %p44 = por %p42, %p43
      %s46 = sadd.s32 %s45, 1
      %p49 = scmp.eq.s32.totalorder %s16, 1
      %p50 = scmp.ne.s32.totalorder %s45, %s47
      %p51 = scmp.eq.s32.totalorder %s16, 0
      %p52 = por %p50, %p51
      %p53 = scmp.ne.s32.totalorder %s45, %s47
      %p54 = scmp.eq.s32.totalorder %s21, 1
      %p55 = por %p53, %p54
      %p56 = scmp.ne.s32.totalorder %s47, %s48
      %p57 = scmp.eq.s32.totalorder %s21, 0
      %p58 = por %p56, %p57
      %p59 = scmp.ne.s32.totalorder %s47, %s48
      %p60 = scmp.eq.s32.totalorder %s22, 1
      %p61 = por %p59, %p60
      %p63 = scmp.ne.s32.totalorder %s48, %s62
      %p64 = scmp.eq.s32.totalorder %s22, 0
      %p65 = por %p63, %p64
      %s66 = ssub.s32 %s16, %s23
      %p67 = scmp.eq.s32.totalorder %s66, 0
      %s69 = sadd.s32 %s68, 1
      %s70 = scalar_select %p67, %s68, %s69
      %p73 = pneg %p67
      %p74 = scmp.eq.s32.totalorder %s16, 1
      %p75 = por %p73, %p74
      %p76 = scmp.ne.s32.totalorder %s68, %s71
      %p77 = scmp.eq.s32.totalorder %s16, 0
      %p78 = por %p76, %p77
      %p79 = scmp.ne.s32.totalorder %s68, %s71
      %p80 = scmp.eq.s32.totalorder %s21, 1
      %p81 = por %p79, %p80
      %p82 = scmp.ne.s32.totalorder %s71, %s72
      %p83 = scmp.eq.s32.totalorder %s21, 0
      %p84 = por %p82, %p83
      %p85 = scmp.ne.s32.totalorder %s71, %s72
      %p86 = scmp.eq.s32.totalorder %s22, 1
      %p87 = por %p85, %p86
      %p89 = scmp.ne.s32.totalorder %s72, %s88
      %p90 = scmp.eq.s32.totalorder %s22, 0
      %p91 = por %p89, %p90
      %s92 = ssub.s32 %s16, %s23
      %p93 = scmp.eq.s32.totalorder %s92, 0
      %s95 = sadd.s32 %s94, 1
      %s96 = scalar_select %p93, %s94, %s95
      %p99 = pneg %p93
      %p100 = scmp.eq.s32.totalorder %s16, 1
      %p101 = por %p99, %p100
      %p102 = scmp.ne.s32.totalorder %s94, %s97
      %p103 = scmp.eq.s32.totalorder %s16, 0
      %p104 = por %p102, %p103
      %p105 = scmp.ne.s32.totalorder %s94, %s97
      %p106 = scmp.eq.s32.totalorder %s21, 1
      %p107 = por %p105, %p106
      %p108 = scmp.ne.s32.totalorder %s97, %s98
      %p109 = scmp.eq.s32.totalorder %s21, 0
      %p110 = por %p108, %p109
      %p111 = scmp.ne.s32.totalorder %s97, %s98
      %p112 = scmp.eq.s32.totalorder %s22, 1
      %p113 = por %p111, %p112
      %p115 = scmp.ne.s32.totalorder %s98, %s114
      %p116 = scmp.eq.s32.totalorder %s22, 0
      %p117 = por %p115, %p116
      %s118 = ssub.s32 %s16, %s23
      %p119 = scmp.eq.s32.totalorder %s118, 0
      %s121 = sadd.s32 %s120, 1
      %s122 = scalar_select %p119, %s120, %s121
      %p125 = pneg %p119
      %p126 = scmp.eq.s32.totalorder %s16, 1
      %p127 = por %p125, %p126
      %p128 = scmp.ne.s32.totalorder %s120, %s123
      %p129 = scmp.eq.s32.totalorder %s16, 0
      %p130 = por %p128, %p129
      %p131 = scmp.ne.s32.totalorder %s120, %s123
      %p132 = scmp.eq.s32.totalorder %s21, 1
      %p133 = por %p131, %p132
      %p134 = scmp.ne.s32.totalorder %s123, %s124
      %p135 = scmp.eq.s32.totalorder %s21, 0
      %p136 = por %p134, %p135
      %p137 = scmp.ne.s32.totalorder %s123, %s124
      %p138 = scmp.eq.s32.totalorder %s22, 1
      %p139 = por %p137, %p138
      %p141 = scmp.ne.s32.totalorder %s124, %s140
      %p142 = scmp.eq.s32.totalorder %s22, 0
      %p143 = por %p141, %p142
      %s145 = sadd.s32 %s144, 1
      %p148 = scmp.eq.s32.totalorder %s16, 1
      %p149 = scmp.ne.s32.totalorder %s144, %s146
      %p150 = scmp.eq.s32.totalorder %s16, 0
      %p151 = por %p149, %p150
      %p152 = scmp.ne.s32.totalorder %s144, %s146
      %p153 = scmp.eq.s32.totalorder %s21, 1
      %p154 = por %p152, %p153
      %p155 = scmp.ne.s32.totalorder %s146, %s147
      %p156 = scmp.eq.s32.totalorder %s21, 0
      %p157 = por %p155, %p156
      %p158 = scmp.ne.s32.totalorder %s146, %s147
      %p159 = scmp.eq.s32.totalorder %s22, 1
      %p160 = por %p158, %p159
      %p162 = scmp.ne.s32.totalorder %s147, %s161
      %p163 = scmp.eq.s32.totalorder %s22, 0
      %p164 = por %p162, %p163
      %s166 = sadd.s32 %s165, 1
      %p169 = scmp.eq.s32.totalorder %s16, 1
      %p170 = scmp.ne.s32.totalorder %s165, %s167
      %p171 = scmp.eq.s32.totalorder %s16, 0
      %p172 = por %p170, %p171
      %p173 = scmp.ne.s32.totalorder %s165, %s167
      %p174 = scmp.eq.s32.totalorder %s21, 1
      %p175 = por %p173, %p174
      %p176 = scmp.ne.s32.totalorder %s167, %s168
      %p177 = scmp.eq.s32.totalorder %s21, 0
      %p178 = por %p176, %p177
      %p179 = scmp.ne.s32.totalorder %s167, %s168
      %p180 = scmp.eq.s32.totalorder %s22, 1
      %p181 = por %p179, %p180
      %p183 = scmp.ne.s32.totalorder %s168, %s182
      %p184 = scmp.eq.s32.totalorder %s22, 0
      %p185 = por %p183, %p184
      %p186 = scmp.le.s32.totalorder 1, %s16
      %p187 = scmp.lt.s32.totalorder %s16, 3
      %p188 = pnand %p186, %p187
      %p189 = pneg %p188
      // Predicated region
      $region9: #{tpu_custom_call.1} parent=5 // pred_check
        _
      $region10: #{tpu_custom_call.1} parent=5 // pred_check_branch
        %191 = sbr.rel (%p188) target = $region12
      $region11: #{tpu_custom_call.1} parent=5 // pred_region
        %s192 = ssub.s32 %s16, 1
        // Predicated region
        $region13: #{tpu_custom_call.1} parent=11 // pred_check
          %p193 = pneg %p37
        $region14: #{tpu_custom_call.1} parent=11 // pred_check_branch
          %195 = sbr.rel (%p193) target = $region16
        $region15: #{tpu_custom_call.1} parent=11 // pred_region
          _
        $region16: #{tpu_custom_call.1} parent=11 // pred_fallthru
          _
        // Predicated region
        $region17: #{tpu_custom_call.1} parent=11 // pred_check
          %p196 = pneg %p58
        $region18: #{tpu_custom_call.1} parent=11 // pred_check_branch
          %198 = sbr.rel (%p196) target = $region20
        $region19: #{tpu_custom_call.1} parent=11 // pred_region
          _
        $region20: #{tpu_custom_call.1} parent=11 // pred_fallthru
          _
        // Predicated region
        $region21: #{tpu_custom_call.1} parent=11 // pred_check
          %p199 = pneg %p157
        $region22: #{tpu_custom_call.1} parent=11 // pred_check_branch
          %201 = sbr.rel (%p199) target = $region24
        $region23: #{tpu_custom_call.1} parent=11 // pred_region
          %s203 = ssub.s32 32, 32
          %204 = vsyncadd [#allocation4], %s203
          %s206 = sshll.u32 %s5, 4
          %s207 = int_to_ptr.vmem [resolvable:$true] %s206
          %209 = dma.vmem_to_smem %s207, 32, [#allocation5], [#allocation4]
        $region24: #{tpu_custom_call.1} parent=11 // pred_fallthru
          _
      $region12: #{tpu_custom_call.1} parent=5 // pred_fallthru
        _
      %p210 = scmp.lt.s32.totalorder %s16, 2
      // Predicated region
      $region25: #{tpu_custom_call.1} parent=5 // pred_check
        %p211 = pneg %p210
      $region26: #{tpu_custom_call.1} parent=5 // pred_check_branch
        %213 = sbr.rel (%p211) target = $region28
      $region27: #{tpu_custom_call.1} parent=5 // pred_region
        // Predicated region
        $region29: #{tpu_custom_call.1} parent=27 // pred_check
          %p214 = pneg %p78
        $region30: #{tpu_custom_call.1} parent=27 // pred_check_branch
          %216 = sbr.rel (%p214) target = $region32
        $region31: #{tpu_custom_call.1} parent=27 // pred_region
          %p217 = scmp.lt.s32.totalorder %s16, 1
          %s218 = scalar_select %p217, %s16, 1
          %s219 = smul.addr %s218, 4
          %s220 = smul.addr %s219, 8
          %s221 = scalar_lea.vmem %s2, %s220
        $region32: #{tpu_custom_call.1} parent=27 // pred_fallthru
          _
        // Predicated region
        $region33: #{tpu_custom_call.1} parent=27 // pred_check
          %p222 = pneg %p104
        $region34: #{tpu_custom_call.1} parent=27 // pred_check_branch
          %224 = sbr.rel (%p222) target = $region36
        $region35: #{tpu_custom_call.1} parent=27 // pred_region
          %s225 = sand.u32 %s94, 1
          %s226 = scalar_lea.sflag [#allocation3], %s225
          %s227 = sand.u32 %s94, 1
          %s228 = smul.addr %s227, 160
          %s229 = scalar_lea.vmem [#allocation2], %s228
          %s231 = ssub.s32 2560, 2560
          %232 = vsyncadd %s226, %s231
          %s233 = smul.addr %s16, 20
          %s234 = smul.addr %s233, 128
          %s235 = scalar_lea.hbm %s3, %s234
          %s236 = sshll.u32 %s229, 4
          %s237 = int_to_ptr.vmem [resolvable:$true] %s236
          %242 = dma.hbm_to_vmem [thread:$0]  %s235, 2560, %s237, %s226, 128, 128, 8
        $region36: #{tpu_custom_call.1} parent=27 // pred_fallthru
          _
        // Predicated region
        $region37: #{tpu_custom_call.1} parent=27 // pred_check
          %p243 = pneg %p130
        $region38: #{tpu_custom_call.1} parent=27 // pred_check_branch
          %245 = sbr.rel (%p243) target = $region40
        $region39: #{tpu_custom_call.1} parent=27 // pred_region
          %p246 = scmp.lt.s32.totalorder %s16, 1
          %s247 = scalar_select %p246, %s16, 1
          %s248 = smul.addr %s247, 2
          %s249 = smul.addr %s248, 8
          %s250 = scalar_lea.vmem %s4, %s249
        $region40: #{tpu_custom_call.1} parent=27 // pred_fallthru
          _
      $region28: #{tpu_custom_call.1} parent=5 // pred_fallthru
        _
      %p251 = scmp.le.s32.totalorder 1, %s16
      %p252 = scmp.lt.s32.totalorder %s16, 3
      %p253 = pnand %p251, %p252
      %p254 = pneg %p253
      // Predicated region
      $region41: #{tpu_custom_call.1} parent=5 // pred_check
        _
      $region42: #{tpu_custom_call.1} parent=5 // pred_check_branch
        %256 = sbr.rel (%p253) target = $region44
      $region43: #{tpu_custom_call.1} parent=5 // pred_region
        %s257 = ssub.s32 %s16, 1
        %s258 = sand.u32 %s97, 1
        %s259 = scalar_lea.sflag [#allocation3], %s258
        %s260 = sand.u32 %s97, 1
        %s261 = smul.addr %s260, 160
        %s262 = scalar_lea.vmem [#allocation2], %s261
        // Predicated region
        $region45: #{tpu_custom_call.1} parent=43 // pred_check
          %p263 = pneg %p110
        $region46: #{tpu_custom_call.1} parent=43 // pred_check_branch
          %265 = sbr.rel (%p263) target = $region48
        $region47: #{tpu_custom_call.1} parent=43 // pred_region
          %266 = dma.done %s259, 2560
        $region48: #{tpu_custom_call.1} parent=43 // pred_fallthru
          _
        // Predicated region
        $region49: #{tpu_custom_call.1} parent=43 // pred_check
          %p267 = pneg %p157
        $region50: #{tpu_custom_call.1} parent=43 // pred_check_branch
          %269 = sbr.rel (%p267) target = $region52
        $region51: #{tpu_custom_call.1} parent=43 // pred_region
          %270 = dma.done [#allocation4], 32
        $region52: #{tpu_custom_call.1} parent=43 // pred_fallthru
          _
        %271 = sfence
        %p272 = pneg %p37
        %p273 = pneg %p34
        %p274 = pneg %p58
        %p275 = pneg %p55
        %p276 = scmp.lt.s32.totalorder %s21, 1
        %s277 = scalar_select %p276, %s21, 1
        %s278 = smul.addr %s277, 4
        %s279 = smul.addr %s278, 8
        %s280 = scalar_lea.vmem %s2, %s279
        %p281 = pneg %p84
        %p282 = pneg %p81
        %s283 = sand.u32 %s97, 1
        %s284 = scalar_lea.sflag [#allocation3], %s283
        %s285 = sand.u32 %s97, 1
        %s286 = smul.addr %s285, 160
        %s287 = scalar_lea.vmem [#allocation2], %s286
        %p288 = pneg %p110
        %p289 = pneg %p107
        %p290 = scmp.lt.s32.totalorder %s21, 1
        %s291 = scalar_select %p290, %s21, 1
        %s292 = smul.addr %s291, 2
        %s293 = smul.addr %s292, 8
        %s294 = scalar_lea.vmem %s4, %s293
        %p295 = pneg %p136
        %p296 = pneg %p133
        %p297 = pneg %p157
        %p298 = pneg %p154
        %p299 = pneg %p178
        %p300 = pneg %p175
        %p301 = scmp.lt.s32.totalorder %s21, 1
        %s302 = scalar_select %p301, %s21, 1
        %s303 = smul.addr %s302, 4
        %s304 = smul.addr %s303, 8
        %s305 = scalar_lea.vmem %s2, %s304
        %p306 = scmp.lt.s32.totalorder %s21, 1
        %s307 = scalar_select %p306, %s21, 1
        %s308 = smul.addr %s307, 2
        %s309 = smul.addr %s308, 8
        %s310 = scalar_lea.vmem %s4, %s309
        %p311 = scmp.eq.s32.totalorder %s21, 0
        // Predicated region
        $region53: #{tpu_custom_call.1} parent=43 // pred_check
          %p312 = pneg %p311
        $region54: #{tpu_custom_call.1} parent=43 // pred_check_branch
          %314 = sbr.rel (%p312) target = $region56
        $region55: #{tpu_custom_call.1} parent=43 // pred_region
          %v315 = vld [vmem:[%s0] sm:$0xff]
          %v316 = vld [vmem:[%s0 + $0x8] sm:$0xff]
          %v317 = vld [vmem:[%s0 + $0x10] sm:$0xff]
          %v318 = vld [vmem:[%s0 + $0x18] sm:$0xff]
          %v319 = vld [vmem:[%s0 + $0x20] sm:$0xff]
          %v320 = vld [vmem:[%s0 + $0x28] sm:$0xff]
          %v321 = vld [vmem:[%s0 + $0x30] sm:$0xff]
          %v322 = vld [vmem:[%s0 + $0x38] sm:$0xff]
          %vm323 = vcmask 261120
          %324 = vst.msk [vmem:[%s6] sm:$0xff] %vm323, %v315
          %325 = vst.msk [vmem:[%s6 + $0x8] sm:$0xff] %vm323, %v316
          %326 = vst.msk [vmem:[%s6 + $0x10] sm:$0xff] %vm323, %v317
          %327 = vst.msk [vmem:[%s6 + $0x18] sm:$0xff] %vm323, %v318
          %328 = vst.msk [vmem:[%s6 + $0x20] sm:$0xff] %vm323, %v319
          %329 = vst.msk [vmem:[%s6 + $0x28] sm:$0xff] %vm323, %v320
          %330 = vst.msk [vmem:[%s6 + $0x30] sm:$0xff] %vm323, %v321
          %331 = vst.msk [vmem:[%s6 + $0x38] sm:$0xff] %vm323, %v322
        $region56: #{tpu_custom_call.1} parent=43 // pred_fallthru
          _
        %v332 = vld [vmem:[%s6] sm:$0xff]
        %v333 = vld [vmem:[%s6 + $0x8] sm:$0xff]
        %v334 = vld [vmem:[%s6 + $0x10] sm:$0xff]
        %v335 = vld [vmem:[%s6 + $0x18] sm:$0xff]
        %v336 = vld [vmem:[%s6 + $0x20] sm:$0xff]
        %v337 = vld [vmem:[%s6 + $0x28] sm:$0xff]
        %v338 = vld [vmem:[%s6 + $0x30] sm:$0xff]
        %v339 = vld [vmem:[%s6 + $0x38] sm:$0xff]
        %v340 = vld [vmem:[%s1] sm:$0xff]
        %v341 = vld [vmem:[%s1 + $0x8] sm:$0xff]
        %v342 = vld [vmem:[%s1 + $0x10] sm:$0xff]
        %v343 = vld [vmem:[%s1 + $0x18] sm:$0xff]
        %v344 = vld [vmem:[%s1 + $0x20] sm:$0xff]
        %v345 = vld [vmem:[%s1 + $0x28] sm:$0xff]
        %v346 = vld [vmem:[%s1 + $0x30] sm:$0xff]
        %v347 = vld [vmem:[%s1 + $0x38] sm:$0xff]
        %v348 = vld [vmem:[%s305] sm:$0xff]
        %v349 = vld [vmem:[%s305 + $0x8] sm:$0xff]
        %v350 = vld [vmem:[%s305 + $0x10] sm:$0xff]
        %v351 = vld [vmem:[%s305 + $0x18] sm:$0xff]
        %v352 = vld [vmem:[%s262] sm:$0xff]
        %v353 = vld [vmem:[%s262 + $0x8] sm:$0xff]
        %v354 = vld [vmem:[%s262 + $0x10] sm:$0xff]
        %v355 = vld [vmem:[%s262 + $0x18] sm:$0xff]
        %v356 = vld [vmem:[%s262 + $0x20] sm:$0xff]
        %v357 = vld [vmem:[%s262 + $0x28] sm:$0xff]
        %v358 = vld [vmem:[%s262 + $0x30] sm:$0xff]
        %v359 = vld [vmem:[%s262 + $0x38] sm:$0xff]
        %v360 = vld [vmem:[%s262 + $0x40] sm:$0xff]
        %v361 = vld [vmem:[%s262 + $0x48] sm:$0xff]
        %v362 = vld [vmem:[%s262 + $0x50] sm:$0xff]
        %v363 = vld [vmem:[%s262 + $0x58] sm:$0xff]
        %v364 = vld [vmem:[%s262 + $0x60] sm:$0xff]
        %v365 = vld [vmem:[%s262 + $0x68] sm:$0xff]
        %v366 = vld [vmem:[%s262 + $0x70] sm:$0xff]
        %v367 = vld [vmem:[%s262 + $0x78] sm:$0xff]
        %v368 = vld [vmem:[%s262 + $0x80] sm:$0xff]
        %v369 = vld [vmem:[%s262 + $0x88] sm:$0xff]
        %v370 = vld [vmem:[%s262 + $0x90] sm:$0xff]
        %v371 = vld [vmem:[%s262 + $0x98] sm:$0xff]
        %v372 = vld [vmem:[%s310] sm:$0xff]
        %v373 = vld [vmem:[%s310 + $0x8] sm:$0x1]
        %s374 = smul.u32 %s21, 128
        %s375 = sld [smem:[#allocation5 + %s374]]
        %vm376 = vcmask 261120
        %v377 = vsel %vm376, %v332, 0.0
        %378 = vadd.xlane.f32.xlu0 %v377
        %v379 = vpop.xlane.xlu0 %378
        %v380 = vsel %vm376, %v333, 0.0
        %381 = vadd.xlane.f32.xlu0 %v380
        %v382 = vpop.xlane.xlu0 %381
        %v383 = vsel %vm376, %v334, 0.0
        %384 = vadd.xlane.f32.xlu0 %v383
        %v385 = vpop.xlane.xlu0 %384
        %v386 = vsel %vm376, %v335, 0.0
        %387 = vadd.xlane.f32.xlu0 %v386
        %v388 = vpop.xlane.xlu0 %387
        %v389 = vsel %vm376, %v336, 0.0
        %390 = vadd.xlane.f32.xlu0 %v389
        %v391 = vpop.xlane.xlu0 %390
        %v392 = vsel %vm376, %v337, 0.0
        %393 = vadd.xlane.f32.xlu0 %v392
        %v394 = vpop.xlane.xlu0 %393
        %v395 = vsel %vm376, %v338, 0.0
        %396 = vadd.xlane.f32.xlu0 %v395
        %v397 = vpop.xlane.xlu0 %396
        %v398 = vsel %vm376, %v339, 0.0
        %399 = vadd.xlane.f32.xlu0 %v398
        %v400 = vpop.xlane.xlu0 %399
        %v401 = vrcp.pop 32.0
        %v402 = vmul.f32 %v379, %v401
        %v403 = vmul.f32 %v382, %v401
        %v404 = vmul.f32 %v385, %v401
        %v405 = vmul.f32 %v388, %v401
        %v406 = vmul.f32 %v391, %v401
        %v407 = vmul.f32 %v394, %v401
        %v408 = vmul.f32 %v397, %v401
        %v409 = vmul.f32 %v400, %v401
        %v410 = vsub.f32 %v332, %v402
        %v411 = vsub.f32 %v333, %v403
        %v412 = vsub.f32 %v334, %v404
        %v413 = vsub.f32 %v335, %v405
        %v414 = vsub.f32 %v336, %v406
        %v415 = vsub.f32 %v337, %v407
        %v416 = vsub.f32 %v338, %v408
        %v417 = vsub.f32 %v339, %v409
        %v418 = vmul.f32 %v410, %v410
        %v419 = vmul.f32 %v411, %v411
        %v420 = vmul.f32 %v412, %v412
        %v421 = vmul.f32 %v413, %v413
        %v422 = vmul.f32 %v414, %v414
        %v423 = vmul.f32 %v415, %v415
        %v424 = vmul.f32 %v416, %v416
        %v425 = vmul.f32 %v417, %v417
        %v426 = vsel %vm376, %v418, 0.0
        %427 = vadd.xlane.f32.xlu0 %v426
        %v428 = vpop.xlane.xlu0 %427
        %v429 = vsel %vm376, %v419, 0.0
        %430 = vadd.xlane.f32.xlu0 %v429
        %v431 = vpop.xlane.xlu0 %430
        %v432 = vsel %vm376, %v420, 0.0
        %433 = vadd.xlane.f32.xlu0 %v432
        %v434 = vpop.xlane.xlu0 %433
        %v435 = vsel %vm376, %v421, 0.0
        %436 = vadd.xlane.f32.xlu0 %v435
        %v437 = vpop.xlane.xlu0 %436
        %v438 = vsel %vm376, %v422, 0.0
        %439 = vadd.xlane.f32.xlu0 %v438
        %v440 = vpop.xlane.xlu0 %439
        %v441 = vsel %vm376, %v423, 0.0
        %442 = vadd.xlane.f32.xlu0 %v441
        %v443 = vpop.xlane.xlu0 %442
        %v444 = vsel %vm376, %v424, 0.0
        %445 = vadd.xlane.f32.xlu0 %v444
        %v446 = vpop.xlane.xlu0 %445
        %v447 = vsel %vm376, %v425, 0.0
        %448 = vadd.xlane.f32.xlu0 %v447
        %v449 = vpop.xlane.xlu0 %448
        %v450 = vmul.f32 %v428, %v401
        %v451 = vmul.f32 %v431, %v401
        %v452 = vmul.f32 %v434, %v401
        %v453 = vmul.f32 %v437, %v401
        %v454 = vmul.f32 %v440, %v401
        %v455 = vmul.f32 %v443, %v401
        %v456 = vmul.f32 %v446, %v401
        %v457 = vmul.f32 %v449, %v401
        %v458 = vadd.f32 %v450, 1e-05
        %v459 = vadd.f32 %v451, 1e-05
        %v460 = vadd.f32 %v452, 1e-05
        %v461 = vadd.f32 %v453, 1e-05
        %v462 = vadd.f32 %v454, 1e-05
        %v463 = vadd.f32 %v455, 1e-05
        %v464 = vadd.f32 %v456, 1e-05
        %v465 = vadd.f32 %v457, 1e-05
        %v466 = vrsqrt.pop %v458
        %v467 = vrsqrt.pop %v459
        %v468 = vrsqrt.pop %v460
        %v469 = vrsqrt.pop %v461
        %v470 = vrsqrt.pop %v462
        %v471 = vrsqrt.pop %v463
        %v472 = vrsqrt.pop %v464
        %v473 = vrsqrt.pop %v465
        %v474 = vmul.f32 %v410, %v466
        %v475 = vmul.f32 %v411, %v467
        %v476 = vmul.f32 %v412, %v468
        %v477 = vmul.f32 %v413, %v469
        %v478 = vmul.f32 %v414, %v470
        %v479 = vmul.f32 %v415, %v471
        %v480 = vmul.f32 %v416, %v472
        %v481 = vmul.f32 %v417, %v473
        %v482 = vlaneseq
        %v483 = vshrl.u32 %v482, 7
        %v484 = vsub.s32 0, %v483
        %v485 = vrot.slane %v372, %v484
        %v486 = vmul.f32 %v474, %v485
        %v487 = vmul.f32 %v475, %v485
        %v488 = vmul.f32 %v476, %v485
        %v489 = vmul.f32 %v477, %v485
        %v490 = vmul.f32 %v478, %v485
        %v491 = vmul.f32 %v479, %v485
        %v492 = vmul.f32 %v480, %v485
        %v493 = vmul.f32 %v481, %v485
        %v494 = vlaneseq
        %v495 = vshrl.u32 %v494, 7
        %v496 = vsub.s32 1, %v495
        %v497 = vrot.slane %v372, %v496
        %v498 = vadd.f32 %v486, %v497
        %v499 = vadd.f32 %v487, %v497
        %v500 = vadd.f32 %v488, %v497
        %v501 = vadd.f32 %v489, %v497
        %v502 = vadd.f32 %v490, %v497
        %v503 = vadd.f32 %v491, %v497
        %v504 = vadd.f32 %v492, %v497
        %v505 = vadd.f32 %v493, %v497
        %v507 = vsel %vm376, %v498, 0
        %v510 = vsel %vm376, %v499, 0
        %v513 = vsel %vm376, %v500, 0
        %v516 = vsel %vm376, %v501, 0
        %v519 = vsel %vm376, %v502, 0
        %v522 = vsel %vm376, %v503, 0
        %v525 = vsel %vm376, %v504, 0
        %v528 = vsel %vm376, %v505, 0
        %530 = vmatprep.subr.mxu0 0.0
        %531 = vmatpush1.msra.mxu0 %v348
        %532 = vmatprep.subr.mxu0 0.0
        %533 = vmatpush1.msra.mxu0 %v349
        %534 = vmatprep.subr.mxu0 0.0
        %535 = vmatpush1.msra.mxu0 %v350
        %536 = vmatprep.subr.mxu0 0.0
        %537 = vmatpush1.msra.mxu0 %v351
        %538 = vmatprep.subr.mxu0 0.0
        %539 = vmatpush1.msra.mxu0 0.0
        %540 = vmatprep.subr.mxu0 0.0
        %541 = vmatpush1.msra.mxu0 0.0
        %542 = vmatprep.subr.mxu0 0.0
        %543 = vmatpush1.msra.mxu0 0.0
        %544 = vmatprep.subr.mxu0 0.0
        %545 = vmatpush1.msra.mxu0 0.0
        %546 = vmatprep.subr.mxu0 0.0
        %547 = vmatpush1.msra.mxu0 0.0
        %548 = vmatprep.subr.mxu0 0.0
        %549 = vmatpush1.msra.mxu0 0.0
        %550 = vmatprep.subr.mxu0 0.0
        %551 = vmatpush1.msra.mxu0 0.0
        %552 = vmatprep.subr.mxu0 0.0
        %553 = vmatpush1.msra.mxu0 0.0
        %554 = vmatprep.subr.mxu0 0.0
        %555 = vmatpush1.msra.mxu0 0.0
        %556 = vmatprep.subr.mxu0 0.0
        %557 = vmatpush1.msra.mxu0 0.0
        %558 = vmatprep.subr.mxu0 0.0
        %559 = vmatpush1.msra.mxu0 0.0
        %560 = vmatprep.subr.mxu0 0.0
        %561 = vmatpush1.msra.mxu0 0.0
        %562 = vmatprep.subr.mxu0 0.0
        %563 = vmatpush1.msra.mxu0 0.0
        %564 = vmatprep.subr.mxu0 0.0
        %565 = vmatpush1.msra.mxu0 0.0
        %566 = vmatprep.subr.mxu0 0.0
        %567 = vmatpush1.msra.mxu0 0.0
        %568 = vmatprep.subr.mxu0 0.0
        %569 = vmatpush1.msra.mxu0 0.0
        %570 = vmatprep.subr.mxu0 0.0
        %571 = vmatpush1.msra.mxu0 0.0
        %572 = vmatprep.subr.mxu0 0.0
        %573 = vmatpush1.msra.mxu0 0.0
        %574 = vmatprep.subr.mxu0 0.0
        %575 = vmatpush1.msra.mxu0 0.0
        %576 = vmatprep.subr.mxu0 0.0
        %577 = vmatpush1.msra.mxu0 0.0
        %578 = vmatprep.subr.mxu0 0.0
        %579 = vmatpush1.msra.mxu0 0.0
        %580 = vmatprep.subr.mxu0 0.0
        %581 = vmatpush1.msra.mxu0 0.0
        %582 = vmatprep.subr.mxu0 0.0
        %583 = vmatpush1.msra.mxu0 0.0
        %584 = vmatprep.subr.mxu0 0.0
        %585 = vmatpush1.msra.mxu0 0.0
        %586 = vmatprep.subr.mxu0 0.0
        %587 = vmatpush1.msra.mxu0 0.0
        %588 = vmatprep.subr.mxu0 0.0
        %589 = vmatpush1.msra.mxu0 0.0
        %590 = vmatprep.subr.mxu0 0.0
        %591 = vmatpush1.msra.mxu0 0.0
        %592 = vmatprep.subr.mxu0 0.0
        %593 = vmatpush1.msra.mxu0 0.0
        %594 = vmatprep.mubr.f32.mxu0 0.0
        %595 = vmatmul.mubr.f32.gmra.mrb[0].mxu0 %v507
        %v596 = vpop.f32.mrb[0].mxu0
        %v597 = vadd.f32 0.0, %v596
        %v598 = vpop.f32.mrb[0].mxu0
        %599 = vmatprep.mubr.f32.mxu0 0.0
        %600 = vmatmul.mubr.f32.gmra.mrb[0].mxu0 %v510
        %v601 = vpop.f32.mrb[0].mxu0
        %v602 = vadd.f32 0.0, %v601
        %v603 = vpop.f32.mrb[0].mxu0
        %604 = vmatprep.mubr.f32.mxu0 0.0
        %605 = vmatmul.mubr.f32.gmra.mrb[0].mxu0 %v513
        %v606 = vpop.f32.mrb[0].mxu0
        %v607 = vadd.f32 0.0, %v606
        %v608 = vpop.f32.mrb[0].mxu0
        %609 = vmatprep.mubr.f32.mxu0 0.0
        %610 = vmatmul.mubr.f32.gmra.mrb[0].mxu0 %v516
        %v611 = vpop.f32.mrb[0].mxu0
        %v612 = vadd.f32 0.0, %v611
        %v613 = vpop.f32.mrb[0].mxu0
        %614 = vmatprep.mubr.f32.mxu0 0.0
        %615 = vmatmul.mubr.f32.gmra.mrb[0].mxu0 %v519
        %v616 = vpop.f32.mrb[0].mxu0
        %v617 = vadd.f32 0.0, %v616
        %v618 = vpop.f32.mrb[0].mxu0
        %619 = vmatprep.mubr.f32.mxu0 0.0
        %620 = vmatmul.mubr.f32.gmra.mrb[0].mxu0 %v522
        %v621 = vpop.f32.mrb[0].mxu0
        %v622 = vadd.f32 0.0, %v621
        %v623 = vpop.f32.mrb[0].mxu0
        %624 = vmatprep.mubr.f32.mxu0 0.0
        %625 = vmatmul.mubr.f32.gmra.mrb[0].mxu0 %v525
        %v626 = vpop.f32.mrb[0].mxu0
        %v627 = vadd.f32 0.0, %v626
        %v628 = vpop.f32.mrb[0].mxu0
        %629 = vmatprep.mubr.f32.mxu0 0.0
        %630 = vmatmul.mubr.f32.gmra.mrb[0].mxu0 %v528
        %v631 = vpop.f32.mrb[0].mxu0
        %v632 = vadd.f32 0.0, %v631
        %v633 = vpop.f32.mrb[0].mxu0
        %634 = vdwg.mxu0
        %v635 = vmul.f32 %v340, %v340
        %v636 = vmul.f32 %v341, %v341
        %v637 = vmul.f32 %v342, %v342
        %v638 = vmul.f32 %v343, %v343
        %v639 = vmul.f32 %v344, %v344
        %v640 = vmul.f32 %v345, %v345
        %v641 = vmul.f32 %v346, %v346
        %v642 = vmul.f32 %v347, %v347
        %v643 = vsel %vm376, %v635, 0.0
        %644 = vadd.xlane.f32.xlu0 %v643
        %v645 = vpop.xlane.xlu0 %644
        %v646 = vsel %vm376, %v636, 0.0
        %647 = vadd.xlane.f32.xlu0 %v646
        %v648 = vpop.xlane.xlu0 %647
        %v649 = vsel %vm376, %v637, 0.0
        %650 = vadd.xlane.f32.xlu0 %v649
        %v651 = vpop.xlane.xlu0 %650
        %v652 = vsel %vm376, %v638, 0.0
        %653 = vadd.xlane.f32.xlu0 %v652
        %v654 = vpop.xlane.xlu0 %653
        %v655 = vsel %vm376, %v639, 0.0
        %656 = vadd.xlane.f32.xlu0 %v655
        %v657 = vpop.xlane.xlu0 %656
        %v658 = vsel %vm376, %v640, 0.0
        %659 = vadd.xlane.f32.xlu0 %v658
        %v660 = vpop.xlane.xlu0 %659
        %v661 = vsel %vm376, %v641, 0.0
        %662 = vadd.xlane.f32.xlu0 %v661
        %v663 = vpop.xlane.xlu0 %662
        %v664 = vsel %vm376, %v642, 0.0
        %665 = vadd.xlane.f32.xlu0 %v664
        %v666 = vpop.xlane.xlu0 %665
        %v667 = vmul.f32 %v597, %v597
        %v668 = vmul.f32 %v602, %v602
        %v669 = vmul.f32 %v607, %v607
        %v670 = vmul.f32 %v612, %v612
        %v671 = vmul.f32 %v617, %v617
        %v672 = vmul.f32 %v622, %v622
        %v673 = vmul.f32 %v627, %v627
        %v674 = vmul.f32 %v632, %v632
        %683 = vrot.lane.b32.xlu0 %v667, 64
        %v684 = vpop.permute.xlu0 %683
        %685 = vrot.lane.b32.xlu0 %v668, 64
        %v686 = vpop.permute.xlu0 %685
        %687 = vrot.lane.b32.xlu0 %v669, 64
        %v688 = vpop.permute.xlu0 %687
        %689 = vrot.lane.b32.xlu0 %v670, 64
        %v690 = vpop.permute.xlu0 %689
        %691 = vrot.lane.b32.xlu0 %v671, 64
        %v692 = vpop.permute.xlu0 %691
        %693 = vrot.lane.b32.xlu0 %v672, 64
        %v694 = vpop.permute.xlu0 %693
        %695 = vrot.lane.b32.xlu0 %v673, 64
        %v696 = vpop.permute.xlu0 %695
        %697 = vrot.lane.b32.xlu0 %v674, 64
        %v698 = vpop.permute.xlu0 %697
        %v707 = vsel %vm376, %v684, 0.0
        %708 = vadd.xlane.f32.xlu0 %v707
        %v709 = vpop.xlane.xlu0 %708
        %v710 = vsel %vm376, %v686, 0.0
        %711 = vadd.xlane.f32.xlu0 %v710
        %v712 = vpop.xlane.xlu0 %711
        %v713 = vsel %vm376, %v688, 0.0
        %714 = vadd.xlane.f32.xlu0 %v713
        %v715 = vpop.xlane.xlu0 %714
        %v716 = vsel %vm376, %v690, 0.0
        %717 = vadd.xlane.f32.xlu0 %v716
        %v718 = vpop.xlane.xlu0 %717
        %v719 = vsel %vm376, %v692, 0.0
        %720 = vadd.xlane.f32.xlu0 %v719
        %v721 = vpop.xlane.xlu0 %720
        %v722 = vsel %vm376, %v694, 0.0
        %723 = vadd.xlane.f32.xlu0 %v722
        %v724 = vpop.xlane.xlu0 %723
        %v725 = vsel %vm376, %v696, 0.0
        %726 = vadd.xlane.f32.xlu0 %v725
        %v727 = vpop.xlane.xlu0 %726
        %v728 = vsel %vm376, %v698, 0.0
        %729 = vadd.xlane.f32.xlu0 %v728
        %v730 = vpop.xlane.xlu0 %729
        %739 = vrot.lane.b32.xlu0 %v597, 64
        %v740 = vpop.permute.xlu0 %739
        %741 = vrot.lane.b32.xlu0 %v602, 64
        %v742 = vpop.permute.xlu0 %741
        %743 = vrot.lane.b32.xlu0 %v607, 64
        %v744 = vpop.permute.xlu0 %743
        %745 = vrot.lane.b32.xlu0 %v612, 64
        %v746 = vpop.permute.xlu0 %745
        %747 = vrot.lane.b32.xlu0 %v617, 64
        %v748 = vpop.permute.xlu0 %747
        %749 = vrot.lane.b32.xlu0 %v622, 64
        %v750 = vpop.permute.xlu0 %749
        %751 = vrot.lane.b32.xlu0 %v627, 64
        %v752 = vpop.permute.xlu0 %751
        %753 = vrot.lane.b32.xlu0 %v632, 64
        %v754 = vpop.permute.xlu0 %753
        %v756 = vsel %vm376, %v340, 0
        %v759 = vsel %vm376, %v341, 0
        %v762 = vsel %vm376, %v342, 0
        %v765 = vsel %vm376, %v343, 0
        %v768 = vsel %vm376, %v344, 0
        %v771 = vsel %vm376, %v345, 0
        %v774 = vsel %vm376, %v346, 0
        %v777 = vsel %vm376, %v347, 0
        %v779 = vsel %vm376, %v740, 0
        %v781 = vsel %vm376, %v742, 0
        %v783 = vsel %vm376, %v744, 0
        %v785 = vsel %vm376, %v746, 0
        %v787 = vsel %vm376, %v748, 0
        %v789 = vsel %vm376, %v750, 0
        %v791 = vsel %vm376, %v752, 0
        %v793 = vsel %vm376, %v754, 0
        %795 = vmatprep.subr.mxu0 0.0
        %796 = vmatpush1.xpose.msra.mxu0 %v779
        %797 = vmatprep.subr.mxu0 0.0
        %798 = vmatpush1.xpose.msra.mxu0 %v781
        %799 = vmatprep.subr.mxu0 0.0
        %800 = vmatpush1.xpose.msra.mxu0 %v783
        %801 = vmatprep.subr.mxu0 0.0
        %802 = vmatpush1.xpose.msra.mxu0 %v785
        %803 = vmatprep.subr.mxu0 0.0
        %804 = vmatpush1.xpose.msra.mxu0 %v787
        %805 = vmatprep.subr.mxu0 0.0
        %806 = vmatpush1.xpose.msra.mxu0 %v789
        %807 = vmatprep.subr.mxu0 0.0
        %808 = vmatpush1.xpose.msra.mxu0 %v791
        %809 = vmatprep.subr.mxu0 0.0
        %810 = vmatpush1.xpose.msra.mxu0 %v793
        %811 = vmatprep.subr.mxu0 0.0
        %812 = vmatpush1.xpose.msra.mxu0 0.0
        %813 = vmatprep.subr.mxu0 0.0
        %814 = vmatpush1.xpose.msra.mxu0 0.0
        %815 = vmatprep.subr.mxu0 0.0
        %816 = vmatpush1.xpose.msra.mxu0 0.0
        %817 = vmatprep.subr.mxu0 0.0
        %818 = vmatpush1.xpose.msra.mxu0 0.0
        %819 = vmatprep.subr.mxu0 0.0
        %820 = vmatpush1.xpose.msra.mxu0 0.0
        %821 = vmatprep.subr.mxu0 0.0
        %822 = vmatpush1.xpose.msra.mxu0 0.0
        %823 = vmatprep.subr.mxu0 0.0
        %824 = vmatpush1.xpose.msra.mxu0 0.0
        %825 = vmatprep.subr.mxu0 0.0
        %826 = vmatpush1.xpose.msra.mxu0 0.0
        %827 = vmatprep.subr.mxu0 0.0
        %828 = vmatpush1.xpose.msra.mxu0 0.0
        %829 = vmatprep.subr.mxu0 0.0
        %830 = vmatpush1.xpose.msra.mxu0 0.0
        %831 = vmatprep.subr.mxu0 0.0
        %832 = vmatpush1.xpose.msra.mxu0 0.0
        %833 = vmatprep.subr.mxu0 0.0
        %834 = vmatpush1.xpose.msra.mxu0 0.0
        %835 = vmatprep.subr.mxu0 0.0
        %836 = vmatpush1.xpose.msra.mxu0 0.0
        %837 = vmatprep.subr.mxu0 0.0
        %838 = vmatpush1.xpose.msra.mxu0 0.0
        %839 = vmatprep.subr.mxu0 0.0
        %840 = vmatpush1.xpose.msra.mxu0 0.0
        %841 = vmatprep.subr.mxu0 0.0
        %842 = vmatpush1.xpose.msra.mxu0 0.0
        %843 = vmatprep.subr.mxu0 0.0
        %844 = vmatpush1.xpose.msra.mxu0 0.0
        %845 = vmatprep.subr.mxu0 0.0
        %846 = vmatpush1.xpose.msra.mxu0 0.0
        %847 = vmatprep.subr.mxu0 0.0
        %848 = vmatpush1.xpose.msra.mxu0 0.0
        %849 = vmatprep.subr.mxu0 0.0
        %850 = vmatpush1.xpose.msra.mxu0 0.0
        %851 = vmatprep.subr.mxu0 0.0
        %852 = vmatpush1.xpose.msra.mxu0 0.0
        %853 = vmatprep.subr.mxu0 0.0
        %854 = vmatpush1.xpose.msra.mxu0 0.0
        %855 = vmatprep.subr.mxu0 0.0
        %856 = vmatpush1.xpose.msra.mxu0 0.0
        %857 = vmatprep.subr.mxu0 0.0
        %858 = vmatpush1.xpose.msra.mxu0 0.0
        %859 = vmatprep.mubr.f32.mxu0 0.0
        %860 = vmatmul.mubr.f32.gmra.mrb[0].mxu0 %v756
        %v861 = vpop.f32.mrb[0].mxu0
        %v862 = vadd.f32 0.0, %v861
        %v863 = vpop.f32.mrb[0].mxu0
        %864 = vmatprep.mubr.f32.mxu0 0.0
        %865 = vmatmul.mubr.f32.gmra.mrb[0].mxu0 %v759
        %v866 = vpop.f32.mrb[0].mxu0
        %v867 = vadd.f32 0.0, %v866
        %v868 = vpop.f32.mrb[0].mxu0
        %869 = vmatprep.mubr.f32.mxu0 0.0
        %870 = vmatmul.mubr.f32.gmra.mrb[0].mxu0 %v762
        %v871 = vpop.f32.mrb[0].mxu0
        %v872 = vadd.f32 0.0, %v871
        %v873 = vpop.f32.mrb[0].mxu0
        %874 = vmatprep.mubr.f32.mxu0 0.0
        %875 = vmatmul.mubr.f32.gmra.mrb[0].mxu0 %v765
        %v876 = vpop.f32.mrb[0].mxu0
        %v877 = vadd.f32 0.0, %v876
        %v878 = vpop.f32.mrb[0].mxu0
        %879 = vmatprep.mubr.f32.mxu0 0.0
        %880 = vmatmul.mubr.f32.gmra.mrb[0].mxu0 %v768
        %v881 = vpop.f32.mrb[0].mxu0
        %v882 = vadd.f32 0.0, %v881
        %v883 = vpop.f32.mrb[0].mxu0
        %884 = vmatprep.mubr.f32.mxu0 0.0
        %885 = vmatmul.mubr.f32.gmra.mrb[0].mxu0 %v771
        %v886 = vpop.f32.mrb[0].mxu0
        %v887 = vadd.f32 0.0, %v886
        %v888 = vpop.f32.mrb[0].mxu0
        %889 = vmatprep.mubr.f32.mxu0 0.0
        %890 = vmatmul.mubr.f32.gmra.mrb[0].mxu0 %v774
        %v891 = vpop.f32.mrb[0].mxu0
        %v892 = vadd.f32 0.0, %v891
        %v893 = vpop.f32.mrb[0].mxu0
        %894 = vmatprep.mubr.f32.mxu0 0.0
        %895 = vmatmul.mubr.f32.gmra.mrb[0].mxu0 %v777
        %v896 = vpop.f32.mrb[0].mxu0
        %v897 = vadd.f32 0.0, %v896
        %v898 = vpop.f32.mrb[0].mxu0
        %899 = vdwg.mxu0
        %900 = vxpose.xlu0.b32.start [1/16] %v709, 128
        %901 = vxpose.xlu0.b32.cont [2/16] %v712, 128
        %902 = vxpose.xlu0.b32.cont [3/16] %v715, 128
        %903 = vxpose.xlu0.b32.cont [4/16] %v718, 128
        %904 = vxpose.xlu0.b32.cont [5/16] %v721, 128
        %905 = vxpose.xlu0.b32.cont [6/16] %v724, 128
        %906 = vxpose.xlu0.b32.cont [7/16] %v727, 128
        %907 = vxpose.xlu0.b32.cont [8/16] %v730, 128
        %908 = vxpose.xlu0.b32.cont [9/16] 0.0, 128
        %909 = vxpose.xlu0.b32.cont [10/16] 0.0, 128
        %910 = vxpose.xlu0.b32.cont [11/16] 0.0, 128
        %911 = vxpose.xlu0.b32.cont [12/16] 0.0, 128
        %912 = vxpose.xlu0.b32.cont [13/16] 0.0, 128
        %913 = vxpose.xlu0.b32.cont [14/16] 0.0, 128
        %914 = vxpose.xlu0.b32.cont [15/16] 0.0, 128
        %915 = vxpose.xlu0.b32.end [16/16] 0.0, 128
        %v916 = vpop.trf.xlu0
        %v917 = vpop.trf.xlu0
        %v918 = vpop.trf.xlu0
        %v919 = vpop.trf.xlu0
        %v920 = vpop.trf.xlu0
        %v921 = vpop.trf.xlu0
        %v922 = vpop.trf.xlu0
        %v923 = vpop.trf.xlu0
        %v924 = vpop.trf.xlu0
        %v925 = vpop.trf.xlu0
        %v926 = vpop.trf.xlu0
        %v927 = vpop.trf.xlu0
        %v928 = vpop.trf.xlu0
        %v929 = vpop.trf.xlu0
        %v930 = vpop.trf.xlu0
        %v931 = vpop.trf.xlu0
        %v932 = vlaneseq
        %v933 = vshrl.u32 %v932, 7
        %v934 = vsub.s32 0, %v933
        %v935 = vrot.slane %v916, %v934
        %v936 = vadd.f32 %v645, %v935
        %v937 = vadd.f32 %v648, %v935
        %v938 = vadd.f32 %v651, %v935
        %v939 = vadd.f32 %v654, %v935
        %v940 = vadd.f32 %v657, %v935
        %v941 = vadd.f32 %v660, %v935
        %v942 = vadd.f32 %v663, %v935
        %v943 = vadd.f32 %v666, %v935
        %v944 = vmul.f32 %v862, 2.0
        %v945 = vmul.f32 %v867, 2.0
        %v946 = vmul.f32 %v872, 2.0
        %v947 = vmul.f32 %v877, 2.0
        %v948 = vmul.f32 %v882, 2.0
        %v949 = vmul.f32 %v887, 2.0
        %v950 = vmul.f32 %v892, 2.0
        %v951 = vmul.f32 %v897, 2.0
        %v952 = vsub.f32 %v936, %v944
        %v953 = vsub.f32 %v937, %v945
        %v954 = vsub.f32 %v938, %v946
        %v955 = vsub.f32 %v939, %v947
        %v956 = vsub.f32 %v940, %v948
        %v957 = vsub.f32 %v941, %v949
        %v958 = vsub.f32 %v942, %v950
        %v959 = vsub.f32 %v943, %v951
        %vm960 = vcmask 523264
        %v961 = vsel %vm960, %v952, 0.0
        %v962 = vsel %vm960, %v953, 0.0
        %v963 = vadd.f32 %v961, %v962
        %v964 = vsel %vm960, %v954, 0.0
        %v965 = vadd.f32 %v963, %v964
        %v966 = vsel %vm960, %v955, 0.0
        %v967 = vadd.f32 %v965, %v966
        %v968 = vsel %vm960, %v956, 0.0
        %v969 = vadd.f32 %v967, %v968
        %v970 = vsel %vm960, %v957, 0.0
        %v971 = vadd.f32 %v969, %v970
        %v972 = vsel %vm960, %v958, 0.0
        %v973 = vadd.f32 %v971, %v972
        %v974 = vsel %vm960, %v959, 0.0
        %v975 = vadd.f32 %v973, %v974
        %976 = vadd.xlane.f32.xlu0 %v975
        %v977 = vpop.xlane.xlu0 %976
        %v978 = vrot.slane %v977, 4
        %v979 = vadd.f32 %v977, %v978
        %v980 = vrot.slane %v979, 2
        %v981 = vadd.f32 %v979, %v980
        %v982 = vrot.slane %v981, 1
        %v983 = vadd.f32 %v981, %v982
        %s984 = vtos %v983
        %v985 = vrcp.pop 4096.0
        %s986 = vtos %v985
        %s987 = smul.f32 %s984, %s986
        %v988 = vmul.f32 %v952, %v952
        %v989 = vmul.f32 %v953, %v953
        %v990 = vmul.f32 %v954, %v954
        %v991 = vmul.f32 %v955, %v955
        %v992 = vmul.f32 %v956, %v956
        %v993 = vmul.f32 %v957, %v957
        %v994 = vmul.f32 %v958, %v958
        %v995 = vmul.f32 %v959, %v959
        %v996 = vsel %vm960, %v988, 0.0
        %v997 = vsel %vm960, %v989, 0.0
        %v998 = vadd.f32 %v996, %v997
        %v999 = vsel %vm960, %v990, 0.0
        %v1000 = vadd.f32 %v998, %v999
        %v1001 = vsel %vm960, %v991, 0.0
        %v1002 = vadd.f32 %v1000, %v1001
        %v1003 = vsel %vm960, %v992, 0.0
        %v1004 = vadd.f32 %v1002, %v1003
        %v1005 = vsel %vm960, %v993, 0.0
        %v1006 = vadd.f32 %v1004, %v1005
        %v1007 = vsel %vm960, %v994, 0.0
        %v1008 = vadd.f32 %v1006, %v1007
        %v1009 = vsel %vm960, %v995, 0.0
        %v1010 = vadd.f32 %v1008, %v1009
        %1011 = vadd.xlane.f32.xlu0 %v1010
        %v1012 = vpop.xlane.xlu0 %1011
        %v1013 = vrot.slane %v1012, 4
        %v1014 = vadd.f32 %v1012, %v1013
        %v1015 = vrot.slane %v1014, 2
        %v1016 = vadd.f32 %v1014, %v1015
        %v1017 = vrot.slane %v1016, 1
        %v1018 = vadd.f32 %v1016, %v1017
        %s1019 = vtos %v1018
        %v1020 = vrcp.pop 4096.0
        %s1021 = vtos %v1020
        %s1022 = smul.f32 %s1019, %s1021
        %s1023 = smul.f32 %s987, %s987
        %s1024 = ssub.f32 %s1022, %s1023
        %s1025 = smax.f32 %s1024, 1e-30
        %v1026 = vstv %s987
        %v1027 = vsub.f32 %v952, %v1026
        %v1028 = vsub.f32 %v953, %v1026
        %v1029 = vsub.f32 %v954, %v1026
        %v1030 = vsub.f32 %v955, %v1026
        %v1031 = vsub.f32 %v956, %v1026
        %v1032 = vsub.f32 %v957, %v1026
        %v1033 = vsub.f32 %v958, %v1026
        %v1034 = vsub.f32 %v959, %v1026
        %v1035 = vstv %s1025
        %v1036 = vrsqrt.pop %v1035
        %s1037 = vtos %v1036
        %s1038 = smul.f32 %s1037, 10.0
        %v1039 = vstv %s1038
        %v1040 = vmul.f32 %v1027, %v1039
        %v1041 = vmul.f32 %v1028, %v1039
        %v1042 = vmul.f32 %v1029, %v1039
        %v1043 = vmul.f32 %v1030, %v1039
        %v1044 = vmul.f32 %v1031, %v1039
        %v1045 = vmul.f32 %v1032, %v1039
        %v1046 = vmul.f32 %v1033, %v1039
        %v1047 = vmul.f32 %v1034, %v1039
        %v1048 = vsub.f32 0.0, %v1040
        %v1049 = vsub.f32 0.0, %v1041
        %v1050 = vsub.f32 0.0, %v1042
        %v1051 = vsub.f32 0.0, %v1043
        %v1052 = vsub.f32 0.0, %v1044
        %v1053 = vsub.f32 0.0, %v1045
        %v1054 = vsub.f32 0.0, %v1046
        %v1055 = vsub.f32 0.0, %v1047
        %v1056 = vsel %vm960, %v1048, -inf
        %1057 = vmax.xlane.f32.xlu0 %v1056
        %v1058 = vpop.xlane.xlu0 %1057
        %v1059 = vsel %vm960, %v1049, -inf
        %1060 = vmax.xlane.f32.xlu0 %v1059
        %v1061 = vpop.xlane.xlu0 %1060
        %v1062 = vsel %vm960, %v1050, -inf
        %1063 = vmax.xlane.f32.xlu0 %v1062
        %v1064 = vpop.xlane.xlu0 %1063
        %v1065 = vsel %vm960, %v1051, -inf
        %1066 = vmax.xlane.f32.xlu0 %v1065
        %v1067 = vpop.xlane.xlu0 %1066
        %v1068 = vsel %vm960, %v1052, -inf
        %1069 = vmax.xlane.f32.xlu0 %v1068
        %v1070 = vpop.xlane.xlu0 %1069
        %v1071 = vsel %vm960, %v1053, -inf
        %1072 = vmax.xlane.f32.xlu0 %v1071
        %v1073 = vpop.xlane.xlu0 %1072
        %v1074 = vsel %vm960, %v1054, -inf
        %1075 = vmax.xlane.f32.xlu0 %v1074
        %v1076 = vpop.xlane.xlu0 %1075
        %v1077 = vsel %vm960, %v1055, -inf
        %1078 = vmax.xlane.f32.xlu0 %v1077
        %v1079 = vpop.xlane.xlu0 %1078
        %v1080 = vsub.f32 %v1048, %v1058
        %v1081 = vsub.f32 %v1049, %v1061
        %v1082 = vsub.f32 %v1050, %v1064
        %v1083 = vsub.f32 %v1051, %v1067
        %v1084 = vsub.f32 %v1052, %v1070
        %v1085 = vsub.f32 %v1053, %v1073
        %v1086 = vsub.f32 %v1054, %v1076
        %v1087 = vsub.f32 %v1055, %v1079
        %v1088 = vmul.f32 %v1080, 1.442695
        %v1089 = vpow.pop %v1088
        %v1090 = vmul.f32 %v1081, 1.442695
        %v1091 = vpow.pop %v1090
        %v1092 = vmul.f32 %v1082, 1.442695
        %v1093 = vpow.pop %v1092
        %v1094 = vmul.f32 %v1083, 1.442695
        %v1095 = vpow.pop %v1094
        %v1096 = vmul.f32 %v1084, 1.442695
        %v1097 = vpow.pop %v1096
        %v1098 = vmul.f32 %v1085, 1.442695
        %v1099 = vpow.pop %v1098
        %v1100 = vmul.f32 %v1086, 1.442695
        %v1101 = vpow.pop %v1100
        %v1102 = vmul.f32 %v1087, 1.442695
        %v1103 = vpow.pop %v1102
        %v1104 = vsel %vm960, %v1089, 0.0
        %1105 = vadd.xlane.f32.xlu0 %v1104
        %v1106 = vpop.xlane.xlu0 %1105
        %v1107 = vsel %vm960, %v1091, 0.0
        %1108 = vadd.xlane.f32.xlu0 %v1107
        %v1109 = vpop.xlane.xlu0 %1108
        %v1110 = vsel %vm960, %v1093, 0.0
        %1111 = vadd.xlane.f32.xlu0 %v1110
        %v1112 = vpop.xlane.xlu0 %1111
        %v1113 = vsel %vm960, %v1095, 0.0
        %1114 = vadd.xlane.f32.xlu0 %v1113
        %v1115 = vpop.xlane.xlu0 %1114
        %v1116 = vsel %vm960, %v1097, 0.0
        %1117 = vadd.xlane.f32.xlu0 %v1116
        %v1118 = vpop.xlane.xlu0 %1117
        %v1119 = vsel %vm960, %v1099, 0.0
        %1120 = vadd.xlane.f32.xlu0 %v1119
        %v1121 = vpop.xlane.xlu0 %1120
        %v1122 = vsel %vm960, %v1101, 0.0
        %1123 = vadd.xlane.f32.xlu0 %v1122
        %v1124 = vpop.xlane.xlu0 %1123
        %v1125 = vsel %vm960, %v1103, 0.0
        %1126 = vadd.xlane.f32.xlu0 %v1125
        %v1127 = vpop.xlane.xlu0 %1126
        %v1128 = vlog2.pop %v1106
        %v1129 = vmul.f32 %v1128, 0.6931472
        %v1130 = vlog2.pop %v1109
        %v1131 = vmul.f32 %v1130, 0.6931472
        %v1132 = vlog2.pop %v1112
        %v1133 = vmul.f32 %v1132, 0.6931472
        %v1134 = vlog2.pop %v1115
        %v1135 = vmul.f32 %v1134, 0.6931472
        %v1136 = vlog2.pop %v1118
        %v1137 = vmul.f32 %v1136, 0.6931472
        %v1138 = vlog2.pop %v1121
        %v1139 = vmul.f32 %v1138, 0.6931472
        %v1140 = vlog2.pop %v1124
        %v1141 = vmul.f32 %v1140, 0.6931472
        %v1142 = vlog2.pop %v1127
        %v1143 = vmul.f32 %v1142, 0.6931472
        %v1144 = vadd.f32 %v1058, %v1129
        %v1145 = vadd.f32 %v1061, %v1131
        %v1146 = vadd.f32 %v1064, %v1133
        %v1147 = vadd.f32 %v1067, %v1135
        %v1148 = vadd.f32 %v1070, %v1137
        %v1149 = vadd.f32 %v1073, %v1139
        %v1150 = vadd.f32 %v1076, %v1141
        %v1151 = vadd.f32 %v1079, %v1143
        %v1152 = vsub.f32 -4.158883, %v1144
        %v1153 = vsub.f32 -4.158883, %v1145
        %v1154 = vsub.f32 -4.158883, %v1146
        %v1155 = vsub.f32 -4.158883, %v1147
        %v1156 = vsub.f32 -4.158883, %v1148
        %v1157 = vsub.f32 -4.158883, %v1149
        %v1158 = vsub.f32 -4.158883, %v1150
        %v1159 = vsub.f32 -4.158883, %v1151
        %v1160 = vsub.f32 %v1152, %v1040
        %v1161 = vsub.f32 %v1153, %v1041
        %v1162 = vsub.f32 %v1154, %v1042
        %v1163 = vsub.f32 %v1155, %v1043
        %v1164 = vsub.f32 %v1156, %v1044
        %v1165 = vsub.f32 %v1157, %v1045
        %v1166 = vsub.f32 %v1158, %v1046
        %v1167 = vsub.f32 %v1159, %v1047
        %v1168 = vsel %vm960, %v1160, -inf
        %v1169 = vsel %vm960, %v1161, -inf
        %v1170 = vsel %vm960, %v1162, -inf
        %v1171 = vsel %vm960, %v1163, -inf
        %v1172 = vsel %vm960, %v1164, -inf
        %v1173 = vmax.f32 %v1168, %v1172
        %v1174 = vsel %vm960, %v1165, -inf
        %v1175 = vmax.f32 %v1169, %v1174
        %v1176 = vsel %vm960, %v1166, -inf
        %v1177 = vmax.f32 %v1170, %v1176
        %v1178 = vsel %vm960, %v1167, -inf
        %v1179 = vmax.f32 %v1171, %v1178
        %v1180 = vmax.f32 %v1173, %v1175
        %v1181 = vmax.f32 %v1177, %v1179
        %v1182 = vmax.f32 %v1180, %v1181
        %v1183 = vrot.slane %v1182, 4
        %v1184 = vmax.f32 %v1182, %v1183
        %v1185 = vrot.slane %v1184, 2
        %v1186 = vmax.f32 %v1184, %v1185
        %v1187 = vrot.slane %v1186, 1
        %v1188 = vmax.f32 %v1186, %v1187
        %v1189 = vsub.f32 %v1160, %v1188
        %v1190 = vsub.f32 %v1161, %v1188
        %v1191 = vsub.f32 %v1162, %v1188
        %v1192 = vsub.f32 %v1163, %v1188
        %v1193 = vsub.f32 %v1164, %v1188
        %v1194 = vsub.f32 %v1165, %v1188
        %v1195 = vsub.f32 %v1166, %v1188
        %v1196 = vsub.f32 %v1167, %v1188
        %v1197 = vmul.f32 %v1189, 1.442695
        %v1198 = vpow.pop %v1197
        %v1199 = vmul.f32 %v1190, 1.442695
        %v1200 = vpow.pop %v1199
        %v1201 = vmul.f32 %v1191, 1.442695
        %v1202 = vpow.pop %v1201
        %v1203 = vmul.f32 %v1192, 1.442695
        %v1204 = vpow.pop %v1203
        %v1205 = vmul.f32 %v1193, 1.442695
        %v1206 = vpow.pop %v1205
        %v1207 = vmul.f32 %v1194, 1.442695
        %v1208 = vpow.pop %v1207
        %v1209 = vmul.f32 %v1195, 1.442695
        %v1210 = vpow.pop %v1209
        %v1211 = vmul.f32 %v1196, 1.442695
        %v1212 = vpow.pop %v1211
        %v1213 = vsel %vm960, %v1198, 0.0
        %v1214 = vsel %vm960, %v1200, 0.0
        %v1215 = vadd.f32 %v1213, %v1214
        %v1216 = vsel %vm960, %v1202, 0.0
        %v1217 = vadd.f32 %v1215, %v1216
        %v1218 = vsel %vm960, %v1204, 0.0
        %v1219 = vadd.f32 %v1217, %v1218
        %v1220 = vsel %vm960, %v1206, 0.0
        %v1221 = vadd.f32 %v1219, %v1220
        %v1222 = vsel %vm960, %v1208, 0.0
        %v1223 = vadd.f32 %v1221, %v1222
        %v1224 = vsel %vm960, %v1210, 0.0
        %v1225 = vadd.f32 %v1223, %v1224
        %v1226 = vsel %vm960, %v1212, 0.0
        %v1227 = vadd.f32 %v1225, %v1226
        %v1228 = vrot.slane %v1227, 4
        %v1229 = vadd.f32 %v1227, %v1228
        %v1230 = vrot.slane %v1229, 2
        %v1231 = vadd.f32 %v1229, %v1230
        %v1232 = vrot.slane %v1231, 1
        %v1233 = vadd.f32 %v1231, %v1232
        %v1234 = vlog2.pop %v1233
        %v1235 = vmul.f32 %v1234, 0.6931472
        %v1236 = vadd.f32 %v1188, %v1235
        %v1237 = vsub.f32 -4.158883, %v1236
        %v1238 = vsub.f32 %v1237, %v1040
        %v1239 = vsub.f32 %v1237, %v1041
        %v1240 = vsub.f32 %v1237, %v1042
        %v1241 = vsub.f32 %v1237, %v1043
        %v1242 = vsub.f32 %v1237, %v1044
        %v1243 = vsub.f32 %v1237, %v1045
        %v1244 = vsub.f32 %v1237, %v1046
        %v1245 = vsub.f32 %v1237, %v1047
        %v1246 = vsel %vm960, %v1238, -inf
        %1247 = vmax.xlane.f32.xlu0 %v1246
        %v1248 = vpop.xlane.xlu0 %1247
        %v1249 = vsel %vm960, %v1239, -inf
        %1250 = vmax.xlane.f32.xlu0 %v1249
        %v1251 = vpop.xlane.xlu0 %1250
        %v1252 = vsel %vm960, %v1240, -inf
        %1253 = vmax.xlane.f32.xlu0 %v1252
        %v1254 = vpop.xlane.xlu0 %1253
        %v1255 = vsel %vm960, %v1241, -inf
        %1256 = vmax.xlane.f32.xlu0 %v1255
        %v1257 = vpop.xlane.xlu0 %1256
        %v1258 = vsel %vm960, %v1242, -inf
        %1259 = vmax.xlane.f32.xlu0 %v1258
        %v1260 = vpop.xlane.xlu0 %1259
        %v1261 = vsel %vm960, %v1243, -inf
        %1262 = vmax.xlane.f32.xlu0 %v1261
        %v1263 = vpop.xlane.xlu0 %1262
        %v1264 = vsel %vm960, %v1244, -inf
        %1265 = vmax.xlane.f32.xlu0 %v1264
        %v1266 = vpop.xlane.xlu0 %1265
        %v1267 = vsel %vm960, %v1245, -inf
        %1268 = vmax.xlane.f32.xlu0 %v1267
        %v1269 = vpop.xlane.xlu0 %1268
        %v1270 = vsub.f32 %v1238, %v1248
        %v1271 = vsub.f32 %v1239, %v1251
        %v1272 = vsub.f32 %v1240, %v1254
        %v1273 = vsub.f32 %v1241, %v1257
        %v1274 = vsub.f32 %v1242, %v1260
        %v1275 = vsub.f32 %v1243, %v1263
        %v1276 = vsub.f32 %v1244, %v1266
        %v1277 = vsub.f32 %v1245, %v1269
        %v1278 = vmul.f32 %v1270, 1.442695
        %v1279 = vpow.pop %v1278
        %v1280 = vmul.f32 %v1271, 1.442695
        %v1281 = vpow.pop %v1280
        %v1282 = vmul.f32 %v1272, 1.442695
        %v1283 = vpow.pop %v1282
        %v1284 = vmul.f32 %v1273, 1.442695
        %v1285 = vpow.pop %v1284
        %v1286 = vmul.f32 %v1274, 1.442695
        %v1287 = vpow.pop %v1286
        %v1288 = vmul.f32 %v1275, 1.442695
        %v1289 = vpow.pop %v1288
        %v1290 = vmul.f32 %v1276, 1.442695
        %v1291 = vpow.pop %v1290
        %v1292 = vmul.f32 %v1277, 1.442695
        %v1293 = vpow.pop %v1292
        %v1294 = vsel %vm960, %v1279, 0.0
        %1295 = vadd.xlane.f32.xlu0 %v1294
        %v1296 = vpop.xlane.xlu0 %1295
        %v1297 = vsel %vm960, %v1281, 0.0
        %1298 = vadd.xlane.f32.xlu0 %v1297
        %v1299 = vpop.xlane.xlu0 %1298
        %v1300 = vsel %vm960, %v1283, 0.0
        %1301 = vadd.xlane.f32.xlu0 %v1300
        %v1302 = vpop.xlane.xlu0 %1301
        %v1303 = vsel %vm960, %v1285, 0.0
        %1304 = vadd.xlane.f32.xlu0 %v1303
        %v1305 = vpop.xlane.xlu0 %1304
        %v1306 = vsel %vm960, %v1287, 0.0
        %1307 = vadd.xlane.f32.xlu0 %v1306
        %v1308 = vpop.xlane.xlu0 %1307
        %v1309 = vsel %vm960, %v1289, 0.0
        %1310 = vadd.xlane.f32.xlu0 %v1309
        %v1311 = vpop.xlane.xlu0 %1310
        %v1312 = vsel %vm960, %v1291, 0.0
        %1313 = vadd.xlane.f32.xlu0 %v1312
        %v1314 = vpop.xlane.xlu0 %1313
        %v1315 = vsel %vm960, %v1293, 0.0
        %1316 = vadd.xlane.f32.xlu0 %v1315
        %v1317 = vpop.xlane.xlu0 %1316
        %v1318 = vlog2.pop %v1296
        %v1319 = vmul.f32 %v1318, 0.6931472
        %v1320 = vlog2.pop %v1299
        %v1321 = vmul.f32 %v1320, 0.6931472
        %v1322 = vlog2.pop %v1302
        %v1323 = vmul.f32 %v1322, 0.6931472
        %v1324 = vlog2.pop %v1305
        %v1325 = vmul.f32 %v1324, 0.6931472
        %v1326 = vlog2.pop %v1308
        %v1327 = vmul.f32 %v1326, 0.6931472
        %v1328 = vlog2.pop %v1311
        %v1329 = vmul.f32 %v1328, 0.6931472
        %v1330 = vlog2.pop %v1314
        %v1331 = vmul.f32 %v1330, 0.6931472
        %v1332 = vlog2.pop %v1317
        %v1333 = vmul.f32 %v1332, 0.6931472
        %v1334 = vadd.f32 %v1248, %v1319
        %v1335 = vadd.f32 %v1251, %v1321
        %v1336 = vadd.f32 %v1254, %v1323
        %v1337 = vadd.f32 %v1257, %v1325
        %v1338 = vadd.f32 %v1260, %v1327
        %v1339 = vadd.f32 %v1263, %v1329
        %v1340 = vadd.f32 %v1266, %v1331
        %v1341 = vadd.f32 %v1269, %v1333
        %v1342 = vsub.f32 -4.158883, %v1334
        %v1343 = vsub.f32 -4.158883, %v1335
        %v1344 = vsub.f32 -4.158883, %v1336
        %v1345 = vsub.f32 -4.158883, %v1337
        %v1346 = vsub.f32 -4.158883, %v1338
        %v1347 = vsub.f32 -4.158883, %v1339
        %v1348 = vsub.f32 -4.158883, %v1340
        %v1349 = vsub.f32 -4.158883, %v1341
        %v1350 = vsub.f32 %v1342, %v1040
        %v1351 = vsub.f32 %v1343, %v1041
        %v1352 = vsub.f32 %v1344, %v1042
        %v1353 = vsub.f32 %v1345, %v1043
        %v1354 = vsub.f32 %v1346, %v1044
        %v1355 = vsub.f32 %v1347, %v1045
        %v1356 = vsub.f32 %v1348, %v1046
        %v1357 = vsub.f32 %v1349, %v1047
        %v1358 = vsel %vm960, %v1350, -inf
        %v1359 = vsel %vm960, %v1351, -inf
        %v1360 = vsel %vm960, %v1352, -inf
        %v1361 = vsel %vm960, %v1353, -inf
        %v1362 = vsel %vm960, %v1354, -inf
        %v1363 = vmax.f32 %v1358, %v1362
        %v1364 = vsel %vm960, %v1355, -inf
        %v1365 = vmax.f32 %v1359, %v1364
        %v1366 = vsel %vm960, %v1356, -inf
        %v1367 = vmax.f32 %v1360, %v1366
        %v1368 = vsel %vm960, %v1357, -inf
        %v1369 = vmax.f32 %v1361, %v1368
        %v1370 = vmax.f32 %v1363, %v1365
        %v1371 = vmax.f32 %v1367, %v1369
        %v1372 = vmax.f32 %v1370, %v1371
        %v1373 = vrot.slane %v1372, 4
        %v1374 = vmax.f32 %v1372, %v1373
        %v1375 = vrot.slane %v1374, 2
        %v1376 = vmax.f32 %v1374, %v1375
        %v1377 = vrot.slane %v1376, 1
        %v1378 = vmax.f32 %v1376, %v1377
        %v1379 = vsub.f32 %v1350, %v1378
        %v1380 = vsub.f32 %v1351, %v1378
        %v1381 = vsub.f32 %v1352, %v1378
        %v1382 = vsub.f32 %v1353, %v1378
        %v1383 = vsub.f32 %v1354, %v1378
        %v1384 = vsub.f32 %v1355, %v1378
        %v1385 = vsub.f32 %v1356, %v1378
        %v1386 = vsub.f32 %v1357, %v1378
        %v1387 = vmul.f32 %v1379, 1.442695
        %v1388 = vpow.pop %v1387
        %v1389 = vmul.f32 %v1380, 1.442695
        %v1390 = vpow.pop %v1389
        %v1391 = vmul.f32 %v1381, 1.442695
        %v1392 = vpow.pop %v1391
        %v1393 = vmul.f32 %v1382, 1.442695
        %v1394 = vpow.pop %v1393
        %v1395 = vmul.f32 %v1383, 1.442695
        %v1396 = vpow.pop %v1395
        %v1397 = vmul.f32 %v1384, 1.442695
        %v1398 = vpow.pop %v1397
        %v1399 = vmul.f32 %v1385, 1.442695
        %v1400 = vpow.pop %v1399
        %v1401 = vmul.f32 %v1386, 1.442695
        %v1402 = vpow.pop %v1401
        %v1403 = vsel %vm960, %v1388, 0.0
        %v1404 = vsel %vm960, %v1390, 0.0
        %v1405 = vadd.f32 %v1403, %v1404
        %v1406 = vsel %vm960, %v1392, 0.0
        %v1407 = vadd.f32 %v1405, %v1406
        %v1408 = vsel %vm960, %v1394, 0.0
        %v1409 = vadd.f32 %v1407, %v1408
        %v1410 = vsel %vm960, %v1396, 0.0
        %v1411 = vadd.f32 %v1409, %v1410
        %v1412 = vsel %vm960, %v1398, 0.0
        %v1413 = vadd.f32 %v1411, %v1412
        %v1414 = vsel %vm960, %v1400, 0.0
        %v1415 = vadd.f32 %v1413, %v1414
        %v1416 = vsel %vm960, %v1402, 0.0
        %v1417 = vadd.f32 %v1415, %v1416
        %v1418 = vrot.slane %v1417, 4
        %v1419 = vadd.f32 %v1417, %v1418
        %v1420 = vrot.slane %v1419, 2
        %v1421 = vadd.f32 %v1419, %v1420
        %v1422 = vrot.slane %v1421, 1
        %v1423 = vadd.f32 %v1421, %v1422
        %v1424 = vlog2.pop %v1423
        %v1425 = vmul.f32 %v1424, 0.6931472
        %v1426 = vadd.f32 %v1378, %v1425
        %v1427 = vsub.f32 -4.158883, %v1426
        %v1428 = vadd.f32 %v1342, %v1427
        %v1429 = vadd.f32 %v1343, %v1427
        %v1430 = vadd.f32 %v1344, %v1427
        %v1431 = vadd.f32 %v1345, %v1427
        %v1432 = vadd.f32 %v1346, %v1427
        %v1433 = vadd.f32 %v1347, %v1427
        %v1434 = vadd.f32 %v1348, %v1427
        %v1435 = vadd.f32 %v1349, %v1427
        %v1436 = vsub.f32 %v1428, %v1040
        %v1437 = vsub.f32 %v1429, %v1041
        %v1438 = vsub.f32 %v1430, %v1042
        %v1439 = vsub.f32 %v1431, %v1043
        %v1440 = vsub.f32 %v1432, %v1044
        %v1441 = vsub.f32 %v1433, %v1045
        %v1442 = vsub.f32 %v1434, %v1046
        %v1443 = vsub.f32 %v1435, %v1047
        %v1444 = vmul.f32 %v1436, 1.442695
        %v1445 = vpow.pop %v1444
        %v1446 = vmul.f32 %v1437, 1.442695
        %v1447 = vpow.pop %v1446
        %v1448 = vmul.f32 %v1438, 1.442695
        %v1449 = vpow.pop %v1448
        %v1450 = vmul.f32 %v1439, 1.442695
        %v1451 = vpow.pop %v1450
        %v1452 = vmul.f32 %v1440, 1.442695
        %v1453 = vpow.pop %v1452
        %v1454 = vmul.f32 %v1441, 1.442695
        %v1455 = vpow.pop %v1454
        %v1456 = vmul.f32 %v1442, 1.442695
        %v1457 = vpow.pop %v1456
        %v1458 = vmul.f32 %v1443, 1.442695
        %v1459 = vpow.pop %v1458
        %v1461 = vsel %vm960, 1.0, 0
        %v1464 = vsel %vm960, %v1445, 0
        %v1467 = vsel %vm960, %v1447, 0
        %v1470 = vsel %vm960, %v1449, 0
        %v1473 = vsel %vm960, %v1451, 0
        %v1476 = vsel %vm960, %v1453, 0
        %v1479 = vsel %vm960, %v1455, 0
        %v1482 = vsel %vm960, %v1457, 0
        %v1485 = vsel %vm960, %v1459, 0
        %1487 = vmatprep.subr.mxu0 0.0
        %1488 = vmatpush1.xpose.msra.mxu0 %v1464
        %1489 = vmatprep.subr.mxu0 0.0
        %1490 = vmatpush1.xpose.msra.mxu0 %v1467
        %1491 = vmatprep.subr.mxu0 0.0
        %1492 = vmatpush1.xpose.msra.mxu0 %v1470
        %1493 = vmatprep.subr.mxu0 0.0
        %1494 = vmatpush1.xpose.msra.mxu0 %v1473
        %1495 = vmatprep.subr.mxu0 0.0
        %1496 = vmatpush1.xpose.msra.mxu0 %v1476
        %1497 = vmatprep.subr.mxu0 0.0
        %1498 = vmatpush1.xpose.msra.mxu0 %v1479
        %1499 = vmatprep.subr.mxu0 0.0
        %1500 = vmatpush1.xpose.msra.mxu0 %v1482
        %1501 = vmatprep.subr.mxu0 0.0
        %1502 = vmatpush1.xpose.msra.mxu0 %v1485
        %1503 = vmatprep.subr.mxu0 0.0
        %1504 = vmatpush1.xpose.msra.mxu0 0.0
        %1505 = vmatprep.subr.mxu0 0.0
        %1506 = vmatpush1.xpose.msra.mxu0 0.0
        %1507 = vmatprep.subr.mxu0 0.0
        %1508 = vmatpush1.xpose.msra.mxu0 0.0
        %1509 = vmatprep.subr.mxu0 0.0
        %1510 = vmatpush1.xpose.msra.mxu0 0.0
        %1511 = vmatprep.subr.mxu0 0.0
        %1512 = vmatpush1.xpose.msra.mxu0 0.0
        %1513 = vmatprep.subr.mxu0 0.0
        %1514 = vmatpush1.xpose.msra.mxu0 0.0
        %1515 = vmatprep.subr.mxu0 0.0
        %1516 = vmatpush1.xpose.msra.mxu0 0.0
        %1517 = vmatprep.subr.mxu0 0.0
        %1518 = vmatpush1.xpose.msra.mxu0 0.0
        %1519 = vmatprep.subr.mxu0 0.0
        %1520 = vmatpush1.xpose.msra.mxu0 0.0
        %1521 = vmatprep.subr.mxu0 0.0
        %1522 = vmatpush1.xpose.msra.mxu0 0.0
        %1523 = vmatprep.subr.mxu0 0.0
        %1524 = vmatpush1.xpose.msra.mxu0 0.0
        %1525 = vmatprep.subr.mxu0 0.0
        %1526 = vmatpush1.xpose.msra.mxu0 0.0
        %1527 = vmatprep.subr.mxu0 0.0
        %1528 = vmatpush1.xpose.msra.mxu0 0.0
        %1529 = vmatprep.subr.mxu0 0.0
        %1530 = vmatpush1.xpose.msra.mxu0 0.0
        %1531 = vmatprep.subr.mxu0 0.0
        %1532 = vmatpush1.xpose.msra.mxu0 0.0
        %1533 = vmatprep.subr.mxu0 0.0
        %1534 = vmatpush1.xpose.msra.mxu0 0.0
        %1535 = vmatprep.subr.mxu0 0.0
        %1536 = vmatpush1.xpose.msra.mxu0 0.0
        %1537 = vmatprep.subr.mxu0 0.0
        %1538 = vmatpush1.xpose.msra.mxu0 0.0
        %1539 = vmatprep.subr.mxu0 0.0
        %1540 = vmatpush1.xpose.msra.mxu0 0.0
        %1541 = vmatprep.subr.mxu0 0.0
        %1542 = vmatpush1.xpose.msra.mxu0 0.0
        %1543 = vmatprep.subr.mxu0 0.0
        %1544 = vmatpush1.xpose.msra.mxu0 0.0
        %1545 = vmatprep.subr.mxu0 0.0
        %1546 = vmatpush1.xpose.msra.mxu0 0.0
        %1547 = vmatprep.subr.mxu0 0.0
        %1548 = vmatpush1.xpose.msra.mxu0 0.0
        %1549 = vmatprep.subr.mxu0 0.0
        %1550 = vmatpush1.xpose.msra.mxu0 0.0
        %1551 = vmatprep.mubr.f32.mxu0 0.0
        %1552 = vmatmul.mubr.f32.gmra.mrb[0].mxu0 %v1461
        %v1553 = vpop.f32.mrb[0].mxu0
        %v1554 = vadd.f32 0.0, %v1553
        %v1555 = vpop.f32.mrb[0].mxu0
        %1556 = vdwg.mxu0
        %v1557 = vmax.f32 %v1554, 1e-30
        %v1558 = vrcp.pop %v1557
        %v1559 = vmul.f32 %v1558, 0.015625
        %v1561 = vsel %vm960, %v1559, 0
        %1563 = vmatprep.subr.mxu0 0.0
        %1564 = vmatpush1.msra.mxu0 %v1445
        %1565 = vmatprep.subr.mxu0 0.0
        %1566 = vmatpush1.msra.mxu0 %v1447
        %1567 = vmatprep.subr.mxu0 0.0
        %1568 = vmatpush1.msra.mxu0 %v1449
        %1569 = vmatprep.subr.mxu0 0.0
        %1570 = vmatpush1.msra.mxu0 %v1451
        %1571 = vmatprep.subr.mxu0 0.0
        %1572 = vmatpush1.msra.mxu0 %v1453
        %1573 = vmatprep.subr.mxu0 0.0
        %1574 = vmatpush1.msra.mxu0 %v1455
        %1575 = vmatprep.subr.mxu0 0.0
        %1576 = vmatpush1.msra.mxu0 %v1457
        %1577 = vmatprep.subr.mxu0 0.0
        %1578 = vmatpush1.msra.mxu0 %v1459
        %1579 = vmatprep.subr.mxu0 0.0
        %1580 = vmatpush1.msra.mxu0 0.0
        %1581 = vmatprep.subr.mxu0 0.0
        %1582 = vmatpush1.msra.mxu0 0.0
        %1583 = vmatprep.subr.mxu0 0.0
        %1584 = vmatpush1.msra.mxu0 0.0
        %1585 = vmatprep.subr.mxu0 0.0
        %1586 = vmatpush1.msra.mxu0 0.0
        %1587 = vmatprep.subr.mxu0 0.0
        %1588 = vmatpush1.msra.mxu0 0.0
        %1589 = vmatprep.subr.mxu0 0.0
        %1590 = vmatpush1.msra.mxu0 0.0
        %1591 = vmatprep.subr.mxu0 0.0
        %1592 = vmatpush1.msra.mxu0 0.0
        %1593 = vmatprep.subr.mxu0 0.0
        %1594 = vmatpush1.msra.mxu0 0.0
        %1595 = vmatprep.subr.mxu0 0.0
        %1596 = vmatpush1.msra.mxu0 0.0
        %1597 = vmatprep.subr.mxu0 0.0
        %1598 = vmatpush1.msra.mxu0 0.0
        %1599 = vmatprep.subr.mxu0 0.0
        %1600 = vmatpush1.msra.mxu0 0.0
        %1601 = vmatprep.subr.mxu0 0.0
        %1602 = vmatpush1.msra.mxu0 0.0
        %1603 = vmatprep.subr.mxu0 0.0
        %1604 = vmatpush1.msra.mxu0 0.0
        %1605 = vmatprep.subr.mxu0 0.0
        %1606 = vmatpush1.msra.mxu0 0.0
        %1607 = vmatprep.subr.mxu0 0.0
        %1608 = vmatpush1.msra.mxu0 0.0
        %1609 = vmatprep.subr.mxu0 0.0
        %1610 = vmatpush1.msra.mxu0 0.0
        %1611 = vmatprep.subr.mxu0 0.0
        %1612 = vmatpush1.msra.mxu0 0.0
        %1613 = vmatprep.subr.mxu0 0.0
        %1614 = vmatpush1.msra.mxu0 0.0
        %1615 = vmatprep.subr.mxu0 0.0
        %1616 = vmatpush1.msra.mxu0 0.0
        %1617 = vmatprep.subr.mxu0 0.0
        %1618 = vmatpush1.msra.mxu0 0.0
        %1619 = vmatprep.subr.mxu0 0.0
        %1620 = vmatpush1.msra.mxu0 0.0
        %1621 = vmatprep.subr.mxu0 0.0
        %1622 = vmatpush1.msra.mxu0 0.0
        %1623 = vmatprep.subr.mxu0 0.0
        %1624 = vmatpush1.msra.mxu0 0.0
        %1625 = vmatprep.subr.mxu0 0.0
        %1626 = vmatpush1.msra.mxu0 0.0
        %1627 = vmatprep.mubr.f32.mxu0 0.0
        %1628 = vmatmul.mubr.f32.gmra.mrb[0].mxu0 %v1561
        %v1629 = vpop.f32.mrb[0].mxu0
        %v1630 = vadd.f32 0.0, %v1629
        %v1631 = vpop.f32.mrb[0].mxu0
        %1632 = vdwg.mxu0
        %v1633 = vmax.f32 %v1630, 1e-30
        %v1634 = vrcp.pop %v1633
        %v1635 = vmul.f32 %v1634, 0.015625
        %v1637 = vsel %vm960, %v1635, 0
        %1639 = vmatprep.subr.mxu0 0.0
        %1640 = vmatpush1.xpose.msra.mxu0 %v1464
        %1641 = vmatprep.subr.mxu0 0.0
        %1642 = vmatpush1.xpose.msra.mxu0 %v1467
        %1643 = vmatprep.subr.mxu0 0.0
        %1644 = vmatpush1.xpose.msra.mxu0 %v1470
        %1645 = vmatprep.subr.mxu0 0.0
        %1646 = vmatpush1.xpose.msra.mxu0 %v1473
        %1647 = vmatprep.subr.mxu0 0.0
        %1648 = vmatpush1.xpose.msra.mxu0 %v1476
        %1649 = vmatprep.subr.mxu0 0.0
        %1650 = vmatpush1.xpose.msra.mxu0 %v1479
        %1651 = vmatprep.subr.mxu0 0.0
        %1652 = vmatpush1.xpose.msra.mxu0 %v1482
        %1653 = vmatprep.subr.mxu0 0.0
        %1654 = vmatpush1.xpose.msra.mxu0 %v1485
        %1655 = vmatprep.subr.mxu0 0.0
        %1656 = vmatpush1.xpose.msra.mxu0 0.0
        %1657 = vmatprep.subr.mxu0 0.0
        %1658 = vmatpush1.xpose.msra.mxu0 0.0
        %1659 = vmatprep.subr.mxu0 0.0
        %1660 = vmatpush1.xpose.msra.mxu0 0.0
        %1661 = vmatprep.subr.mxu0 0.0
        %1662 = vmatpush1.xpose.msra.mxu0 0.0
        %1663 = vmatprep.subr.mxu0 0.0
        %1664 = vmatpush1.xpose.msra.mxu0 0.0
        %1665 = vmatprep.subr.mxu0 0.0
        %1666 = vmatpush1.xpose.msra.mxu0 0.0
        %1667 = vmatprep.subr.mxu0 0.0
        %1668 = vmatpush1.xpose.msra.mxu0 0.0
        %1669 = vmatprep.subr.mxu0 0.0
        %1670 = vmatpush1.xpose.msra.mxu0 0.0
        %1671 = vmatprep.subr.mxu0 0.0
        %1672 = vmatpush1.xpose.msra.mxu0 0.0
        %1673 = vmatprep.subr.mxu0 0.0
        %1674 = vmatpush1.xpose.msra.mxu0 0.0
        %1675 = vmatprep.subr.mxu0 0.0
        %1676 = vmatpush1.xpose.msra.mxu0 0.0
        %1677 = vmatprep.subr.mxu0 0.0
        %1678 = vmatpush1.xpose.msra.mxu0 0.0
        %1679 = vmatprep.subr.mxu0 0.0
        %1680 = vmatpush1.xpose.msra.mxu0 0.0
        %1681 = vmatprep.subr.mxu0 0.0
        %1682 = vmatpush1.xpose.msra.mxu0 0.0
        %1683 = vmatprep.subr.mxu0 0.0
        %1684 = vmatpush1.xpose.msra.mxu0 0.0
        %1685 = vmatprep.subr.mxu0 0.0
        %1686 = vmatpush1.xpose.msra.mxu0 0.0
        %1687 = vmatprep.subr.mxu0 0.0
        %1688 = vmatpush1.xpose.msra.mxu0 0.0
        %1689 = vmatprep.subr.mxu0 0.0
        %1690 = vmatpush1.xpose.msra.mxu0 0.0
        %1691 = vmatprep.subr.mxu0 0.0
        %1692 = vmatpush1.xpose.msra.mxu0 0.0
        %1693 = vmatprep.subr.mxu0 0.0
        %1694 = vmatpush1.xpose.msra.mxu0 0.0
        %1695 = vmatprep.subr.mxu0 0.0
        %1696 = vmatpush1.xpose.msra.mxu0 0.0
        %1697 = vmatprep.subr.mxu0 0.0
        %1698 = vmatpush1.xpose.msra.mxu0 0.0
        %1699 = vmatprep.subr.mxu0 0.0
        %1700 = vmatpush1.xpose.msra.mxu0 0.0
        %1701 = vmatprep.subr.mxu0 0.0
        %1702 = vmatpush1.xpose.msra.mxu0 0.0
        %1703 = vmatprep.mubr.f32.mxu0 0.0
        %1704 = vmatmul.mubr.f32.gmra.mrb[0].mxu0 %v1637
        %v1705 = vpop.f32.mrb[0].mxu0
        %v1706 = vadd.f32 0.0, %v1705
        %v1707 = vpop.f32.mrb[0].mxu0
        %1708 = vdwg.mxu0
        %v1709 = vmax.f32 %v1706, 1e-30
        %v1710 = vrcp.pop %v1709
        %v1711 = vmul.f32 %v1710, 0.015625
        %v1713 = vsel %vm960, %v1711, 0
        %1715 = vmatprep.subr.mxu0 0.0
        %1716 = vmatpush1.msra.mxu0 %v1445
        %1717 = vmatprep.subr.mxu0 0.0
        %1718 = vmatpush1.msra.mxu0 %v1447
        %1719 = vmatprep.subr.mxu0 0.0
        %1720 = vmatpush1.msra.mxu0 %v1449
        %1721 = vmatprep.subr.mxu0 0.0
        %1722 = vmatpush1.msra.mxu0 %v1451
        %1723 = vmatprep.subr.mxu0 0.0
        %1724 = vmatpush1.msra.mxu0 %v1453
        %1725 = vmatprep.subr.mxu0 0.0
        %1726 = vmatpush1.msra.mxu0 %v1455
        %1727 = vmatprep.subr.mxu0 0.0
        %1728 = vmatpush1.msra.mxu0 %v1457
        %1729 = vmatprep.subr.mxu0 0.0
        %1730 = vmatpush1.msra.mxu0 %v1459
        %1731 = vmatprep.subr.mxu0 0.0
        %1732 = vmatpush1.msra.mxu0 0.0
        %1733 = vmatprep.subr.mxu0 0.0
        %1734 = vmatpush1.msra.mxu0 0.0
        %1735 = vmatprep.subr.mxu0 0.0
        %1736 = vmatpush1.msra.mxu0 0.0
        %1737 = vmatprep.subr.mxu0 0.0
        %1738 = vmatpush1.msra.mxu0 0.0
        %1739 = vmatprep.subr.mxu0 0.0
        %1740 = vmatpush1.msra.mxu0 0.0
        %1741 = vmatprep.subr.mxu0 0.0
        %1742 = vmatpush1.msra.mxu0 0.0
        %1743 = vmatprep.subr.mxu0 0.0
        %1744 = vmatpush1.msra.mxu0 0.0
        %1745 = vmatprep.subr.mxu0 0.0
        %1746 = vmatpush1.msra.mxu0 0.0
        %1747 = vmatprep.subr.mxu0 0.0
        %1748 = vmatpush1.msra.mxu0 0.0
        %1749 = vmatprep.subr.mxu0 0.0
        %1750 = vmatpush1.msra.mxu0 0.0
        %1751 = vmatprep.subr.mxu0 0.0
        %1752 = vmatpush1.msra.mxu0 0.0
        %1753 = vmatprep.subr.mxu0 0.0
        %1754 = vmatpush1.msra.mxu0 0.0
        %1755 = vmatprep.subr.mxu0 0.0
        %1756 = vmatpush1.msra.mxu0 0.0
        %1757 = vmatprep.subr.mxu0 0.0
        %1758 = vmatpush1.msra.mxu0 0.0
        %1759 = vmatprep.subr.mxu0 0.0
        %1760 = vmatpush1.msra.mxu0 0.0
        %1761 = vmatprep.subr.mxu0 0.0
        %1762 = vmatpush1.msra.mxu0 0.0
        %1763 = vmatprep.subr.mxu0 0.0
        %1764 = vmatpush1.msra.mxu0 0.0
        %1765 = vmatprep.subr.mxu0 0.0
        %1766 = vmatpush1.msra.mxu0 0.0
        %1767 = vmatprep.subr.mxu0 0.0
        %1768 = vmatpush1.msra.mxu0 0.0
        %1769 = vmatprep.subr.mxu0 0.0
        %1770 = vmatpush1.msra.mxu0 0.0
        %1771 = vmatprep.subr.mxu0 0.0
        %1772 = vmatpush1.msra.mxu0 0.0
        %1773 = vmatprep.subr.mxu0 0.0
        %1774 = vmatpush1.msra.mxu0 0.0
        %1775 = vmatprep.subr.mxu0 0.0
        %1776 = vmatpush1.msra.mxu0 0.0
        %1777 = vmatprep.subr.mxu0 0.0
        %1778 = vmatpush1.msra.mxu0 0.0
        %1779 = vmatprep.mubr.f32.mxu0 0.0
        %1780 = vmatmul.mubr.f32.gmra.mrb[0].mxu0 %v1713
        %v1781 = vpop.f32.mrb[0].mxu0
        %v1782 = vadd.f32 0.0, %v1781
        %v1783 = vpop.f32.mrb[0].mxu0
        %1784 = vdwg.mxu0
        %v1785 = vmax.f32 %v1782, 1e-30
        %v1786 = vrcp.pop %v1785
        %v1787 = vmul.f32 %v1786, 0.015625
        %v1789 = vsel %vm960, %v1787, 0
        %1791 = vmatprep.subr.mxu0 0.0
        %1792 = vmatpush1.xpose.msra.mxu0 %v1464
        %1793 = vmatprep.subr.mxu0 0.0
        %1794 = vmatpush1.xpose.msra.mxu0 %v1467
        %1795 = vmatprep.subr.mxu0 0.0
        %1796 = vmatpush1.xpose.msra.mxu0 %v1470
        %1797 = vmatprep.subr.mxu0 0.0
        %1798 = vmatpush1.xpose.msra.mxu0 %v1473
        %1799 = vmatprep.subr.mxu0 0.0
        %1800 = vmatpush1.xpose.msra.mxu0 %v1476
        %1801 = vmatprep.subr.mxu0 0.0
        %1802 = vmatpush1.xpose.msra.mxu0 %v1479
        %1803 = vmatprep.subr.mxu0 0.0
        %1804 = vmatpush1.xpose.msra.mxu0 %v1482
        %1805 = vmatprep.subr.mxu0 0.0
        %1806 = vmatpush1.xpose.msra.mxu0 %v1485
        %1807 = vmatprep.subr.mxu0 0.0
        %1808 = vmatpush1.xpose.msra.mxu0 0.0
        %1809 = vmatprep.subr.mxu0 0.0
        %1810 = vmatpush1.xpose.msra.mxu0 0.0
        %1811 = vmatprep.subr.mxu0 0.0
        %1812 = vmatpush1.xpose.msra.mxu0 0.0
        %1813 = vmatprep.subr.mxu0 0.0
        %1814 = vmatpush1.xpose.msra.mxu0 0.0
        %1815 = vmatprep.subr.mxu0 0.0
        %1816 = vmatpush1.xpose.msra.mxu0 0.0
        %1817 = vmatprep.subr.mxu0 0.0
        %1818 = vmatpush1.xpose.msra.mxu0 0.0
        %1819 = vmatprep.subr.mxu0 0.0
        %1820 = vmatpush1.xpose.msra.mxu0 0.0
        %1821 = vmatprep.subr.mxu0 0.0
        %1822 = vmatpush1.xpose.msra.mxu0 0.0
        %1823 = vmatprep.subr.mxu0 0.0
        %1824 = vmatpush1.xpose.msra.mxu0 0.0
        %1825 = vmatprep.subr.mxu0 0.0
        %1826 = vmatpush1.xpose.msra.mxu0 0.0
        %1827 = vmatprep.subr.mxu0 0.0
        %1828 = vmatpush1.xpose.msra.mxu0 0.0
        %1829 = vmatprep.subr.mxu0 0.0
        %1830 = vmatpush1.xpose.msra.mxu0 0.0
        %1831 = vmatprep.subr.mxu0 0.0
        %1832 = vmatpush1.xpose.msra.mxu0 0.0
        %1833 = vmatprep.subr.mxu0 0.0
        %1834 = vmatpush1.xpose.msra.mxu0 0.0
        %1835 = vmatprep.subr.mxu0 0.0
        %1836 = vmatpush1.xpose.msra.mxu0 0.0
        %1837 = vmatprep.subr.mxu0 0.0
        %1838 = vmatpush1.xpose.msra.mxu0 0.0
        %1839 = vmatprep.subr.mxu0 0.0
        %1840 = vmatpush1.xpose.msra.mxu0 0.0
        %1841 = vmatprep.subr.mxu0 0.0
        %1842 = vmatpush1.xpose.msra.mxu0 0.0
        %1843 = vmatprep.subr.mxu0 0.0
        %1844 = vmatpush1.xpose.msra.mxu0 0.0
        %1845 = vmatprep.subr.mxu0 0.0
        %1846 = vmatpush1.xpose.msra.mxu0 0.0
        %1847 = vmatprep.subr.mxu0 0.0
        %1848 = vmatpush1.xpose.msra.mxu0 0.0
        %1849 = vmatprep.subr.mxu0 0.0
        %1850 = vmatpush1.xpose.msra.mxu0 0.0
        %1851 = vmatprep.subr.mxu0 0.0
        %1852 = vmatpush1.xpose.msra.mxu0 0.0
        %1853 = vmatprep.subr.mxu0 0.0
        %1854 = vmatpush1.xpose.msra.mxu0 0.0
        %1855 = vmatprep.mubr.f32.mxu0 0.0
        %1856 = vmatmul.mubr.f32.gmra.mrb[0].mxu0 %v1789
        %v1857 = vpop.f32.mrb[0].mxu0
        %v1858 = vadd.f32 0.0, %v1857
        %v1859 = vpop.f32.mrb[0].mxu0
        %1860 = vdwg.mxu0
        %v1861 = vmax.f32 %v1858, 1e-30
        %v1862 = vrcp.pop %v1861
        %v1863 = vmul.f32 %v1862, 0.015625
        %v1865 = vsel %vm960, %v1863, 0
        %1867 = vmatprep.subr.mxu0 0.0
        %1868 = vmatpush1.msra.mxu0 %v1445
        %1869 = vmatprep.subr.mxu0 0.0
        %1870 = vmatpush1.msra.mxu0 %v1447
        %1871 = vmatprep.subr.mxu0 0.0
        %1872 = vmatpush1.msra.mxu0 %v1449
        %1873 = vmatprep.subr.mxu0 0.0
        %1874 = vmatpush1.msra.mxu0 %v1451
        %1875 = vmatprep.subr.mxu0 0.0
        %1876 = vmatpush1.msra.mxu0 %v1453
        %1877 = vmatprep.subr.mxu0 0.0
        %1878 = vmatpush1.msra.mxu0 %v1455
        %1879 = vmatprep.subr.mxu0 0.0
        %1880 = vmatpush1.msra.mxu0 %v1457
        %1881 = vmatprep.subr.mxu0 0.0
        %1882 = vmatpush1.msra.mxu0 %v1459
        %1883 = vmatprep.subr.mxu0 0.0
        %1884 = vmatpush1.msra.mxu0 0.0
        %1885 = vmatprep.subr.mxu0 0.0
        %1886 = vmatpush1.msra.mxu0 0.0
        %1887 = vmatprep.subr.mxu0 0.0
        %1888 = vmatpush1.msra.mxu0 0.0
        %1889 = vmatprep.subr.mxu0 0.0
        %1890 = vmatpush1.msra.mxu0 0.0
        %1891 = vmatprep.subr.mxu0 0.0
        %1892 = vmatpush1.msra.mxu0 0.0
        %1893 = vmatprep.subr.mxu0 0.0
        %1894 = vmatpush1.msra.mxu0 0.0
        %1895 = vmatprep.subr.mxu0 0.0
        %1896 = vmatpush1.msra.mxu0 0.0
        %1897 = vmatprep.subr.mxu0 0.0
        %1898 = vmatpush1.msra.mxu0 0.0
        %1899 = vmatprep.subr.mxu0 0.0
        %1900 = vmatpush1.msra.mxu0 0.0
        %1901 = vmatprep.subr.mxu0 0.0
        %1902 = vmatpush1.msra.mxu0 0.0
        %1903 = vmatprep.subr.mxu0 0.0
        %1904 = vmatpush1.msra.mxu0 0.0
        %1905 = vmatprep.subr.mxu0 0.0
        %1906 = vmatpush1.msra.mxu0 0.0
        %1907 = vmatprep.subr.mxu0 0.0
        %1908 = vmatpush1.msra.mxu0 0.0
        %1909 = vmatprep.subr.mxu0 0.0
        %1910 = vmatpush1.msra.mxu0 0.0
        %1911 = vmatprep.subr.mxu0 0.0
        %1912 = vmatpush1.msra.mxu0 0.0
        %1913 = vmatprep.subr.mxu0 0.0
        %1914 = vmatpush1.msra.mxu0 0.0
        %1915 = vmatprep.subr.mxu0 0.0
        %1916 = vmatpush1.msra.mxu0 0.0
        %1917 = vmatprep.subr.mxu0 0.0
        %1918 = vmatpush1.msra.mxu0 0.0
        %1919 = vmatprep.subr.mxu0 0.0
        %1920 = vmatpush1.msra.mxu0 0.0
        %1921 = vmatprep.subr.mxu0 0.0
        %1922 = vmatpush1.msra.mxu0 0.0
        %1923 = vmatprep.subr.mxu0 0.0
        %1924 = vmatpush1.msra.mxu0 0.0
        %1925 = vmatprep.subr.mxu0 0.0
        %1926 = vmatpush1.msra.mxu0 0.0
        %1927 = vmatprep.subr.mxu0 0.0
        %1928 = vmatpush1.msra.mxu0 0.0
        %1929 = vmatprep.subr.mxu0 0.0
        %1930 = vmatpush1.msra.mxu0 0.0
        %1931 = vmatprep.mubr.f32.mxu0 0.0
        %1932 = vmatmul.mubr.f32.gmra.mrb[0].mxu0 %v1865
        %v1933 = vpop.f32.mrb[0].mxu0
        %v1934 = vadd.f32 0.0, %v1933
        %v1935 = vpop.f32.mrb[0].mxu0
        %1936 = vdwg.mxu0
        %v1937 = vmax.f32 %v1934, 1e-30
        %v1938 = vrcp.pop %v1937
        %v1939 = vmul.f32 %v1938, 0.015625
        %v1941 = vsel %vm960, %v1939, 0
        %1943 = vmatprep.subr.mxu0 0.0
        %1944 = vmatpush1.xpose.msra.mxu0 %v1464
        %1945 = vmatprep.subr.mxu0 0.0
        %1946 = vmatpush1.xpose.msra.mxu0 %v1467
        %1947 = vmatprep.subr.mxu0 0.0
        %1948 = vmatpush1.xpose.msra.mxu0 %v1470
        %1949 = vmatprep.subr.mxu0 0.0
        %1950 = vmatpush1.xpose.msra.mxu0 %v1473
        %1951 = vmatprep.subr.mxu0 0.0
        %1952 = vmatpush1.xpose.msra.mxu0 %v1476
        %1953 = vmatprep.subr.mxu0 0.0
        %1954 = vmatpush1.xpose.msra.mxu0 %v1479
        %1955 = vmatprep.subr.mxu0 0.0
        %1956 = vmatpush1.xpose.msra.mxu0 %v1482
        %1957 = vmatprep.subr.mxu0 0.0
        %1958 = vmatpush1.xpose.msra.mxu0 %v1485
        %1959 = vmatprep.subr.mxu0 0.0
        %1960 = vmatpush1.xpose.msra.mxu0 0.0
        %1961 = vmatprep.subr.mxu0 0.0
        %1962 = vmatpush1.xpose.msra.mxu0 0.0
        %1963 = vmatprep.subr.mxu0 0.0
        %1964 = vmatpush1.xpose.msra.mxu0 0.0
        %1965 = vmatprep.subr.mxu0 0.0
        %1966 = vmatpush1.xpose.msra.mxu0 0.0
        %1967 = vmatprep.subr.mxu0 0.0
        %1968 = vmatpush1.xpose.msra.mxu0 0.0
        %1969 = vmatprep.subr.mxu0 0.0
        %1970 = vmatpush1.xpose.msra.mxu0 0.0
        %1971 = vmatprep.subr.mxu0 0.0
        %1972 = vmatpush1.xpose.msra.mxu0 0.0
        %1973 = vmatprep.subr.mxu0 0.0
        %1974 = vmatpush1.xpose.msra.mxu0 0.0
        %1975 = vmatprep.subr.mxu0 0.0
        %1976 = vmatpush1.xpose.msra.mxu0 0.0
        %1977 = vmatprep.subr.mxu0 0.0
        %1978 = vmatpush1.xpose.msra.mxu0 0.0
        %1979 = vmatprep.subr.mxu0 0.0
        %1980 = vmatpush1.xpose.msra.mxu0 0.0
        %1981 = vmatprep.subr.mxu0 0.0
        %1982 = vmatpush1.xpose.msra.mxu0 0.0
        %1983 = vmatprep.subr.mxu0 0.0
        %1984 = vmatpush1.xpose.msra.mxu0 0.0
        %1985 = vmatprep.subr.mxu0 0.0
        %1986 = vmatpush1.xpose.msra.mxu0 0.0
        %1987 = vmatprep.subr.mxu0 0.0
        %1988 = vmatpush1.xpose.msra.mxu0 0.0
        %1989 = vmatprep.subr.mxu0 0.0
        %1990 = vmatpush1.xpose.msra.mxu0 0.0
        %1991 = vmatprep.subr.mxu0 0.0
        %1992 = vmatpush1.xpose.msra.mxu0 0.0
        %1993 = vmatprep.subr.mxu0 0.0
        %1994 = vmatpush1.xpose.msra.mxu0 0.0
        %1995 = vmatprep.subr.mxu0 0.0
        %1996 = vmatpush1.xpose.msra.mxu0 0.0
        %1997 = vmatprep.subr.mxu0 0.0
        %1998 = vmatpush1.xpose.msra.mxu0 0.0
        %1999 = vmatprep.subr.mxu0 0.0
        %2000 = vmatpush1.xpose.msra.mxu0 0.0
        %2001 = vmatprep.subr.mxu0 0.0
        %2002 = vmatpush1.xpose.msra.mxu0 0.0
        %2003 = vmatprep.subr.mxu0 0.0
        %2004 = vmatpush1.xpose.msra.mxu0 0.0
        %2005 = vmatprep.subr.mxu0 0.0
        %2006 = vmatpush1.xpose.msra.mxu0 0.0
        %2007 = vmatprep.mubr.f32.mxu0 0.0
        %2008 = vmatmul.mubr.f32.gmra.mrb[0].mxu0 %v1941
        %v2009 = vpop.f32.mrb[0].mxu0
        %v2010 = vadd.f32 0.0, %v2009
        %v2011 = vpop.f32.mrb[0].mxu0
        %2012 = vdwg.mxu0
        %v2013 = vmax.f32 %v2010, 1e-30
        %v2014 = vrcp.pop %v2013
        %v2015 = vmul.f32 %v2014, 0.015625
        %v2017 = vsel %vm960, %v2015, 0
        %2019 = vmatprep.subr.mxu0 0.0
        %2020 = vmatpush1.msra.mxu0 %v1445
        %2021 = vmatprep.subr.mxu0 0.0
        %2022 = vmatpush1.msra.mxu0 %v1447
        %2023 = vmatprep.subr.mxu0 0.0
        %2024 = vmatpush1.msra.mxu0 %v1449
        %2025 = vmatprep.subr.mxu0 0.0
        %2026 = vmatpush1.msra.mxu0 %v1451
        %2027 = vmatprep.subr.mxu0 0.0
        %2028 = vmatpush1.msra.mxu0 %v1453
        %2029 = vmatprep.subr.mxu0 0.0
        %2030 = vmatpush1.msra.mxu0 %v1455
        %2031 = vmatprep.subr.mxu0 0.0
        %2032 = vmatpush1.msra.mxu0 %v1457
        %2033 = vmatprep.subr.mxu0 0.0
        %2034 = vmatpush1.msra.mxu0 %v1459
        %2035 = vmatprep.subr.mxu0 0.0
        %2036 = vmatpush1.msra.mxu0 0.0
        %2037 = vmatprep.subr.mxu0 0.0
        %2038 = vmatpush1.msra.mxu0 0.0
        %2039 = vmatprep.subr.mxu0 0.0
        %2040 = vmatpush1.msra.mxu0 0.0
        %2041 = vmatprep.subr.mxu0 0.0
        %2042 = vmatpush1.msra.mxu0 0.0
        %2043 = vmatprep.subr.mxu0 0.0
        %2044 = vmatpush1.msra.mxu0 0.0
        %2045 = vmatprep.subr.mxu0 0.0
        %2046 = vmatpush1.msra.mxu0 0.0
        %2047 = vmatprep.subr.mxu0 0.0
        %2048 = vmatpush1.msra.mxu0 0.0
        %2049 = vmatprep.subr.mxu0 0.0
        %2050 = vmatpush1.msra.mxu0 0.0
        %2051 = vmatprep.subr.mxu0 0.0
        %2052 = vmatpush1.msra.mxu0 0.0
        %2053 = vmatprep.subr.mxu0 0.0
        %2054 = vmatpush1.msra.mxu0 0.0
        %2055 = vmatprep.subr.mxu0 0.0
        %2056 = vmatpush1.msra.mxu0 0.0
        %2057 = vmatprep.subr.mxu0 0.0
        %2058 = vmatpush1.msra.mxu0 0.0
        %2059 = vmatprep.subr.mxu0 0.0
        %2060 = vmatpush1.msra.mxu0 0.0
        %2061 = vmatprep.subr.mxu0 0.0
        %2062 = vmatpush1.msra.mxu0 0.0
        %2063 = vmatprep.subr.mxu0 0.0
        %2064 = vmatpush1.msra.mxu0 0.0
        %2065 = vmatprep.subr.mxu0 0.0
        %2066 = vmatpush1.msra.mxu0 0.0
        %2067 = vmatprep.subr.mxu0 0.0
        %2068 = vmatpush1.msra.mxu0 0.0
        %2069 = vmatprep.subr.mxu0 0.0
        %2070 = vmatpush1.msra.mxu0 0.0
        %2071 = vmatprep.subr.mxu0 0.0
        %2072 = vmatpush1.msra.mxu0 0.0
        %2073 = vmatprep.subr.mxu0 0.0
        %2074 = vmatpush1.msra.mxu0 0.0
        %2075 = vmatprep.subr.mxu0 0.0
        %2076 = vmatpush1.msra.mxu0 0.0
        %2077 = vmatprep.subr.mxu0 0.0
        %2078 = vmatpush1.msra.mxu0 0.0
        %2079 = vmatprep.subr.mxu0 0.0
        %2080 = vmatpush1.msra.mxu0 0.0
        %2081 = vmatprep.subr.mxu0 0.0
        %2082 = vmatpush1.msra.mxu0 0.0
        %2083 = vmatprep.mubr.f32.mxu0 0.0
        %2084 = vmatmul.mubr.f32.gmra.mrb[0].mxu0 %v2017
        %v2085 = vpop.f32.mrb[0].mxu0
        %v2086 = vadd.f32 0.0, %v2085
        %v2087 = vpop.f32.mrb[0].mxu0
        %2088 = vdwg.mxu0
        %v2089 = vmax.f32 %v2086, 1e-30
        %v2090 = vrcp.pop %v2089
        %v2091 = vmul.f32 %v2090, 0.015625
        %v2093 = vsel %vm960, %v2091, 0
        %2095 = vmatprep.subr.mxu0 0.0
        %2096 = vmatpush1.xpose.msra.mxu0 %v1464
        %2097 = vmatprep.subr.mxu0 0.0
        %2098 = vmatpush1.xpose.msra.mxu0 %v1467
        %2099 = vmatprep.subr.mxu0 0.0
        %2100 = vmatpush1.xpose.msra.mxu0 %v1470
        %2101 = vmatprep.subr.mxu0 0.0
        %2102 = vmatpush1.xpose.msra.mxu0 %v1473
        %2103 = vmatprep.subr.mxu0 0.0
        %2104 = vmatpush1.xpose.msra.mxu0 %v1476
        %2105 = vmatprep.subr.mxu0 0.0
        %2106 = vmatpush1.xpose.msra.mxu0 %v1479
        %2107 = vmatprep.subr.mxu0 0.0
        %2108 = vmatpush1.xpose.msra.mxu0 %v1482
        %2109 = vmatprep.subr.mxu0 0.0
        %2110 = vmatpush1.xpose.msra.mxu0 %v1485
        %2111 = vmatprep.subr.mxu0 0.0
        %2112 = vmatpush1.xpose.msra.mxu0 0.0
        %2113 = vmatprep.subr.mxu0 0.0
        %2114 = vmatpush1.xpose.msra.mxu0 0.0
        %2115 = vmatprep.subr.mxu0 0.0
        %2116 = vmatpush1.xpose.msra.mxu0 0.0
        %2117 = vmatprep.subr.mxu0 0.0
        %2118 = vmatpush1.xpose.msra.mxu0 0.0
        %2119 = vmatprep.subr.mxu0 0.0
        %2120 = vmatpush1.xpose.msra.mxu0 0.0
        %2121 = vmatprep.subr.mxu0 0.0
        %2122 = vmatpush1.xpose.msra.mxu0 0.0
        %2123 = vmatprep.subr.mxu0 0.0
        %2124 = vmatpush1.xpose.msra.mxu0 0.0
        %2125 = vmatprep.subr.mxu0 0.0
        %2126 = vmatpush1.xpose.msra.mxu0 0.0
        %2127 = vmatprep.subr.mxu0 0.0
        %2128 = vmatpush1.xpose.msra.mxu0 0.0
        %2129 = vmatprep.subr.mxu0 0.0
        %2130 = vmatpush1.xpose.msra.mxu0 0.0
        %2131 = vmatprep.subr.mxu0 0.0
        %2132 = vmatpush1.xpose.msra.mxu0 0.0
        %2133 = vmatprep.subr.mxu0 0.0
        %2134 = vmatpush1.xpose.msra.mxu0 0.0
        %2135 = vmatprep.subr.mxu0 0.0
        %2136 = vmatpush1.xpose.msra.mxu0 0.0
        %2137 = vmatprep.subr.mxu0 0.0
        %2138 = vmatpush1.xpose.msra.mxu0 0.0
        %2139 = vmatprep.subr.mxu0 0.0
        %2140 = vmatpush1.xpose.msra.mxu0 0.0
        %2141 = vmatprep.subr.mxu0 0.0
        %2142 = vmatpush1.xpose.msra.mxu0 0.0
        %2143 = vmatprep.subr.mxu0 0.0
        %2144 = vmatpush1.xpose.msra.mxu0 0.0
        %2145 = vmatprep.subr.mxu0 0.0
        %2146 = vmatpush1.xpose.msra.mxu0 0.0
        %2147 = vmatprep.subr.mxu0 0.0
        %2148 = vmatpush1.xpose.msra.mxu0 0.0
        %2149 = vmatprep.subr.mxu0 0.0
        %2150 = vmatpush1.xpose.msra.mxu0 0.0
        %2151 = vmatprep.subr.mxu0 0.0
        %2152 = vmatpush1.xpose.msra.mxu0 0.0
        %2153 = vmatprep.subr.mxu0 0.0
        %2154 = vmatpush1.xpose.msra.mxu0 0.0
        %2155 = vmatprep.subr.mxu0 0.0
        %2156 = vmatpush1.xpose.msra.mxu0 0.0
        %2157 = vmatprep.subr.mxu0 0.0
        %2158 = vmatpush1.xpose.msra.mxu0 0.0
        %2159 = vmatprep.mubr.f32.mxu0 0.0
        %2160 = vmatmul.mubr.f32.gmra.mrb[0].mxu0 %v2093
        %v2161 = vpop.f32.mrb[0].mxu0
        %v2162 = vadd.f32 0.0, %v2161
        %v2163 = vpop.f32.mrb[0].mxu0
        %2164 = vdwg.mxu0
        %v2165 = vmax.f32 %v2162, 1e-30
        %v2166 = vrcp.pop %v2165
        %v2167 = vmul.f32 %v2166, 0.015625
        %v2169 = vsel %vm960, %v2167, 0
        %2171 = vmatprep.subr.mxu0 0.0
        %2172 = vmatpush1.msra.mxu0 %v1445
        %2173 = vmatprep.subr.mxu0 0.0
        %2174 = vmatpush1.msra.mxu0 %v1447
        %2175 = vmatprep.subr.mxu0 0.0
        %2176 = vmatpush1.msra.mxu0 %v1449
        %2177 = vmatprep.subr.mxu0 0.0
        %2178 = vmatpush1.msra.mxu0 %v1451
        %2179 = vmatprep.subr.mxu0 0.0
        %2180 = vmatpush1.msra.mxu0 %v1453
        %2181 = vmatprep.subr.mxu0 0.0
        %2182 = vmatpush1.msra.mxu0 %v1455
        %2183 = vmatprep.subr.mxu0 0.0
        %2184 = vmatpush1.msra.mxu0 %v1457
        %2185 = vmatprep.subr.mxu0 0.0
        %2186 = vmatpush1.msra.mxu0 %v1459
        %2187 = vmatprep.subr.mxu0 0.0
        %2188 = vmatpush1.msra.mxu0 0.0
        %2189 = vmatprep.subr.mxu0 0.0
        %2190 = vmatpush1.msra.mxu0 0.0
        %2191 = vmatprep.subr.mxu0 0.0
        %2192 = vmatpush1.msra.mxu0 0.0
        %2193 = vmatprep.subr.mxu0 0.0
        %2194 = vmatpush1.msra.mxu0 0.0
        %2195 = vmatprep.subr.mxu0 0.0
        %2196 = vmatpush1.msra.mxu0 0.0
        %2197 = vmatprep.subr.mxu0 0.0
        %2198 = vmatpush1.msra.mxu0 0.0
        %2199 = vmatprep.subr.mxu0 0.0
        %2200 = vmatpush1.msra.mxu0 0.0
        %2201 = vmatprep.subr.mxu0 0.0
        %2202 = vmatpush1.msra.mxu0 0.0
        %2203 = vmatprep.subr.mxu0 0.0
        %2204 = vmatpush1.msra.mxu0 0.0
        %2205 = vmatprep.subr.mxu0 0.0
        %2206 = vmatpush1.msra.mxu0 0.0
        %2207 = vmatprep.subr.mxu0 0.0
        %2208 = vmatpush1.msra.mxu0 0.0
        %2209 = vmatprep.subr.mxu0 0.0
        %2210 = vmatpush1.msra.mxu0 0.0
        %2211 = vmatprep.subr.mxu0 0.0
        %2212 = vmatpush1.msra.mxu0 0.0
        %2213 = vmatprep.subr.mxu0 0.0
        %2214 = vmatpush1.msra.mxu0 0.0
        %2215 = vmatprep.subr.mxu0 0.0
        %2216 = vmatpush1.msra.mxu0 0.0
        %2217 = vmatprep.subr.mxu0 0.0
        %2218 = vmatpush1.msra.mxu0 0.0
        %2219 = vmatprep.subr.mxu0 0.0
        %2220 = vmatpush1.msra.mxu0 0.0
        %2221 = vmatprep.subr.mxu0 0.0
        %2222 = vmatpush1.msra.mxu0 0.0
        %2223 = vmatprep.subr.mxu0 0.0
        %2224 = vmatpush1.msra.mxu0 0.0
        %2225 = vmatprep.subr.mxu0 0.0
        %2226 = vmatpush1.msra.mxu0 0.0
        %2227 = vmatprep.subr.mxu0 0.0
        %2228 = vmatpush1.msra.mxu0 0.0
        %2229 = vmatprep.subr.mxu0 0.0
        %2230 = vmatpush1.msra.mxu0 0.0
        %2231 = vmatprep.subr.mxu0 0.0
        %2232 = vmatpush1.msra.mxu0 0.0
        %2233 = vmatprep.subr.mxu0 0.0
        %2234 = vmatpush1.msra.mxu0 0.0
        %2235 = vmatprep.mubr.f32.mxu0 0.0
        %2236 = vmatmul.mubr.f32.gmra.mrb[0].mxu0 %v2169
        %v2237 = vpop.f32.mrb[0].mxu0
        %v2238 = vadd.f32 0.0, %v2237
        %v2239 = vpop.f32.mrb[0].mxu0
        %2240 = vdwg.mxu0
        %v2241 = vmax.f32 %v2238, 1e-30
        %v2242 = vrcp.pop %v2241
        %v2243 = vmul.f32 %v2242, 0.015625
        %v2245 = vsel %vm960, %v2243, 0
        %2247 = vmatprep.subr.mxu0 0.0
        %2248 = vmatpush1.xpose.msra.mxu0 %v1464
        %2249 = vmatprep.subr.mxu0 0.0
        %2250 = vmatpush1.xpose.msra.mxu0 %v1467
        %2251 = vmatprep.subr.mxu0 0.0
        %2252 = vmatpush1.xpose.msra.mxu0 %v1470
        %2253 = vmatprep.subr.mxu0 0.0
        %2254 = vmatpush1.xpose.msra.mxu0 %v1473
        %2255 = vmatprep.subr.mxu0 0.0
        %2256 = vmatpush1.xpose.msra.mxu0 %v1476
        %2257 = vmatprep.subr.mxu0 0.0
        %2258 = vmatpush1.xpose.msra.mxu0 %v1479
        %2259 = vmatprep.subr.mxu0 0.0
        %2260 = vmatpush1.xpose.msra.mxu0 %v1482
        %2261 = vmatprep.subr.mxu0 0.0
        %2262 = vmatpush1.xpose.msra.mxu0 %v1485
        %2263 = vmatprep.subr.mxu0 0.0
        %2264 = vmatpush1.xpose.msra.mxu0 0.0
        %2265 = vmatprep.subr.mxu0 0.0
        %2266 = vmatpush1.xpose.msra.mxu0 0.0
        %2267 = vmatprep.subr.mxu0 0.0
        %2268 = vmatpush1.xpose.msra.mxu0 0.0
        %2269 = vmatprep.subr.mxu0 0.0
        %2270 = vmatpush1.xpose.msra.mxu0 0.0
        %2271 = vmatprep.subr.mxu0 0.0
        %2272 = vmatpush1.xpose.msra.mxu0 0.0
        %2273 = vmatprep.subr.mxu0 0.0
        %2274 = vmatpush1.xpose.msra.mxu0 0.0
        %2275 = vmatprep.subr.mxu0 0.0
        %2276 = vmatpush1.xpose.msra.mxu0 0.0
        %2277 = vmatprep.subr.mxu0 0.0
        %2278 = vmatpush1.xpose.msra.mxu0 0.0
        %2279 = vmatprep.subr.mxu0 0.0
        %2280 = vmatpush1.xpose.msra.mxu0 0.0
        %2281 = vmatprep.subr.mxu0 0.0
        %2282 = vmatpush1.xpose.msra.mxu0 0.0
        %2283 = vmatprep.subr.mxu0 0.0
        %2284 = vmatpush1.xpose.msra.mxu0 0.0
        %2285 = vmatprep.subr.mxu0 0.0
        %2286 = vmatpush1.xpose.msra.mxu0 0.0
        %2287 = vmatprep.subr.mxu0 0.0
        %2288 = vmatpush1.xpose.msra.mxu0 0.0
        %2289 = vmatprep.subr.mxu0 0.0
        %2290 = vmatpush1.xpose.msra.mxu0 0.0
        %2291 = vmatprep.subr.mxu0 0.0
        %2292 = vmatpush1.xpose.msra.mxu0 0.0
        %2293 = vmatprep.subr.mxu0 0.0
        %2294 = vmatpush1.xpose.msra.mxu0 0.0
        %2295 = vmatprep.subr.mxu0 0.0
        %2296 = vmatpush1.xpose.msra.mxu0 0.0
        %2297 = vmatprep.subr.mxu0 0.0
        %2298 = vmatpush1.xpose.msra.mxu0 0.0
        %2299 = vmatprep.subr.mxu0 0.0
        %2300 = vmatpush1.xpose.msra.mxu0 0.0
        %2301 = vmatprep.subr.mxu0 0.0
        %2302 = vmatpush1.xpose.msra.mxu0 0.0
        %2303 = vmatprep.subr.mxu0 0.0
        %2304 = vmatpush1.xpose.msra.mxu0 0.0
        %2305 = vmatprep.subr.mxu0 0.0
        %2306 = vmatpush1.xpose.msra.mxu0 0.0
        %2307 = vmatprep.subr.mxu0 0.0
        %2308 = vmatpush1.xpose.msra.mxu0 0.0
        %2309 = vmatprep.subr.mxu0 0.0
        %2310 = vmatpush1.xpose.msra.mxu0 0.0
        %2311 = vmatprep.mubr.f32.mxu0 0.0
        %2312 = vmatmul.mubr.f32.gmra.mrb[0].mxu0 %v2245
        %v2313 = vpop.f32.mrb[0].mxu0
        %v2314 = vadd.f32 0.0, %v2313
        %v2315 = vpop.f32.mrb[0].mxu0
        %2316 = vdwg.mxu0
        %v2317 = vmax.f32 %v2314, 1e-30
        %v2318 = vrcp.pop %v2317
        %v2319 = vmul.f32 %v2318, 0.015625
        %v2321 = vsel %vm960, %v2319, 0
        %2323 = vmatprep.subr.mxu0 0.0
        %2324 = vmatpush1.msra.mxu0 %v1445
        %2325 = vmatprep.subr.mxu0 0.0
        %2326 = vmatpush1.msra.mxu0 %v1447
        %2327 = vmatprep.subr.mxu0 0.0
        %2328 = vmatpush1.msra.mxu0 %v1449
        %2329 = vmatprep.subr.mxu0 0.0
        %2330 = vmatpush1.msra.mxu0 %v1451
        %2331 = vmatprep.subr.mxu0 0.0
        %2332 = vmatpush1.msra.mxu0 %v1453
        %2333 = vmatprep.subr.mxu0 0.0
        %2334 = vmatpush1.msra.mxu0 %v1455
        %2335 = vmatprep.subr.mxu0 0.0
        %2336 = vmatpush1.msra.mxu0 %v1457
        %2337 = vmatprep.subr.mxu0 0.0
        %2338 = vmatpush1.msra.mxu0 %v1459
        %2339 = vmatprep.subr.mxu0 0.0
        %2340 = vmatpush1.msra.mxu0 0.0
        %2341 = vmatprep.subr.mxu0 0.0
        %2342 = vmatpush1.msra.mxu0 0.0
        %2343 = vmatprep.subr.mxu0 0.0
        %2344 = vmatpush1.msra.mxu0 0.0
        %2345 = vmatprep.subr.mxu0 0.0
        %2346 = vmatpush1.msra.mxu0 0.0
        %2347 = vmatprep.subr.mxu0 0.0
        %2348 = vmatpush1.msra.mxu0 0.0
        %2349 = vmatprep.subr.mxu0 0.0
        %2350 = vmatpush1.msra.mxu0 0.0
        %2351 = vmatprep.subr.mxu0 0.0
        %2352 = vmatpush1.msra.mxu0 0.0
        %2353 = vmatprep.subr.mxu0 0.0
        %2354 = vmatpush1.msra.mxu0 0.0
        %2355 = vmatprep.subr.mxu0 0.0
        %2356 = vmatpush1.msra.mxu0 0.0
        %2357 = vmatprep.subr.mxu0 0.0
        %2358 = vmatpush1.msra.mxu0 0.0
        %2359 = vmatprep.subr.mxu0 0.0
        %2360 = vmatpush1.msra.mxu0 0.0
        %2361 = vmatprep.subr.mxu0 0.0
        %2362 = vmatpush1.msra.mxu0 0.0
        %2363 = vmatprep.subr.mxu0 0.0
        %2364 = vmatpush1.msra.mxu0 0.0
        %2365 = vmatprep.subr.mxu0 0.0
        %2366 = vmatpush1.msra.mxu0 0.0
        %2367 = vmatprep.subr.mxu0 0.0
        %2368 = vmatpush1.msra.mxu0 0.0
        %2369 = vmatprep.subr.mxu0 0.0
        %2370 = vmatpush1.msra.mxu0 0.0
        %2371 = vmatprep.subr.mxu0 0.0
        %2372 = vmatpush1.msra.mxu0 0.0
        %2373 = vmatprep.subr.mxu0 0.0
        %2374 = vmatpush1.msra.mxu0 0.0
        %2375 = vmatprep.subr.mxu0 0.0
        %2376 = vmatpush1.msra.mxu0 0.0
        %2377 = vmatprep.subr.mxu0 0.0
        %2378 = vmatpush1.msra.mxu0 0.0
        %2379 = vmatprep.subr.mxu0 0.0
        %2380 = vmatpush1.msra.mxu0 0.0
        %2381 = vmatprep.subr.mxu0 0.0
        %2382 = vmatpush1.msra.mxu0 0.0
        %2383 = vmatprep.subr.mxu0 0.0
        %2384 = vmatpush1.msra.mxu0 0.0
        %2385 = vmatprep.subr.mxu0 0.0
        %2386 = vmatpush1.msra.mxu0 0.0
        %2387 = vmatprep.mubr.f32.mxu0 0.0
        %2388 = vmatmul.mubr.f32.gmra.mrb[0].mxu0 %v2321
        %v2389 = vpop.f32.mrb[0].mxu0
        %v2390 = vadd.f32 0.0, %v2389
        %v2391 = vpop.f32.mrb[0].mxu0
        %2392 = vdwg.mxu0
        %v2393 = vmax.f32 %v2390, 1e-30
        %v2394 = vrcp.pop %v2393
        %v2395 = vmul.f32 %v2394, 0.015625
        %v2397 = vsel %vm960, %v2395, 0
        %2399 = vmatprep.subr.mxu0 0.0
        %2400 = vmatpush1.xpose.msra.mxu0 %v1464
        %2401 = vmatprep.subr.mxu0 0.0
        %2402 = vmatpush1.xpose.msra.mxu0 %v1467
        %2403 = vmatprep.subr.mxu0 0.0
        %2404 = vmatpush1.xpose.msra.mxu0 %v1470
        %2405 = vmatprep.subr.mxu0 0.0
        %2406 = vmatpush1.xpose.msra.mxu0 %v1473
        %2407 = vmatprep.subr.mxu0 0.0
        %2408 = vmatpush1.xpose.msra.mxu0 %v1476
        %2409 = vmatprep.subr.mxu0 0.0
        %2410 = vmatpush1.xpose.msra.mxu0 %v1479
        %2411 = vmatprep.subr.mxu0 0.0
        %2412 = vmatpush1.xpose.msra.mxu0 %v1482
        %2413 = vmatprep.subr.mxu0 0.0
        %2414 = vmatpush1.xpose.msra.mxu0 %v1485
        %2415 = vmatprep.subr.mxu0 0.0
        %2416 = vmatpush1.xpose.msra.mxu0 0.0
        %2417 = vmatprep.subr.mxu0 0.0
        %2418 = vmatpush1.xpose.msra.mxu0 0.0
        %2419 = vmatprep.subr.mxu0 0.0
        %2420 = vmatpush1.xpose.msra.mxu0 0.0
        %2421 = vmatprep.subr.mxu0 0.0
        %2422 = vmatpush1.xpose.msra.mxu0 0.0
        %2423 = vmatprep.subr.mxu0 0.0
        %2424 = vmatpush1.xpose.msra.mxu0 0.0
        %2425 = vmatprep.subr.mxu0 0.0
        %2426 = vmatpush1.xpose.msra.mxu0 0.0
        %2427 = vmatprep.subr.mxu0 0.0
        %2428 = vmatpush1.xpose.msra.mxu0 0.0
        %2429 = vmatprep.subr.mxu0 0.0
        %2430 = vmatpush1.xpose.msra.mxu0 0.0
        %2431 = vmatprep.subr.mxu0 0.0
        %2432 = vmatpush1.xpose.msra.mxu0 0.0
        %2433 = vmatprep.subr.mxu0 0.0
        %2434 = vmatpush1.xpose.msra.mxu0 0.0
        %2435 = vmatprep.subr.mxu0 0.0
        %2436 = vmatpush1.xpose.msra.mxu0 0.0
        %2437 = vmatprep.subr.mxu0 0.0
        %2438 = vmatpush1.xpose.msra.mxu0 0.0
        %2439 = vmatprep.subr.mxu0 0.0
        %2440 = vmatpush1.xpose.msra.mxu0 0.0
        %2441 = vmatprep.subr.mxu0 0.0
        %2442 = vmatpush1.xpose.msra.mxu0 0.0
        %2443 = vmatprep.subr.mxu0 0.0
        %2444 = vmatpush1.xpose.msra.mxu0 0.0
        %2445 = vmatprep.subr.mxu0 0.0
        %2446 = vmatpush1.xpose.msra.mxu0 0.0
        %2447 = vmatprep.subr.mxu0 0.0
        %2448 = vmatpush1.xpose.msra.mxu0 0.0
        %2449 = vmatprep.subr.mxu0 0.0
        %2450 = vmatpush1.xpose.msra.mxu0 0.0
        %2451 = vmatprep.subr.mxu0 0.0
        %2452 = vmatpush1.xpose.msra.mxu0 0.0
        %2453 = vmatprep.subr.mxu0 0.0
        %2454 = vmatpush1.xpose.msra.mxu0 0.0
        %2455 = vmatprep.subr.mxu0 0.0
        %2456 = vmatpush1.xpose.msra.mxu0 0.0
        %2457 = vmatprep.subr.mxu0 0.0
        %2458 = vmatpush1.xpose.msra.mxu0 0.0
        %2459 = vmatprep.subr.mxu0 0.0
        %2460 = vmatpush1.xpose.msra.mxu0 0.0
        %2461 = vmatprep.subr.mxu0 0.0
        %2462 = vmatpush1.xpose.msra.mxu0 0.0
        %2463 = vmatprep.mubr.f32.mxu0 0.0
        %2464 = vmatmul.mubr.f32.gmra.mrb[0].mxu0 %v2397
        %v2465 = vpop.f32.mrb[0].mxu0
        %v2466 = vadd.f32 0.0, %v2465
        %v2467 = vpop.f32.mrb[0].mxu0
        %2468 = vdwg.mxu0
        %v2469 = vmax.f32 %v2466, 1e-30
        %v2470 = vrcp.pop %v2469
        %v2471 = vmul.f32 %v2470, 0.015625
        %v2473 = vsel %vm960, %v2471, 0
        %2475 = vmatprep.subr.mxu0 0.0
        %2476 = vmatpush1.msra.mxu0 %v1445
        %2477 = vmatprep.subr.mxu0 0.0
        %2478 = vmatpush1.msra.mxu0 %v1447
        %2479 = vmatprep.subr.mxu0 0.0
        %2480 = vmatpush1.msra.mxu0 %v1449
        %2481 = vmatprep.subr.mxu0 0.0
        %2482 = vmatpush1.msra.mxu0 %v1451
        %2483 = vmatprep.subr.mxu0 0.0
        %2484 = vmatpush1.msra.mxu0 %v1453
        %2485 = vmatprep.subr.mxu0 0.0
        %2486 = vmatpush1.msra.mxu0 %v1455
        %2487 = vmatprep.subr.mxu0 0.0
        %2488 = vmatpush1.msra.mxu0 %v1457
        %2489 = vmatprep.subr.mxu0 0.0
        %2490 = vmatpush1.msra.mxu0 %v1459
        %2491 = vmatprep.subr.mxu0 0.0
        %2492 = vmatpush1.msra.mxu0 0.0
        %2493 = vmatprep.subr.mxu0 0.0
        %2494 = vmatpush1.msra.mxu0 0.0
        %2495 = vmatprep.subr.mxu0 0.0
        %2496 = vmatpush1.msra.mxu0 0.0
        %2497 = vmatprep.subr.mxu0 0.0
        %2498 = vmatpush1.msra.mxu0 0.0
        %2499 = vmatprep.subr.mxu0 0.0
        %2500 = vmatpush1.msra.mxu0 0.0
        %2501 = vmatprep.subr.mxu0 0.0
        %2502 = vmatpush1.msra.mxu0 0.0
        %2503 = vmatprep.subr.mxu0 0.0
        %2504 = vmatpush1.msra.mxu0 0.0
        %2505 = vmatprep.subr.mxu0 0.0
        %2506 = vmatpush1.msra.mxu0 0.0
        %2507 = vmatprep.subr.mxu0 0.0
        %2508 = vmatpush1.msra.mxu0 0.0
        %2509 = vmatprep.subr.mxu0 0.0
        %2510 = vmatpush1.msra.mxu0 0.0
        %2511 = vmatprep.subr.mxu0 0.0
        %2512 = vmatpush1.msra.mxu0 0.0
        %2513 = vmatprep.subr.mxu0 0.0
        %2514 = vmatpush1.msra.mxu0 0.0
        %2515 = vmatprep.subr.mxu0 0.0
        %2516 = vmatpush1.msra.mxu0 0.0
        %2517 = vmatprep.subr.mxu0 0.0
        %2518 = vmatpush1.msra.mxu0 0.0
        %2519 = vmatprep.subr.mxu0 0.0
        %2520 = vmatpush1.msra.mxu0 0.0
        %2521 = vmatprep.subr.mxu0 0.0
        %2522 = vmatpush1.msra.mxu0 0.0
        %2523 = vmatprep.subr.mxu0 0.0
        %2524 = vmatpush1.msra.mxu0 0.0
        %2525 = vmatprep.subr.mxu0 0.0
        %2526 = vmatpush1.msra.mxu0 0.0
        %2527 = vmatprep.subr.mxu0 0.0
        %2528 = vmatpush1.msra.mxu0 0.0
        %2529 = vmatprep.subr.mxu0 0.0
        %2530 = vmatpush1.msra.mxu0 0.0
        %2531 = vmatprep.subr.mxu0 0.0
        %2532 = vmatpush1.msra.mxu0 0.0
        %2533 = vmatprep.subr.mxu0 0.0
        %2534 = vmatpush1.msra.mxu0 0.0
        %2535 = vmatprep.subr.mxu0 0.0
        %2536 = vmatpush1.msra.mxu0 0.0
        %2537 = vmatprep.subr.mxu0 0.0
        %2538 = vmatpush1.msra.mxu0 0.0
        %2539 = vmatprep.mubr.f32.mxu0 0.0
        %2540 = vmatmul.mubr.f32.gmra.mrb[0].mxu0 %v2473
        %v2541 = vpop.f32.mrb[0].mxu0
        %v2542 = vadd.f32 0.0, %v2541
        %v2543 = vpop.f32.mrb[0].mxu0
        %2544 = vdwg.mxu0
        %v2545 = vmax.f32 %v2542, 1e-30
        %v2546 = vrcp.pop %v2545
        %v2547 = vmul.f32 %v2546, 0.015625
        %v2549 = vsel %vm960, %v2547, 0
        %2551 = vmatprep.subr.mxu0 0.0
        %2552 = vmatpush1.xpose.msra.mxu0 %v1464
        %2553 = vmatprep.subr.mxu0 0.0
        %2554 = vmatpush1.xpose.msra.mxu0 %v1467
        %2555 = vmatprep.subr.mxu0 0.0
        %2556 = vmatpush1.xpose.msra.mxu0 %v1470
        %2557 = vmatprep.subr.mxu0 0.0
        %2558 = vmatpush1.xpose.msra.mxu0 %v1473
        %2559 = vmatprep.subr.mxu0 0.0
        %2560 = vmatpush1.xpose.msra.mxu0 %v1476
        %2561 = vmatprep.subr.mxu0 0.0
        %2562 = vmatpush1.xpose.msra.mxu0 %v1479
        %2563 = vmatprep.subr.mxu0 0.0
        %2564 = vmatpush1.xpose.msra.mxu0 %v1482
        %2565 = vmatprep.subr.mxu0 0.0
        %2566 = vmatpush1.xpose.msra.mxu0 %v1485
        %2567 = vmatprep.subr.mxu0 0.0
        %2568 = vmatpush1.xpose.msra.mxu0 0.0
        %2569 = vmatprep.subr.mxu0 0.0
        %2570 = vmatpush1.xpose.msra.mxu0 0.0
        %2571 = vmatprep.subr.mxu0 0.0
        %2572 = vmatpush1.xpose.msra.mxu0 0.0
        %2573 = vmatprep.subr.mxu0 0.0
        %2574 = vmatpush1.xpose.msra.mxu0 0.0
        %2575 = vmatprep.subr.mxu0 0.0
        %2576 = vmatpush1.xpose.msra.mxu0 0.0
        %2577 = vmatprep.subr.mxu0 0.0
        %2578 = vmatpush1.xpose.msra.mxu0 0.0
        %2579 = vmatprep.subr.mxu0 0.0
        %2580 = vmatpush1.xpose.msra.mxu0 0.0
        %2581 = vmatprep.subr.mxu0 0.0
        %2582 = vmatpush1.xpose.msra.mxu0 0.0
        %2583 = vmatprep.subr.mxu0 0.0
        %2584 = vmatpush1.xpose.msra.mxu0 0.0
        %2585 = vmatprep.subr.mxu0 0.0
        %2586 = vmatpush1.xpose.msra.mxu0 0.0
        %2587 = vmatprep.subr.mxu0 0.0
        %2588 = vmatpush1.xpose.msra.mxu0 0.0
        %2589 = vmatprep.subr.mxu0 0.0
        %2590 = vmatpush1.xpose.msra.mxu0 0.0
        %2591 = vmatprep.subr.mxu0 0.0
        %2592 = vmatpush1.xpose.msra.mxu0 0.0
        %2593 = vmatprep.subr.mxu0 0.0
        %2594 = vmatpush1.xpose.msra.mxu0 0.0
        %2595 = vmatprep.subr.mxu0 0.0
        %2596 = vmatpush1.xpose.msra.mxu0 0.0
        %2597 = vmatprep.subr.mxu0 0.0
        %2598 = vmatpush1.xpose.msra.mxu0 0.0
        %2599 = vmatprep.subr.mxu0 0.0
        %2600 = vmatpush1.xpose.msra.mxu0 0.0
        %2601 = vmatprep.subr.mxu0 0.0
        %2602 = vmatpush1.xpose.msra.mxu0 0.0
        %2603 = vmatprep.subr.mxu0 0.0
        %2604 = vmatpush1.xpose.msra.mxu0 0.0
        %2605 = vmatprep.subr.mxu0 0.0
        %2606 = vmatpush1.xpose.msra.mxu0 0.0
        %2607 = vmatprep.subr.mxu0 0.0
        %2608 = vmatpush1.xpose.msra.mxu0 0.0
        %2609 = vmatprep.subr.mxu0 0.0
        %2610 = vmatpush1.xpose.msra.mxu0 0.0
        %2611 = vmatprep.subr.mxu0 0.0
        %2612 = vmatpush1.xpose.msra.mxu0 0.0
        %2613 = vmatprep.subr.mxu0 0.0
        %2614 = vmatpush1.xpose.msra.mxu0 0.0
        %2615 = vmatprep.mubr.f32.mxu0 0.0
        %2616 = vmatmul.mubr.f32.gmra.mrb[0].mxu0 %v2549
        %v2617 = vpop.f32.mrb[0].mxu0
        %v2618 = vadd.f32 0.0, %v2617
        %v2619 = vpop.f32.mrb[0].mxu0
        %2620 = vdwg.mxu0
        %v2621 = vmax.f32 %v2618, 1e-30
        %v2622 = vrcp.pop %v2621
        %v2623 = vmul.f32 %v2622, 0.015625
        %v2625 = vsel %vm960, %v2623, 0
        %2627 = vmatprep.subr.mxu0 0.0
        %2628 = vmatpush1.msra.mxu0 %v1445
        %2629 = vmatprep.subr.mxu0 0.0
        %2630 = vmatpush1.msra.mxu0 %v1447
        %2631 = vmatprep.subr.mxu0 0.0
        %2632 = vmatpush1.msra.mxu0 %v1449
        %2633 = vmatprep.subr.mxu0 0.0
        %2634 = vmatpush1.msra.mxu0 %v1451
        %2635 = vmatprep.subr.mxu0 0.0
        %2636 = vmatpush1.msra.mxu0 %v1453
        %2637 = vmatprep.subr.mxu0 0.0
        %2638 = vmatpush1.msra.mxu0 %v1455
        %2639 = vmatprep.subr.mxu0 0.0
        %2640 = vmatpush1.msra.mxu0 %v1457
        %2641 = vmatprep.subr.mxu0 0.0
        %2642 = vmatpush1.msra.mxu0 %v1459
        %2643 = vmatprep.subr.mxu0 0.0
        %2644 = vmatpush1.msra.mxu0 0.0
        %2645 = vmatprep.subr.mxu0 0.0
        %2646 = vmatpush1.msra.mxu0 0.0
        %2647 = vmatprep.subr.mxu0 0.0
        %2648 = vmatpush1.msra.mxu0 0.0
        %2649 = vmatprep.subr.mxu0 0.0
        %2650 = vmatpush1.msra.mxu0 0.0
        %2651 = vmatprep.subr.mxu0 0.0
        %2652 = vmatpush1.msra.mxu0 0.0
        %2653 = vmatprep.subr.mxu0 0.0
        %2654 = vmatpush1.msra.mxu0 0.0
        %2655 = vmatprep.subr.mxu0 0.0
        %2656 = vmatpush1.msra.mxu0 0.0
        %2657 = vmatprep.subr.mxu0 0.0
        %2658 = vmatpush1.msra.mxu0 0.0
        %2659 = vmatprep.subr.mxu0 0.0
        %2660 = vmatpush1.msra.mxu0 0.0
        %2661 = vmatprep.subr.mxu0 0.0
        %2662 = vmatpush1.msra.mxu0 0.0
        %2663 = vmatprep.subr.mxu0 0.0
        %2664 = vmatpush1.msra.mxu0 0.0
        %2665 = vmatprep.subr.mxu0 0.0
        %2666 = vmatpush1.msra.mxu0 0.0
        %2667 = vmatprep.subr.mxu0 0.0
        %2668 = vmatpush1.msra.mxu0 0.0
        %2669 = vmatprep.subr.mxu0 0.0
        %2670 = vmatpush1.msra.mxu0 0.0
        %2671 = vmatprep.subr.mxu0 0.0
        %2672 = vmatpush1.msra.mxu0 0.0
        %2673 = vmatprep.subr.mxu0 0.0
        %2674 = vmatpush1.msra.mxu0 0.0
        %2675 = vmatprep.subr.mxu0 0.0
        %2676 = vmatpush1.msra.mxu0 0.0
        %2677 = vmatprep.subr.mxu0 0.0
        %2678 = vmatpush1.msra.mxu0 0.0
        %2679 = vmatprep.subr.mxu0 0.0
        %2680 = vmatpush1.msra.mxu0 0.0
        %2681 = vmatprep.subr.mxu0 0.0
        %2682 = vmatpush1.msra.mxu0 0.0
        %2683 = vmatprep.subr.mxu0 0.0
        %2684 = vmatpush1.msra.mxu0 0.0
        %2685 = vmatprep.subr.mxu0 0.0
        %2686 = vmatpush1.msra.mxu0 0.0
        %2687 = vmatprep.subr.mxu0 0.0
        %2688 = vmatpush1.msra.mxu0 0.0
        %2689 = vmatprep.subr.mxu0 0.0
        %2690 = vmatpush1.msra.mxu0 0.0
        %2691 = vmatprep.mubr.f32.mxu0 0.0
        %2692 = vmatmul.mubr.f32.gmra.mrb[0].mxu0 %v2625
        %v2693 = vpop.f32.mrb[0].mxu0
        %v2694 = vadd.f32 0.0, %v2693
        %v2695 = vpop.f32.mrb[0].mxu0
        %2696 = vdwg.mxu0
        %v2697 = vmax.f32 %v2694, 1e-30
        %v2698 = vrcp.pop %v2697
        %v2699 = vmul.f32 %v2698, 0.015625
        %v2701 = vsel %vm960, %v2699, 0
        %2703 = vmatprep.subr.mxu0 0.0
        %2704 = vmatpush1.xpose.msra.mxu0 %v1464
        %2705 = vmatprep.subr.mxu0 0.0
        %2706 = vmatpush1.xpose.msra.mxu0 %v1467
        %2707 = vmatprep.subr.mxu0 0.0
        %2708 = vmatpush1.xpose.msra.mxu0 %v1470
        %2709 = vmatprep.subr.mxu0 0.0
        %2710 = vmatpush1.xpose.msra.mxu0 %v1473
        %2711 = vmatprep.subr.mxu0 0.0
        %2712 = vmatpush1.xpose.msra.mxu0 %v1476
        %2713 = vmatprep.subr.mxu0 0.0
        %2714 = vmatpush1.xpose.msra.mxu0 %v1479
        %2715 = vmatprep.subr.mxu0 0.0
        %2716 = vmatpush1.xpose.msra.mxu0 %v1482
        %2717 = vmatprep.subr.mxu0 0.0
        %2718 = vmatpush1.xpose.msra.mxu0 %v1485
        %2719 = vmatprep.subr.mxu0 0.0
        %2720 = vmatpush1.xpose.msra.mxu0 0.0
        %2721 = vmatprep.subr.mxu0 0.0
        %2722 = vmatpush1.xpose.msra.mxu0 0.0
        %2723 = vmatprep.subr.mxu0 0.0
        %2724 = vmatpush1.xpose.msra.mxu0 0.0
        %2725 = vmatprep.subr.mxu0 0.0
        %2726 = vmatpush1.xpose.msra.mxu0 0.0
        %2727 = vmatprep.subr.mxu0 0.0
        %2728 = vmatpush1.xpose.msra.mxu0 0.0
        %2729 = vmatprep.subr.mxu0 0.0
        %2730 = vmatpush1.xpose.msra.mxu0 0.0
        %2731 = vmatprep.subr.mxu0 0.0
        %2732 = vmatpush1.xpose.msra.mxu0 0.0
        %2733 = vmatprep.subr.mxu0 0.0
        %2734 = vmatpush1.xpose.msra.mxu0 0.0
        %2735 = vmatprep.subr.mxu0 0.0
        %2736 = vmatpush1.xpose.msra.mxu0 0.0
        %2737 = vmatprep.subr.mxu0 0.0
        %2738 = vmatpush1.xpose.msra.mxu0 0.0
        %2739 = vmatprep.subr.mxu0 0.0
        %2740 = vmatpush1.xpose.msra.mxu0 0.0
        %2741 = vmatprep.subr.mxu0 0.0
        %2742 = vmatpush1.xpose.msra.mxu0 0.0
        %2743 = vmatprep.subr.mxu0 0.0
        %2744 = vmatpush1.xpose.msra.mxu0 0.0
        %2745 = vmatprep.subr.mxu0 0.0
        %2746 = vmatpush1.xpose.msra.mxu0 0.0
        %2747 = vmatprep.subr.mxu0 0.0
        %2748 = vmatpush1.xpose.msra.mxu0 0.0
        %2749 = vmatprep.subr.mxu0 0.0
        %2750 = vmatpush1.xpose.msra.mxu0 0.0
        %2751 = vmatprep.subr.mxu0 0.0
        %2752 = vmatpush1.xpose.msra.mxu0 0.0
        %2753 = vmatprep.subr.mxu0 0.0
        %2754 = vmatpush1.xpose.msra.mxu0 0.0
        %2755 = vmatprep.subr.mxu0 0.0
        %2756 = vmatpush1.xpose.msra.mxu0 0.0
        %2757 = vmatprep.subr.mxu0 0.0
        %2758 = vmatpush1.xpose.msra.mxu0 0.0
        %2759 = vmatprep.subr.mxu0 0.0
        %2760 = vmatpush1.xpose.msra.mxu0 0.0
        %2761 = vmatprep.subr.mxu0 0.0
        %2762 = vmatpush1.xpose.msra.mxu0 0.0
        %2763 = vmatprep.subr.mxu0 0.0
        %2764 = vmatpush1.xpose.msra.mxu0 0.0
        %2765 = vmatprep.subr.mxu0 0.0
        %2766 = vmatpush1.xpose.msra.mxu0 0.0
        %2767 = vmatprep.mubr.f32.mxu0 0.0
        %2768 = vmatmul.mubr.f32.gmra.mrb[0].mxu0 %v2701
        %v2769 = vpop.f32.mrb[0].mxu0
        %v2770 = vadd.f32 0.0, %v2769
        %v2771 = vpop.f32.mrb[0].mxu0
        %2772 = vdwg.mxu0
        %v2773 = vmax.f32 %v2770, 1e-30
        %v2774 = vrcp.pop %v2773
        %v2775 = vmul.f32 %v2774, 0.015625
        %v2777 = vsel %vm960, %v2775, 0
        %2779 = vmatprep.subr.mxu0 0.0
        %2780 = vmatpush1.msra.mxu0 %v1445
        %2781 = vmatprep.subr.mxu0 0.0
        %2782 = vmatpush1.msra.mxu0 %v1447
        %2783 = vmatprep.subr.mxu0 0.0
        %2784 = vmatpush1.msra.mxu0 %v1449
        %2785 = vmatprep.subr.mxu0 0.0
        %2786 = vmatpush1.msra.mxu0 %v1451
        %2787 = vmatprep.subr.mxu0 0.0
        %2788 = vmatpush1.msra.mxu0 %v1453
        %2789 = vmatprep.subr.mxu0 0.0
        %2790 = vmatpush1.msra.mxu0 %v1455
        %2791 = vmatprep.subr.mxu0 0.0
        %2792 = vmatpush1.msra.mxu0 %v1457
        %2793 = vmatprep.subr.mxu0 0.0
        %2794 = vmatpush1.msra.mxu0 %v1459
        %2795 = vmatprep.subr.mxu0 0.0
        %2796 = vmatpush1.msra.mxu0 0.0
        %2797 = vmatprep.subr.mxu0 0.0
        %2798 = vmatpush1.msra.mxu0 0.0
        %2799 = vmatprep.subr.mxu0 0.0
        %2800 = vmatpush1.msra.mxu0 0.0
        %2801 = vmatprep.subr.mxu0 0.0
        %2802 = vmatpush1.msra.mxu0 0.0
        %2803 = vmatprep.subr.mxu0 0.0
        %2804 = vmatpush1.msra.mxu0 0.0
        %2805 = vmatprep.subr.mxu0 0.0
        %2806 = vmatpush1.msra.mxu0 0.0
        %2807 = vmatprep.subr.mxu0 0.0
        %2808 = vmatpush1.msra.mxu0 0.0
        %2809 = vmatprep.subr.mxu0 0.0
        %2810 = vmatpush1.msra.mxu0 0.0
        %2811 = vmatprep.subr.mxu0 0.0
        %2812 = vmatpush1.msra.mxu0 0.0
        %2813 = vmatprep.subr.mxu0 0.0
        %2814 = vmatpush1.msra.mxu0 0.0
        %2815 = vmatprep.subr.mxu0 0.0
        %2816 = vmatpush1.msra.mxu0 0.0
        %2817 = vmatprep.subr.mxu0 0.0
        %2818 = vmatpush1.msra.mxu0 0.0
        %2819 = vmatprep.subr.mxu0 0.0
        %2820 = vmatpush1.msra.mxu0 0.0
        %2821 = vmatprep.subr.mxu0 0.0
        %2822 = vmatpush1.msra.mxu0 0.0
        %2823 = vmatprep.subr.mxu0 0.0
        %2824 = vmatpush1.msra.mxu0 0.0
        %2825 = vmatprep.subr.mxu0 0.0
        %2826 = vmatpush1.msra.mxu0 0.0
        %2827 = vmatprep.subr.mxu0 0.0
        %2828 = vmatpush1.msra.mxu0 0.0
        %2829 = vmatprep.subr.mxu0 0.0
        %2830 = vmatpush1.msra.mxu0 0.0
        %2831 = vmatprep.subr.mxu0 0.0
        %2832 = vmatpush1.msra.mxu0 0.0
        %2833 = vmatprep.subr.mxu0 0.0
        %2834 = vmatpush1.msra.mxu0 0.0
        %2835 = vmatprep.subr.mxu0 0.0
        %2836 = vmatpush1.msra.mxu0 0.0
        %2837 = vmatprep.subr.mxu0 0.0
        %2838 = vmatpush1.msra.mxu0 0.0
        %2839 = vmatprep.subr.mxu0 0.0
        %2840 = vmatpush1.msra.mxu0 0.0
        %2841 = vmatprep.subr.mxu0 0.0
        %2842 = vmatpush1.msra.mxu0 0.0
        %2843 = vmatprep.mubr.f32.mxu0 0.0
        %2844 = vmatmul.mubr.f32.gmra.mrb[0].mxu0 %v2777
        %v2845 = vpop.f32.mrb[0].mxu0
        %v2846 = vadd.f32 0.0, %v2845
        %v2847 = vpop.f32.mrb[0].mxu0
        %2848 = vdwg.mxu0
        %v2849 = vmax.f32 %v2846, 1e-30
        %v2850 = vrcp.pop %v2849
        %v2851 = vmul.f32 %v2850, 0.015625
        %v2853 = vsel %vm960, %v2851, 0
        %2855 = vmatprep.subr.mxu0 0.0
        %2856 = vmatpush1.xpose.msra.mxu0 %v1464
        %2857 = vmatprep.subr.mxu0 0.0
        %2858 = vmatpush1.xpose.msra.mxu0 %v1467
        %2859 = vmatprep.subr.mxu0 0.0
        %2860 = vmatpush1.xpose.msra.mxu0 %v1470
        %2861 = vmatprep.subr.mxu0 0.0
        %2862 = vmatpush1.xpose.msra.mxu0 %v1473
        %2863 = vmatprep.subr.mxu0 0.0
        %2864 = vmatpush1.xpose.msra.mxu0 %v1476
        %2865 = vmatprep.subr.mxu0 0.0
        %2866 = vmatpush1.xpose.msra.mxu0 %v1479
        %2867 = vmatprep.subr.mxu0 0.0
        %2868 = vmatpush1.xpose.msra.mxu0 %v1482
        %2869 = vmatprep.subr.mxu0 0.0
        %2870 = vmatpush1.xpose.msra.mxu0 %v1485
        %2871 = vmatprep.subr.mxu0 0.0
        %2872 = vmatpush1.xpose.msra.mxu0 0.0
        %2873 = vmatprep.subr.mxu0 0.0
        %2874 = vmatpush1.xpose.msra.mxu0 0.0
        %2875 = vmatprep.subr.mxu0 0.0
        %2876 = vmatpush1.xpose.msra.mxu0 0.0
        %2877 = vmatprep.subr.mxu0 0.0
        %2878 = vmatpush1.xpose.msra.mxu0 0.0
        %2879 = vmatprep.subr.mxu0 0.0
        %2880 = vmatpush1.xpose.msra.mxu0 0.0
        %2881 = vmatprep.subr.mxu0 0.0
        %2882 = vmatpush1.xpose.msra.mxu0 0.0
        %2883 = vmatprep.subr.mxu0 0.0
        %2884 = vmatpush1.xpose.msra.mxu0 0.0
        %2885 = vmatprep.subr.mxu0 0.0
        %2886 = vmatpush1.xpose.msra.mxu0 0.0
        %2887 = vmatprep.subr.mxu0 0.0
        %2888 = vmatpush1.xpose.msra.mxu0 0.0
        %2889 = vmatprep.subr.mxu0 0.0
        %2890 = vmatpush1.xpose.msra.mxu0 0.0
        %2891 = vmatprep.subr.mxu0 0.0
        %2892 = vmatpush1.xpose.msra.mxu0 0.0
        %2893 = vmatprep.subr.mxu0 0.0
        %2894 = vmatpush1.xpose.msra.mxu0 0.0
        %2895 = vmatprep.subr.mxu0 0.0
        %2896 = vmatpush1.xpose.msra.mxu0 0.0
        %2897 = vmatprep.subr.mxu0 0.0
        %2898 = vmatpush1.xpose.msra.mxu0 0.0
        %2899 = vmatprep.subr.mxu0 0.0
        %2900 = vmatpush1.xpose.msra.mxu0 0.0
        %2901 = vmatprep.subr.mxu0 0.0
        %2902 = vmatpush1.xpose.msra.mxu0 0.0
        %2903 = vmatprep.subr.mxu0 0.0
        %2904 = vmatpush1.xpose.msra.mxu0 0.0
        %2905 = vmatprep.subr.mxu0 0.0
        %2906 = vmatpush1.xpose.msra.mxu0 0.0
        %2907 = vmatprep.subr.mxu0 0.0
        %2908 = vmatpush1.xpose.msra.mxu0 0.0
        %2909 = vmatprep.subr.mxu0 0.0
        %2910 = vmatpush1.xpose.msra.mxu0 0.0
        %2911 = vmatprep.subr.mxu0 0.0
        %2912 = vmatpush1.xpose.msra.mxu0 0.0
        %2913 = vmatprep.subr.mxu0 0.0
        %2914 = vmatpush1.xpose.msra.mxu0 0.0
        %2915 = vmatprep.subr.mxu0 0.0
        %2916 = vmatpush1.xpose.msra.mxu0 0.0
        %2917 = vmatprep.subr.mxu0 0.0
        %2918 = vmatpush1.xpose.msra.mxu0 0.0
        %2919 = vmatprep.mubr.f32.mxu0 0.0
        %2920 = vmatmul.mubr.f32.gmra.mrb[0].mxu0 %v2853
        %v2921 = vpop.f32.mrb[0].mxu0
        %v2922 = vadd.f32 0.0, %v2921
        %v2923 = vpop.f32.mrb[0].mxu0
        %2924 = vdwg.mxu0
        %v2925 = vmax.f32 %v2922, 1e-30
        %v2926 = vrcp.pop %v2925
        %v2927 = vmul.f32 %v2926, 0.015625
        %v2929 = vsel %vm960, %v2927, 0
        %2931 = vmatprep.subr.mxu0 0.0
        %2932 = vmatpush1.msra.mxu0 %v1445
        %2933 = vmatprep.subr.mxu0 0.0
        %2934 = vmatpush1.msra.mxu0 %v1447
        %2935 = vmatprep.subr.mxu0 0.0
        %2936 = vmatpush1.msra.mxu0 %v1449
        %2937 = vmatprep.subr.mxu0 0.0
        %2938 = vmatpush1.msra.mxu0 %v1451
        %2939 = vmatprep.subr.mxu0 0.0
        %2940 = vmatpush1.msra.mxu0 %v1453
        %2941 = vmatprep.subr.mxu0 0.0
        %2942 = vmatpush1.msra.mxu0 %v1455
        %2943 = vmatprep.subr.mxu0 0.0
        %2944 = vmatpush1.msra.mxu0 %v1457
        %2945 = vmatprep.subr.mxu0 0.0
        %2946 = vmatpush1.msra.mxu0 %v1459
        %2947 = vmatprep.subr.mxu0 0.0
        %2948 = vmatpush1.msra.mxu0 0.0
        %2949 = vmatprep.subr.mxu0 0.0
        %2950 = vmatpush1.msra.mxu0 0.0
        %2951 = vmatprep.subr.mxu0 0.0
        %2952 = vmatpush1.msra.mxu0 0.0
        %2953 = vmatprep.subr.mxu0 0.0
        %2954 = vmatpush1.msra.mxu0 0.0
        %2955 = vmatprep.subr.mxu0 0.0
        %2956 = vmatpush1.msra.mxu0 0.0
        %2957 = vmatprep.subr.mxu0 0.0
        %2958 = vmatpush1.msra.mxu0 0.0
        %2959 = vmatprep.subr.mxu0 0.0
        %2960 = vmatpush1.msra.mxu0 0.0
        %2961 = vmatprep.subr.mxu0 0.0
        %2962 = vmatpush1.msra.mxu0 0.0
        %2963 = vmatprep.subr.mxu0 0.0
        %2964 = vmatpush1.msra.mxu0 0.0
        %2965 = vmatprep.subr.mxu0 0.0
        %2966 = vmatpush1.msra.mxu0 0.0
        %2967 = vmatprep.subr.mxu0 0.0
        %2968 = vmatpush1.msra.mxu0 0.0
        %2969 = vmatprep.subr.mxu0 0.0
        %2970 = vmatpush1.msra.mxu0 0.0
        %2971 = vmatprep.subr.mxu0 0.0
        %2972 = vmatpush1.msra.mxu0 0.0
        %2973 = vmatprep.subr.mxu0 0.0
        %2974 = vmatpush1.msra.mxu0 0.0
        %2975 = vmatprep.subr.mxu0 0.0
        %2976 = vmatpush1.msra.mxu0 0.0
        %2977 = vmatprep.subr.mxu0 0.0
        %2978 = vmatpush1.msra.mxu0 0.0
        %2979 = vmatprep.subr.mxu0 0.0
        %2980 = vmatpush1.msra.mxu0 0.0
        %2981 = vmatprep.subr.mxu0 0.0
        %2982 = vmatpush1.msra.mxu0 0.0
        %2983 = vmatprep.subr.mxu0 0.0
        %2984 = vmatpush1.msra.mxu0 0.0
        %2985 = vmatprep.subr.mxu0 0.0
        %2986 = vmatpush1.msra.mxu0 0.0
        %2987 = vmatprep.subr.mxu0 0.0
        %2988 = vmatpush1.msra.mxu0 0.0
        %2989 = vmatprep.subr.mxu0 0.0
        %2990 = vmatpush1.msra.mxu0 0.0
        %2991 = vmatprep.subr.mxu0 0.0
        %2992 = vmatpush1.msra.mxu0 0.0
        %2993 = vmatprep.subr.mxu0 0.0
        %2994 = vmatpush1.msra.mxu0 0.0
        %2995 = vmatprep.mubr.f32.mxu0 0.0
        %2996 = vmatmul.mubr.f32.gmra.mrb[0].mxu0 %v2929
        %v2997 = vpop.f32.mrb[0].mxu0
        %v2998 = vadd.f32 0.0, %v2997
        %v2999 = vpop.f32.mrb[0].mxu0
        %3000 = vdwg.mxu0
        %v3001 = vmax.f32 %v2998, 1e-30
        %v3002 = vrcp.pop %v3001
        %v3003 = vmul.f32 %v3002, 0.015625
        %v3004 = vmax.f32 %v2927, 1e-30
        %v3005 = vlog2.pop %v3004
        %v3006 = vmul.f32 %v3005, 0.6931472
        %3007 = vxpose.xlu0.b32.start [1/16] %v3006, 128
        %3008 = vxpose.xlu0.b32.cont [2/16] 0.0, 128
        %3009 = vxpose.xlu0.b32.cont [3/16] 0.0, 128
        %3010 = vxpose.xlu0.b32.cont [4/16] 0.0, 128
        %3011 = vxpose.xlu0.b32.cont [5/16] 0.0, 128
        %3012 = vxpose.xlu0.b32.cont [6/16] 0.0, 128
        %3013 = vxpose.xlu0.b32.cont [7/16] 0.0, 128
        %3014 = vxpose.xlu0.b32.cont [8/16] 0.0, 128
        %3015 = vxpose.xlu0.b32.cont [9/16] 0.0, 128
        %3016 = vxpose.xlu0.b32.cont [10/16] 0.0, 128
        %3017 = vxpose.xlu0.b32.cont [11/16] 0.0, 128
        %3018 = vxpose.xlu0.b32.cont [12/16] 0.0, 128
        %3019 = vxpose.xlu0.b32.cont [13/16] 0.0, 128
        %3020 = vxpose.xlu0.b32.cont [14/16] 0.0, 128
        %3021 = vxpose.xlu0.b32.cont [15/16] 0.0, 128
        %3022 = vxpose.xlu0.b32.end [16/16] 0.0, 128
        %v3023 = vpop.trf.xlu0
        %v3024 = vpop.trf.xlu0
        %v3025 = vpop.trf.xlu0
        %v3026 = vpop.trf.xlu0
        %v3027 = vpop.trf.xlu0
        %v3028 = vpop.trf.xlu0
        %v3029 = vpop.trf.xlu0
        %v3030 = vpop.trf.xlu0
        %v3031 = vpop.trf.xlu0
        %v3032 = vpop.trf.xlu0
        %v3033 = vpop.trf.xlu0
        %v3034 = vpop.trf.xlu0
        %v3035 = vpop.trf.xlu0
        %v3036 = vpop.trf.xlu0
        %v3037 = vpop.trf.xlu0
        %v3038 = vpop.trf.xlu0
        %v3039 = vadd.f32 %v1342, %v3023
        %v3040 = vadd.f32 %v1343, %v3024
        %v3041 = vadd.f32 %v1344, %v3025
        %v3042 = vadd.f32 %v1345, %v3026
        %v3043 = vadd.f32 %v1346, %v3027
        %v3044 = vadd.f32 %v1347, %v3028
        %v3045 = vadd.f32 %v1348, %v3029
        %v3046 = vadd.f32 %v1349, %v3030
        %v3047 = vmax.f32 %v3003, 1e-30
        %v3048 = vlog2.pop %v3047
        %v3049 = vmul.f32 %v3048, 0.6931472
        %v3050 = vadd.f32 %v1427, %v3049
        %3052 = vset.pattern.permute.xlu0 0
        %3053 = vperm.xlu0 %3052, %v3039
        %v3054 = vpop.permute.xlu0 %3053
        %3057 = vset.pattern.permute.xlu0 0
        %3058 = vperm.xlu0 %3057, %v3040
        %v3059 = vpop.permute.xlu0 %3058
        %3062 = vset.pattern.permute.xlu0 0
        %3063 = vperm.xlu0 %3062, %v3041
        %v3064 = vpop.permute.xlu0 %3063
        %3067 = vset.pattern.permute.xlu0 0
        %3068 = vperm.xlu0 %3067, %v3042
        %v3069 = vpop.permute.xlu0 %3068
        %3072 = vset.pattern.permute.xlu0 0
        %3073 = vperm.xlu0 %3072, %v3043
        %v3074 = vpop.permute.xlu0 %3073
        %3077 = vset.pattern.permute.xlu0 0
        %3078 = vperm.xlu0 %3077, %v3044
        %v3079 = vpop.permute.xlu0 %3078
        %3082 = vset.pattern.permute.xlu0 0
        %3083 = vperm.xlu0 %3082, %v3045
        %v3084 = vpop.permute.xlu0 %3083
        %3087 = vset.pattern.permute.xlu0 0
        %3088 = vperm.xlu0 %3087, %v3046
        %v3089 = vpop.permute.xlu0 %3088
        %v3091 = vlaneseq
        %v3092 = vshrl.u32 %v3091, 7
        %v3093 = vsub.s32 0, %v3092
        %v3094 = vrot.slane %v3050, %v3093
        %v3095 = vadd.f32 %v3054, %v3094
        %v3096 = vadd.f32 %v3059, %v3094
        %v3097 = vadd.f32 %v3064, %v3094
        %v3098 = vadd.f32 %v3069, %v3094
        %v3099 = vadd.f32 %v3074, %v3094
        %v3100 = vadd.f32 %v3079, %v3094
        %v3101 = vadd.f32 %v3084, %v3094
        %v3102 = vadd.f32 %v3089, %v3094
        %v3103 = vsub.f32 %v3095, %v1040
        %v3104 = vsub.f32 %v3096, %v1041
        %v3105 = vsub.f32 %v3097, %v1042
        %v3106 = vsub.f32 %v3098, %v1043
        %v3107 = vsub.f32 %v3099, %v1044
        %v3108 = vsub.f32 %v3100, %v1045
        %v3109 = vsub.f32 %v3101, %v1046
        %v3110 = vsub.f32 %v3102, %v1047
        %v3111 = vmul.f32 %v3103, 1.442695
        %v3112 = vpow.pop %v3111
        %v3113 = vmul.f32 %v3104, 1.442695
        %v3114 = vpow.pop %v3113
        %v3115 = vmul.f32 %v3105, 1.442695
        %v3116 = vpow.pop %v3115
        %v3117 = vmul.f32 %v3106, 1.442695
        %v3118 = vpow.pop %v3117
        %v3119 = vmul.f32 %v3107, 1.442695
        %v3120 = vpow.pop %v3119
        %v3121 = vmul.f32 %v3108, 1.442695
        %v3122 = vpow.pop %v3121
        %v3123 = vmul.f32 %v3109, 1.442695
        %v3124 = vpow.pop %v3123
        %v3125 = vmul.f32 %v3110, 1.442695
        %v3126 = vpow.pop %v3125
        %v3128 = vsel %vm960, %v3112, 0
        %v3131 = vsel %vm960, %v3114, 0
        %v3134 = vsel %vm960, %v3116, 0
        %v3137 = vsel %vm960, %v3118, 0
        %v3140 = vsel %vm960, %v3120, 0
        %v3143 = vsel %vm960, %v3122, 0
        %v3146 = vsel %vm960, %v3124, 0
        %v3149 = vsel %vm960, %v3126, 0
        %3151 = vmatprep.subr.mxu0 0.0
        %3152 = vmatpush1.xpose.msra.mxu0 %v3128
        %3153 = vmatprep.subr.mxu0 0.0
        %3154 = vmatpush1.xpose.msra.mxu0 %v3131
        %3155 = vmatprep.subr.mxu0 0.0
        %3156 = vmatpush1.xpose.msra.mxu0 %v3134
        %3157 = vmatprep.subr.mxu0 0.0
        %3158 = vmatpush1.xpose.msra.mxu0 %v3137
        %3159 = vmatprep.subr.mxu0 0.0
        %3160 = vmatpush1.xpose.msra.mxu0 %v3140
        %3161 = vmatprep.subr.mxu0 0.0
        %3162 = vmatpush1.xpose.msra.mxu0 %v3143
        %3163 = vmatprep.subr.mxu0 0.0
        %3164 = vmatpush1.xpose.msra.mxu0 %v3146
        %3165 = vmatprep.subr.mxu0 0.0
        %3166 = vmatpush1.xpose.msra.mxu0 %v3149
        %3167 = vmatprep.subr.mxu0 0.0
        %3168 = vmatpush1.xpose.msra.mxu0 0.0
        %3169 = vmatprep.subr.mxu0 0.0
        %3170 = vmatpush1.xpose.msra.mxu0 0.0
        %3171 = vmatprep.subr.mxu0 0.0
        %3172 = vmatpush1.xpose.msra.mxu0 0.0
        %3173 = vmatprep.subr.mxu0 0.0
        %3174 = vmatpush1.xpose.msra.mxu0 0.0
        %3175 = vmatprep.subr.mxu0 0.0
        %3176 = vmatpush1.xpose.msra.mxu0 0.0
        %3177 = vmatprep.subr.mxu0 0.0
        %3178 = vmatpush1.xpose.msra.mxu0 0.0
        %3179 = vmatprep.subr.mxu0 0.0
        %3180 = vmatpush1.xpose.msra.mxu0 0.0
        %3181 = vmatprep.subr.mxu0 0.0
        %3182 = vmatpush1.xpose.msra.mxu0 0.0
        %3183 = vmatprep.subr.mxu0 0.0
        %3184 = vmatpush1.xpose.msra.mxu0 0.0
        %3185 = vmatprep.subr.mxu0 0.0
        %3186 = vmatpush1.xpose.msra.mxu0 0.0
        %3187 = vmatprep.subr.mxu0 0.0
        %3188 = vmatpush1.xpose.msra.mxu0 0.0
        %3189 = vmatprep.subr.mxu0 0.0
        %3190 = vmatpush1.xpose.msra.mxu0 0.0
        %3191 = vmatprep.subr.mxu0 0.0
        %3192 = vmatpush1.xpose.msra.mxu0 0.0
        %3193 = vmatprep.subr.mxu0 0.0
        %3194 = vmatpush1.xpose.msra.mxu0 0.0
        %3195 = vmatprep.subr.mxu0 0.0
        %3196 = vmatpush1.xpose.msra.mxu0 0.0
        %3197 = vmatprep.subr.mxu0 0.0
        %3198 = vmatpush1.xpose.msra.mxu0 0.0
        %3199 = vmatprep.subr.mxu0 0.0
        %3200 = vmatpush1.xpose.msra.mxu0 0.0
        %3201 = vmatprep.subr.mxu0 0.0
        %3202 = vmatpush1.xpose.msra.mxu0 0.0
        %3203 = vmatprep.subr.mxu0 0.0
        %3204 = vmatpush1.xpose.msra.mxu0 0.0
        %3205 = vmatprep.subr.mxu0 0.0
        %3206 = vmatpush1.xpose.msra.mxu0 0.0
        %3207 = vmatprep.subr.mxu0 0.0
        %3208 = vmatpush1.xpose.msra.mxu0 0.0
        %3209 = vmatprep.subr.mxu0 0.0
        %3210 = vmatpush1.xpose.msra.mxu0 0.0
        %3211 = vmatprep.subr.mxu0 0.0
        %3212 = vmatpush1.xpose.msra.mxu0 0.0
        %3213 = vmatprep.subr.mxu0 0.0
        %3214 = vmatpush1.xpose.msra.mxu0 0.0
        %3215 = vmatprep.mubr.f32.mxu0 0.0
        %3216 = vmatmul.mubr.f32.gmra.mrb[0].mxu0 %v1461
        %v3217 = vpop.f32.mrb[0].mxu0
        %v3218 = vadd.f32 0.0, %v3217
        %v3219 = vpop.f32.mrb[0].mxu0
        %3220 = vdwg.mxu0
        %v3221 = vmax.f32 %v3218, 1e-30
        %v3222 = vrcp.pop %v3221
        %v3223 = vmul.f32 %v3222, 0.015625
        %v3225 = vsel %vm960, %v3223, 0
        %3227 = vmatprep.subr.mxu0 0.0
        %3228 = vmatpush1.msra.mxu0 %v3112
        %3229 = vmatprep.subr.mxu0 0.0
        %3230 = vmatpush1.msra.mxu0 %v3114
        %3231 = vmatprep.subr.mxu0 0.0
        %3232 = vmatpush1.msra.mxu0 %v3116
        %3233 = vmatprep.subr.mxu0 0.0
        %3234 = vmatpush1.msra.mxu0 %v3118
        %3235 = vmatprep.subr.mxu0 0.0
        %3236 = vmatpush1.msra.mxu0 %v3120
        %3237 = vmatprep.subr.mxu0 0.0
        %3238 = vmatpush1.msra.mxu0 %v3122
        %3239 = vmatprep.subr.mxu0 0.0
        %3240 = vmatpush1.msra.mxu0 %v3124
        %3241 = vmatprep.subr.mxu0 0.0
        %3242 = vmatpush1.msra.mxu0 %v3126
        %3243 = vmatprep.subr.mxu0 0.0
        %3244 = vmatpush1.msra.mxu0 0.0
        %3245 = vmatprep.subr.mxu0 0.0
        %3246 = vmatpush1.msra.mxu0 0.0
        %3247 = vmatprep.subr.mxu0 0.0
        %3248 = vmatpush1.msra.mxu0 0.0
        %3249 = vmatprep.subr.mxu0 0.0
        %3250 = vmatpush1.msra.mxu0 0.0
        %3251 = vmatprep.subr.mxu0 0.0
        %3252 = vmatpush1.msra.mxu0 0.0
        %3253 = vmatprep.subr.mxu0 0.0
        %3254 = vmatpush1.msra.mxu0 0.0
        %3255 = vmatprep.subr.mxu0 0.0
        %3256 = vmatpush1.msra.mxu0 0.0
        %3257 = vmatprep.subr.mxu0 0.0
        %3258 = vmatpush1.msra.mxu0 0.0
        %3259 = vmatprep.subr.mxu0 0.0
        %3260 = vmatpush1.msra.mxu0 0.0
        %3261 = vmatprep.subr.mxu0 0.0
        %3262 = vmatpush1.msra.mxu0 0.0
        %3263 = vmatprep.subr.mxu0 0.0
        %3264 = vmatpush1.msra.mxu0 0.0
        %3265 = vmatprep.subr.mxu0 0.0
        %3266 = vmatpush1.msra.mxu0 0.0
        %3267 = vmatprep.subr.mxu0 0.0
        %3268 = vmatpush1.msra.mxu0 0.0
        %3269 = vmatprep.subr.mxu0 0.0
        %3270 = vmatpush1.msra.mxu0 0.0
        %3271 = vmatprep.subr.mxu0 0.0
        %3272 = vmatpush1.msra.mxu0 0.0
        %3273 = vmatprep.subr.mxu0 0.0
        %3274 = vmatpush1.msra.mxu0 0.0
        %3275 = vmatprep.subr.mxu0 0.0
        %3276 = vmatpush1.msra.mxu0 0.0
        %3277 = vmatprep.subr.mxu0 0.0
        %3278 = vmatpush1.msra.mxu0 0.0
        %3279 = vmatprep.subr.mxu0 0.0
        %3280 = vmatpush1.msra.mxu0 0.0
        %3281 = vmatprep.subr.mxu0 0.0
        %3282 = vmatpush1.msra.mxu0 0.0
        %3283 = vmatprep.subr.mxu0 0.0
        %3284 = vmatpush1.msra.mxu0 0.0
        %3285 = vmatprep.subr.mxu0 0.0
        %3286 = vmatpush1.msra.mxu0 0.0
        %3287 = vmatprep.subr.mxu0 0.0
        %3288 = vmatpush1.msra.mxu0 0.0
        %3289 = vmatprep.subr.mxu0 0.0
        %3290 = vmatpush1.msra.mxu0 0.0
        %3291 = vmatprep.mubr.f32.mxu0 0.0
        %3292 = vmatmul.mubr.f32.gmra.mrb[0].mxu0 %v3225
        %v3293 = vpop.f32.mrb[0].mxu0
        %v3294 = vadd.f32 0.0, %v3293
        %v3295 = vpop.f32.mrb[0].mxu0
        %3296 = vdwg.mxu0
        %v3297 = vmax.f32 %v3294, 1e-30
        %v3298 = vrcp.pop %v3297
        %v3299 = vmul.f32 %v3298, 0.015625
        %v3301 = vsel %vm960, %v3299, 0
        %3303 = vmatprep.subr.mxu0 0.0
        %3304 = vmatpush1.xpose.msra.mxu0 %v3128
        %3305 = vmatprep.subr.mxu0 0.0
        %3306 = vmatpush1.xpose.msra.mxu0 %v3131
        %3307 = vmatprep.subr.mxu0 0.0
        %3308 = vmatpush1.xpose.msra.mxu0 %v3134
        %3309 = vmatprep.subr.mxu0 0.0
        %3310 = vmatpush1.xpose.msra.mxu0 %v3137
        %3311 = vmatprep.subr.mxu0 0.0
        %3312 = vmatpush1.xpose.msra.mxu0 %v3140
        %3313 = vmatprep.subr.mxu0 0.0
        %3314 = vmatpush1.xpose.msra.mxu0 %v3143
        %3315 = vmatprep.subr.mxu0 0.0
        %3316 = vmatpush1.xpose.msra.mxu0 %v3146
        %3317 = vmatprep.subr.mxu0 0.0
        %3318 = vmatpush1.xpose.msra.mxu0 %v3149
        %3319 = vmatprep.subr.mxu0 0.0
        %3320 = vmatpush1.xpose.msra.mxu0 0.0
        %3321 = vmatprep.subr.mxu0 0.0
        %3322 = vmatpush1.xpose.msra.mxu0 0.0
        %3323 = vmatprep.subr.mxu0 0.0
        %3324 = vmatpush1.xpose.msra.mxu0 0.0
        %3325 = vmatprep.subr.mxu0 0.0
        %3326 = vmatpush1.xpose.msra.mxu0 0.0
        %3327 = vmatprep.subr.mxu0 0.0
        %3328 = vmatpush1.xpose.msra.mxu0 0.0
        %3329 = vmatprep.subr.mxu0 0.0
        %3330 = vmatpush1.xpose.msra.mxu0 0.0
        %3331 = vmatprep.subr.mxu0 0.0
        %3332 = vmatpush1.xpose.msra.mxu0 0.0
        %3333 = vmatprep.subr.mxu0 0.0
        %3334 = vmatpush1.xpose.msra.mxu0 0.0
        %3335 = vmatprep.subr.mxu0 0.0
        %3336 = vmatpush1.xpose.msra.mxu0 0.0
        %3337 = vmatprep.subr.mxu0 0.0
        %3338 = vmatpush1.xpose.msra.mxu0 0.0
        %3339 = vmatprep.subr.mxu0 0.0
        %3340 = vmatpush1.xpose.msra.mxu0 0.0
        %3341 = vmatprep.subr.mxu0 0.0
        %3342 = vmatpush1.xpose.msra.mxu0 0.0
        %3343 = vmatprep.subr.mxu0 0.0
        %3344 = vmatpush1.xpose.msra.mxu0 0.0
        %3345 = vmatprep.subr.mxu0 0.0
        %3346 = vmatpush1.xpose.msra.mxu0 0.0
        %3347 = vmatprep.subr.mxu0 0.0
        %3348 = vmatpush1.xpose.msra.mxu0 0.0
        %3349 = vmatprep.subr.mxu0 0.0
        %3350 = vmatpush1.xpose.msra.mxu0 0.0
        %3351 = vmatprep.subr.mxu0 0.0
        %3352 = vmatpush1.xpose.msra.mxu0 0.0
        %3353 = vmatprep.subr.mxu0 0.0
        %3354 = vmatpush1.xpose.msra.mxu0 0.0
        %3355 = vmatprep.subr.mxu0 0.0
        %3356 = vmatpush1.xpose.msra.mxu0 0.0
        %3357 = vmatprep.subr.mxu0 0.0
        %3358 = vmatpush1.xpose.msra.mxu0 0.0
        %3359 = vmatprep.subr.mxu0 0.0
        %3360 = vmatpush1.xpose.msra.mxu0 0.0
        %3361 = vmatprep.subr.mxu0 0.0
        %3362 = vmatpush1.xpose.msra.mxu0 0.0
        %3363 = vmatprep.subr.mxu0 0.0
        %3364 = vmatpush1.xpose.msra.mxu0 0.0
        %3365 = vmatprep.subr.mxu0 0.0
        %3366 = vmatpush1.xpose.msra.mxu0 0.0
        %3367 = vmatprep.mubr.f32.mxu0 0.0
        %3368 = vmatmul.mubr.f32.gmra.mrb[0].mxu0 %v3301
        %v3369 = vpop.f32.mrb[0].mxu0
        %v3370 = vadd.f32 0.0, %v3369
        %v3371 = vpop.f32.mrb[0].mxu0
        %3372 = vdwg.mxu0
        %v3373 = vmax.f32 %v3370, 1e-30
        %v3374 = vrcp.pop %v3373
        %v3375 = vmul.f32 %v3374, 0.015625
        %v3377 = vsel %vm960, %v3375, 0
        %3379 = vmatprep.subr.mxu0 0.0
        %3380 = vmatpush1.msra.mxu0 %v3112
        %3381 = vmatprep.subr.mxu0 0.0
        %3382 = vmatpush1.msra.mxu0 %v3114
        %3383 = vmatprep.subr.mxu0 0.0
        %3384 = vmatpush1.msra.mxu0 %v3116
        %3385 = vmatprep.subr.mxu0 0.0
        %3386 = vmatpush1.msra.mxu0 %v3118
        %3387 = vmatprep.subr.mxu0 0.0
        %3388 = vmatpush1.msra.mxu0 %v3120
        %3389 = vmatprep.subr.mxu0 0.0
        %3390 = vmatpush1.msra.mxu0 %v3122
        %3391 = vmatprep.subr.mxu0 0.0
        %3392 = vmatpush1.msra.mxu0 %v3124
        %3393 = vmatprep.subr.mxu0 0.0
        %3394 = vmatpush1.msra.mxu0 %v3126
        %3395 = vmatprep.subr.mxu0 0.0
        %3396 = vmatpush1.msra.mxu0 0.0
        %3397 = vmatprep.subr.mxu0 0.0
        %3398 = vmatpush1.msra.mxu0 0.0
        %3399 = vmatprep.subr.mxu0 0.0
        %3400 = vmatpush1.msra.mxu0 0.0
        %3401 = vmatprep.subr.mxu0 0.0
        %3402 = vmatpush1.msra.mxu0 0.0
        %3403 = vmatprep.subr.mxu0 0.0
        %3404 = vmatpush1.msra.mxu0 0.0
        %3405 = vmatprep.subr.mxu0 0.0
        %3406 = vmatpush1.msra.mxu0 0.0
        %3407 = vmatprep.subr.mxu0 0.0
        %3408 = vmatpush1.msra.mxu0 0.0
        %3409 = vmatprep.subr.mxu0 0.0
        %3410 = vmatpush1.msra.mxu0 0.0
        %3411 = vmatprep.subr.mxu0 0.0
        %3412 = vmatpush1.msra.mxu0 0.0
        %3413 = vmatprep.subr.mxu0 0.0
        %3414 = vmatpush1.msra.mxu0 0.0
        %3415 = vmatprep.subr.mxu0 0.0
        %3416 = vmatpush1.msra.mxu0 0.0
        %3417 = vmatprep.subr.mxu0 0.0
        %3418 = vmatpush1.msra.mxu0 0.0
        %3419 = vmatprep.subr.mxu0 0.0
        %3420 = vmatpush1.msra.mxu0 0.0
        %3421 = vmatprep.subr.mxu0 0.0
        %3422 = vmatpush1.msra.mxu0 0.0
        %3423 = vmatprep.subr.mxu0 0.0
        %3424 = vmatpush1.msra.mxu0 0.0
        %3425 = vmatprep.subr.mxu0 0.0
        %3426 = vmatpush1.msra.mxu0 0.0
        %3427 = vmatprep.subr.mxu0 0.0
        %3428 = vmatpush1.msra.mxu0 0.0
        %3429 = vmatprep.subr.mxu0 0.0
        %3430 = vmatpush1.msra.mxu0 0.0
        %3431 = vmatprep.subr.mxu0 0.0
        %3432 = vmatpush1.msra.mxu0 0.0
        %3433 = vmatprep.subr.mxu0 0.0
        %3434 = vmatpush1.msra.mxu0 0.0
        %3435 = vmatprep.subr.mxu0 0.0
        %3436 = vmatpush1.msra.mxu0 0.0
        %3437 = vmatprep.subr.mxu0 0.0
        %3438 = vmatpush1.msra.mxu0 0.0
        %3439 = vmatprep.subr.mxu0 0.0
        %3440 = vmatpush1.msra.mxu0 0.0
        %3441 = vmatprep.subr.mxu0 0.0
        %3442 = vmatpush1.msra.mxu0 0.0
        %3443 = vmatprep.mubr.f32.mxu0 0.0
        %3444 = vmatmul.mubr.f32.gmra.mrb[0].mxu0 %v3377
        %v3445 = vpop.f32.mrb[0].mxu0
        %v3446 = vadd.f32 0.0, %v3445
        %v3447 = vpop.f32.mrb[0].mxu0
        %3448 = vdwg.mxu0
        %v3449 = vmax.f32 %v3446, 1e-30
        %v3450 = vrcp.pop %v3449
        %v3451 = vmul.f32 %v3450, 0.015625
        %v3453 = vsel %vm960, %v3451, 0
        %3455 = vmatprep.subr.mxu0 0.0
        %3456 = vmatpush1.xpose.msra.mxu0 %v3128
        %3457 = vmatprep.subr.mxu0 0.0
        %3458 = vmatpush1.xpose.msra.mxu0 %v3131
        %3459 = vmatprep.subr.mxu0 0.0
        %3460 = vmatpush1.xpose.msra.mxu0 %v3134
        %3461 = vmatprep.subr.mxu0 0.0
        %3462 = vmatpush1.xpose.msra.mxu0 %v3137
        %3463 = vmatprep.subr.mxu0 0.0
        %3464 = vmatpush1.xpose.msra.mxu0 %v3140
        %3465 = vmatprep.subr.mxu0 0.0
        %3466 = vmatpush1.xpose.msra.mxu0 %v3143
        %3467 = vmatprep.subr.mxu0 0.0
        %3468 = vmatpush1.xpose.msra.mxu0 %v3146
        %3469 = vmatprep.subr.mxu0 0.0
        %3470 = vmatpush1.xpose.msra.mxu0 %v3149
        %3471 = vmatprep.subr.mxu0 0.0
        %3472 = vmatpush1.xpose.msra.mxu0 0.0
        %3473 = vmatprep.subr.mxu0 0.0
        %3474 = vmatpush1.xpose.msra.mxu0 0.0
        %3475 = vmatprep.subr.mxu0 0.0
        %3476 = vmatpush1.xpose.msra.mxu0 0.0
        %3477 = vmatprep.subr.mxu0 0.0
        %3478 = vmatpush1.xpose.msra.mxu0 0.0
        %3479 = vmatprep.subr.mxu0 0.0
        %3480 = vmatpush1.xpose.msra.mxu0 0.0
        %3481 = vmatprep.subr.mxu0 0.0
        %3482 = vmatpush1.xpose.msra.mxu0 0.0
        %3483 = vmatprep.subr.mxu0 0.0
        %3484 = vmatpush1.xpose.msra.mxu0 0.0
        %3485 = vmatprep.subr.mxu0 0.0
        %3486 = vmatpush1.xpose.msra.mxu0 0.0
        %3487 = vmatprep.subr.mxu0 0.0
        %3488 = vmatpush1.xpose.msra.mxu0 0.0
        %3489 = vmatprep.subr.mxu0 0.0
        %3490 = vmatpush1.xpose.msra.mxu0 0.0
        %3491 = vmatprep.subr.mxu0 0.0
        %3492 = vmatpush1.xpose.msra.mxu0 0.0
        %3493 = vmatprep.subr.mxu0 0.0
        %3494 = vmatpush1.xpose.msra.mxu0 0.0
        %3495 = vmatprep.subr.mxu0 0.0
        %3496 = vmatpush1.xpose.msra.mxu0 0.0
        %3497 = vmatprep.subr.mxu0 0.0
        %3498 = vmatpush1.xpose.msra.mxu0 0.0
        %3499 = vmatprep.subr.mxu0 0.0
        %3500 = vmatpush1.xpose.msra.mxu0 0.0
        %3501 = vmatprep.subr.mxu0 0.0
        %3502 = vmatpush1.xpose.msra.mxu0 0.0
        %3503 = vmatprep.subr.mxu0 0.0
        %3504 = vmatpush1.xpose.msra.mxu0 0.0
        %3505 = vmatprep.subr.mxu0 0.0
        %3506 = vmatpush1.xpose.msra.mxu0 0.0
        %3507 = vmatprep.subr.mxu0 0.0
        %3508 = vmatpush1.xpose.msra.mxu0 0.0
        %3509 = vmatprep.subr.mxu0 0.0
        %3510 = vmatpush1.xpose.msra.mxu0 0.0
        %3511 = vmatprep.subr.mxu0 0.0
        %3512 = vmatpush1.xpose.msra.mxu0 0.0
        %3513 = vmatprep.subr.mxu0 0.0
        %3514 = vmatpush1.xpose.msra.mxu0 0.0
        %3515 = vmatprep.subr.mxu0 0.0
        %3516 = vmatpush1.xpose.msra.mxu0 0.0
        %3517 = vmatprep.subr.mxu0 0.0
        %3518 = vmatpush1.xpose.msra.mxu0 0.0
        %3519 = vmatprep.mubr.f32.mxu0 0.0
        %3520 = vmatmul.mubr.f32.gmra.mrb[0].mxu0 %v3453
        %v3521 = vpop.f32.mrb[0].mxu0
        %v3522 = vadd.f32 0.0, %v3521
        %v3523 = vpop.f32.mrb[0].mxu0
        %3524 = vdwg.mxu0
        %v3525 = vmax.f32 %v3522, 1e-30
        %v3526 = vrcp.pop %v3525
        %v3527 = vmul.f32 %v3526, 0.015625
        %v3529 = vsel %vm960, %v3527, 0
        %3531 = vmatprep.subr.mxu0 0.0
        %3532 = vmatpush1.msra.mxu0 %v3112
        %3533 = vmatprep.subr.mxu0 0.0
        %3534 = vmatpush1.msra.mxu0 %v3114
        %3535 = vmatprep.subr.mxu0 0.0
        %3536 = vmatpush1.msra.mxu0 %v3116
        %3537 = vmatprep.subr.mxu0 0.0
        %3538 = vmatpush1.msra.mxu0 %v3118
        %3539 = vmatprep.subr.mxu0 0.0
        %3540 = vmatpush1.msra.mxu0 %v3120
        %3541 = vmatprep.subr.mxu0 0.0
        %3542 = vmatpush1.msra.mxu0 %v3122
        %3543 = vmatprep.subr.mxu0 0.0
        %3544 = vmatpush1.msra.mxu0 %v3124
        %3545 = vmatprep.subr.mxu0 0.0
        %3546 = vmatpush1.msra.mxu0 %v3126
        %3547 = vmatprep.subr.mxu0 0.0
        %3548 = vmatpush1.msra.mxu0 0.0
        %3549 = vmatprep.subr.mxu0 0.0
        %3550 = vmatpush1.msra.mxu0 0.0
        %3551 = vmatprep.subr.mxu0 0.0
        %3552 = vmatpush1.msra.mxu0 0.0
        %3553 = vmatprep.subr.mxu0 0.0
        %3554 = vmatpush1.msra.mxu0 0.0
        %3555 = vmatprep.subr.mxu0 0.0
        %3556 = vmatpush1.msra.mxu0 0.0
        %3557 = vmatprep.subr.mxu0 0.0
        %3558 = vmatpush1.msra.mxu0 0.0
        %3559 = vmatprep.subr.mxu0 0.0
        %3560 = vmatpush1.msra.mxu0 0.0
        %3561 = vmatprep.subr.mxu0 0.0
        %3562 = vmatpush1.msra.mxu0 0.0
        %3563 = vmatprep.subr.mxu0 0.0
        %3564 = vmatpush1.msra.mxu0 0.0
        %3565 = vmatprep.subr.mxu0 0.0
        %3566 = vmatpush1.msra.mxu0 0.0
        %3567 = vmatprep.subr.mxu0 0.0
        %3568 = vmatpush1.msra.mxu0 0.0
        %3569 = vmatprep.subr.mxu0 0.0
        %3570 = vmatpush1.msra.mxu0 0.0
        %3571 = vmatprep.subr.mxu0 0.0
        %3572 = vmatpush1.msra.mxu0 0.0
        %3573 = vmatprep.subr.mxu0 0.0
        %3574 = vmatpush1.msra.mxu0 0.0
        %3575 = vmatprep.subr.mxu0 0.0
        %3576 = vmatpush1.msra.mxu0 0.0
        %3577 = vmatprep.subr.mxu0 0.0
        %3578 = vmatpush1.msra.mxu0 0.0
        %3579 = vmatprep.subr.mxu0 0.0
        %3580 = vmatpush1.msra.mxu0 0.0
        %3581 = vmatprep.subr.mxu0 0.0
        %3582 = vmatpush1.msra.mxu0 0.0
        %3583 = vmatprep.subr.mxu0 0.0
        %3584 = vmatpush1.msra.mxu0 0.0
        %3585 = vmatprep.subr.mxu0 0.0
        %3586 = vmatpush1.msra.mxu0 0.0
        %3587 = vmatprep.subr.mxu0 0.0
        %3588 = vmatpush1.msra.mxu0 0.0
        %3589 = vmatprep.subr.mxu0 0.0
        %3590 = vmatpush1.msra.mxu0 0.0
        %3591 = vmatprep.subr.mxu0 0.0
        %3592 = vmatpush1.msra.mxu0 0.0
        %3593 = vmatprep.subr.mxu0 0.0
        %3594 = vmatpush1.msra.mxu0 0.0
        %3595 = vmatprep.mubr.f32.mxu0 0.0
        %3596 = vmatmul.mubr.f32.gmra.mrb[0].mxu0 %v3529
        %v3597 = vpop.f32.mrb[0].mxu0
        %v3598 = vadd.f32 0.0, %v3597
        %v3599 = vpop.f32.mrb[0].mxu0
        %3600 = vdwg.mxu0
        %v3601 = vmax.f32 %v3598, 1e-30
        %v3602 = vrcp.pop %v3601
        %v3603 = vmul.f32 %v3602, 0.015625
        %v3605 = vsel %vm960, %v3603, 0
        %3607 = vmatprep.subr.mxu0 0.0
        %3608 = vmatpush1.xpose.msra.mxu0 %v3128
        %3609 = vmatprep.subr.mxu0 0.0
        %3610 = vmatpush1.xpose.msra.mxu0 %v3131
        %3611 = vmatprep.subr.mxu0 0.0
        %3612 = vmatpush1.xpose.msra.mxu0 %v3134
        %3613 = vmatprep.subr.mxu0 0.0
        %3614 = vmatpush1.xpose.msra.mxu0 %v3137
        %3615 = vmatprep.subr.mxu0 0.0
        %3616 = vmatpush1.xpose.msra.mxu0 %v3140
        %3617 = vmatprep.subr.mxu0 0.0
        %3618 = vmatpush1.xpose.msra.mxu0 %v3143
        %3619 = vmatprep.subr.mxu0 0.0
        %3620 = vmatpush1.xpose.msra.mxu0 %v3146
        %3621 = vmatprep.subr.mxu0 0.0
        %3622 = vmatpush1.xpose.msra.mxu0 %v3149
        %3623 = vmatprep.subr.mxu0 0.0
        %3624 = vmatpush1.xpose.msra.mxu0 0.0
        %3625 = vmatprep.subr.mxu0 0.0
        %3626 = vmatpush1.xpose.msra.mxu0 0.0
        %3627 = vmatprep.subr.mxu0 0.0
        %3628 = vmatpush1.xpose.msra.mxu0 0.0
        %3629 = vmatprep.subr.mxu0 0.0
        %3630 = vmatpush1.xpose.msra.mxu0 0.0
        %3631 = vmatprep.subr.mxu0 0.0
        %3632 = vmatpush1.xpose.msra.mxu0 0.0
        %3633 = vmatprep.subr.mxu0 0.0
        %3634 = vmatpush1.xpose.msra.mxu0 0.0
        %3635 = vmatprep.subr.mxu0 0.0
        %3636 = vmatpush1.xpose.msra.mxu0 0.0
        %3637 = vmatprep.subr.mxu0 0.0
        %3638 = vmatpush1.xpose.msra.mxu0 0.0
        %3639 = vmatprep.subr.mxu0 0.0
        %3640 = vmatpush1.xpose.msra.mxu0 0.0
        %3641 = vmatprep.subr.mxu0 0.0
        %3642 = vmatpush1.xpose.msra.mxu0 0.0
        %3643 = vmatprep.subr.mxu0 0.0
        %3644 = vmatpush1.xpose.msra.mxu0 0.0
        %3645 = vmatprep.subr.mxu0 0.0
        %3646 = vmatpush1.xpose.msra.mxu0 0.0
        %3647 = vmatprep.subr.mxu0 0.0
        %3648 = vmatpush1.xpose.msra.mxu0 0.0
        %3649 = vmatprep.subr.mxu0 0.0
        %3650 = vmatpush1.xpose.msra.mxu0 0.0
        %3651 = vmatprep.subr.mxu0 0.0
        %3652 = vmatpush1.xpose.msra.mxu0 0.0
        %3653 = vmatprep.subr.mxu0 0.0
        %3654 = vmatpush1.xpose.msra.mxu0 0.0
        %3655 = vmatprep.subr.mxu0 0.0
        %3656 = vmatpush1.xpose.msra.mxu0 0.0
        %3657 = vmatprep.subr.mxu0 0.0
        %3658 = vmatpush1.xpose.msra.mxu0 0.0
        %3659 = vmatprep.subr.mxu0 0.0
        %3660 = vmatpush1.xpose.msra.mxu0 0.0
        %3661 = vmatprep.subr.mxu0 0.0
        %3662 = vmatpush1.xpose.msra.mxu0 0.0
        %3663 = vmatprep.subr.mxu0 0.0
        %3664 = vmatpush1.xpose.msra.mxu0 0.0
        %3665 = vmatprep.subr.mxu0 0.0
        %3666 = vmatpush1.xpose.msra.mxu0 0.0
        %3667 = vmatprep.subr.mxu0 0.0
        %3668 = vmatpush1.xpose.msra.mxu0 0.0
        %3669 = vmatprep.subr.mxu0 0.0
        %3670 = vmatpush1.xpose.msra.mxu0 0.0
        %3671 = vmatprep.mubr.f32.mxu0 0.0
        %3672 = vmatmul.mubr.f32.gmra.mrb[0].mxu0 %v3605
        %v3673 = vpop.f32.mrb[0].mxu0
        %v3674 = vadd.f32 0.0, %v3673
        %v3675 = vpop.f32.mrb[0].mxu0
        %3676 = vdwg.mxu0
        %v3677 = vmax.f32 %v3674, 1e-30
        %v3678 = vrcp.pop %v3677
        %v3679 = vmul.f32 %v3678, 0.015625
        %v3681 = vsel %vm960, %v3679, 0
        %3683 = vmatprep.subr.mxu0 0.0
        %3684 = vmatpush1.msra.mxu0 %v3112
        %3685 = vmatprep.subr.mxu0 0.0
        %3686 = vmatpush1.msra.mxu0 %v3114
        %3687 = vmatprep.subr.mxu0 0.0
        %3688 = vmatpush1.msra.mxu0 %v3116
        %3689 = vmatprep.subr.mxu0 0.0
        %3690 = vmatpush1.msra.mxu0 %v3118
        %3691 = vmatprep.subr.mxu0 0.0
        %3692 = vmatpush1.msra.mxu0 %v3120
        %3693 = vmatprep.subr.mxu0 0.0
        %3694 = vmatpush1.msra.mxu0 %v3122
        %3695 = vmatprep.subr.mxu0 0.0
        %3696 = vmatpush1.msra.mxu0 %v3124
        %3697 = vmatprep.subr.mxu0 0.0
        %3698 = vmatpush1.msra.mxu0 %v3126
        %3699 = vmatprep.subr.mxu0 0.0
        %3700 = vmatpush1.msra.mxu0 0.0
        %3701 = vmatprep.subr.mxu0 0.0
        %3702 = vmatpush1.msra.mxu0 0.0
        %3703 = vmatprep.subr.mxu0 0.0
        %3704 = vmatpush1.msra.mxu0 0.0
        %3705 = vmatprep.subr.mxu0 0.0
        %3706 = vmatpush1.msra.mxu0 0.0
        %3707 = vmatprep.subr.mxu0 0.0
        %3708 = vmatpush1.msra.mxu0 0.0
        %3709 = vmatprep.subr.mxu0 0.0
        %3710 = vmatpush1.msra.mxu0 0.0
        %3711 = vmatprep.subr.mxu0 0.0
        %3712 = vmatpush1.msra.mxu0 0.0
        %3713 = vmatprep.subr.mxu0 0.0
        %3714 = vmatpush1.msra.mxu0 0.0
        %3715 = vmatprep.subr.mxu0 0.0
        %3716 = vmatpush1.msra.mxu0 0.0
        %3717 = vmatprep.subr.mxu0 0.0
        %3718 = vmatpush1.msra.mxu0 0.0
        %3719 = vmatprep.subr.mxu0 0.0
        %3720 = vmatpush1.msra.mxu0 0.0
        %3721 = vmatprep.subr.mxu0 0.0
        %3722 = vmatpush1.msra.mxu0 0.0
        %3723 = vmatprep.subr.mxu0 0.0
        %3724 = vmatpush1.msra.mxu0 0.0
        %3725 = vmatprep.subr.mxu0 0.0
        %3726 = vmatpush1.msra.mxu0 0.0
        %3727 = vmatprep.subr.mxu0 0.0
        %3728 = vmatpush1.msra.mxu0 0.0
        %3729 = vmatprep.subr.mxu0 0.0
        %3730 = vmatpush1.msra.mxu0 0.0
        %3731 = vmatprep.subr.mxu0 0.0
        %3732 = vmatpush1.msra.mxu0 0.0
        %3733 = vmatprep.subr.mxu0 0.0
        %3734 = vmatpush1.msra.mxu0 0.0
        %3735 = vmatprep.subr.mxu0 0.0
        %3736 = vmatpush1.msra.mxu0 0.0
        %3737 = vmatprep.subr.mxu0 0.0
        %3738 = vmatpush1.msra.mxu0 0.0
        %3739 = vmatprep.subr.mxu0 0.0
        %3740 = vmatpush1.msra.mxu0 0.0
        %3741 = vmatprep.subr.mxu0 0.0
        %3742 = vmatpush1.msra.mxu0 0.0
        %3743 = vmatprep.subr.mxu0 0.0
        %3744 = vmatpush1.msra.mxu0 0.0
        %3745 = vmatprep.subr.mxu0 0.0
        %3746 = vmatpush1.msra.mxu0 0.0
        %3747 = vmatprep.mubr.f32.mxu0 0.0
        %3748 = vmatmul.mubr.f32.gmra.mrb[0].mxu0 %v3681
        %v3749 = vpop.f32.mrb[0].mxu0
        %v3750 = vadd.f32 0.0, %v3749
        %v3751 = vpop.f32.mrb[0].mxu0
        %3752 = vdwg.mxu0
        %v3753 = vmax.f32 %v3750, 1e-30
        %v3754 = vrcp.pop %v3753
        %v3755 = vmul.f32 %v3754, 0.015625
        %v3757 = vsel %vm960, %v3755, 0
        %3759 = vmatprep.subr.mxu0 0.0
        %3760 = vmatpush1.xpose.msra.mxu0 %v3128
        %3761 = vmatprep.subr.mxu0 0.0
        %3762 = vmatpush1.xpose.msra.mxu0 %v3131
        %3763 = vmatprep.subr.mxu0 0.0
        %3764 = vmatpush1.xpose.msra.mxu0 %v3134
        %3765 = vmatprep.subr.mxu0 0.0
        %3766 = vmatpush1.xpose.msra.mxu0 %v3137
        %3767 = vmatprep.subr.mxu0 0.0
        %3768 = vmatpush1.xpose.msra.mxu0 %v3140
        %3769 = vmatprep.subr.mxu0 0.0
        %3770 = vmatpush1.xpose.msra.mxu0 %v3143
        %3771 = vmatprep.subr.mxu0 0.0
        %3772 = vmatpush1.xpose.msra.mxu0 %v3146
        %3773 = vmatprep.subr.mxu0 0.0
        %3774 = vmatpush1.xpose.msra.mxu0 %v3149
        %3775 = vmatprep.subr.mxu0 0.0
        %3776 = vmatpush1.xpose.msra.mxu0 0.0
        %3777 = vmatprep.subr.mxu0 0.0
        %3778 = vmatpush1.xpose.msra.mxu0 0.0
        %3779 = vmatprep.subr.mxu0 0.0
        %3780 = vmatpush1.xpose.msra.mxu0 0.0
        %3781 = vmatprep.subr.mxu0 0.0
        %3782 = vmatpush1.xpose.msra.mxu0 0.0
        %3783 = vmatprep.subr.mxu0 0.0
        %3784 = vmatpush1.xpose.msra.mxu0 0.0
        %3785 = vmatprep.subr.mxu0 0.0
        %3786 = vmatpush1.xpose.msra.mxu0 0.0
        %3787 = vmatprep.subr.mxu0 0.0
        %3788 = vmatpush1.xpose.msra.mxu0 0.0
        %3789 = vmatprep.subr.mxu0 0.0
        %3790 = vmatpush1.xpose.msra.mxu0 0.0
        %3791 = vmatprep.subr.mxu0 0.0
        %3792 = vmatpush1.xpose.msra.mxu0 0.0
        %3793 = vmatprep.subr.mxu0 0.0
        %3794 = vmatpush1.xpose.msra.mxu0 0.0
        %3795 = vmatprep.subr.mxu0 0.0
        %3796 = vmatpush1.xpose.msra.mxu0 0.0
        %3797 = vmatprep.subr.mxu0 0.0
        %3798 = vmatpush1.xpose.msra.mxu0 0.0
        %3799 = vmatprep.subr.mxu0 0.0
        %3800 = vmatpush1.xpose.msra.mxu0 0.0
        %3801 = vmatprep.subr.mxu0 0.0
        %3802 = vmatpush1.xpose.msra.mxu0 0.0
        %3803 = vmatprep.subr.mxu0 0.0
        %3804 = vmatpush1.xpose.msra.mxu0 0.0
        %3805 = vmatprep.subr.mxu0 0.0
        %3806 = vmatpush1.xpose.msra.mxu0 0.0
        %3807 = vmatprep.subr.mxu0 0.0
        %3808 = vmatpush1.xpose.msra.mxu0 0.0
        %3809 = vmatprep.subr.mxu0 0.0
        %3810 = vmatpush1.xpose.msra.mxu0 0.0
        %3811 = vmatprep.subr.mxu0 0.0
        %3812 = vmatpush1.xpose.msra.mxu0 0.0
        %3813 = vmatprep.subr.mxu0 0.0
        %3814 = vmatpush1.xpose.msra.mxu0 0.0
        %3815 = vmatprep.subr.mxu0 0.0
        %3816 = vmatpush1.xpose.msra.mxu0 0.0
        %3817 = vmatprep.subr.mxu0 0.0
        %3818 = vmatpush1.xpose.msra.mxu0 0.0
        %3819 = vmatprep.subr.mxu0 0.0
        %3820 = vmatpush1.xpose.msra.mxu0 0.0
        %3821 = vmatprep.subr.mxu0 0.0
        %3822 = vmatpush1.xpose.msra.mxu0 0.0
        %3823 = vmatprep.mubr.f32.mxu0 0.0
        %3824 = vmatmul.mubr.f32.gmra.mrb[0].mxu0 %v3757
        %v3825 = vpop.f32.mrb[0].mxu0
        %v3826 = vadd.f32 0.0, %v3825
        %v3827 = vpop.f32.mrb[0].mxu0
        %3828 = vdwg.mxu0
        %v3829 = vmax.f32 %v3826, 1e-30
        %v3830 = vrcp.pop %v3829
        %v3831 = vmul.f32 %v3830, 0.015625
        %v3833 = vsel %vm960, %v3831, 0
        %3835 = vmatprep.subr.mxu0 0.0
        %3836 = vmatpush1.msra.mxu0 %v3112
        %3837 = vmatprep.subr.mxu0 0.0
        %3838 = vmatpush1.msra.mxu0 %v3114
        %3839 = vmatprep.subr.mxu0 0.0
        %3840 = vmatpush1.msra.mxu0 %v3116
        %3841 = vmatprep.subr.mxu0 0.0
        %3842 = vmatpush1.msra.mxu0 %v3118
        %3843 = vmatprep.subr.mxu0 0.0
        %3844 = vmatpush1.msra.mxu0 %v3120
        %3845 = vmatprep.subr.mxu0 0.0
        %3846 = vmatpush1.msra.mxu0 %v3122
        %3847 = vmatprep.subr.mxu0 0.0
        %3848 = vmatpush1.msra.mxu0 %v3124
        %3849 = vmatprep.subr.mxu0 0.0
        %3850 = vmatpush1.msra.mxu0 %v3126
        %3851 = vmatprep.subr.mxu0 0.0
        %3852 = vmatpush1.msra.mxu0 0.0
        %3853 = vmatprep.subr.mxu0 0.0
        %3854 = vmatpush1.msra.mxu0 0.0
        %3855 = vmatprep.subr.mxu0 0.0
        %3856 = vmatpush1.msra.mxu0 0.0
        %3857 = vmatprep.subr.mxu0 0.0
        %3858 = vmatpush1.msra.mxu0 0.0
        %3859 = vmatprep.subr.mxu0 0.0
        %3860 = vmatpush1.msra.mxu0 0.0
        %3861 = vmatprep.subr.mxu0 0.0
        %3862 = vmatpush1.msra.mxu0 0.0
        %3863 = vmatprep.subr.mxu0 0.0
        %3864 = vmatpush1.msra.mxu0 0.0
        %3865 = vmatprep.subr.mxu0 0.0
        %3866 = vmatpush1.msra.mxu0 0.0
        %3867 = vmatprep.subr.mxu0 0.0
        %3868 = vmatpush1.msra.mxu0 0.0
        %3869 = vmatprep.subr.mxu0 0.0
        %3870 = vmatpush1.msra.mxu0 0.0
        %3871 = vmatprep.subr.mxu0 0.0
        %3872 = vmatpush1.msra.mxu0 0.0
        %3873 = vmatprep.subr.mxu0 0.0
        %3874 = vmatpush1.msra.mxu0 0.0
        %3875 = vmatprep.subr.mxu0 0.0
        %3876 = vmatpush1.msra.mxu0 0.0
        %3877 = vmatprep.subr.mxu0 0.0
        %3878 = vmatpush1.msra.mxu0 0.0
        %3879 = vmatprep.subr.mxu0 0.0
        %3880 = vmatpush1.msra.mxu0 0.0
        %3881 = vmatprep.subr.mxu0 0.0
        %3882 = vmatpush1.msra.mxu0 0.0
        %3883 = vmatprep.subr.mxu0 0.0
        %3884 = vmatpush1.msra.mxu0 0.0
        %3885 = vmatprep.subr.mxu0 0.0
        %3886 = vmatpush1.msra.mxu0 0.0
        %3887 = vmatprep.subr.mxu0 0.0
        %3888 = vmatpush1.msra.mxu0 0.0
        %3889 = vmatprep.subr.mxu0 0.0
        %3890 = vmatpush1.msra.mxu0 0.0
        %3891 = vmatprep.subr.mxu0 0.0
        %3892 = vmatpush1.msra.mxu0 0.0
        %3893 = vmatprep.subr.mxu0 0.0
        %3894 = vmatpush1.msra.mxu0 0.0
        %3895 = vmatprep.subr.mxu0 0.0
        %3896 = vmatpush1.msra.mxu0 0.0
        %3897 = vmatprep.subr.mxu0 0.0
        %3898 = vmatpush1.msra.mxu0 0.0
        %3899 = vmatprep.mubr.f32.mxu0 0.0
        %3900 = vmatmul.mubr.f32.gmra.mrb[0].mxu0 %v3833
        %v3901 = vpop.f32.mrb[0].mxu0
        %v3902 = vadd.f32 0.0, %v3901
        %v3903 = vpop.f32.mrb[0].mxu0
        %3904 = vdwg.mxu0
        %v3905 = vmax.f32 %v3902, 1e-30
        %v3906 = vrcp.pop %v3905
        %v3907 = vmul.f32 %v3906, 0.015625
        %v3909 = vsel %vm960, %v3907, 0
        %3911 = vmatprep.subr.mxu0 0.0
        %3912 = vmatpush1.xpose.msra.mxu0 %v3128
        %3913 = vmatprep.subr.mxu0 0.0
        %3914 = vmatpush1.xpose.msra.mxu0 %v3131
        %3915 = vmatprep.subr.mxu0 0.0
        %3916 = vmatpush1.xpose.msra.mxu0 %v3134
        %3917 = vmatprep.subr.mxu0 0.0
        %3918 = vmatpush1.xpose.msra.mxu0 %v3137
        %3919 = vmatprep.subr.mxu0 0.0
        %3920 = vmatpush1.xpose.msra.mxu0 %v3140
        %3921 = vmatprep.subr.mxu0 0.0
        %3922 = vmatpush1.xpose.msra.mxu0 %v3143
        %3923 = vmatprep.subr.mxu0 0.0
        %3924 = vmatpush1.xpose.msra.mxu0 %v3146
        %3925 = vmatprep.subr.mxu0 0.0
        %3926 = vmatpush1.xpose.msra.mxu0 %v3149
        %3927 = vmatprep.subr.mxu0 0.0
        %3928 = vmatpush1.xpose.msra.mxu0 0.0
        %3929 = vmatprep.subr.mxu0 0.0
        %3930 = vmatpush1.xpose.msra.mxu0 0.0
        %3931 = vmatprep.subr.mxu0 0.0
        %3932 = vmatpush1.xpose.msra.mxu0 0.0
        %3933 = vmatprep.subr.mxu0 0.0
        %3934 = vmatpush1.xpose.msra.mxu0 0.0
        %3935 = vmatprep.subr.mxu0 0.0
        %3936 = vmatpush1.xpose.msra.mxu0 0.0
        %3937 = vmatprep.subr.mxu0 0.0
        %3938 = vmatpush1.xpose.msra.mxu0 0.0
        %3939 = vmatprep.subr.mxu0 0.0
        %3940 = vmatpush1.xpose.msra.mxu0 0.0
        %3941 = vmatprep.subr.mxu0 0.0
        %3942 = vmatpush1.xpose.msra.mxu0 0.0
        %3943 = vmatprep.subr.mxu0 0.0
        %3944 = vmatpush1.xpose.msra.mxu0 0.0
        %3945 = vmatprep.subr.mxu0 0.0
        %3946 = vmatpush1.xpose.msra.mxu0 0.0
        %3947 = vmatprep.subr.mxu0 0.0
        %3948 = vmatpush1.xpose.msra.mxu0 0.0
        %3949 = vmatprep.subr.mxu0 0.0
        %3950 = vmatpush1.xpose.msra.mxu0 0.0
        %3951 = vmatprep.subr.mxu0 0.0
        %3952 = vmatpush1.xpose.msra.mxu0 0.0
        %3953 = vmatprep.subr.mxu0 0.0
        %3954 = vmatpush1.xpose.msra.mxu0 0.0
        %3955 = vmatprep.subr.mxu0 0.0
        %3956 = vmatpush1.xpose.msra.mxu0 0.0
        %3957 = vmatprep.subr.mxu0 0.0
        %3958 = vmatpush1.xpose.msra.mxu0 0.0
        %3959 = vmatprep.subr.mxu0 0.0
        %3960 = vmatpush1.xpose.msra.mxu0 0.0
        %3961 = vmatprep.subr.mxu0 0.0
        %3962 = vmatpush1.xpose.msra.mxu0 0.0
        %3963 = vmatprep.subr.mxu0 0.0
        %3964 = vmatpush1.xpose.msra.mxu0 0.0
        %3965 = vmatprep.subr.mxu0 0.0
        %3966 = vmatpush1.xpose.msra.mxu0 0.0
        %3967 = vmatprep.subr.mxu0 0.0
        %3968 = vmatpush1.xpose.msra.mxu0 0.0
        %3969 = vmatprep.subr.mxu0 0.0
        %3970 = vmatpush1.xpose.msra.mxu0 0.0
        %3971 = vmatprep.subr.mxu0 0.0
        %3972 = vmatpush1.xpose.msra.mxu0 0.0
        %3973 = vmatprep.subr.mxu0 0.0
        %3974 = vmatpush1.xpose.msra.mxu0 0.0
        %3975 = vmatprep.mubr.f32.mxu0 0.0
        %3976 = vmatmul.mubr.f32.gmra.mrb[0].mxu0 %v3909
        %v3977 = vpop.f32.mrb[0].mxu0
        %v3978 = vadd.f32 0.0, %v3977
        %v3979 = vpop.f32.mrb[0].mxu0
        %3980 = vdwg.mxu0
        %v3981 = vmax.f32 %v3978, 1e-30
        %v3982 = vrcp.pop %v3981
        %v3983 = vmul.f32 %v3982, 0.015625
        %v3985 = vsel %vm960, %v3983, 0
        %3987 = vmatprep.subr.mxu0 0.0
        %3988 = vmatpush1.msra.mxu0 %v3112
        %3989 = vmatprep.subr.mxu0 0.0
        %3990 = vmatpush1.msra.mxu0 %v3114
        %3991 = vmatprep.subr.mxu0 0.0
        %3992 = vmatpush1.msra.mxu0 %v3116
        %3993 = vmatprep.subr.mxu0 0.0
        %3994 = vmatpush1.msra.mxu0 %v3118
        %3995 = vmatprep.subr.mxu0 0.0
        %3996 = vmatpush1.msra.mxu0 %v3120
        %3997 = vmatprep.subr.mxu0 0.0
        %3998 = vmatpush1.msra.mxu0 %v3122
        %3999 = vmatprep.subr.mxu0 0.0
        %4000 = vmatpush1.msra.mxu0 %v3124
        %4001 = vmatprep.subr.mxu0 0.0
        %4002 = vmatpush1.msra.mxu0 %v3126
        %4003 = vmatprep.subr.mxu0 0.0
        %4004 = vmatpush1.msra.mxu0 0.0
        %4005 = vmatprep.subr.mxu0 0.0
        %4006 = vmatpush1.msra.mxu0 0.0
        %4007 = vmatprep.subr.mxu0 0.0
        %4008 = vmatpush1.msra.mxu0 0.0
        %4009 = vmatprep.subr.mxu0 0.0
        %4010 = vmatpush1.msra.mxu0 0.0
        %4011 = vmatprep.subr.mxu0 0.0
        %4012 = vmatpush1.msra.mxu0 0.0
        %4013 = vmatprep.subr.mxu0 0.0
        %4014 = vmatpush1.msra.mxu0 0.0
        %4015 = vmatprep.subr.mxu0 0.0
        %4016 = vmatpush1.msra.mxu0 0.0
        %4017 = vmatprep.subr.mxu0 0.0
        %4018 = vmatpush1.msra.mxu0 0.0
        %4019 = vmatprep.subr.mxu0 0.0
        %4020 = vmatpush1.msra.mxu0 0.0
        %4021 = vmatprep.subr.mxu0 0.0
        %4022 = vmatpush1.msra.mxu0 0.0
        %4023 = vmatprep.subr.mxu0 0.0
        %4024 = vmatpush1.msra.mxu0 0.0
        %4025 = vmatprep.subr.mxu0 0.0
        %4026 = vmatpush1.msra.mxu0 0.0
        %4027 = vmatprep.subr.mxu0 0.0
        %4028 = vmatpush1.msra.mxu0 0.0
        %4029 = vmatprep.subr.mxu0 0.0
        %4030 = vmatpush1.msra.mxu0 0.0
        %4031 = vmatprep.subr.mxu0 0.0
        %4032 = vmatpush1.msra.mxu0 0.0
        %4033 = vmatprep.subr.mxu0 0.0
        %4034 = vmatpush1.msra.mxu0 0.0
        %4035 = vmatprep.subr.mxu0 0.0
        %4036 = vmatpush1.msra.mxu0 0.0
        %4037 = vmatprep.subr.mxu0 0.0
        %4038 = vmatpush1.msra.mxu0 0.0
        %4039 = vmatprep.subr.mxu0 0.0
        %4040 = vmatpush1.msra.mxu0 0.0
        %4041 = vmatprep.subr.mxu0 0.0
        %4042 = vmatpush1.msra.mxu0 0.0
        %4043 = vmatprep.subr.mxu0 0.0
        %4044 = vmatpush1.msra.mxu0 0.0
        %4045 = vmatprep.subr.mxu0 0.0
        %4046 = vmatpush1.msra.mxu0 0.0
        %4047 = vmatprep.subr.mxu0 0.0
        %4048 = vmatpush1.msra.mxu0 0.0
        %4049 = vmatprep.subr.mxu0 0.0
        %4050 = vmatpush1.msra.mxu0 0.0
        %4051 = vmatprep.mubr.f32.mxu0 0.0
        %4052 = vmatmul.mubr.f32.gmra.mrb[0].mxu0 %v3985
        %v4053 = vpop.f32.mrb[0].mxu0
        %v4054 = vadd.f32 0.0, %v4053
        %v4055 = vpop.f32.mrb[0].mxu0
        %4056 = vdwg.mxu0
        %v4057 = vmax.f32 %v4054, 1e-30
        %v4058 = vrcp.pop %v4057
        %v4059 = vmul.f32 %v4058, 0.015625
        %v4061 = vsel %vm960, %v4059, 0
        %4063 = vmatprep.subr.mxu0 0.0
        %4064 = vmatpush1.xpose.msra.mxu0 %v3128
        %4065 = vmatprep.subr.mxu0 0.0
        %4066 = vmatpush1.xpose.msra.mxu0 %v3131
        %4067 = vmatprep.subr.mxu0 0.0
        %4068 = vmatpush1.xpose.msra.mxu0 %v3134
        %4069 = vmatprep.subr.mxu0 0.0
        %4070 = vmatpush1.xpose.msra.mxu0 %v3137
        %4071 = vmatprep.subr.mxu0 0.0
        %4072 = vmatpush1.xpose.msra.mxu0 %v3140
        %4073 = vmatprep.subr.mxu0 0.0
        %4074 = vmatpush1.xpose.msra.mxu0 %v3143
        %4075 = vmatprep.subr.mxu0 0.0
        %4076 = vmatpush1.xpose.msra.mxu0 %v3146
        %4077 = vmatprep.subr.mxu0 0.0
        %4078 = vmatpush1.xpose.msra.mxu0 %v3149
        %4079 = vmatprep.subr.mxu0 0.0
        %4080 = vmatpush1.xpose.msra.mxu0 0.0
        %4081 = vmatprep.subr.mxu0 0.0
        %4082 = vmatpush1.xpose.msra.mxu0 0.0
        %4083 = vmatprep.subr.mxu0 0.0
        %4084 = vmatpush1.xpose.msra.mxu0 0.0
        %4085 = vmatprep.subr.mxu0 0.0
        %4086 = vmatpush1.xpose.msra.mxu0 0.0
        %4087 = vmatprep.subr.mxu0 0.0
        %4088 = vmatpush1.xpose.msra.mxu0 0.0
        %4089 = vmatprep.subr.mxu0 0.0
        %4090 = vmatpush1.xpose.msra.mxu0 0.0
        %4091 = vmatprep.subr.mxu0 0.0
        %4092 = vmatpush1.xpose.msra.mxu0 0.0
        %4093 = vmatprep.subr.mxu0 0.0
        %4094 = vmatpush1.xpose.msra.mxu0 0.0
        %4095 = vmatprep.subr.mxu0 0.0
        %4096 = vmatpush1.xpose.msra.mxu0 0.0
        %4097 = vmatprep.subr.mxu0 0.0
        %4098 = vmatpush1.xpose.msra.mxu0 0.0
        %4099 = vmatprep.subr.mxu0 0.0
        %4100 = vmatpush1.xpose.msra.mxu0 0.0
        %4101 = vmatprep.subr.mxu0 0.0
        %4102 = vmatpush1.xpose.msra.mxu0 0.0
        %4103 = vmatprep.subr.mxu0 0.0
        %4104 = vmatpush1.xpose.msra.mxu0 0.0
        %4105 = vmatprep.subr.mxu0 0.0
        %4106 = vmatpush1.xpose.msra.mxu0 0.0
        %4107 = vmatprep.subr.mxu0 0.0
        %4108 = vmatpush1.xpose.msra.mxu0 0.0
        %4109 = vmatprep.subr.mxu0 0.0
        %4110 = vmatpush1.xpose.msra.mxu0 0.0
        %4111 = vmatprep.subr.mxu0 0.0
        %4112 = vmatpush1.xpose.msra.mxu0 0.0
        %4113 = vmatprep.subr.mxu0 0.0
        %4114 = vmatpush1.xpose.msra.mxu0 0.0
        %4115 = vmatprep.subr.mxu0 0.0
        %4116 = vmatpush1.xpose.msra.mxu0 0.0
        %4117 = vmatprep.subr.mxu0 0.0
        %4118 = vmatpush1.xpose.msra.mxu0 0.0
        %4119 = vmatprep.subr.mxu0 0.0
        %4120 = vmatpush1.xpose.msra.mxu0 0.0
        %4121 = vmatprep.subr.mxu0 0.0
        %4122 = vmatpush1.xpose.msra.mxu0 0.0
        %4123 = vmatprep.subr.mxu0 0.0
        %4124 = vmatpush1.xpose.msra.mxu0 0.0
        %4125 = vmatprep.subr.mxu0 0.0
        %4126 = vmatpush1.xpose.msra.mxu0 0.0
        %4127 = vmatprep.mubr.f32.mxu0 0.0
        %4128 = vmatmul.mubr.f32.gmra.mrb[0].mxu0 %v4061
        %v4129 = vpop.f32.mrb[0].mxu0
        %v4130 = vadd.f32 0.0, %v4129
        %v4131 = vpop.f32.mrb[0].mxu0
        %4132 = vdwg.mxu0
        %v4133 = vmax.f32 %v4130, 1e-30
        %v4134 = vrcp.pop %v4133
        %v4135 = vmul.f32 %v4134, 0.015625
        %v4137 = vsel %vm960, %v4135, 0
        %4139 = vmatprep.subr.mxu0 0.0
        %4140 = vmatpush1.msra.mxu0 %v3112
        %4141 = vmatprep.subr.mxu0 0.0
        %4142 = vmatpush1.msra.mxu0 %v3114
        %4143 = vmatprep.subr.mxu0 0.0
        %4144 = vmatpush1.msra.mxu0 %v3116
        %4145 = vmatprep.subr.mxu0 0.0
        %4146 = vmatpush1.msra.mxu0 %v3118
        %4147 = vmatprep.subr.mxu0 0.0
        %4148 = vmatpush1.msra.mxu0 %v3120
        %4149 = vmatprep.subr.mxu0 0.0
        %4150 = vmatpush1.msra.mxu0 %v3122
        %4151 = vmatprep.subr.mxu0 0.0
        %4152 = vmatpush1.msra.mxu0 %v3124
        %4153 = vmatprep.subr.mxu0 0.0
        %4154 = vmatpush1.msra.mxu0 %v3126
        %4155 = vmatprep.subr.mxu0 0.0
        %4156 = vmatpush1.msra.mxu0 0.0
        %4157 = vmatprep.subr.mxu0 0.0
        %4158 = vmatpush1.msra.mxu0 0.0
        %4159 = vmatprep.subr.mxu0 0.0
        %4160 = vmatpush1.msra.mxu0 0.0
        %4161 = vmatprep.subr.mxu0 0.0
        %4162 = vmatpush1.msra.mxu0 0.0
        %4163 = vmatprep.subr.mxu0 0.0
        %4164 = vmatpush1.msra.mxu0 0.0
        %4165 = vmatprep.subr.mxu0 0.0
        %4166 = vmatpush1.msra.mxu0 0.0
        %4167 = vmatprep.subr.mxu0 0.0
        %4168 = vmatpush1.msra.mxu0 0.0
        %4169 = vmatprep.subr.mxu0 0.0
        %4170 = vmatpush1.msra.mxu0 0.0
        %4171 = vmatprep.subr.mxu0 0.0
        %4172 = vmatpush1.msra.mxu0 0.0
        %4173 = vmatprep.subr.mxu0 0.0
        %4174 = vmatpush1.msra.mxu0 0.0
        %4175 = vmatprep.subr.mxu0 0.0
        %4176 = vmatpush1.msra.mxu0 0.0
        %4177 = vmatprep.subr.mxu0 0.0
        %4178 = vmatpush1.msra.mxu0 0.0
        %4179 = vmatprep.subr.mxu0 0.0
        %4180 = vmatpush1.msra.mxu0 0.0
        %4181 = vmatprep.subr.mxu0 0.0
        %4182 = vmatpush1.msra.mxu0 0.0
        %4183 = vmatprep.subr.mxu0 0.0
        %4184 = vmatpush1.msra.mxu0 0.0
        %4185 = vmatprep.subr.mxu0 0.0
        %4186 = vmatpush1.msra.mxu0 0.0
        %4187 = vmatprep.subr.mxu0 0.0
        %4188 = vmatpush1.msra.mxu0 0.0
        %4189 = vmatprep.subr.mxu0 0.0
        %4190 = vmatpush1.msra.mxu0 0.0
        %4191 = vmatprep.subr.mxu0 0.0
        %4192 = vmatpush1.msra.mxu0 0.0
        %4193 = vmatprep.subr.mxu0 0.0
        %4194 = vmatpush1.msra.mxu0 0.0
        %4195 = vmatprep.subr.mxu0 0.0
        %4196 = vmatpush1.msra.mxu0 0.0
        %4197 = vmatprep.subr.mxu0 0.0
        %4198 = vmatpush1.msra.mxu0 0.0
        %4199 = vmatprep.subr.mxu0 0.0
        %4200 = vmatpush1.msra.mxu0 0.0
        %4201 = vmatprep.subr.mxu0 0.0
        %4202 = vmatpush1.msra.mxu0 0.0
        %4203 = vmatprep.mubr.f32.mxu0 0.0
        %4204 = vmatmul.mubr.f32.gmra.mrb[0].mxu0 %v4137
        %v4205 = vpop.f32.mrb[0].mxu0
        %v4206 = vadd.f32 0.0, %v4205
        %v4207 = vpop.f32.mrb[0].mxu0
        %4208 = vdwg.mxu0
        %v4209 = vmax.f32 %v4206, 1e-30
        %v4210 = vrcp.pop %v4209
        %v4211 = vmul.f32 %v4210, 0.015625
        %v4213 = vsel %vm960, %v4211, 0
        %4215 = vmatprep.subr.mxu0 0.0
        %4216 = vmatpush1.xpose.msra.mxu0 %v3128
        %4217 = vmatprep.subr.mxu0 0.0
        %4218 = vmatpush1.xpose.msra.mxu0 %v3131
        %4219 = vmatprep.subr.mxu0 0.0
        %4220 = vmatpush1.xpose.msra.mxu0 %v3134
        %4221 = vmatprep.subr.mxu0 0.0
        %4222 = vmatpush1.xpose.msra.mxu0 %v3137
        %4223 = vmatprep.subr.mxu0 0.0
        %4224 = vmatpush1.xpose.msra.mxu0 %v3140
        %4225 = vmatprep.subr.mxu0 0.0
        %4226 = vmatpush1.xpose.msra.mxu0 %v3143
        %4227 = vmatprep.subr.mxu0 0.0
        %4228 = vmatpush1.xpose.msra.mxu0 %v3146
        %4229 = vmatprep.subr.mxu0 0.0
        %4230 = vmatpush1.xpose.msra.mxu0 %v3149
        %4231 = vmatprep.subr.mxu0 0.0
        %4232 = vmatpush1.xpose.msra.mxu0 0.0
        %4233 = vmatprep.subr.mxu0 0.0
        %4234 = vmatpush1.xpose.msra.mxu0 0.0
        %4235 = vmatprep.subr.mxu0 0.0
        %4236 = vmatpush1.xpose.msra.mxu0 0.0
        %4237 = vmatprep.subr.mxu0 0.0
        %4238 = vmatpush1.xpose.msra.mxu0 0.0
        %4239 = vmatprep.subr.mxu0 0.0
        %4240 = vmatpush1.xpose.msra.mxu0 0.0
        %4241 = vmatprep.subr.mxu0 0.0
        %4242 = vmatpush1.xpose.msra.mxu0 0.0
        %4243 = vmatprep.subr.mxu0 0.0
        %4244 = vmatpush1.xpose.msra.mxu0 0.0
        %4245 = vmatprep.subr.mxu0 0.0
        %4246 = vmatpush1.xpose.msra.mxu0 0.0
        %4247 = vmatprep.subr.mxu0 0.0
        %4248 = vmatpush1.xpose.msra.mxu0 0.0
        %4249 = vmatprep.subr.mxu0 0.0
        %4250 = vmatpush1.xpose.msra.mxu0 0.0
        %4251 = vmatprep.subr.mxu0 0.0
        %4252 = vmatpush1.xpose.msra.mxu0 0.0
        %4253 = vmatprep.subr.mxu0 0.0
        %4254 = vmatpush1.xpose.msra.mxu0 0.0
        %4255 = vmatprep.subr.mxu0 0.0
        %4256 = vmatpush1.xpose.msra.mxu0 0.0
        %4257 = vmatprep.subr.mxu0 0.0
        %4258 = vmatpush1.xpose.msra.mxu0 0.0
        %4259 = vmatprep.subr.mxu0 0.0
        %4260 = vmatpush1.xpose.msra.mxu0 0.0
        %4261 = vmatprep.subr.mxu0 0.0
        %4262 = vmatpush1.xpose.msra.mxu0 0.0
        %4263 = vmatprep.subr.mxu0 0.0
        %4264 = vmatpush1.xpose.msra.mxu0 0.0
        %4265 = vmatprep.subr.mxu0 0.0
        %4266 = vmatpush1.xpose.msra.mxu0 0.0
        %4267 = vmatprep.subr.mxu0 0.0
        %4268 = vmatpush1.xpose.msra.mxu0 0.0
        %4269 = vmatprep.subr.mxu0 0.0
        %4270 = vmatpush1.xpose.msra.mxu0 0.0
        %4271 = vmatprep.subr.mxu0 0.0
        %4272 = vmatpush1.xpose.msra.mxu0 0.0
        %4273 = vmatprep.subr.mxu0 0.0
        %4274 = vmatpush1.xpose.msra.mxu0 0.0
        %4275 = vmatprep.subr.mxu0 0.0
        %4276 = vmatpush1.xpose.msra.mxu0 0.0
        %4277 = vmatprep.subr.mxu0 0.0
        %4278 = vmatpush1.xpose.msra.mxu0 0.0
        %4279 = vmatprep.mubr.f32.mxu0 0.0
        %4280 = vmatmul.mubr.f32.gmra.mrb[0].mxu0 %v4213
        %v4281 = vpop.f32.mrb[0].mxu0
        %v4282 = vadd.f32 0.0, %v4281
        %v4283 = vpop.f32.mrb[0].mxu0
        %4284 = vdwg.mxu0
        %v4285 = vmax.f32 %v4282, 1e-30
        %v4286 = vrcp.pop %v4285
        %v4287 = vmul.f32 %v4286, 0.015625
        %v4289 = vsel %vm960, %v4287, 0
        %4291 = vmatprep.subr.mxu0 0.0
        %4292 = vmatpush1.msra.mxu0 %v3112
        %4293 = vmatprep.subr.mxu0 0.0
        %4294 = vmatpush1.msra.mxu0 %v3114
        %4295 = vmatprep.subr.mxu0 0.0
        %4296 = vmatpush1.msra.mxu0 %v3116
        %4297 = vmatprep.subr.mxu0 0.0
        %4298 = vmatpush1.msra.mxu0 %v3118
        %4299 = vmatprep.subr.mxu0 0.0
        %4300 = vmatpush1.msra.mxu0 %v3120
        %4301 = vmatprep.subr.mxu0 0.0
        %4302 = vmatpush1.msra.mxu0 %v3122
        %4303 = vmatprep.subr.mxu0 0.0
        %4304 = vmatpush1.msra.mxu0 %v3124
        %4305 = vmatprep.subr.mxu0 0.0
        %4306 = vmatpush1.msra.mxu0 %v3126
        %4307 = vmatprep.subr.mxu0 0.0
        %4308 = vmatpush1.msra.mxu0 0.0
        %4309 = vmatprep.subr.mxu0 0.0
        %4310 = vmatpush1.msra.mxu0 0.0
        %4311 = vmatprep.subr.mxu0 0.0
        %4312 = vmatpush1.msra.mxu0 0.0
        %4313 = vmatprep.subr.mxu0 0.0
        %4314 = vmatpush1.msra.mxu0 0.0
        %4315 = vmatprep.subr.mxu0 0.0
        %4316 = vmatpush1.msra.mxu0 0.0
        %4317 = vmatprep.subr.mxu0 0.0
        %4318 = vmatpush1.msra.mxu0 0.0
        %4319 = vmatprep.subr.mxu0 0.0
        %4320 = vmatpush1.msra.mxu0 0.0
        %4321 = vmatprep.subr.mxu0 0.0
        %4322 = vmatpush1.msra.mxu0 0.0
        %4323 = vmatprep.subr.mxu0 0.0
        %4324 = vmatpush1.msra.mxu0 0.0
        %4325 = vmatprep.subr.mxu0 0.0
        %4326 = vmatpush1.msra.mxu0 0.0
        %4327 = vmatprep.subr.mxu0 0.0
        %4328 = vmatpush1.msra.mxu0 0.0
        %4329 = vmatprep.subr.mxu0 0.0
        %4330 = vmatpush1.msra.mxu0 0.0
        %4331 = vmatprep.subr.mxu0 0.0
        %4332 = vmatpush1.msra.mxu0 0.0
        %4333 = vmatprep.subr.mxu0 0.0
        %4334 = vmatpush1.msra.mxu0 0.0
        %4335 = vmatprep.subr.mxu0 0.0
        %4336 = vmatpush1.msra.mxu0 0.0
        %4337 = vmatprep.subr.mxu0 0.0
        %4338 = vmatpush1.msra.mxu0 0.0
        %4339 = vmatprep.subr.mxu0 0.0
        %4340 = vmatpush1.msra.mxu0 0.0
        %4341 = vmatprep.subr.mxu0 0.0
        %4342 = vmatpush1.msra.mxu0 0.0
        %4343 = vmatprep.subr.mxu0 0.0
        %4344 = vmatpush1.msra.mxu0 0.0
        %4345 = vmatprep.subr.mxu0 0.0
        %4346 = vmatpush1.msra.mxu0 0.0
        %4347 = vmatprep.subr.mxu0 0.0
        %4348 = vmatpush1.msra.mxu0 0.0
        %4349 = vmatprep.subr.mxu0 0.0
        %4350 = vmatpush1.msra.mxu0 0.0
        %4351 = vmatprep.subr.mxu0 0.0
        %4352 = vmatpush1.msra.mxu0 0.0
        %4353 = vmatprep.subr.mxu0 0.0
        %4354 = vmatpush1.msra.mxu0 0.0
        %4355 = vmatprep.mubr.f32.mxu0 0.0
        %4356 = vmatmul.mubr.f32.gmra.mrb[0].mxu0 %v4289
        %v4357 = vpop.f32.mrb[0].mxu0
        %v4358 = vadd.f32 0.0, %v4357
        %v4359 = vpop.f32.mrb[0].mxu0
        %4360 = vdwg.mxu0
        %v4361 = vmax.f32 %v4358, 1e-30
        %v4362 = vrcp.pop %v4361
        %v4363 = vmul.f32 %v4362, 0.015625
        %v4365 = vsel %vm960, %v4363, 0
        %4367 = vmatprep.subr.mxu0 0.0
        %4368 = vmatpush1.xpose.msra.mxu0 %v3128
        %4369 = vmatprep.subr.mxu0 0.0
        %4370 = vmatpush1.xpose.msra.mxu0 %v3131
        %4371 = vmatprep.subr.mxu0 0.0
        %4372 = vmatpush1.xpose.msra.mxu0 %v3134
        %4373 = vmatprep.subr.mxu0 0.0
        %4374 = vmatpush1.xpose.msra.mxu0 %v3137
        %4375 = vmatprep.subr.mxu0 0.0
        %4376 = vmatpush1.xpose.msra.mxu0 %v3140
        %4377 = vmatprep.subr.mxu0 0.0
        %4378 = vmatpush1.xpose.msra.mxu0 %v3143
        %4379 = vmatprep.subr.mxu0 0.0
        %4380 = vmatpush1.xpose.msra.mxu0 %v3146
        %4381 = vmatprep.subr.mxu0 0.0
        %4382 = vmatpush1.xpose.msra.mxu0 %v3149
        %4383 = vmatprep.subr.mxu0 0.0
        %4384 = vmatpush1.xpose.msra.mxu0 0.0
        %4385 = vmatprep.subr.mxu0 0.0
        %4386 = vmatpush1.xpose.msra.mxu0 0.0
        %4387 = vmatprep.subr.mxu0 0.0
        %4388 = vmatpush1.xpose.msra.mxu0 0.0
        %4389 = vmatprep.subr.mxu0 0.0
        %4390 = vmatpush1.xpose.msra.mxu0 0.0
        %4391 = vmatprep.subr.mxu0 0.0
        %4392 = vmatpush1.xpose.msra.mxu0 0.0
        %4393 = vmatprep.subr.mxu0 0.0
        %4394 = vmatpush1.xpose.msra.mxu0 0.0
        %4395 = vmatprep.subr.mxu0 0.0
        %4396 = vmatpush1.xpose.msra.mxu0 0.0
        %4397 = vmatprep.subr.mxu0 0.0
        %4398 = vmatpush1.xpose.msra.mxu0 0.0
        %4399 = vmatprep.subr.mxu0 0.0
        %4400 = vmatpush1.xpose.msra.mxu0 0.0
        %4401 = vmatprep.subr.mxu0 0.0
        %4402 = vmatpush1.xpose.msra.mxu0 0.0
        %4403 = vmatprep.subr.mxu0 0.0
        %4404 = vmatpush1.xpose.msra.mxu0 0.0
        %4405 = vmatprep.subr.mxu0 0.0
        %4406 = vmatpush1.xpose.msra.mxu0 0.0
        %4407 = vmatprep.subr.mxu0 0.0
        %4408 = vmatpush1.xpose.msra.mxu0 0.0
        %4409 = vmatprep.subr.mxu0 0.0
        %4410 = vmatpush1.xpose.msra.mxu0 0.0
        %4411 = vmatprep.subr.mxu0 0.0
        %4412 = vmatpush1.xpose.msra.mxu0 0.0
        %4413 = vmatprep.subr.mxu0 0.0
        %4414 = vmatpush1.xpose.msra.mxu0 0.0
        %4415 = vmatprep.subr.mxu0 0.0
        %4416 = vmatpush1.xpose.msra.mxu0 0.0
        %4417 = vmatprep.subr.mxu0 0.0
        %4418 = vmatpush1.xpose.msra.mxu0 0.0
        %4419 = vmatprep.subr.mxu0 0.0
        %4420 = vmatpush1.xpose.msra.mxu0 0.0
        %4421 = vmatprep.subr.mxu0 0.0
        %4422 = vmatpush1.xpose.msra.mxu0 0.0
        %4423 = vmatprep.subr.mxu0 0.0
        %4424 = vmatpush1.xpose.msra.mxu0 0.0
        %4425 = vmatprep.subr.mxu0 0.0
        %4426 = vmatpush1.xpose.msra.mxu0 0.0
        %4427 = vmatprep.subr.mxu0 0.0
        %4428 = vmatpush1.xpose.msra.mxu0 0.0
        %4429 = vmatprep.subr.mxu0 0.0
        %4430 = vmatpush1.xpose.msra.mxu0 0.0
        %4431 = vmatprep.mubr.f32.mxu0 0.0
        %4432 = vmatmul.mubr.f32.gmra.mrb[0].mxu0 %v4365
        %v4433 = vpop.f32.mrb[0].mxu0
        %v4434 = vadd.f32 0.0, %v4433
        %v4435 = vpop.f32.mrb[0].mxu0
        %4436 = vdwg.mxu0
        %v4437 = vmax.f32 %v4434, 1e-30
        %v4438 = vrcp.pop %v4437
        %v4439 = vmul.f32 %v4438, 0.015625
        %v4441 = vsel %vm960, %v4439, 0
        %4443 = vmatprep.subr.mxu0 0.0
        %4444 = vmatpush1.msra.mxu0 %v3112
        %4445 = vmatprep.subr.mxu0 0.0
        %4446 = vmatpush1.msra.mxu0 %v3114
        %4447 = vmatprep.subr.mxu0 0.0
        %4448 = vmatpush1.msra.mxu0 %v3116
        %4449 = vmatprep.subr.mxu0 0.0
        %4450 = vmatpush1.msra.mxu0 %v3118
        %4451 = vmatprep.subr.mxu0 0.0
        %4452 = vmatpush1.msra.mxu0 %v3120
        %4453 = vmatprep.subr.mxu0 0.0
        %4454 = vmatpush1.msra.mxu0 %v3122
        %4455 = vmatprep.subr.mxu0 0.0
        %4456 = vmatpush1.msra.mxu0 %v3124
        %4457 = vmatprep.subr.mxu0 0.0
        %4458 = vmatpush1.msra.mxu0 %v3126
        %4459 = vmatprep.subr.mxu0 0.0
        %4460 = vmatpush1.msra.mxu0 0.0
        %4461 = vmatprep.subr.mxu0 0.0
        %4462 = vmatpush1.msra.mxu0 0.0
        %4463 = vmatprep.subr.mxu0 0.0
        %4464 = vmatpush1.msra.mxu0 0.0
        %4465 = vmatprep.subr.mxu0 0.0
        %4466 = vmatpush1.msra.mxu0 0.0
        %4467 = vmatprep.subr.mxu0 0.0
        %4468 = vmatpush1.msra.mxu0 0.0
        %4469 = vmatprep.subr.mxu0 0.0
        %4470 = vmatpush1.msra.mxu0 0.0
        %4471 = vmatprep.subr.mxu0 0.0
        %4472 = vmatpush1.msra.mxu0 0.0
        %4473 = vmatprep.subr.mxu0 0.0
        %4474 = vmatpush1.msra.mxu0 0.0
        %4475 = vmatprep.subr.mxu0 0.0
        %4476 = vmatpush1.msra.mxu0 0.0
        %4477 = vmatprep.subr.mxu0 0.0
        %4478 = vmatpush1.msra.mxu0 0.0
        %4479 = vmatprep.subr.mxu0 0.0
        %4480 = vmatpush1.msra.mxu0 0.0
        %4481 = vmatprep.subr.mxu0 0.0
        %4482 = vmatpush1.msra.mxu0 0.0
        %4483 = vmatprep.subr.mxu0 0.0
        %4484 = vmatpush1.msra.mxu0 0.0
        %4485 = vmatprep.subr.mxu0 0.0
        %4486 = vmatpush1.msra.mxu0 0.0
        %4487 = vmatprep.subr.mxu0 0.0
        %4488 = vmatpush1.msra.mxu0 0.0
        %4489 = vmatprep.subr.mxu0 0.0
        %4490 = vmatpush1.msra.mxu0 0.0
        %4491 = vmatprep.subr.mxu0 0.0
        %4492 = vmatpush1.msra.mxu0 0.0
        %4493 = vmatprep.subr.mxu0 0.0
        %4494 = vmatpush1.msra.mxu0 0.0
        %4495 = vmatprep.subr.mxu0 0.0
        %4496 = vmatpush1.msra.mxu0 0.0
        %4497 = vmatprep.subr.mxu0 0.0
        %4498 = vmatpush1.msra.mxu0 0.0
        %4499 = vmatprep.subr.mxu0 0.0
        %4500 = vmatpush1.msra.mxu0 0.0
        %4501 = vmatprep.subr.mxu0 0.0
        %4502 = vmatpush1.msra.mxu0 0.0
        %4503 = vmatprep.subr.mxu0 0.0
        %4504 = vmatpush1.msra.mxu0 0.0
        %4505 = vmatprep.subr.mxu0 0.0
        %4506 = vmatpush1.msra.mxu0 0.0
        %4507 = vmatprep.mubr.f32.mxu0 0.0
        %4508 = vmatmul.mubr.f32.gmra.mrb[0].mxu0 %v4441
        %v4509 = vpop.f32.mrb[0].mxu0
        %v4510 = vadd.f32 0.0, %v4509
        %v4511 = vpop.f32.mrb[0].mxu0
        %4512 = vdwg.mxu0
        %v4513 = vmax.f32 %v4510, 1e-30
        %v4514 = vrcp.pop %v4513
        %v4515 = vmul.f32 %v4514, 0.015625
        %v4517 = vsel %vm960, %v4515, 0
        %4519 = vmatprep.subr.mxu0 0.0
        %4520 = vmatpush1.xpose.msra.mxu0 %v3128
        %4521 = vmatprep.subr.mxu0 0.0
        %4522 = vmatpush1.xpose.msra.mxu0 %v3131
        %4523 = vmatprep.subr.mxu0 0.0
        %4524 = vmatpush1.xpose.msra.mxu0 %v3134
        %4525 = vmatprep.subr.mxu0 0.0
        %4526 = vmatpush1.xpose.msra.mxu0 %v3137
        %4527 = vmatprep.subr.mxu0 0.0
        %4528 = vmatpush1.xpose.msra.mxu0 %v3140
        %4529 = vmatprep.subr.mxu0 0.0
        %4530 = vmatpush1.xpose.msra.mxu0 %v3143
        %4531 = vmatprep.subr.mxu0 0.0
        %4532 = vmatpush1.xpose.msra.mxu0 %v3146
        %4533 = vmatprep.subr.mxu0 0.0
        %4534 = vmatpush1.xpose.msra.mxu0 %v3149
        %4535 = vmatprep.subr.mxu0 0.0
        %4536 = vmatpush1.xpose.msra.mxu0 0.0
        %4537 = vmatprep.subr.mxu0 0.0
        %4538 = vmatpush1.xpose.msra.mxu0 0.0
        %4539 = vmatprep.subr.mxu0 0.0
        %4540 = vmatpush1.xpose.msra.mxu0 0.0
        %4541 = vmatprep.subr.mxu0 0.0
        %4542 = vmatpush1.xpose.msra.mxu0 0.0
        %4543 = vmatprep.subr.mxu0 0.0
        %4544 = vmatpush1.xpose.msra.mxu0 0.0
        %4545 = vmatprep.subr.mxu0 0.0
        %4546 = vmatpush1.xpose.msra.mxu0 0.0
        %4547 = vmatprep.subr.mxu0 0.0
        %4548 = vmatpush1.xpose.msra.mxu0 0.0
        %4549 = vmatprep.subr.mxu0 0.0
        %4550 = vmatpush1.xpose.msra.mxu0 0.0
        %4551 = vmatprep.subr.mxu0 0.0
        %4552 = vmatpush1.xpose.msra.mxu0 0.0
        %4553 = vmatprep.subr.mxu0 0.0
        %4554 = vmatpush1.xpose.msra.mxu0 0.0
        %4555 = vmatprep.subr.mxu0 0.0
        %4556 = vmatpush1.xpose.msra.mxu0 0.0
        %4557 = vmatprep.subr.mxu0 0.0
        %4558 = vmatpush1.xpose.msra.mxu0 0.0
        %4559 = vmatprep.subr.mxu0 0.0
        %4560 = vmatpush1.xpose.msra.mxu0 0.0
        %4561 = vmatprep.subr.mxu0 0.0
        %4562 = vmatpush1.xpose.msra.mxu0 0.0
        %4563 = vmatprep.subr.mxu0 0.0
        %4564 = vmatpush1.xpose.msra.mxu0 0.0
        %4565 = vmatprep.subr.mxu0 0.0
        %4566 = vmatpush1.xpose.msra.mxu0 0.0
        %4567 = vmatprep.subr.mxu0 0.0
        %4568 = vmatpush1.xpose.msra.mxu0 0.0
        %4569 = vmatprep.subr.mxu0 0.0
        %4570 = vmatpush1.xpose.msra.mxu0 0.0
        %4571 = vmatprep.subr.mxu0 0.0
        %4572 = vmatpush1.xpose.msra.mxu0 0.0
        %4573 = vmatprep.subr.mxu0 0.0
        %4574 = vmatpush1.xpose.msra.mxu0 0.0
        %4575 = vmatprep.subr.mxu0 0.0
        %4576 = vmatpush1.xpose.msra.mxu0 0.0
        %4577 = vmatprep.subr.mxu0 0.0
        %4578 = vmatpush1.xpose.msra.mxu0 0.0
        %4579 = vmatprep.subr.mxu0 0.0
        %4580 = vmatpush1.xpose.msra.mxu0 0.0
        %4581 = vmatprep.subr.mxu0 0.0
        %4582 = vmatpush1.xpose.msra.mxu0 0.0
        %4583 = vmatprep.mubr.f32.mxu0 0.0
        %4584 = vmatmul.mubr.f32.gmra.mrb[0].mxu0 %v4517
        %v4585 = vpop.f32.mrb[0].mxu0
        %v4586 = vadd.f32 0.0, %v4585
        %v4587 = vpop.f32.mrb[0].mxu0
        %4588 = vdwg.mxu0
        %v4589 = vmax.f32 %v4586, 1e-30
        %v4590 = vrcp.pop %v4589
        %v4591 = vmul.f32 %v4590, 0.015625
        %v4593 = vsel %vm960, %v4591, 0
        %4595 = vmatprep.subr.mxu0 0.0
        %4596 = vmatpush1.msra.mxu0 %v3112
        %4597 = vmatprep.subr.mxu0 0.0
        %4598 = vmatpush1.msra.mxu0 %v3114
        %4599 = vmatprep.subr.mxu0 0.0
        %4600 = vmatpush1.msra.mxu0 %v3116
        %4601 = vmatprep.subr.mxu0 0.0
        %4602 = vmatpush1.msra.mxu0 %v3118
        %4603 = vmatprep.subr.mxu0 0.0
        %4604 = vmatpush1.msra.mxu0 %v3120
        %4605 = vmatprep.subr.mxu0 0.0
        %4606 = vmatpush1.msra.mxu0 %v3122
        %4607 = vmatprep.subr.mxu0 0.0
        %4608 = vmatpush1.msra.mxu0 %v3124
        %4609 = vmatprep.subr.mxu0 0.0
        %4610 = vmatpush1.msra.mxu0 %v3126
        %4611 = vmatprep.subr.mxu0 0.0
        %4612 = vmatpush1.msra.mxu0 0.0
        %4613 = vmatprep.subr.mxu0 0.0
        %4614 = vmatpush1.msra.mxu0 0.0
        %4615 = vmatprep.subr.mxu0 0.0
        %4616 = vmatpush1.msra.mxu0 0.0
        %4617 = vmatprep.subr.mxu0 0.0
        %4618 = vmatpush1.msra.mxu0 0.0
        %4619 = vmatprep.subr.mxu0 0.0
        %4620 = vmatpush1.msra.mxu0 0.0
        %4621 = vmatprep.subr.mxu0 0.0
        %4622 = vmatpush1.msra.mxu0 0.0
        %4623 = vmatprep.subr.mxu0 0.0
        %4624 = vmatpush1.msra.mxu0 0.0
        %4625 = vmatprep.subr.mxu0 0.0
        %4626 = vmatpush1.msra.mxu0 0.0
        %4627 = vmatprep.subr.mxu0 0.0
        %4628 = vmatpush1.msra.mxu0 0.0
        %4629 = vmatprep.subr.mxu0 0.0
        %4630 = vmatpush1.msra.mxu0 0.0
        %4631 = vmatprep.subr.mxu0 0.0
        %4632 = vmatpush1.msra.mxu0 0.0
        %4633 = vmatprep.subr.mxu0 0.0
        %4634 = vmatpush1.msra.mxu0 0.0
        %4635 = vmatprep.subr.mxu0 0.0
        %4636 = vmatpush1.msra.mxu0 0.0
        %4637 = vmatprep.subr.mxu0 0.0
        %4638 = vmatpush1.msra.mxu0 0.0
        %4639 = vmatprep.subr.mxu0 0.0
        %4640 = vmatpush1.msra.mxu0 0.0
        %4641 = vmatprep.subr.mxu0 0.0
        %4642 = vmatpush1.msra.mxu0 0.0
        %4643 = vmatprep.subr.mxu0 0.0
        %4644 = vmatpush1.msra.mxu0 0.0
        %4645 = vmatprep.subr.mxu0 0.0
        %4646 = vmatpush1.msra.mxu0 0.0
        %4647 = vmatprep.subr.mxu0 0.0
        %4648 = vmatpush1.msra.mxu0 0.0
        %4649 = vmatprep.subr.mxu0 0.0
        %4650 = vmatpush1.msra.mxu0 0.0
        %4651 = vmatprep.subr.mxu0 0.0
        %4652 = vmatpush1.msra.mxu0 0.0
        %4653 = vmatprep.subr.mxu0 0.0
        %4654 = vmatpush1.msra.mxu0 0.0
        %4655 = vmatprep.subr.mxu0 0.0
        %4656 = vmatpush1.msra.mxu0 0.0
        %4657 = vmatprep.subr.mxu0 0.0
        %4658 = vmatpush1.msra.mxu0 0.0
        %4659 = vmatprep.mubr.f32.mxu0 0.0
        %4660 = vmatmul.mubr.f32.gmra.mrb[0].mxu0 %v4593
        %v4661 = vpop.f32.mrb[0].mxu0
        %v4662 = vadd.f32 0.0, %v4661
        %v4663 = vpop.f32.mrb[0].mxu0
        %4664 = vdwg.mxu0
        %v4665 = vmax.f32 %v4662, 1e-30
        %v4666 = vrcp.pop %v4665
        %v4667 = vmul.f32 %v4666, 0.015625
        %v4668 = vmax.f32 %v4591, 1e-30
        %v4669 = vlog2.pop %v4668
        %v4670 = vmul.f32 %v4669, 0.6931472
        %4671 = vxpose.xlu0.b32.start [1/16] %v4670, 128
        %4672 = vxpose.xlu0.b32.cont [2/16] 0.0, 128
        %4673 = vxpose.xlu0.b32.cont [3/16] 0.0, 128
        %4674 = vxpose.xlu0.b32.cont [4/16] 0.0, 128
        %4675 = vxpose.xlu0.b32.cont [5/16] 0.0, 128
        %4676 = vxpose.xlu0.b32.cont [6/16] 0.0, 128
        %4677 = vxpose.xlu0.b32.cont [7/16] 0.0, 128
        %4678 = vxpose.xlu0.b32.cont [8/16] 0.0, 128
        %4679 = vxpose.xlu0.b32.cont [9/16] 0.0, 128
        %4680 = vxpose.xlu0.b32.cont [10/16] 0.0, 128
        %4681 = vxpose.xlu0.b32.cont [11/16] 0.0, 128
        %4682 = vxpose.xlu0.b32.cont [12/16] 0.0, 128
        %4683 = vxpose.xlu0.b32.cont [13/16] 0.0, 128
        %4684 = vxpose.xlu0.b32.cont [14/16] 0.0, 128
        %4685 = vxpose.xlu0.b32.cont [15/16] 0.0, 128
        %4686 = vxpose.xlu0.b32.end [16/16] 0.0, 128
        %v4687 = vpop.trf.xlu0
        %v4688 = vpop.trf.xlu0
        %v4689 = vpop.trf.xlu0
        %v4690 = vpop.trf.xlu0
        %v4691 = vpop.trf.xlu0
        %v4692 = vpop.trf.xlu0
        %v4693 = vpop.trf.xlu0
        %v4694 = vpop.trf.xlu0
        %v4695 = vpop.trf.xlu0
        %v4696 = vpop.trf.xlu0
        %v4697 = vpop.trf.xlu0
        %v4698 = vpop.trf.xlu0
        %v4699 = vpop.trf.xlu0
        %v4700 = vpop.trf.xlu0
        %v4701 = vpop.trf.xlu0
        %v4702 = vpop.trf.xlu0
        %v4703 = vadd.f32 %v3039, %v4687
        %v4704 = vadd.f32 %v3040, %v4688
        %v4705 = vadd.f32 %v3041, %v4689
        %v4706 = vadd.f32 %v3042, %v4690
        %v4707 = vadd.f32 %v3043, %v4691
        %v4708 = vadd.f32 %v3044, %v4692
        %v4709 = vadd.f32 %v3045, %v4693
        %v4710 = vadd.f32 %v3046, %v4694
        %v4711 = vmax.f32 %v4667, 1e-30
        %v4712 = vlog2.pop %v4711
        %v4713 = vmul.f32 %v4712, 0.6931472
        %v4714 = vadd.f32 %v3050, %v4713
        %4716 = vset.pattern.permute.xlu0 0
        %4717 = vperm.xlu0 %4716, %v4703
        %v4718 = vpop.permute.xlu0 %4717
        %4721 = vset.pattern.permute.xlu0 0
        %4722 = vperm.xlu0 %4721, %v4704
        %v4723 = vpop.permute.xlu0 %4722
        %4726 = vset.pattern.permute.xlu0 0
        %4727 = vperm.xlu0 %4726, %v4705
        %v4728 = vpop.permute.xlu0 %4727
        %4731 = vset.pattern.permute.xlu0 0
        %4732 = vperm.xlu0 %4731, %v4706
        %v4733 = vpop.permute.xlu0 %4732
        %4736 = vset.pattern.permute.xlu0 0
        %4737 = vperm.xlu0 %4736, %v4707
        %v4738 = vpop.permute.xlu0 %4737
        %4741 = vset.pattern.permute.xlu0 0
        %4742 = vperm.xlu0 %4741, %v4708
        %v4743 = vpop.permute.xlu0 %4742
        %4746 = vset.pattern.permute.xlu0 0
        %4747 = vperm.xlu0 %4746, %v4709
        %v4748 = vpop.permute.xlu0 %4747
        %4751 = vset.pattern.permute.xlu0 0
        %4752 = vperm.xlu0 %4751, %v4710
        %v4753 = vpop.permute.xlu0 %4752
        %v4755 = vlaneseq
        %v4756 = vshrl.u32 %v4755, 7
        %v4757 = vsub.s32 0, %v4756
        %v4758 = vrot.slane %v4714, %v4757
        %v4759 = vadd.f32 %v4718, %v4758
        %v4760 = vadd.f32 %v4723, %v4758
        %v4761 = vadd.f32 %v4728, %v4758
        %v4762 = vadd.f32 %v4733, %v4758
        %v4763 = vadd.f32 %v4738, %v4758
        %v4764 = vadd.f32 %v4743, %v4758
        %v4765 = vadd.f32 %v4748, %v4758
        %v4766 = vadd.f32 %v4753, %v4758
        %v4767 = vsub.f32 %v4759, %v1040
        %v4768 = vsub.f32 %v4760, %v1041
        %v4769 = vsub.f32 %v4761, %v1042
        %v4770 = vsub.f32 %v4762, %v1043
        %v4771 = vsub.f32 %v4763, %v1044
        %v4772 = vsub.f32 %v4764, %v1045
        %v4773 = vsub.f32 %v4765, %v1046
        %v4774 = vsub.f32 %v4766, %v1047
        %v4775 = vmul.f32 %v4767, 1.442695
        %v4776 = vpow.pop %v4775
        %v4777 = vmul.f32 %v4768, 1.442695
        %v4778 = vpow.pop %v4777
        %v4779 = vmul.f32 %v4769, 1.442695
        %v4780 = vpow.pop %v4779
        %v4781 = vmul.f32 %v4770, 1.442695
        %v4782 = vpow.pop %v4781
        %v4783 = vmul.f32 %v4771, 1.442695
        %v4784 = vpow.pop %v4783
        %v4785 = vmul.f32 %v4772, 1.442695
        %v4786 = vpow.pop %v4785
        %v4787 = vmul.f32 %v4773, 1.442695
        %v4788 = vpow.pop %v4787
        %v4789 = vmul.f32 %v4774, 1.442695
        %v4790 = vpow.pop %v4789
        %v4792 = vsel %vm960, %v4776, 0
        %v4795 = vsel %vm960, %v4778, 0
        %v4798 = vsel %vm960, %v4780, 0
        %v4801 = vsel %vm960, %v4782, 0
        %v4804 = vsel %vm960, %v4784, 0
        %v4807 = vsel %vm960, %v4786, 0
        %v4810 = vsel %vm960, %v4788, 0
        %v4813 = vsel %vm960, %v4790, 0
        %4815 = vmatprep.subr.mxu0 0.0
        %4816 = vmatpush1.xpose.msra.mxu0 %v4792
        %4817 = vmatprep.subr.mxu0 0.0
        %4818 = vmatpush1.xpose.msra.mxu0 %v4795
        %4819 = vmatprep.subr.mxu0 0.0
        %4820 = vmatpush1.xpose.msra.mxu0 %v4798
        %4821 = vmatprep.subr.mxu0 0.0
        %4822 = vmatpush1.xpose.msra.mxu0 %v4801
        %4823 = vmatprep.subr.mxu0 0.0
        %4824 = vmatpush1.xpose.msra.mxu0 %v4804
        %4825 = vmatprep.subr.mxu0 0.0
        %4826 = vmatpush1.xpose.msra.mxu0 %v4807
        %4827 = vmatprep.subr.mxu0 0.0
        %4828 = vmatpush1.xpose.msra.mxu0 %v4810
        %4829 = vmatprep.subr.mxu0 0.0
        %4830 = vmatpush1.xpose.msra.mxu0 %v4813
        %4831 = vmatprep.subr.mxu0 0.0
        %4832 = vmatpush1.xpose.msra.mxu0 0.0
        %4833 = vmatprep.subr.mxu0 0.0
        %4834 = vmatpush1.xpose.msra.mxu0 0.0
        %4835 = vmatprep.subr.mxu0 0.0
        %4836 = vmatpush1.xpose.msra.mxu0 0.0
        %4837 = vmatprep.subr.mxu0 0.0
        %4838 = vmatpush1.xpose.msra.mxu0 0.0
        %4839 = vmatprep.subr.mxu0 0.0
        %4840 = vmatpush1.xpose.msra.mxu0 0.0
        %4841 = vmatprep.subr.mxu0 0.0
        %4842 = vmatpush1.xpose.msra.mxu0 0.0
        %4843 = vmatprep.subr.mxu0 0.0
        %4844 = vmatpush1.xpose.msra.mxu0 0.0
        %4845 = vmatprep.subr.mxu0 0.0
        %4846 = vmatpush1.xpose.msra.mxu0 0.0
        %4847 = vmatprep.subr.mxu0 0.0
        %4848 = vmatpush1.xpose.msra.mxu0 0.0
        %4849 = vmatprep.subr.mxu0 0.0
        %4850 = vmatpush1.xpose.msra.mxu0 0.0
        %4851 = vmatprep.subr.mxu0 0.0
        %4852 = vmatpush1.xpose.msra.mxu0 0.0
        %4853 = vmatprep.subr.mxu0 0.0
        %4854 = vmatpush1.xpose.msra.mxu0 0.0
        %4855 = vmatprep.subr.mxu0 0.0
        %4856 = vmatpush1.xpose.msra.mxu0 0.0
        %4857 = vmatprep.subr.mxu0 0.0
        %4858 = vmatpush1.xpose.msra.mxu0 0.0
        %4859 = vmatprep.subr.mxu0 0.0
        %4860 = vmatpush1.xpose.msra.mxu0 0.0
        %4861 = vmatprep.subr.mxu0 0.0
        %4862 = vmatpush1.xpose.msra.mxu0 0.0
        %4863 = vmatprep.subr.mxu0 0.0
        %4864 = vmatpush1.xpose.msra.mxu0 0.0
        %4865 = vmatprep.subr.mxu0 0.0
        %4866 = vmatpush1.xpose.msra.mxu0 0.0
        %4867 = vmatprep.subr.mxu0 0.0
        %4868 = vmatpush1.xpose.msra.mxu0 0.0
        %4869 = vmatprep.subr.mxu0 0.0
        %4870 = vmatpush1.xpose.msra.mxu0 0.0
        %4871 = vmatprep.subr.mxu0 0.0
        %4872 = vmatpush1.xpose.msra.mxu0 0.0
        %4873 = vmatprep.subr.mxu0 0.0
        %4874 = vmatpush1.xpose.msra.mxu0 0.0
        %4875 = vmatprep.subr.mxu0 0.0
        %4876 = vmatpush1.xpose.msra.mxu0 0.0
        %4877 = vmatprep.subr.mxu0 0.0
        %4878 = vmatpush1.xpose.msra.mxu0 0.0
        %4879 = vmatprep.mubr.f32.mxu0 0.0
        %4880 = vmatmul.mubr.f32.gmra.mrb[0].mxu0 %v1461
        %v4881 = vpop.f32.mrb[0].mxu0
        %v4882 = vadd.f32 0.0, %v4881
        %v4883 = vpop.f32.mrb[0].mxu0
        %4884 = vdwg.mxu0
        %v4885 = vmax.f32 %v4882, 1e-30
        %v4886 = vrcp.pop %v4885
        %v4887 = vmul.f32 %v4886, 0.015625
        %v4889 = vsel %vm960, %v4887, 0
        %4891 = vmatprep.subr.mxu0 0.0
        %4892 = vmatpush1.msra.mxu0 %v4776
        %4893 = vmatprep.subr.mxu0 0.0
        %4894 = vmatpush1.msra.mxu0 %v4778
        %4895 = vmatprep.subr.mxu0 0.0
        %4896 = vmatpush1.msra.mxu0 %v4780
        %4897 = vmatprep.subr.mxu0 0.0
        %4898 = vmatpush1.msra.mxu0 %v4782
        %4899 = vmatprep.subr.mxu0 0.0
        %4900 = vmatpush1.msra.mxu0 %v4784
        %4901 = vmatprep.subr.mxu0 0.0
        %4902 = vmatpush1.msra.mxu0 %v4786
        %4903 = vmatprep.subr.mxu0 0.0
        %4904 = vmatpush1.msra.mxu0 %v4788
        %4905 = vmatprep.subr.mxu0 0.0
        %4906 = vmatpush1.msra.mxu0 %v4790
        %4907 = vmatprep.subr.mxu0 0.0
        %4908 = vmatpush1.msra.mxu0 0.0
        %4909 = vmatprep.subr.mxu0 0.0
        %4910 = vmatpush1.msra.mxu0 0.0
        %4911 = vmatprep.subr.mxu0 0.0
        %4912 = vmatpush1.msra.mxu0 0.0
        %4913 = vmatprep.subr.mxu0 0.0
        %4914 = vmatpush1.msra.mxu0 0.0
        %4915 = vmatprep.subr.mxu0 0.0
        %4916 = vmatpush1.msra.mxu0 0.0
        %4917 = vmatprep.subr.mxu0 0.0
        %4918 = vmatpush1.msra.mxu0 0.0
        %4919 = vmatprep.subr.mxu0 0.0
        %4920 = vmatpush1.msra.mxu0 0.0
        %4921 = vmatprep.subr.mxu0 0.0
        %4922 = vmatpush1.msra.mxu0 0.0
        %4923 = vmatprep.subr.mxu0 0.0
        %4924 = vmatpush1.msra.mxu0 0.0
        %4925 = vmatprep.subr.mxu0 0.0
        %4926 = vmatpush1.msra.mxu0 0.0
        %4927 = vmatprep.subr.mxu0 0.0
        %4928 = vmatpush1.msra.mxu0 0.0
        %4929 = vmatprep.subr.mxu0 0.0
        %4930 = vmatpush1.msra.mxu0 0.0
        %4931 = vmatprep.subr.mxu0 0.0
        %4932 = vmatpush1.msra.mxu0 0.0
        %4933 = vmatprep.subr.mxu0 0.0
        %4934 = vmatpush1.msra.mxu0 0.0
        %4935 = vmatprep.subr.mxu0 0.0
        %4936 = vmatpush1.msra.mxu0 0.0
        %4937 = vmatprep.subr.mxu0 0.0
        %4938 = vmatpush1.msra.mxu0 0.0
        %4939 = vmatprep.subr.mxu0 0.0
        %4940 = vmatpush1.msra.mxu0 0.0
        %4941 = vmatprep.subr.mxu0 0.0
        %4942 = vmatpush1.msra.mxu0 0.0
        %4943 = vmatprep.subr.mxu0 0.0
        %4944 = vmatpush1.msra.mxu0 0.0
        %4945 = vmatprep.subr.mxu0 0.0
        %4946 = vmatpush1.msra.mxu0 0.0
        %4947 = vmatprep.subr.mxu0 0.0
        %4948 = vmatpush1.msra.mxu0 0.0
        %4949 = vmatprep.subr.mxu0 0.0
        %4950 = vmatpush1.msra.mxu0 0.0
        %4951 = vmatprep.subr.mxu0 0.0
        %4952 = vmatpush1.msra.mxu0 0.0
        %4953 = vmatprep.subr.mxu0 0.0
        %4954 = vmatpush1.msra.mxu0 0.0
        %4955 = vmatprep.mubr.f32.mxu0 0.0
        %4956 = vmatmul.mubr.f32.gmra.mrb[0].mxu0 %v4889
        %v4957 = vpop.f32.mrb[0].mxu0
        %v4958 = vadd.f32 0.0, %v4957
        %v4959 = vpop.f32.mrb[0].mxu0
        %4960 = vdwg.mxu0
        %v4961 = vmax.f32 %v4958, 1e-30
        %v4962 = vrcp.pop %v4961
        %v4963 = vmul.f32 %v4962, 0.015625
        %v4965 = vsel %vm960, %v4963, 0
        %4967 = vmatprep.subr.mxu0 0.0
        %4968 = vmatpush1.xpose.msra.mxu0 %v4792
        %4969 = vmatprep.subr.mxu0 0.0
        %4970 = vmatpush1.xpose.msra.mxu0 %v4795
        %4971 = vmatprep.subr.mxu0 0.0
        %4972 = vmatpush1.xpose.msra.mxu0 %v4798
        %4973 = vmatprep.subr.mxu0 0.0
        %4974 = vmatpush1.xpose.msra.mxu0 %v4801
        %4975 = vmatprep.subr.mxu0 0.0
        %4976 = vmatpush1.xpose.msra.mxu0 %v4804
        %4977 = vmatprep.subr.mxu0 0.0
        %4978 = vmatpush1.xpose.msra.mxu0 %v4807
        %4979 = vmatprep.subr.mxu0 0.0
        %4980 = vmatpush1.xpose.msra.mxu0 %v4810
        %4981 = vmatprep.subr.mxu0 0.0
        %4982 = vmatpush1.xpose.msra.mxu0 %v4813
        %4983 = vmatprep.subr.mxu0 0.0
        %4984 = vmatpush1.xpose.msra.mxu0 0.0
        %4985 = vmatprep.subr.mxu0 0.0
        %4986 = vmatpush1.xpose.msra.mxu0 0.0
        %4987 = vmatprep.subr.mxu0 0.0
        %4988 = vmatpush1.xpose.msra.mxu0 0.0
        %4989 = vmatprep.subr.mxu0 0.0
        %4990 = vmatpush1.xpose.msra.mxu0 0.0
        %4991 = vmatprep.subr.mxu0 0.0
        %4992 = vmatpush1.xpose.msra.mxu0 0.0
        %4993 = vmatprep.subr.mxu0 0.0
        %4994 = vmatpush1.xpose.msra.mxu0 0.0
        %4995 = vmatprep.subr.mxu0 0.0
        %4996 = vmatpush1.xpose.msra.mxu0 0.0
        %4997 = vmatprep.subr.mxu0 0.0
        %4998 = vmatpush1.xpose.msra.mxu0 0.0
        %4999 = vmatprep.subr.mxu0 0.0
        %5000 = vmatpush1.xpose.msra.mxu0 0.0
        %5001 = vmatprep.subr.mxu0 0.0
        %5002 = vmatpush1.xpose.msra.mxu0 0.0
        %5003 = vmatprep.subr.mxu0 0.0
        %5004 = vmatpush1.xpose.msra.mxu0 0.0
        %5005 = vmatprep.subr.mxu0 0.0
        %5006 = vmatpush1.xpose.msra.mxu0 0.0
        %5007 = vmatprep.subr.mxu0 0.0
        %5008 = vmatpush1.xpose.msra.mxu0 0.0
        %5009 = vmatprep.subr.mxu0 0.0
        %5010 = vmatpush1.xpose.msra.mxu0 0.0
        %5011 = vmatprep.subr.mxu0 0.0
        %5012 = vmatpush1.xpose.msra.mxu0 0.0
        %5013 = vmatprep.subr.mxu0 0.0
        %5014 = vmatpush1.xpose.msra.mxu0 0.0
        %5015 = vmatprep.subr.mxu0 0.0
        %5016 = vmatpush1.xpose.msra.mxu0 0.0
        %5017 = vmatprep.subr.mxu0 0.0
        %5018 = vmatpush1.xpose.msra.mxu0 0.0
        %5019 = vmatprep.subr.mxu0 0.0
        %5020 = vmatpush1.xpose.msra.mxu0 0.0
        %5021 = vmatprep.subr.mxu0 0.0
        %5022 = vmatpush1.xpose.msra.mxu0 0.0
        %5023 = vmatprep.subr.mxu0 0.0
        %5024 = vmatpush1.xpose.msra.mxu0 0.0
        %5025 = vmatprep.subr.mxu0 0.0
        %5026 = vmatpush1.xpose.msra.mxu0 0.0
        %5027 = vmatprep.subr.mxu0 0.0
        %5028 = vmatpush1.xpose.msra.mxu0 0.0
        %5029 = vmatprep.subr.mxu0 0.0
        %5030 = vmatpush1.xpose.msra.mxu0 0.0
        %5031 = vmatprep.mubr.f32.mxu0 0.0
        %5032 = vmatmul.mubr.f32.gmra.mrb[0].mxu0 %v4965
        %v5033 = vpop.f32.mrb[0].mxu0
        %v5034 = vadd.f32 0.0, %v5033
        %v5035 = vpop.f32.mrb[0].mxu0
        %5036 = vdwg.mxu0
        %v5037 = vmax.f32 %v5034, 1e-30
        %v5038 = vrcp.pop %v5037
        %v5039 = vmul.f32 %v5038, 0.015625
        %v5041 = vsel %vm960, %v5039, 0
        %5043 = vmatprep.subr.mxu0 0.0
        %5044 = vmatpush1.msra.mxu0 %v4776
        %5045 = vmatprep.subr.mxu0 0.0
        %5046 = vmatpush1.msra.mxu0 %v4778
        %5047 = vmatprep.subr.mxu0 0.0
        %5048 = vmatpush1.msra.mxu0 %v4780
        %5049 = vmatprep.subr.mxu0 0.0
        %5050 = vmatpush1.msra.mxu0 %v4782
        %5051 = vmatprep.subr.mxu0 0.0
        %5052 = vmatpush1.msra.mxu0 %v4784
        %5053 = vmatprep.subr.mxu0 0.0
        %5054 = vmatpush1.msra.mxu0 %v4786
        %5055 = vmatprep.subr.mxu0 0.0
        %5056 = vmatpush1.msra.mxu0 %v4788
        %5057 = vmatprep.subr.mxu0 0.0
        %5058 = vmatpush1.msra.mxu0 %v4790
        %5059 = vmatprep.subr.mxu0 0.0
        %5060 = vmatpush1.msra.mxu0 0.0
        %5061 = vmatprep.subr.mxu0 0.0
        %5062 = vmatpush1.msra.mxu0 0.0
        %5063 = vmatprep.subr.mxu0 0.0
        %5064 = vmatpush1.msra.mxu0 0.0
        %5065 = vmatprep.subr.mxu0 0.0
        %5066 = vmatpush1.msra.mxu0 0.0
        %5067 = vmatprep.subr.mxu0 0.0
        %5068 = vmatpush1.msra.mxu0 0.0
        %5069 = vmatprep.subr.mxu0 0.0
        %5070 = vmatpush1.msra.mxu0 0.0
        %5071 = vmatprep.subr.mxu0 0.0
        %5072 = vmatpush1.msra.mxu0 0.0
        %5073 = vmatprep.subr.mxu0 0.0
        %5074 = vmatpush1.msra.mxu0 0.0
        %5075 = vmatprep.subr.mxu0 0.0
        %5076 = vmatpush1.msra.mxu0 0.0
        %5077 = vmatprep.subr.mxu0 0.0
        %5078 = vmatpush1.msra.mxu0 0.0
        %5079 = vmatprep.subr.mxu0 0.0
        %5080 = vmatpush1.msra.mxu0 0.0
        %5081 = vmatprep.subr.mxu0 0.0
        %5082 = vmatpush1.msra.mxu0 0.0
        %5083 = vmatprep.subr.mxu0 0.0
        %5084 = vmatpush1.msra.mxu0 0.0
        %5085 = vmatprep.subr.mxu0 0.0
        %5086 = vmatpush1.msra.mxu0 0.0
        %5087 = vmatprep.subr.mxu0 0.0
        %5088 = vmatpush1.msra.mxu0 0.0
        %5089 = vmatprep.subr.mxu0 0.0
        %5090 = vmatpush1.msra.mxu0 0.0
        %5091 = vmatprep.subr.mxu0 0.0
        %5092 = vmatpush1.msra.mxu0 0.0
        %5093 = vmatprep.subr.mxu0 0.0
        %5094 = vmatpush1.msra.mxu0 0.0
        %5095 = vmatprep.subr.mxu0 0.0
        %5096 = vmatpush1.msra.mxu0 0.0
        %5097 = vmatprep.subr.mxu0 0.0
        %5098 = vmatpush1.msra.mxu0 0.0
        %5099 = vmatprep.subr.mxu0 0.0
        %5100 = vmatpush1.msra.mxu0 0.0
        %5101 = vmatprep.subr.mxu0 0.0
        %5102 = vmatpush1.msra.mxu0 0.0
        %5103 = vmatprep.subr.mxu0 0.0
        %5104 = vmatpush1.msra.mxu0 0.0
        %5105 = vmatprep.subr.mxu0 0.0
        %5106 = vmatpush1.msra.mxu0 0.0
        %5107 = vmatprep.mubr.f32.mxu0 0.0
        %5108 = vmatmul.mubr.f32.gmra.mrb[0].mxu0 %v5041
        %v5109 = vpop.f32.mrb[0].mxu0
        %v5110 = vadd.f32 0.0, %v5109
        %v5111 = vpop.f32.mrb[0].mxu0
        %5112 = vdwg.mxu0
        %v5113 = vmax.f32 %v5110, 1e-30
        %v5114 = vrcp.pop %v5113
        %v5115 = vmul.f32 %v5114, 0.015625
        %v5117 = vsel %vm960, %v5115, 0
        %5119 = vmatprep.subr.mxu0 0.0
        %5120 = vmatpush1.xpose.msra.mxu0 %v4792
        %5121 = vmatprep.subr.mxu0 0.0
        %5122 = vmatpush1.xpose.msra.mxu0 %v4795
        %5123 = vmatprep.subr.mxu0 0.0
        %5124 = vmatpush1.xpose.msra.mxu0 %v4798
        %5125 = vmatprep.subr.mxu0 0.0
        %5126 = vmatpush1.xpose.msra.mxu0 %v4801
        %5127 = vmatprep.subr.mxu0 0.0
        %5128 = vmatpush1.xpose.msra.mxu0 %v4804
        %5129 = vmatprep.subr.mxu0 0.0
        %5130 = vmatpush1.xpose.msra.mxu0 %v4807
        %5131 = vmatprep.subr.mxu0 0.0
        %5132 = vmatpush1.xpose.msra.mxu0 %v4810
        %5133 = vmatprep.subr.mxu0 0.0
        %5134 = vmatpush1.xpose.msra.mxu0 %v4813
        %5135 = vmatprep.subr.mxu0 0.0
        %5136 = vmatpush1.xpose.msra.mxu0 0.0
        %5137 = vmatprep.subr.mxu0 0.0
        %5138 = vmatpush1.xpose.msra.mxu0 0.0
        %5139 = vmatprep.subr.mxu0 0.0
        %5140 = vmatpush1.xpose.msra.mxu0 0.0
        %5141 = vmatprep.subr.mxu0 0.0
        %5142 = vmatpush1.xpose.msra.mxu0 0.0
        %5143 = vmatprep.subr.mxu0 0.0
        %5144 = vmatpush1.xpose.msra.mxu0 0.0
        %5145 = vmatprep.subr.mxu0 0.0
        %5146 = vmatpush1.xpose.msra.mxu0 0.0
        %5147 = vmatprep.subr.mxu0 0.0
        %5148 = vmatpush1.xpose.msra.mxu0 0.0
        %5149 = vmatprep.subr.mxu0 0.0
        %5150 = vmatpush1.xpose.msra.mxu0 0.0
        %5151 = vmatprep.subr.mxu0 0.0
        %5152 = vmatpush1.xpose.msra.mxu0 0.0
        %5153 = vmatprep.subr.mxu0 0.0
        %5154 = vmatpush1.xpose.msra.mxu0 0.0
        %5155 = vmatprep.subr.mxu0 0.0
        %5156 = vmatpush1.xpose.msra.mxu0 0.0
        %5157 = vmatprep.subr.mxu0 0.0
        %5158 = vmatpush1.xpose.msra.mxu0 0.0
        %5159 = vmatprep.subr.mxu0 0.0
        %5160 = vmatpush1.xpose.msra.mxu0 0.0
        %5161 = vmatprep.subr.mxu0 0.0
        %5162 = vmatpush1.xpose.msra.mxu0 0.0
        %5163 = vmatprep.subr.mxu0 0.0
        %5164 = vmatpush1.xpose.msra.mxu0 0.0
        %5165 = vmatprep.subr.mxu0 0.0
        %5166 = vmatpush1.xpose.msra.mxu0 0.0
        %5167 = vmatprep.subr.mxu0 0.0
        %5168 = vmatpush1.xpose.msra.mxu0 0.0
        %5169 = vmatprep.subr.mxu0 0.0
        %5170 = vmatpush1.xpose.msra.mxu0 0.0
        %5171 = vmatprep.subr.mxu0 0.0
        %5172 = vmatpush1.xpose.msra.mxu0 0.0
        %5173 = vmatprep.subr.mxu0 0.0
        %5174 = vmatpush1.xpose.msra.mxu0 0.0
        %5175 = vmatprep.subr.mxu0 0.0
        %5176 = vmatpush1.xpose.msra.mxu0 0.0
        %5177 = vmatprep.subr.mxu0 0.0
        %5178 = vmatpush1.xpose.msra.mxu0 0.0
        %5179 = vmatprep.subr.mxu0 0.0
        %5180 = vmatpush1.xpose.msra.mxu0 0.0
        %5181 = vmatprep.subr.mxu0 0.0
        %5182 = vmatpush1.xpose.msra.mxu0 0.0
        %5183 = vmatprep.mubr.f32.mxu0 0.0
        %5184 = vmatmul.mubr.f32.gmra.mrb[0].mxu0 %v5117
        %v5185 = vpop.f32.mrb[0].mxu0
        %v5186 = vadd.f32 0.0, %v5185
        %v5187 = vpop.f32.mrb[0].mxu0
        %5188 = vdwg.mxu0
        %v5189 = vmax.f32 %v5186, 1e-30
        %v5190 = vrcp.pop %v5189
        %v5191 = vmul.f32 %v5190, 0.015625
        %v5193 = vsel %vm960, %v5191, 0
        %5195 = vmatprep.subr.mxu0 0.0
        %5196 = vmatpush1.msra.mxu0 %v4776
        %5197 = vmatprep.subr.mxu0 0.0
        %5198 = vmatpush1.msra.mxu0 %v4778
        %5199 = vmatprep.subr.mxu0 0.0
        %5200 = vmatpush1.msra.mxu0 %v4780
        %5201 = vmatprep.subr.mxu0 0.0
        %5202 = vmatpush1.msra.mxu0 %v4782
        %5203 = vmatprep.subr.mxu0 0.0
        %5204 = vmatpush1.msra.mxu0 %v4784
        %5205 = vmatprep.subr.mxu0 0.0
        %5206 = vmatpush1.msra.mxu0 %v4786
        %5207 = vmatprep.subr.mxu0 0.0
        %5208 = vmatpush1.msra.mxu0 %v4788
        %5209 = vmatprep.subr.mxu0 0.0
        %5210 = vmatpush1.msra.mxu0 %v4790
        %5211 = vmatprep.subr.mxu0 0.0
        %5212 = vmatpush1.msra.mxu0 0.0
        %5213 = vmatprep.subr.mxu0 0.0
        %5214 = vmatpush1.msra.mxu0 0.0
        %5215 = vmatprep.subr.mxu0 0.0
        %5216 = vmatpush1.msra.mxu0 0.0
        %5217 = vmatprep.subr.mxu0 0.0
        %5218 = vmatpush1.msra.mxu0 0.0
        %5219 = vmatprep.subr.mxu0 0.0
        %5220 = vmatpush1.msra.mxu0 0.0
        %5221 = vmatprep.subr.mxu0 0.0
        %5222 = vmatpush1.msra.mxu0 0.0
        %5223 = vmatprep.subr.mxu0 0.0
        %5224 = vmatpush1.msra.mxu0 0.0
        %5225 = vmatprep.subr.mxu0 0.0
        %5226 = vmatpush1.msra.mxu0 0.0
        %5227 = vmatprep.subr.mxu0 0.0
        %5228 = vmatpush1.msra.mxu0 0.0
        %5229 = vmatprep.subr.mxu0 0.0
        %5230 = vmatpush1.msra.mxu0 0.0
        %5231 = vmatprep.subr.mxu0 0.0
        %5232 = vmatpush1.msra.mxu0 0.0
        %5233 = vmatprep.subr.mxu0 0.0
        %5234 = vmatpush1.msra.mxu0 0.0
        %5235 = vmatprep.subr.mxu0 0.0
        %5236 = vmatpush1.msra.mxu0 0.0
        %5237 = vmatprep.subr.mxu0 0.0
        %5238 = vmatpush1.msra.mxu0 0.0
        %5239 = vmatprep.subr.mxu0 0.0
        %5240 = vmatpush1.msra.mxu0 0.0
        %5241 = vmatprep.subr.mxu0 0.0
        %5242 = vmatpush1.msra.mxu0 0.0
        %5243 = vmatprep.subr.mxu0 0.0
        %5244 = vmatpush1.msra.mxu0 0.0
        %5245 = vmatprep.subr.mxu0 0.0
        %5246 = vmatpush1.msra.mxu0 0.0
        %5247 = vmatprep.subr.mxu0 0.0
        %5248 = vmatpush1.msra.mxu0 0.0
        %5249 = vmatprep.subr.mxu0 0.0
        %5250 = vmatpush1.msra.mxu0 0.0
        %5251 = vmatprep.subr.mxu0 0.0
        %5252 = vmatpush1.msra.mxu0 0.0
        %5253 = vmatprep.subr.mxu0 0.0
        %5254 = vmatpush1.msra.mxu0 0.0
        %5255 = vmatprep.subr.mxu0 0.0
        %5256 = vmatpush1.msra.mxu0 0.0
        %5257 = vmatprep.subr.mxu0 0.0
        %5258 = vmatpush1.msra.mxu0 0.0
        %5259 = vmatprep.mubr.f32.mxu0 0.0
        %5260 = vmatmul.mubr.f32.gmra.mrb[0].mxu0 %v5193
        %v5261 = vpop.f32.mrb[0].mxu0
        %v5262 = vadd.f32 0.0, %v5261
        %v5263 = vpop.f32.mrb[0].mxu0
        %5264 = vdwg.mxu0
        %v5265 = vmax.f32 %v5262, 1e-30
        %v5266 = vrcp.pop %v5265
        %v5267 = vmul.f32 %v5266, 0.015625
        %v5269 = vsel %vm960, %v5267, 0
        %5271 = vmatprep.subr.mxu0 0.0
        %5272 = vmatpush1.xpose.msra.mxu0 %v4792
        %5273 = vmatprep.subr.mxu0 0.0
        %5274 = vmatpush1.xpose.msra.mxu0 %v4795
        %5275 = vmatprep.subr.mxu0 0.0
        %5276 = vmatpush1.xpose.msra.mxu0 %v4798
        %5277 = vmatprep.subr.mxu0 0.0
        %5278 = vmatpush1.xpose.msra.mxu0 %v4801
        %5279 = vmatprep.subr.mxu0 0.0
        %5280 = vmatpush1.xpose.msra.mxu0 %v4804
        %5281 = vmatprep.subr.mxu0 0.0
        %5282 = vmatpush1.xpose.msra.mxu0 %v4807
        %5283 = vmatprep.subr.mxu0 0.0
        %5284 = vmatpush1.xpose.msra.mxu0 %v4810
        %5285 = vmatprep.subr.mxu0 0.0
        %5286 = vmatpush1.xpose.msra.mxu0 %v4813
        %5287 = vmatprep.subr.mxu0 0.0
        %5288 = vmatpush1.xpose.msra.mxu0 0.0
        %5289 = vmatprep.subr.mxu0 0.0
        %5290 = vmatpush1.xpose.msra.mxu0 0.0
        %5291 = vmatprep.subr.mxu0 0.0
        %5292 = vmatpush1.xpose.msra.mxu0 0.0
        %5293 = vmatprep.subr.mxu0 0.0
        %5294 = vmatpush1.xpose.msra.mxu0 0.0
        %5295 = vmatprep.subr.mxu0 0.0
        %5296 = vmatpush1.xpose.msra.mxu0 0.0
        %5297 = vmatprep.subr.mxu0 0.0
        %5298 = vmatpush1.xpose.msra.mxu0 0.0
        %5299 = vmatprep.subr.mxu0 0.0
        %5300 = vmatpush1.xpose.msra.mxu0 0.0
        %5301 = vmatprep.subr.mxu0 0.0
        %5302 = vmatpush1.xpose.msra.mxu0 0.0
        %5303 = vmatprep.subr.mxu0 0.0
        %5304 = vmatpush1.xpose.msra.mxu0 0.0
        %5305 = vmatprep.subr.mxu0 0.0
        %5306 = vmatpush1.xpose.msra.mxu0 0.0
        %5307 = vmatprep.subr.mxu0 0.0
        %5308 = vmatpush1.xpose.msra.mxu0 0.0
        %5309 = vmatprep.subr.mxu0 0.0
        %5310 = vmatpush1.xpose.msra.mxu0 0.0
        %5311 = vmatprep.subr.mxu0 0.0
        %5312 = vmatpush1.xpose.msra.mxu0 0.0
        %5313 = vmatprep.subr.mxu0 0.0
        %5314 = vmatpush1.xpose.msra.mxu0 0.0
        %5315 = vmatprep.subr.mxu0 0.0
        %5316 = vmatpush1.xpose.msra.mxu0 0.0
        %5317 = vmatprep.subr.mxu0 0.0
        %5318 = vmatpush1.xpose.msra.mxu0 0.0
        %5319 = vmatprep.subr.mxu0 0.0
        %5320 = vmatpush1.xpose.msra.mxu0 0.0
        %5321 = vmatprep.subr.mxu0 0.0
        %5322 = vmatpush1.xpose.msra.mxu0 0.0
        %5323 = vmatprep.subr.mxu0 0.0
        %5324 = vmatpush1.xpose.msra.mxu0 0.0
        %5325 = vmatprep.subr.mxu0 0.0
        %5326 = vmatpush1.xpose.msra.mxu0 0.0
        %5327 = vmatprep.subr.mxu0 0.0
        %5328 = vmatpush1.xpose.msra.mxu0 0.0
        %5329 = vmatprep.subr.mxu0 0.0
        %5330 = vmatpush1.xpose.msra.mxu0 0.0
        %5331 = vmatprep.subr.mxu0 0.0
        %5332 = vmatpush1.xpose.msra.mxu0 0.0
        %5333 = vmatprep.subr.mxu0 0.0
        %5334 = vmatpush1.xpose.msra.mxu0 0.0
        %5335 = vmatprep.mubr.f32.mxu0 0.0
        %5336 = vmatmul.mubr.f32.gmra.mrb[0].mxu0 %v5269
        %v5337 = vpop.f32.mrb[0].mxu0
        %v5338 = vadd.f32 0.0, %v5337
        %v5339 = vpop.f32.mrb[0].mxu0
        %5340 = vdwg.mxu0
        %v5341 = vmax.f32 %v5338, 1e-30
        %v5342 = vrcp.pop %v5341
        %v5343 = vmul.f32 %v5342, 0.015625
        %v5345 = vsel %vm960, %v5343, 0
        %5347 = vmatprep.subr.mxu0 0.0
        %5348 = vmatpush1.msra.mxu0 %v4776
        %5349 = vmatprep.subr.mxu0 0.0
        %5350 = vmatpush1.msra.mxu0 %v4778
        %5351 = vmatprep.subr.mxu0 0.0
        %5352 = vmatpush1.msra.mxu0 %v4780
        %5353 = vmatprep.subr.mxu0 0.0
        %5354 = vmatpush1.msra.mxu0 %v4782
        %5355 = vmatprep.subr.mxu0 0.0
        %5356 = vmatpush1.msra.mxu0 %v4784
        %5357 = vmatprep.subr.mxu0 0.0
        %5358 = vmatpush1.msra.mxu0 %v4786
        %5359 = vmatprep.subr.mxu0 0.0
        %5360 = vmatpush1.msra.mxu0 %v4788
        %5361 = vmatprep.subr.mxu0 0.0
        %5362 = vmatpush1.msra.mxu0 %v4790
        %5363 = vmatprep.subr.mxu0 0.0
        %5364 = vmatpush1.msra.mxu0 0.0
        %5365 = vmatprep.subr.mxu0 0.0
        %5366 = vmatpush1.msra.mxu0 0.0
        %5367 = vmatprep.subr.mxu0 0.0
        %5368 = vmatpush1.msra.mxu0 0.0
        %5369 = vmatprep.subr.mxu0 0.0
        %5370 = vmatpush1.msra.mxu0 0.0
        %5371 = vmatprep.subr.mxu0 0.0
        %5372 = vmatpush1.msra.mxu0 0.0
        %5373 = vmatprep.subr.mxu0 0.0
        %5374 = vmatpush1.msra.mxu0 0.0
        %5375 = vmatprep.subr.mxu0 0.0
        %5376 = vmatpush1.msra.mxu0 0.0
        %5377 = vmatprep.subr.mxu0 0.0
        %5378 = vmatpush1.msra.mxu0 0.0
        %5379 = vmatprep.subr.mxu0 0.0
        %5380 = vmatpush1.msra.mxu0 0.0
        %5381 = vmatprep.subr.mxu0 0.0
        %5382 = vmatpush1.msra.mxu0 0.0
        %5383 = vmatprep.subr.mxu0 0.0
        %5384 = vmatpush1.msra.mxu0 0.0
        %5385 = vmatprep.subr.mxu0 0.0
        %5386 = vmatpush1.msra.mxu0 0.0
        %5387 = vmatprep.subr.mxu0 0.0
        %5388 = vmatpush1.msra.mxu0 0.0
        %5389 = vmatprep.subr.mxu0 0.0
        %5390 = vmatpush1.msra.mxu0 0.0
        %5391 = vmatprep.subr.mxu0 0.0
        %5392 = vmatpush1.msra.mxu0 0.0
        %5393 = vmatprep.subr.mxu0 0.0
        %5394 = vmatpush1.msra.mxu0 0.0
        %5395 = vmatprep.subr.mxu0 0.0
        %5396 = vmatpush1.msra.mxu0 0.0
        %5397 = vmatprep.subr.mxu0 0.0
        %5398 = vmatpush1.msra.mxu0 0.0
        %5399 = vmatprep.subr.mxu0 0.0
        %5400 = vmatpush1.msra.mxu0 0.0
        %5401 = vmatprep.subr.mxu0 0.0
        %5402 = vmatpush1.msra.mxu0 0.0
        %5403 = vmatprep.subr.mxu0 0.0
        %5404 = vmatpush1.msra.mxu0 0.0
        %5405 = vmatprep.subr.mxu0 0.0
        %5406 = vmatpush1.msra.mxu0 0.0
        %5407 = vmatprep.subr.mxu0 0.0
        %5408 = vmatpush1.msra.mxu0 0.0
        %5409 = vmatprep.subr.mxu0 0.0
        %5410 = vmatpush1.msra.mxu0 0.0
        %5411 = vmatprep.mubr.f32.mxu0 0.0
        %5412 = vmatmul.mubr.f32.gmra.mrb[0].mxu0 %v5345
        %v5413 = vpop.f32.mrb[0].mxu0
        %v5414 = vadd.f32 0.0, %v5413
        %v5415 = vpop.f32.mrb[0].mxu0
        %5416 = vdwg.mxu0
        %v5417 = vmax.f32 %v5414, 1e-30
        %v5418 = vrcp.pop %v5417
        %v5419 = vmul.f32 %v5418, 0.015625
        %v5421 = vsel %vm960, %v5419, 0
        %5423 = vmatprep.subr.mxu0 0.0
        %5424 = vmatpush1.xpose.msra.mxu0 %v4792
        %5425 = vmatprep.subr.mxu0 0.0
        %5426 = vmatpush1.xpose.msra.mxu0 %v4795
        %5427 = vmatprep.subr.mxu0 0.0
        %5428 = vmatpush1.xpose.msra.mxu0 %v4798
        %5429 = vmatprep.subr.mxu0 0.0
        %5430 = vmatpush1.xpose.msra.mxu0 %v4801
        %5431 = vmatprep.subr.mxu0 0.0
        %5432 = vmatpush1.xpose.msra.mxu0 %v4804
        %5433 = vmatprep.subr.mxu0 0.0
        %5434 = vmatpush1.xpose.msra.mxu0 %v4807
        %5435 = vmatprep.subr.mxu0 0.0
        %5436 = vmatpush1.xpose.msra.mxu0 %v4810
        %5437 = vmatprep.subr.mxu0 0.0
        %5438 = vmatpush1.xpose.msra.mxu0 %v4813
        %5439 = vmatprep.subr.mxu0 0.0
        %5440 = vmatpush1.xpose.msra.mxu0 0.0
        %5441 = vmatprep.subr.mxu0 0.0
        %5442 = vmatpush1.xpose.msra.mxu0 0.0
        %5443 = vmatprep.subr.mxu0 0.0
        %5444 = vmatpush1.xpose.msra.mxu0 0.0
        %5445 = vmatprep.subr.mxu0 0.0
        %5446 = vmatpush1.xpose.msra.mxu0 0.0
        %5447 = vmatprep.subr.mxu0 0.0
        %5448 = vmatpush1.xpose.msra.mxu0 0.0
        %5449 = vmatprep.subr.mxu0 0.0
        %5450 = vmatpush1.xpose.msra.mxu0 0.0
        %5451 = vmatprep.subr.mxu0 0.0
        %5452 = vmatpush1.xpose.msra.mxu0 0.0
        %5453 = vmatprep.subr.mxu0 0.0
        %5454 = vmatpush1.xpose.msra.mxu0 0.0
        %5455 = vmatprep.subr.mxu0 0.0
        %5456 = vmatpush1.xpose.msra.mxu0 0.0
        %5457 = vmatprep.subr.mxu0 0.0
        %5458 = vmatpush1.xpose.msra.mxu0 0.0
        %5459 = vmatprep.subr.mxu0 0.0
        %5460 = vmatpush1.xpose.msra.mxu0 0.0
        %5461 = vmatprep.subr.mxu0 0.0
        %5462 = vmatpush1.xpose.msra.mxu0 0.0
        %5463 = vmatprep.subr.mxu0 0.0
        %5464 = vmatpush1.xpose.msra.mxu0 0.0
        %5465 = vmatprep.subr.mxu0 0.0
        %5466 = vmatpush1.xpose.msra.mxu0 0.0
        %5467 = vmatprep.subr.mxu0 0.0
        %5468 = vmatpush1.xpose.msra.mxu0 0.0
        %5469 = vmatprep.subr.mxu0 0.0
        %5470 = vmatpush1.xpose.msra.mxu0 0.0
        %5471 = vmatprep.subr.mxu0 0.0
        %5472 = vmatpush1.xpose.msra.mxu0 0.0
        %5473 = vmatprep.subr.mxu0 0.0
        %5474 = vmatpush1.xpose.msra.mxu0 0.0
        %5475 = vmatprep.subr.mxu0 0.0
        %5476 = vmatpush1.xpose.msra.mxu0 0.0
        %5477 = vmatprep.subr.mxu0 0.0
        %5478 = vmatpush1.xpose.msra.mxu0 0.0
        %5479 = vmatprep.subr.mxu0 0.0
        %5480 = vmatpush1.xpose.msra.mxu0 0.0
        %5481 = vmatprep.subr.mxu0 0.0
        %5482 = vmatpush1.xpose.msra.mxu0 0.0
        %5483 = vmatprep.subr.mxu0 0.0
        %5484 = vmatpush1.xpose.msra.mxu0 0.0
        %5485 = vmatprep.subr.mxu0 0.0
        %5486 = vmatpush1.xpose.msra.mxu0 0.0
        %5487 = vmatprep.mubr.f32.mxu0 0.0
        %5488 = vmatmul.mubr.f32.gmra.mrb[0].mxu0 %v5421
        %v5489 = vpop.f32.mrb[0].mxu0
        %v5490 = vadd.f32 0.0, %v5489
        %v5491 = vpop.f32.mrb[0].mxu0
        %5492 = vdwg.mxu0
        %v5493 = vmax.f32 %v5490, 1e-30
        %v5494 = vrcp.pop %v5493
        %v5495 = vmul.f32 %v5494, 0.015625
        %v5497 = vsel %vm960, %v5495, 0
        %5499 = vmatprep.subr.mxu0 0.0
        %5500 = vmatpush1.msra.mxu0 %v4776
        %5501 = vmatprep.subr.mxu0 0.0
        %5502 = vmatpush1.msra.mxu0 %v4778
        %5503 = vmatprep.subr.mxu0 0.0
        %5504 = vmatpush1.msra.mxu0 %v4780
        %5505 = vmatprep.subr.mxu0 0.0
        %5506 = vmatpush1.msra.mxu0 %v4782
        %5507 = vmatprep.subr.mxu0 0.0
        %5508 = vmatpush1.msra.mxu0 %v4784
        %5509 = vmatprep.subr.mxu0 0.0
        %5510 = vmatpush1.msra.mxu0 %v4786
        %5511 = vmatprep.subr.mxu0 0.0
        %5512 = vmatpush1.msra.mxu0 %v4788
        %5513 = vmatprep.subr.mxu0 0.0
        %5514 = vmatpush1.msra.mxu0 %v4790
        %5515 = vmatprep.subr.mxu0 0.0
        %5516 = vmatpush1.msra.mxu0 0.0
        %5517 = vmatprep.subr.mxu0 0.0
        %5518 = vmatpush1.msra.mxu0 0.0
        %5519 = vmatprep.subr.mxu0 0.0
        %5520 = vmatpush1.msra.mxu0 0.0
        %5521 = vmatprep.subr.mxu0 0.0
        %5522 = vmatpush1.msra.mxu0 0.0
        %5523 = vmatprep.subr.mxu0 0.0
        %5524 = vmatpush1.msra.mxu0 0.0
        %5525 = vmatprep.subr.mxu0 0.0
        %5526 = vmatpush1.msra.mxu0 0.0
        %5527 = vmatprep.subr.mxu0 0.0
        %5528 = vmatpush1.msra.mxu0 0.0
        %5529 = vmatprep.subr.mxu0 0.0
        %5530 = vmatpush1.msra.mxu0 0.0
        %5531 = vmatprep.subr.mxu0 0.0
        %5532 = vmatpush1.msra.mxu0 0.0
        %5533 = vmatprep.subr.mxu0 0.0
        %5534 = vmatpush1.msra.mxu0 0.0
        %5535 = vmatprep.subr.mxu0 0.0
        %5536 = vmatpush1.msra.mxu0 0.0
        %5537 = vmatprep.subr.mxu0 0.0
        %5538 = vmatpush1.msra.mxu0 0.0
        %5539 = vmatprep.subr.mxu0 0.0
        %5540 = vmatpush1.msra.mxu0 0.0
        %5541 = vmatprep.subr.mxu0 0.0
        %5542 = vmatpush1.msra.mxu0 0.0
        %5543 = vmatprep.subr.mxu0 0.0
        %5544 = vmatpush1.msra.mxu0 0.0
        %5545 = vmatprep.subr.mxu0 0.0
        %5546 = vmatpush1.msra.mxu0 0.0
        %5547 = vmatprep.subr.mxu0 0.0
        %5548 = vmatpush1.msra.mxu0 0.0
        %5549 = vmatprep.subr.mxu0 0.0
        %5550 = vmatpush1.msra.mxu0 0.0
        %5551 = vmatprep.subr.mxu0 0.0
        %5552 = vmatpush1.msra.mxu0 0.0
        %5553 = vmatprep.subr.mxu0 0.0
        %5554 = vmatpush1.msra.mxu0 0.0
        %5555 = vmatprep.subr.mxu0 0.0
        %5556 = vmatpush1.msra.mxu0 0.0
        %5557 = vmatprep.subr.mxu0 0.0
        %5558 = vmatpush1.msra.mxu0 0.0
        %5559 = vmatprep.subr.mxu0 0.0
        %5560 = vmatpush1.msra.mxu0 0.0
        %5561 = vmatprep.subr.mxu0 0.0
        %5562 = vmatpush1.msra.mxu0 0.0
        %5563 = vmatprep.mubr.f32.mxu0 0.0
        %5564 = vmatmul.mubr.f32.gmra.mrb[0].mxu0 %v5497
        %v5565 = vpop.f32.mrb[0].mxu0
        %v5566 = vadd.f32 0.0, %v5565
        %v5567 = vpop.f32.mrb[0].mxu0
        %5568 = vdwg.mxu0
        %v5569 = vmax.f32 %v5566, 1e-30
        %v5570 = vrcp.pop %v5569
        %v5571 = vmul.f32 %v5570, 0.015625
        %v5573 = vsel %vm960, %v5571, 0
        %5575 = vmatprep.subr.mxu0 0.0
        %5576 = vmatpush1.xpose.msra.mxu0 %v4792
        %5577 = vmatprep.subr.mxu0 0.0
        %5578 = vmatpush1.xpose.msra.mxu0 %v4795
        %5579 = vmatprep.subr.mxu0 0.0
        %5580 = vmatpush1.xpose.msra.mxu0 %v4798
        %5581 = vmatprep.subr.mxu0 0.0
        %5582 = vmatpush1.xpose.msra.mxu0 %v4801
        %5583 = vmatprep.subr.mxu0 0.0
        %5584 = vmatpush1.xpose.msra.mxu0 %v4804
        %5585 = vmatprep.subr.mxu0 0.0
        %5586 = vmatpush1.xpose.msra.mxu0 %v4807
        %5587 = vmatprep.subr.mxu0 0.0
        %5588 = vmatpush1.xpose.msra.mxu0 %v4810
        %5589 = vmatprep.subr.mxu0 0.0
        %5590 = vmatpush1.xpose.msra.mxu0 %v4813
        %5591 = vmatprep.subr.mxu0 0.0
        %5592 = vmatpush1.xpose.msra.mxu0 0.0
        %5593 = vmatprep.subr.mxu0 0.0
        %5594 = vmatpush1.xpose.msra.mxu0 0.0
        %5595 = vmatprep.subr.mxu0 0.0
        %5596 = vmatpush1.xpose.msra.mxu0 0.0
        %5597 = vmatprep.subr.mxu0 0.0
        %5598 = vmatpush1.xpose.msra.mxu0 0.0
        %5599 = vmatprep.subr.mxu0 0.0
        %5600 = vmatpush1.xpose.msra.mxu0 0.0
        %5601 = vmatprep.subr.mxu0 0.0
        %5602 = vmatpush1.xpose.msra.mxu0 0.0
        %5603 = vmatprep.subr.mxu0 0.0
        %5604 = vmatpush1.xpose.msra.mxu0 0.0
        %5605 = vmatprep.subr.mxu0 0.0
        %5606 = vmatpush1.xpose.msra.mxu0 0.0
        %5607 = vmatprep.subr.mxu0 0.0
        %5608 = vmatpush1.xpose.msra.mxu0 0.0
        %5609 = vmatprep.subr.mxu0 0.0
        %5610 = vmatpush1.xpose.msra.mxu0 0.0
        %5611 = vmatprep.subr.mxu0 0.0
        %5612 = vmatpush1.xpose.msra.mxu0 0.0
        %5613 = vmatprep.subr.mxu0 0.0
        %5614 = vmatpush1.xpose.msra.mxu0 0.0
        %5615 = vmatprep.subr.mxu0 0.0
        %5616 = vmatpush1.xpose.msra.mxu0 0.0
        %5617 = vmatprep.subr.mxu0 0.0
        %5618 = vmatpush1.xpose.msra.mxu0 0.0
        %5619 = vmatprep.subr.mxu0 0.0
        %5620 = vmatpush1.xpose.msra.mxu0 0.0
        %5621 = vmatprep.subr.mxu0 0.0
        %5622 = vmatpush1.xpose.msra.mxu0 0.0
        %5623 = vmatprep.subr.mxu0 0.0
        %5624 = vmatpush1.xpose.msra.mxu0 0.0
        %5625 = vmatprep.subr.mxu0 0.0
        %5626 = vmatpush1.xpose.msra.mxu0 0.0
        %5627 = vmatprep.subr.mxu0 0.0
        %5628 = vmatpush1.xpose.msra.mxu0 0.0
        %5629 = vmatprep.subr.mxu0 0.0
        %5630 = vmatpush1.xpose.msra.mxu0 0.0
        %5631 = vmatprep.subr.mxu0 0.0
        %5632 = vmatpush1.xpose.msra.mxu0 0.0
        %5633 = vmatprep.subr.mxu0 0.0
        %5634 = vmatpush1.xpose.msra.mxu0 0.0
        %5635 = vmatprep.subr.mxu0 0.0
        %5636 = vmatpush1.xpose.msra.mxu0 0.0
        %5637 = vmatprep.subr.mxu0 0.0
        %5638 = vmatpush1.xpose.msra.mxu0 0.0
        %5639 = vmatprep.mubr.f32.mxu0 0.0
        %5640 = vmatmul.mubr.f32.gmra.mrb[0].mxu0 %v5573
        %v5641 = vpop.f32.mrb[0].mxu0
        %v5642 = vadd.f32 0.0, %v5641
        %v5643 = vpop.f32.mrb[0].mxu0
        %5644 = vdwg.mxu0
        %v5645 = vmax.f32 %v5642, 1e-30
        %v5646 = vrcp.pop %v5645
        %v5647 = vmul.f32 %v5646, 0.015625
        %v5649 = vsel %vm960, %v5647, 0
        %5651 = vmatprep.subr.mxu0 0.0
        %5652 = vmatpush1.msra.mxu0 %v4776
        %5653 = vmatprep.subr.mxu0 0.0
        %5654 = vmatpush1.msra.mxu0 %v4778
        %5655 = vmatprep.subr.mxu0 0.0
        %5656 = vmatpush1.msra.mxu0 %v4780
        %5657 = vmatprep.subr.mxu0 0.0
        %5658 = vmatpush1.msra.mxu0 %v4782
        %5659 = vmatprep.subr.mxu0 0.0
        %5660 = vmatpush1.msra.mxu0 %v4784
        %5661 = vmatprep.subr.mxu0 0.0
        %5662 = vmatpush1.msra.mxu0 %v4786
        %5663 = vmatprep.subr.mxu0 0.0
        %5664 = vmatpush1.msra.mxu0 %v4788
        %5665 = vmatprep.subr.mxu0 0.0
        %5666 = vmatpush1.msra.mxu0 %v4790
        %5667 = vmatprep.subr.mxu0 0.0
        %5668 = vmatpush1.msra.mxu0 0.0
        %5669 = vmatprep.subr.mxu0 0.0
        %5670 = vmatpush1.msra.mxu0 0.0
        %5671 = vmatprep.subr.mxu0 0.0
        %5672 = vmatpush1.msra.mxu0 0.0
        %5673 = vmatprep.subr.mxu0 0.0
        %5674 = vmatpush1.msra.mxu0 0.0
        %5675 = vmatprep.subr.mxu0 0.0
        %5676 = vmatpush1.msra.mxu0 0.0
        %5677 = vmatprep.subr.mxu0 0.0
        %5678 = vmatpush1.msra.mxu0 0.0
        %5679 = vmatprep.subr.mxu0 0.0
        %5680 = vmatpush1.msra.mxu0 0.0
        %5681 = vmatprep.subr.mxu0 0.0
        %5682 = vmatpush1.msra.mxu0 0.0
        %5683 = vmatprep.subr.mxu0 0.0
        %5684 = vmatpush1.msra.mxu0 0.0
        %5685 = vmatprep.subr.mxu0 0.0
        %5686 = vmatpush1.msra.mxu0 0.0
        %5687 = vmatprep.subr.mxu0 0.0
        %5688 = vmatpush1.msra.mxu0 0.0
        %5689 = vmatprep.subr.mxu0 0.0
        %5690 = vmatpush1.msra.mxu0 0.0
        %5691 = vmatprep.subr.mxu0 0.0
        %5692 = vmatpush1.msra.mxu0 0.0
        %5693 = vmatprep.subr.mxu0 0.0
        %5694 = vmatpush1.msra.mxu0 0.0
        %5695 = vmatprep.subr.mxu0 0.0
        %5696 = vmatpush1.msra.mxu0 0.0
        %5697 = vmatprep.subr.mxu0 0.0
        %5698 = vmatpush1.msra.mxu0 0.0
        %5699 = vmatprep.subr.mxu0 0.0
        %5700 = vmatpush1.msra.mxu0 0.0
        %5701 = vmatprep.subr.mxu0 0.0
        %5702 = vmatpush1.msra.mxu0 0.0
        %5703 = vmatprep.subr.mxu0 0.0
        %5704 = vmatpush1.msra.mxu0 0.0
        %5705 = vmatprep.subr.mxu0 0.0
        %5706 = vmatpush1.msra.mxu0 0.0
        %5707 = vmatprep.subr.mxu0 0.0
        %5708 = vmatpush1.msra.mxu0 0.0
        %5709 = vmatprep.subr.mxu0 0.0
        %5710 = vmatpush1.msra.mxu0 0.0
        %5711 = vmatprep.subr.mxu0 0.0
        %5712 = vmatpush1.msra.mxu0 0.0
        %5713 = vmatprep.subr.mxu0 0.0
        %5714 = vmatpush1.msra.mxu0 0.0
        %5715 = vmatprep.mubr.f32.mxu0 0.0
        %5716 = vmatmul.mubr.f32.gmra.mrb[0].mxu0 %v5649
        %v5717 = vpop.f32.mrb[0].mxu0
        %v5718 = vadd.f32 0.0, %v5717
        %v5719 = vpop.f32.mrb[0].mxu0
        %5720 = vdwg.mxu0
        %v5721 = vmax.f32 %v5718, 1e-30
        %v5722 = vrcp.pop %v5721
        %v5723 = vmul.f32 %v5722, 0.015625
        %v5725 = vsel %vm960, %v5723, 0
        %5727 = vmatprep.subr.mxu0 0.0
        %5728 = vmatpush1.xpose.msra.mxu0 %v4792
        %5729 = vmatprep.subr.mxu0 0.0
        %5730 = vmatpush1.xpose.msra.mxu0 %v4795
        %5731 = vmatprep.subr.mxu0 0.0
        %5732 = vmatpush1.xpose.msra.mxu0 %v4798
        %5733 = vmatprep.subr.mxu0 0.0
        %5734 = vmatpush1.xpose.msra.mxu0 %v4801
        %5735 = vmatprep.subr.mxu0 0.0
        %5736 = vmatpush1.xpose.msra.mxu0 %v4804
        %5737 = vmatprep.subr.mxu0 0.0
        %5738 = vmatpush1.xpose.msra.mxu0 %v4807
        %5739 = vmatprep.subr.mxu0 0.0
        %5740 = vmatpush1.xpose.msra.mxu0 %v4810
        %5741 = vmatprep.subr.mxu0 0.0
        %5742 = vmatpush1.xpose.msra.mxu0 %v4813
        %5743 = vmatprep.subr.mxu0 0.0
        %5744 = vmatpush1.xpose.msra.mxu0 0.0
        %5745 = vmatprep.subr.mxu0 0.0
        %5746 = vmatpush1.xpose.msra.mxu0 0.0
        %5747 = vmatprep.subr.mxu0 0.0
        %5748 = vmatpush1.xpose.msra.mxu0 0.0
        %5749 = vmatprep.subr.mxu0 0.0
        %5750 = vmatpush1.xpose.msra.mxu0 0.0
        %5751 = vmatprep.subr.mxu0 0.0
        %5752 = vmatpush1.xpose.msra.mxu0 0.0
        %5753 = vmatprep.subr.mxu0 0.0
        %5754 = vmatpush1.xpose.msra.mxu0 0.0
        %5755 = vmatprep.subr.mxu0 0.0
        %5756 = vmatpush1.xpose.msra.mxu0 0.0
        %5757 = vmatprep.subr.mxu0 0.0
        %5758 = vmatpush1.xpose.msra.mxu0 0.0
        %5759 = vmatprep.subr.mxu0 0.0
        %5760 = vmatpush1.xpose.msra.mxu0 0.0
        %5761 = vmatprep.subr.mxu0 0.0
        %5762 = vmatpush1.xpose.msra.mxu0 0.0
        %5763 = vmatprep.subr.mxu0 0.0
        %5764 = vmatpush1.xpose.msra.mxu0 0.0
        %5765 = vmatprep.subr.mxu0 0.0
        %5766 = vmatpush1.xpose.msra.mxu0 0.0
        %5767 = vmatprep.subr.mxu0 0.0
        %5768 = vmatpush1.xpose.msra.mxu0 0.0
        %5769 = vmatprep.subr.mxu0 0.0
        %5770 = vmatpush1.xpose.msra.mxu0 0.0
        %5771 = vmatprep.subr.mxu0 0.0
        %5772 = vmatpush1.xpose.msra.mxu0 0.0
        %5773 = vmatprep.subr.mxu0 0.0
        %5774 = vmatpush1.xpose.msra.mxu0 0.0
        %5775 = vmatprep.subr.mxu0 0.0
        %5776 = vmatpush1.xpose.msra.mxu0 0.0
        %5777 = vmatprep.subr.mxu0 0.0
        %5778 = vmatpush1.xpose.msra.mxu0 0.0
        %5779 = vmatprep.subr.mxu0 0.0
        %5780 = vmatpush1.xpose.msra.mxu0 0.0
        %5781 = vmatprep.subr.mxu0 0.0
        %5782 = vmatpush1.xpose.msra.mxu0 0.0
        %5783 = vmatprep.subr.mxu0 0.0
        %5784 = vmatpush1.xpose.msra.mxu0 0.0
        %5785 = vmatprep.subr.mxu0 0.0
        %5786 = vmatpush1.xpose.msra.mxu0 0.0
        %5787 = vmatprep.subr.mxu0 0.0
        %5788 = vmatpush1.xpose.msra.mxu0 0.0
        %5789 = vmatprep.subr.mxu0 0.0
        %5790 = vmatpush1.xpose.msra.mxu0 0.0
        %5791 = vmatprep.mubr.f32.mxu0 0.0
        %5792 = vmatmul.mubr.f32.gmra.mrb[0].mxu0 %v5725
        %v5793 = vpop.f32.mrb[0].mxu0
        %v5794 = vadd.f32 0.0, %v5793
        %v5795 = vpop.f32.mrb[0].mxu0
        %5796 = vdwg.mxu0
        %v5797 = vmax.f32 %v5794, 1e-30
        %v5798 = vrcp.pop %v5797
        %v5799 = vmul.f32 %v5798, 0.015625
        %v5801 = vsel %vm960, %v5799, 0
        %5803 = vmatprep.subr.mxu0 0.0
        %5804 = vmatpush1.msra.mxu0 %v4776
        %5805 = vmatprep.subr.mxu0 0.0
        %5806 = vmatpush1.msra.mxu0 %v4778
        %5807 = vmatprep.subr.mxu0 0.0
        %5808 = vmatpush1.msra.mxu0 %v4780
        %5809 = vmatprep.subr.mxu0 0.0
        %5810 = vmatpush1.msra.mxu0 %v4782
        %5811 = vmatprep.subr.mxu0 0.0
        %5812 = vmatpush1.msra.mxu0 %v4784
        %5813 = vmatprep.subr.mxu0 0.0
        %5814 = vmatpush1.msra.mxu0 %v4786
        %5815 = vmatprep.subr.mxu0 0.0
        %5816 = vmatpush1.msra.mxu0 %v4788
        %5817 = vmatprep.subr.mxu0 0.0
        %5818 = vmatpush1.msra.mxu0 %v4790
        %5819 = vmatprep.subr.mxu0 0.0
        %5820 = vmatpush1.msra.mxu0 0.0
        %5821 = vmatprep.subr.mxu0 0.0
        %5822 = vmatpush1.msra.mxu0 0.0
        %5823 = vmatprep.subr.mxu0 0.0
        %5824 = vmatpush1.msra.mxu0 0.0
        %5825 = vmatprep.subr.mxu0 0.0
        %5826 = vmatpush1.msra.mxu0 0.0
        %5827 = vmatprep.subr.mxu0 0.0
        %5828 = vmatpush1.msra.mxu0 0.0
        %5829 = vmatprep.subr.mxu0 0.0
        %5830 = vmatpush1.msra.mxu0 0.0
        %5831 = vmatprep.subr.mxu0 0.0
        %5832 = vmatpush1.msra.mxu0 0.0
        %5833 = vmatprep.subr.mxu0 0.0
        %5834 = vmatpush1.msra.mxu0 0.0
        %5835 = vmatprep.subr.mxu0 0.0
        %5836 = vmatpush1.msra.mxu0 0.0
        %5837 = vmatprep.subr.mxu0 0.0
        %5838 = vmatpush1.msra.mxu0 0.0
        %5839 = vmatprep.subr.mxu0 0.0
        %5840 = vmatpush1.msra.mxu0 0.0
        %5841 = vmatprep.subr.mxu0 0.0
        %5842 = vmatpush1.msra.mxu0 0.0
        %5843 = vmatprep.subr.mxu0 0.0
        %5844 = vmatpush1.msra.mxu0 0.0
        %5845 = vmatprep.subr.mxu0 0.0
        %5846 = vmatpush1.msra.mxu0 0.0
        %5847 = vmatprep.subr.mxu0 0.0
        %5848 = vmatpush1.msra.mxu0 0.0
        %5849 = vmatprep.subr.mxu0 0.0
        %5850 = vmatpush1.msra.mxu0 0.0
        %5851 = vmatprep.subr.mxu0 0.0
        %5852 = vmatpush1.msra.mxu0 0.0
        %5853 = vmatprep.subr.mxu0 0.0
        %5854 = vmatpush1.msra.mxu0 0.0
        %5855 = vmatprep.subr.mxu0 0.0
        %5856 = vmatpush1.msra.mxu0 0.0
        %5857 = vmatprep.subr.mxu0 0.0
        %5858 = vmatpush1.msra.mxu0 0.0
        %5859 = vmatprep.subr.mxu0 0.0
        %5860 = vmatpush1.msra.mxu0 0.0
        %5861 = vmatprep.subr.mxu0 0.0
        %5862 = vmatpush1.msra.mxu0 0.0
        %5863 = vmatprep.subr.mxu0 0.0
        %5864 = vmatpush1.msra.mxu0 0.0
        %5865 = vmatprep.subr.mxu0 0.0
        %5866 = vmatpush1.msra.mxu0 0.0
        %5867 = vmatprep.mubr.f32.mxu0 0.0
        %5868 = vmatmul.mubr.f32.gmra.mrb[0].mxu0 %v5801
        %v5869 = vpop.f32.mrb[0].mxu0
        %v5870 = vadd.f32 0.0, %v5869
        %v5871 = vpop.f32.mrb[0].mxu0
        %5872 = vdwg.mxu0
        %v5873 = vmax.f32 %v5870, 1e-30
        %v5874 = vrcp.pop %v5873
        %v5875 = vmul.f32 %v5874, 0.015625
        %v5877 = vsel %vm960, %v5875, 0
        %5879 = vmatprep.subr.mxu0 0.0
        %5880 = vmatpush1.xpose.msra.mxu0 %v4792
        %5881 = vmatprep.subr.mxu0 0.0
        %5882 = vmatpush1.xpose.msra.mxu0 %v4795
        %5883 = vmatprep.subr.mxu0 0.0
        %5884 = vmatpush1.xpose.msra.mxu0 %v4798
        %5885 = vmatprep.subr.mxu0 0.0
        %5886 = vmatpush1.xpose.msra.mxu0 %v4801
        %5887 = vmatprep.subr.mxu0 0.0
        %5888 = vmatpush1.xpose.msra.mxu0 %v4804
        %5889 = vmatprep.subr.mxu0 0.0
        %5890 = vmatpush1.xpose.msra.mxu0 %v4807
        %5891 = vmatprep.subr.mxu0 0.0
        %5892 = vmatpush1.xpose.msra.mxu0 %v4810
        %5893 = vmatprep.subr.mxu0 0.0
        %5894 = vmatpush1.xpose.msra.mxu0 %v4813
        %5895 = vmatprep.subr.mxu0 0.0
        %5896 = vmatpush1.xpose.msra.mxu0 0.0
        %5897 = vmatprep.subr.mxu0 0.0
        %5898 = vmatpush1.xpose.msra.mxu0 0.0
        %5899 = vmatprep.subr.mxu0 0.0
        %5900 = vmatpush1.xpose.msra.mxu0 0.0
        %5901 = vmatprep.subr.mxu0 0.0
        %5902 = vmatpush1.xpose.msra.mxu0 0.0
        %5903 = vmatprep.subr.mxu0 0.0
        %5904 = vmatpush1.xpose.msra.mxu0 0.0
        %5905 = vmatprep.subr.mxu0 0.0
        %5906 = vmatpush1.xpose.msra.mxu0 0.0
        %5907 = vmatprep.subr.mxu0 0.0
        %5908 = vmatpush1.xpose.msra.mxu0 0.0
        %5909 = vmatprep.subr.mxu0 0.0
        %5910 = vmatpush1.xpose.msra.mxu0 0.0
        %5911 = vmatprep.subr.mxu0 0.0
        %5912 = vmatpush1.xpose.msra.mxu0 0.0
        %5913 = vmatprep.subr.mxu0 0.0
        %5914 = vmatpush1.xpose.msra.mxu0 0.0
        %5915 = vmatprep.subr.mxu0 0.0
        %5916 = vmatpush1.xpose.msra.mxu0 0.0
        %5917 = vmatprep.subr.mxu0 0.0
        %5918 = vmatpush1.xpose.msra.mxu0 0.0
        %5919 = vmatprep.subr.mxu0 0.0
        %5920 = vmatpush1.xpose.msra.mxu0 0.0
        %5921 = vmatprep.subr.mxu0 0.0
        %5922 = vmatpush1.xpose.msra.mxu0 0.0
        %5923 = vmatprep.subr.mxu0 0.0
        %5924 = vmatpush1.xpose.msra.mxu0 0.0
        %5925 = vmatprep.subr.mxu0 0.0
        %5926 = vmatpush1.xpose.msra.mxu0 0.0
        %5927 = vmatprep.subr.mxu0 0.0
        %5928 = vmatpush1.xpose.msra.mxu0 0.0
        %5929 = vmatprep.subr.mxu0 0.0
        %5930 = vmatpush1.xpose.msra.mxu0 0.0
        %5931 = vmatprep.subr.mxu0 0.0
        %5932 = vmatpush1.xpose.msra.mxu0 0.0
        %5933 = vmatprep.subr.mxu0 0.0
        %5934 = vmatpush1.xpose.msra.mxu0 0.0
        %5935 = vmatprep.subr.mxu0 0.0
        %5936 = vmatpush1.xpose.msra.mxu0 0.0
        %5937 = vmatprep.subr.mxu0 0.0
        %5938 = vmatpush1.xpose.msra.mxu0 0.0
        %5939 = vmatprep.subr.mxu0 0.0
        %5940 = vmatpush1.xpose.msra.mxu0 0.0
        %5941 = vmatprep.subr.mxu0 0.0
        %5942 = vmatpush1.xpose.msra.mxu0 0.0
        %5943 = vmatprep.mubr.f32.mxu0 0.0
        %5944 = vmatmul.mubr.f32.gmra.mrb[0].mxu0 %v5877
        %v5945 = vpop.f32.mrb[0].mxu0
        %v5946 = vadd.f32 0.0, %v5945
        %v5947 = vpop.f32.mrb[0].mxu0
        %5948 = vdwg.mxu0
        %v5949 = vmax.f32 %v5946, 1e-30
        %v5950 = vrcp.pop %v5949
        %v5951 = vmul.f32 %v5950, 0.015625
        %v5953 = vsel %vm960, %v5951, 0
        %5955 = vmatprep.subr.mxu0 0.0
        %5956 = vmatpush1.msra.mxu0 %v4776
        %5957 = vmatprep.subr.mxu0 0.0
        %5958 = vmatpush1.msra.mxu0 %v4778
        %5959 = vmatprep.subr.mxu0 0.0
        %5960 = vmatpush1.msra.mxu0 %v4780
        %5961 = vmatprep.subr.mxu0 0.0
        %5962 = vmatpush1.msra.mxu0 %v4782
        %5963 = vmatprep.subr.mxu0 0.0
        %5964 = vmatpush1.msra.mxu0 %v4784
        %5965 = vmatprep.subr.mxu0 0.0
        %5966 = vmatpush1.msra.mxu0 %v4786
        %5967 = vmatprep.subr.mxu0 0.0
        %5968 = vmatpush1.msra.mxu0 %v4788
        %5969 = vmatprep.subr.mxu0 0.0
        %5970 = vmatpush1.msra.mxu0 %v4790
        %5971 = vmatprep.subr.mxu0 0.0
        %5972 = vmatpush1.msra.mxu0 0.0
        %5973 = vmatprep.subr.mxu0 0.0
        %5974 = vmatpush1.msra.mxu0 0.0
        %5975 = vmatprep.subr.mxu0 0.0
        %5976 = vmatpush1.msra.mxu0 0.0
        %5977 = vmatprep.subr.mxu0 0.0
        %5978 = vmatpush1.msra.mxu0 0.0
        %5979 = vmatprep.subr.mxu0 0.0
        %5980 = vmatpush1.msra.mxu0 0.0
        %5981 = vmatprep.subr.mxu0 0.0
        %5982 = vmatpush1.msra.mxu0 0.0
        %5983 = vmatprep.subr.mxu0 0.0
        %5984 = vmatpush1.msra.mxu0 0.0
        %5985 = vmatprep.subr.mxu0 0.0
        %5986 = vmatpush1.msra.mxu0 0.0
        %5987 = vmatprep.subr.mxu0 0.0
        %5988 = vmatpush1.msra.mxu0 0.0
        %5989 = vmatprep.subr.mxu0 0.0
        %5990 = vmatpush1.msra.mxu0 0.0
        %5991 = vmatprep.subr.mxu0 0.0
        %5992 = vmatpush1.msra.mxu0 0.0
        %5993 = vmatprep.subr.mxu0 0.0
        %5994 = vmatpush1.msra.mxu0 0.0
        %5995 = vmatprep.subr.mxu0 0.0
        %5996 = vmatpush1.msra.mxu0 0.0
        %5997 = vmatprep.subr.mxu0 0.0
        %5998 = vmatpush1.msra.mxu0 0.0
        %5999 = vmatprep.subr.mxu0 0.0
        %6000 = vmatpush1.msra.mxu0 0.0
        %6001 = vmatprep.subr.mxu0 0.0
        %6002 = vmatpush1.msra.mxu0 0.0
        %6003 = vmatprep.subr.mxu0 0.0
        %6004 = vmatpush1.msra.mxu0 0.0
        %6005 = vmatprep.subr.mxu0 0.0
        %6006 = vmatpush1.msra.mxu0 0.0
        %6007 = vmatprep.subr.mxu0 0.0
        %6008 = vmatpush1.msra.mxu0 0.0
        %6009 = vmatprep.subr.mxu0 0.0
        %6010 = vmatpush1.msra.mxu0 0.0
        %6011 = vmatprep.subr.mxu0 0.0
        %6012 = vmatpush1.msra.mxu0 0.0
        %6013 = vmatprep.subr.mxu0 0.0
        %6014 = vmatpush1.msra.mxu0 0.0
        %6015 = vmatprep.subr.mxu0 0.0
        %6016 = vmatpush1.msra.mxu0 0.0
        %6017 = vmatprep.subr.mxu0 0.0
        %6018 = vmatpush1.msra.mxu0 0.0
        %6019 = vmatprep.mubr.f32.mxu0 0.0
        %6020 = vmatmul.mubr.f32.gmra.mrb[0].mxu0 %v5953
        %v6021 = vpop.f32.mrb[0].mxu0
        %v6022 = vadd.f32 0.0, %v6021
        %v6023 = vpop.f32.mrb[0].mxu0
        %6024 = vdwg.mxu0
        %v6025 = vmax.f32 %v6022, 1e-30
        %v6026 = vrcp.pop %v6025
        %v6027 = vmul.f32 %v6026, 0.015625
        %v6029 = vsel %vm960, %v6027, 0
        %6031 = vmatprep.subr.mxu0 0.0
        %6032 = vmatpush1.xpose.msra.mxu0 %v4792
        %6033 = vmatprep.subr.mxu0 0.0
        %6034 = vmatpush1.xpose.msra.mxu0 %v4795
        %6035 = vmatprep.subr.mxu0 0.0
        %6036 = vmatpush1.xpose.msra.mxu0 %v4798
        %6037 = vmatprep.subr.mxu0 0.0
        %6038 = vmatpush1.xpose.msra.mxu0 %v4801
        %6039 = vmatprep.subr.mxu0 0.0
        %6040 = vmatpush1.xpose.msra.mxu0 %v4804
        %6041 = vmatprep.subr.mxu0 0.0
        %6042 = vmatpush1.xpose.msra.mxu0 %v4807
        %6043 = vmatprep.subr.mxu0 0.0
        %6044 = vmatpush1.xpose.msra.mxu0 %v4810
        %6045 = vmatprep.subr.mxu0 0.0
        %6046 = vmatpush1.xpose.msra.mxu0 %v4813
        %6047 = vmatprep.subr.mxu0 0.0
        %6048 = vmatpush1.xpose.msra.mxu0 0.0
        %6049 = vmatprep.subr.mxu0 0.0
        %6050 = vmatpush1.xpose.msra.mxu0 0.0
        %6051 = vmatprep.subr.mxu0 0.0
        %6052 = vmatpush1.xpose.msra.mxu0 0.0
        %6053 = vmatprep.subr.mxu0 0.0
        %6054 = vmatpush1.xpose.msra.mxu0 0.0
        %6055 = vmatprep.subr.mxu0 0.0
        %6056 = vmatpush1.xpose.msra.mxu0 0.0
        %6057 = vmatprep.subr.mxu0 0.0
        %6058 = vmatpush1.xpose.msra.mxu0 0.0
        %6059 = vmatprep.subr.mxu0 0.0
        %6060 = vmatpush1.xpose.msra.mxu0 0.0
        %6061 = vmatprep.subr.mxu0 0.0
        %6062 = vmatpush1.xpose.msra.mxu0 0.0
        %6063 = vmatprep.subr.mxu0 0.0
        %6064 = vmatpush1.xpose.msra.mxu0 0.0
        %6065 = vmatprep.subr.mxu0 0.0
        %6066 = vmatpush1.xpose.msra.mxu0 0.0
        %6067 = vmatprep.subr.mxu0 0.0
        %6068 = vmatpush1.xpose.msra.mxu0 0.0
        %6069 = vmatprep.subr.mxu0 0.0
        %6070 = vmatpush1.xpose.msra.mxu0 0.0
        %6071 = vmatprep.subr.mxu0 0.0
        %6072 = vmatpush1.xpose.msra.mxu0 0.0
        %6073 = vmatprep.subr.mxu0 0.0
        %6074 = vmatpush1.xpose.msra.mxu0 0.0
        %6075 = vmatprep.subr.mxu0 0.0
        %6076 = vmatpush1.xpose.msra.mxu0 0.0
        %6077 = vmatprep.subr.mxu0 0.0
        %6078 = vmatpush1.xpose.msra.mxu0 0.0
        %6079 = vmatprep.subr.mxu0 0.0
        %6080 = vmatpush1.xpose.msra.mxu0 0.0
        %6081 = vmatprep.subr.mxu0 0.0
        %6082 = vmatpush1.xpose.msra.mxu0 0.0
        %6083 = vmatprep.subr.mxu0 0.0
        %6084 = vmatpush1.xpose.msra.mxu0 0.0
        %6085 = vmatprep.subr.mxu0 0.0
        %6086 = vmatpush1.xpose.msra.mxu0 0.0
        %6087 = vmatprep.subr.mxu0 0.0
        %6088 = vmatpush1.xpose.msra.mxu0 0.0
        %6089 = vmatprep.subr.mxu0 0.0
        %6090 = vmatpush1.xpose.msra.mxu0 0.0
        %6091 = vmatprep.subr.mxu0 0.0
        %6092 = vmatpush1.xpose.msra.mxu0 0.0
        %6093 = vmatprep.subr.mxu0 0.0
        %6094 = vmatpush1.xpose.msra.mxu0 0.0
        %6095 = vmatprep.mubr.f32.mxu0 0.0
        %6096 = vmatmul.mubr.f32.gmra.mrb[0].mxu0 %v6029
        %v6097 = vpop.f32.mrb[0].mxu0
        %v6098 = vadd.f32 0.0, %v6097
        %v6099 = vpop.f32.mrb[0].mxu0
        %6100 = vdwg.mxu0
        %v6101 = vmax.f32 %v6098, 1e-30
        %v6102 = vrcp.pop %v6101
        %v6103 = vmul.f32 %v6102, 0.015625
        %v6105 = vsel %vm960, %v6103, 0
        %6107 = vmatprep.subr.mxu0 0.0
        %6108 = vmatpush1.msra.mxu0 %v4776
        %6109 = vmatprep.subr.mxu0 0.0
        %6110 = vmatpush1.msra.mxu0 %v4778
        %6111 = vmatprep.subr.mxu0 0.0
        %6112 = vmatpush1.msra.mxu0 %v4780
        %6113 = vmatprep.subr.mxu0 0.0
        %6114 = vmatpush1.msra.mxu0 %v4782
        %6115 = vmatprep.subr.mxu0 0.0
        %6116 = vmatpush1.msra.mxu0 %v4784
        %6117 = vmatprep.subr.mxu0 0.0
        %6118 = vmatpush1.msra.mxu0 %v4786
        %6119 = vmatprep.subr.mxu0 0.0
        %6120 = vmatpush1.msra.mxu0 %v4788
        %6121 = vmatprep.subr.mxu0 0.0
        %6122 = vmatpush1.msra.mxu0 %v4790
        %6123 = vmatprep.subr.mxu0 0.0
        %6124 = vmatpush1.msra.mxu0 0.0
        %6125 = vmatprep.subr.mxu0 0.0
        %6126 = vmatpush1.msra.mxu0 0.0
        %6127 = vmatprep.subr.mxu0 0.0
        %6128 = vmatpush1.msra.mxu0 0.0
        %6129 = vmatprep.subr.mxu0 0.0
        %6130 = vmatpush1.msra.mxu0 0.0
        %6131 = vmatprep.subr.mxu0 0.0
        %6132 = vmatpush1.msra.mxu0 0.0
        %6133 = vmatprep.subr.mxu0 0.0
        %6134 = vmatpush1.msra.mxu0 0.0
        %6135 = vmatprep.subr.mxu0 0.0
        %6136 = vmatpush1.msra.mxu0 0.0
        %6137 = vmatprep.subr.mxu0 0.0
        %6138 = vmatpush1.msra.mxu0 0.0
        %6139 = vmatprep.subr.mxu0 0.0
        %6140 = vmatpush1.msra.mxu0 0.0
        %6141 = vmatprep.subr.mxu0 0.0
        %6142 = vmatpush1.msra.mxu0 0.0
        %6143 = vmatprep.subr.mxu0 0.0
        %6144 = vmatpush1.msra.mxu0 0.0
        %6145 = vmatprep.subr.mxu0 0.0
        %6146 = vmatpush1.msra.mxu0 0.0
        %6147 = vmatprep.subr.mxu0 0.0
        %6148 = vmatpush1.msra.mxu0 0.0
        %6149 = vmatprep.subr.mxu0 0.0
        %6150 = vmatpush1.msra.mxu0 0.0
        %6151 = vmatprep.subr.mxu0 0.0
        %6152 = vmatpush1.msra.mxu0 0.0
        %6153 = vmatprep.subr.mxu0 0.0
        %6154 = vmatpush1.msra.mxu0 0.0
        %6155 = vmatprep.subr.mxu0 0.0
        %6156 = vmatpush1.msra.mxu0 0.0
        %6157 = vmatprep.subr.mxu0 0.0
        %6158 = vmatpush1.msra.mxu0 0.0
        %6159 = vmatprep.subr.mxu0 0.0
        %6160 = vmatpush1.msra.mxu0 0.0
        %6161 = vmatprep.subr.mxu0 0.0
        %6162 = vmatpush1.msra.mxu0 0.0
        %6163 = vmatprep.subr.mxu0 0.0
        %6164 = vmatpush1.msra.mxu0 0.0
        %6165 = vmatprep.subr.mxu0 0.0
        %6166 = vmatpush1.msra.mxu0 0.0
        %6167 = vmatprep.subr.mxu0 0.0
        %6168 = vmatpush1.msra.mxu0 0.0
        %6169 = vmatprep.subr.mxu0 0.0
        %6170 = vmatpush1.msra.mxu0 0.0
        %6171 = vmatprep.mubr.f32.mxu0 0.0
        %6172 = vmatmul.mubr.f32.gmra.mrb[0].mxu0 %v6105
        %v6173 = vpop.f32.mrb[0].mxu0
        %v6174 = vadd.f32 0.0, %v6173
        %v6175 = vpop.f32.mrb[0].mxu0
        %6176 = vdwg.mxu0
        %v6177 = vmax.f32 %v6174, 1e-30
        %v6178 = vrcp.pop %v6177
        %v6179 = vmul.f32 %v6178, 0.015625
        %v6181 = vsel %vm960, %v6179, 0
        %6183 = vmatprep.subr.mxu0 0.0
        %6184 = vmatpush1.xpose.msra.mxu0 %v4792
        %6185 = vmatprep.subr.mxu0 0.0
        %6186 = vmatpush1.xpose.msra.mxu0 %v4795
        %6187 = vmatprep.subr.mxu0 0.0
        %6188 = vmatpush1.xpose.msra.mxu0 %v4798
        %6189 = vmatprep.subr.mxu0 0.0
        %6190 = vmatpush1.xpose.msra.mxu0 %v4801
        %6191 = vmatprep.subr.mxu0 0.0
        %6192 = vmatpush1.xpose.msra.mxu0 %v4804
        %6193 = vmatprep.subr.mxu0 0.0
        %6194 = vmatpush1.xpose.msra.mxu0 %v4807
        %6195 = vmatprep.subr.mxu0 0.0
        %6196 = vmatpush1.xpose.msra.mxu0 %v4810
        %6197 = vmatprep.subr.mxu0 0.0
        %6198 = vmatpush1.xpose.msra.mxu0 %v4813
        %6199 = vmatprep.subr.mxu0 0.0
        %6200 = vmatpush1.xpose.msra.mxu0 0.0
        %6201 = vmatprep.subr.mxu0 0.0
        %6202 = vmatpush1.xpose.msra.mxu0 0.0
        %6203 = vmatprep.subr.mxu0 0.0
        %6204 = vmatpush1.xpose.msra.mxu0 0.0
        %6205 = vmatprep.subr.mxu0 0.0
        %6206 = vmatpush1.xpose.msra.mxu0 0.0
        %6207 = vmatprep.subr.mxu0 0.0
        %6208 = vmatpush1.xpose.msra.mxu0 0.0
        %6209 = vmatprep.subr.mxu0 0.0
        %6210 = vmatpush1.xpose.msra.mxu0 0.0
        %6211 = vmatprep.subr.mxu0 0.0
        %6212 = vmatpush1.xpose.msra.mxu0 0.0
        %6213 = vmatprep.subr.mxu0 0.0
        %6214 = vmatpush1.xpose.msra.mxu0 0.0
        %6215 = vmatprep.subr.mxu0 0.0
        %6216 = vmatpush1.xpose.msra.mxu0 0.0
        %6217 = vmatprep.subr.mxu0 0.0
        %6218 = vmatpush1.xpose.msra.mxu0 0.0
        %6219 = vmatprep.subr.mxu0 0.0
        %6220 = vmatpush1.xpose.msra.mxu0 0.0
        %6221 = vmatprep.subr.mxu0 0.0
        %6222 = vmatpush1.xpose.msra.mxu0 0.0
        %6223 = vmatprep.subr.mxu0 0.0
        %6224 = vmatpush1.xpose.msra.mxu0 0.0
        %6225 = vmatprep.subr.mxu0 0.0
        %6226 = vmatpush1.xpose.msra.mxu0 0.0
        %6227 = vmatprep.subr.mxu0 0.0
        %6228 = vmatpush1.xpose.msra.mxu0 0.0
        %6229 = vmatprep.subr.mxu0 0.0
        %6230 = vmatpush1.xpose.msra.mxu0 0.0
        %6231 = vmatprep.subr.mxu0 0.0
        %6232 = vmatpush1.xpose.msra.mxu0 0.0
        %6233 = vmatprep.subr.mxu0 0.0
        %6234 = vmatpush1.xpose.msra.mxu0 0.0
        %6235 = vmatprep.subr.mxu0 0.0
        %6236 = vmatpush1.xpose.msra.mxu0 0.0
        %6237 = vmatprep.subr.mxu0 0.0
        %6238 = vmatpush1.xpose.msra.mxu0 0.0
        %6239 = vmatprep.subr.mxu0 0.0
        %6240 = vmatpush1.xpose.msra.mxu0 0.0
        %6241 = vmatprep.subr.mxu0 0.0
        %6242 = vmatpush1.xpose.msra.mxu0 0.0
        %6243 = vmatprep.subr.mxu0 0.0
        %6244 = vmatpush1.xpose.msra.mxu0 0.0
        %6245 = vmatprep.subr.mxu0 0.0
        %6246 = vmatpush1.xpose.msra.mxu0 0.0
        %6247 = vmatprep.mubr.f32.mxu0 0.0
        %6248 = vmatmul.mubr.f32.gmra.mrb[0].mxu0 %v6181
        %v6249 = vpop.f32.mrb[0].mxu0
        %v6250 = vadd.f32 0.0, %v6249
        %v6251 = vpop.f32.mrb[0].mxu0
        %6252 = vdwg.mxu0
        %v6253 = vmax.f32 %v6250, 1e-30
        %v6254 = vrcp.pop %v6253
        %v6255 = vmul.f32 %v6254, 0.015625
        %v6257 = vsel %vm960, %v6255, 0
        %6259 = vmatprep.subr.mxu0 0.0
        %6260 = vmatpush1.msra.mxu0 %v4776
        %6261 = vmatprep.subr.mxu0 0.0
        %6262 = vmatpush1.msra.mxu0 %v4778
        %6263 = vmatprep.subr.mxu0 0.0
        %6264 = vmatpush1.msra.mxu0 %v4780
        %6265 = vmatprep.subr.mxu0 0.0
        %6266 = vmatpush1.msra.mxu0 %v4782
        %6267 = vmatprep.subr.mxu0 0.0
        %6268 = vmatpush1.msra.mxu0 %v4784
        %6269 = vmatprep.subr.mxu0 0.0
        %6270 = vmatpush1.msra.mxu0 %v4786
        %6271 = vmatprep.subr.mxu0 0.0
        %6272 = vmatpush1.msra.mxu0 %v4788
        %6273 = vmatprep.subr.mxu0 0.0
        %6274 = vmatpush1.msra.mxu0 %v4790
        %6275 = vmatprep.subr.mxu0 0.0
        %6276 = vmatpush1.msra.mxu0 0.0
        %6277 = vmatprep.subr.mxu0 0.0
        %6278 = vmatpush1.msra.mxu0 0.0
        %6279 = vmatprep.subr.mxu0 0.0
        %6280 = vmatpush1.msra.mxu0 0.0
        %6281 = vmatprep.subr.mxu0 0.0
        %6282 = vmatpush1.msra.mxu0 0.0
        %6283 = vmatprep.subr.mxu0 0.0
        %6284 = vmatpush1.msra.mxu0 0.0
        %6285 = vmatprep.subr.mxu0 0.0
        %6286 = vmatpush1.msra.mxu0 0.0
        %6287 = vmatprep.subr.mxu0 0.0
        %6288 = vmatpush1.msra.mxu0 0.0
        %6289 = vmatprep.subr.mxu0 0.0
        %6290 = vmatpush1.msra.mxu0 0.0
        %6291 = vmatprep.subr.mxu0 0.0
        %6292 = vmatpush1.msra.mxu0 0.0
        %6293 = vmatprep.subr.mxu0 0.0
        %6294 = vmatpush1.msra.mxu0 0.0
        %6295 = vmatprep.subr.mxu0 0.0
        %6296 = vmatpush1.msra.mxu0 0.0
        %6297 = vmatprep.subr.mxu0 0.0
        %6298 = vmatpush1.msra.mxu0 0.0
        %6299 = vmatprep.subr.mxu0 0.0
        %6300 = vmatpush1.msra.mxu0 0.0
        %6301 = vmatprep.subr.mxu0 0.0
        %6302 = vmatpush1.msra.mxu0 0.0
        %6303 = vmatprep.subr.mxu0 0.0
        %6304 = vmatpush1.msra.mxu0 0.0
        %6305 = vmatprep.subr.mxu0 0.0
        %6306 = vmatpush1.msra.mxu0 0.0
        %6307 = vmatprep.subr.mxu0 0.0
        %6308 = vmatpush1.msra.mxu0 0.0
        %6309 = vmatprep.subr.mxu0 0.0
        %6310 = vmatpush1.msra.mxu0 0.0
        %6311 = vmatprep.subr.mxu0 0.0
        %6312 = vmatpush1.msra.mxu0 0.0
        %6313 = vmatprep.subr.mxu0 0.0
        %6314 = vmatpush1.msra.mxu0 0.0
        %6315 = vmatprep.subr.mxu0 0.0
        %6316 = vmatpush1.msra.mxu0 0.0
        %6317 = vmatprep.subr.mxu0 0.0
        %6318 = vmatpush1.msra.mxu0 0.0
        %6319 = vmatprep.subr.mxu0 0.0
        %6320 = vmatpush1.msra.mxu0 0.0
        %6321 = vmatprep.subr.mxu0 0.0
        %6322 = vmatpush1.msra.mxu0 0.0
        %6323 = vmatprep.mubr.f32.mxu0 0.0
        %6324 = vmatmul.mubr.f32.gmra.mrb[0].mxu0 %v6257
        %v6325 = vpop.f32.mrb[0].mxu0
        %v6326 = vadd.f32 0.0, %v6325
        %v6327 = vpop.f32.mrb[0].mxu0
        %6328 = vdwg.mxu0
        %v6329 = vmax.f32 %v6326, 1e-30
        %v6330 = vrcp.pop %v6329
        %v6331 = vmul.f32 %v6330, 0.015625
        %v6332 = vmax.f32 %v6255, 1e-30
        %v6333 = vlog2.pop %v6332
        %v6334 = vmul.f32 %v6333, 0.6931472
        %6335 = vxpose.xlu0.b32.start [1/16] %v6334, 128
        %6336 = vxpose.xlu0.b32.cont [2/16] 0.0, 128
        %6337 = vxpose.xlu0.b32.cont [3/16] 0.0, 128
        %6338 = vxpose.xlu0.b32.cont [4/16] 0.0, 128
        %6339 = vxpose.xlu0.b32.cont [5/16] 0.0, 128
        %6340 = vxpose.xlu0.b32.cont [6/16] 0.0, 128
        %6341 = vxpose.xlu0.b32.cont [7/16] 0.0, 128
        %6342 = vxpose.xlu0.b32.cont [8/16] 0.0, 128
        %6343 = vxpose.xlu0.b32.cont [9/16] 0.0, 128
        %6344 = vxpose.xlu0.b32.cont [10/16] 0.0, 128
        %6345 = vxpose.xlu0.b32.cont [11/16] 0.0, 128
        %6346 = vxpose.xlu0.b32.cont [12/16] 0.0, 128
        %6347 = vxpose.xlu0.b32.cont [13/16] 0.0, 128
        %6348 = vxpose.xlu0.b32.cont [14/16] 0.0, 128
        %6349 = vxpose.xlu0.b32.cont [15/16] 0.0, 128
        %6350 = vxpose.xlu0.b32.end [16/16] 0.0, 128
        %v6351 = vpop.trf.xlu0
        %v6352 = vpop.trf.xlu0
        %v6353 = vpop.trf.xlu0
        %v6354 = vpop.trf.xlu0
        %v6355 = vpop.trf.xlu0
        %v6356 = vpop.trf.xlu0
        %v6357 = vpop.trf.xlu0
        %v6358 = vpop.trf.xlu0
        %v6359 = vpop.trf.xlu0
        %v6360 = vpop.trf.xlu0
        %v6361 = vpop.trf.xlu0
        %v6362 = vpop.trf.xlu0
        %v6363 = vpop.trf.xlu0
        %v6364 = vpop.trf.xlu0
        %v6365 = vpop.trf.xlu0
        %v6366 = vpop.trf.xlu0
        %v6367 = vadd.f32 %v4703, %v6351
        %v6368 = vadd.f32 %v4704, %v6352
        %v6369 = vadd.f32 %v4705, %v6353
        %v6370 = vadd.f32 %v4706, %v6354
        %v6371 = vadd.f32 %v4707, %v6355
        %v6372 = vadd.f32 %v4708, %v6356
        %v6373 = vadd.f32 %v4709, %v6357
        %v6374 = vadd.f32 %v4710, %v6358
        %v6375 = vmax.f32 %v6331, 1e-30
        %v6376 = vlog2.pop %v6375
        %v6377 = vmul.f32 %v6376, 0.6931472
        %v6378 = vadd.f32 %v4714, %v6377
        %6380 = vset.pattern.permute.xlu0 0
        %6381 = vperm.xlu0 %6380, %v6367
        %v6382 = vpop.permute.xlu0 %6381
        %6385 = vset.pattern.permute.xlu0 0
        %6386 = vperm.xlu0 %6385, %v6368
        %v6387 = vpop.permute.xlu0 %6386
        %6390 = vset.pattern.permute.xlu0 0
        %6391 = vperm.xlu0 %6390, %v6369
        %v6392 = vpop.permute.xlu0 %6391
        %6395 = vset.pattern.permute.xlu0 0
        %6396 = vperm.xlu0 %6395, %v6370
        %v6397 = vpop.permute.xlu0 %6396
        %6400 = vset.pattern.permute.xlu0 0
        %6401 = vperm.xlu0 %6400, %v6371
        %v6402 = vpop.permute.xlu0 %6401
        %6405 = vset.pattern.permute.xlu0 0
        %6406 = vperm.xlu0 %6405, %v6372
        %v6407 = vpop.permute.xlu0 %6406
        %6410 = vset.pattern.permute.xlu0 0
        %6411 = vperm.xlu0 %6410, %v6373
        %v6412 = vpop.permute.xlu0 %6411
        %6415 = vset.pattern.permute.xlu0 0
        %6416 = vperm.xlu0 %6415, %v6374
        %v6417 = vpop.permute.xlu0 %6416
        %v6419 = vlaneseq
        %v6420 = vshrl.u32 %v6419, 7
        %v6421 = vsub.s32 0, %v6420
        %v6422 = vrot.slane %v6378, %v6421
        %v6423 = vadd.f32 %v6382, %v6422
        %v6424 = vadd.f32 %v6387, %v6422
        %v6425 = vadd.f32 %v6392, %v6422
        %v6426 = vadd.f32 %v6397, %v6422
        %v6427 = vadd.f32 %v6402, %v6422
        %v6428 = vadd.f32 %v6407, %v6422
        %v6429 = vadd.f32 %v6412, %v6422
        %v6430 = vadd.f32 %v6417, %v6422
        %v6431 = vsub.f32 %v6423, %v1040
        %v6432 = vsub.f32 %v6424, %v1041
        %v6433 = vsub.f32 %v6425, %v1042
        %v6434 = vsub.f32 %v6426, %v1043
        %v6435 = vsub.f32 %v6427, %v1044
        %v6436 = vsub.f32 %v6428, %v1045
        %v6437 = vsub.f32 %v6429, %v1046
        %v6438 = vsub.f32 %v6430, %v1047
        %v6439 = vmul.f32 %v6431, 1.442695
        %v6440 = vpow.pop %v6439
        %v6441 = vmul.f32 %v6432, 1.442695
        %v6442 = vpow.pop %v6441
        %v6443 = vmul.f32 %v6433, 1.442695
        %v6444 = vpow.pop %v6443
        %v6445 = vmul.f32 %v6434, 1.442695
        %v6446 = vpow.pop %v6445
        %v6447 = vmul.f32 %v6435, 1.442695
        %v6448 = vpow.pop %v6447
        %v6449 = vmul.f32 %v6436, 1.442695
        %v6450 = vpow.pop %v6449
        %v6451 = vmul.f32 %v6437, 1.442695
        %v6452 = vpow.pop %v6451
        %v6453 = vmul.f32 %v6438, 1.442695
        %v6454 = vpow.pop %v6453
        %v6456 = vsel %vm960, %v6440, 0
        %v6459 = vsel %vm960, %v6442, 0
        %v6462 = vsel %vm960, %v6444, 0
        %v6465 = vsel %vm960, %v6446, 0
        %v6468 = vsel %vm960, %v6448, 0
        %v6471 = vsel %vm960, %v6450, 0
        %v6474 = vsel %vm960, %v6452, 0
        %v6477 = vsel %vm960, %v6454, 0
        %6479 = vmatprep.subr.mxu0 0.0
        %6480 = vmatpush1.xpose.msra.mxu0 %v6456
        %6481 = vmatprep.subr.mxu0 0.0
        %6482 = vmatpush1.xpose.msra.mxu0 %v6459
        %6483 = vmatprep.subr.mxu0 0.0
        %6484 = vmatpush1.xpose.msra.mxu0 %v6462
        %6485 = vmatprep.subr.mxu0 0.0
        %6486 = vmatpush1.xpose.msra.mxu0 %v6465
        %6487 = vmatprep.subr.mxu0 0.0
        %6488 = vmatpush1.xpose.msra.mxu0 %v6468
        %6489 = vmatprep.subr.mxu0 0.0
        %6490 = vmatpush1.xpose.msra.mxu0 %v6471
        %6491 = vmatprep.subr.mxu0 0.0
        %6492 = vmatpush1.xpose.msra.mxu0 %v6474
        %6493 = vmatprep.subr.mxu0 0.0
        %6494 = vmatpush1.xpose.msra.mxu0 %v6477
        %6495 = vmatprep.subr.mxu0 0.0
        %6496 = vmatpush1.xpose.msra.mxu0 0.0
        %6497 = vmatprep.subr.mxu0 0.0
        %6498 = vmatpush1.xpose.msra.mxu0 0.0
        %6499 = vmatprep.subr.mxu0 0.0
        %6500 = vmatpush1.xpose.msra.mxu0 0.0
        %6501 = vmatprep.subr.mxu0 0.0
        %6502 = vmatpush1.xpose.msra.mxu0 0.0
        %6503 = vmatprep.subr.mxu0 0.0
        %6504 = vmatpush1.xpose.msra.mxu0 0.0
        %6505 = vmatprep.subr.mxu0 0.0
        %6506 = vmatpush1.xpose.msra.mxu0 0.0
        %6507 = vmatprep.subr.mxu0 0.0
        %6508 = vmatpush1.xpose.msra.mxu0 0.0
        %6509 = vmatprep.subr.mxu0 0.0
        %6510 = vmatpush1.xpose.msra.mxu0 0.0
        %6511 = vmatprep.subr.mxu0 0.0
        %6512 = vmatpush1.xpose.msra.mxu0 0.0
        %6513 = vmatprep.subr.mxu0 0.0
        %6514 = vmatpush1.xpose.msra.mxu0 0.0
        %6515 = vmatprep.subr.mxu0 0.0
        %6516 = vmatpush1.xpose.msra.mxu0 0.0
        %6517 = vmatprep.subr.mxu0 0.0
        %6518 = vmatpush1.xpose.msra.mxu0 0.0
        %6519 = vmatprep.subr.mxu0 0.0
        %6520 = vmatpush1.xpose.msra.mxu0 0.0
        %6521 = vmatprep.subr.mxu0 0.0
        %6522 = vmatpush1.xpose.msra.mxu0 0.0
        %6523 = vmatprep.subr.mxu0 0.0
        %6524 = vmatpush1.xpose.msra.mxu0 0.0
        %6525 = vmatprep.subr.mxu0 0.0
        %6526 = vmatpush1.xpose.msra.mxu0 0.0
        %6527 = vmatprep.subr.mxu0 0.0
        %6528 = vmatpush1.xpose.msra.mxu0 0.0
        %6529 = vmatprep.subr.mxu0 0.0
        %6530 = vmatpush1.xpose.msra.mxu0 0.0
        %6531 = vmatprep.subr.mxu0 0.0
        %6532 = vmatpush1.xpose.msra.mxu0 0.0
        %6533 = vmatprep.subr.mxu0 0.0
        %6534 = vmatpush1.xpose.msra.mxu0 0.0
        %6535 = vmatprep.subr.mxu0 0.0
        %6536 = vmatpush1.xpose.msra.mxu0 0.0
        %6537 = vmatprep.subr.mxu0 0.0
        %6538 = vmatpush1.xpose.msra.mxu0 0.0
        %6539 = vmatprep.subr.mxu0 0.0
        %6540 = vmatpush1.xpose.msra.mxu0 0.0
        %6541 = vmatprep.subr.mxu0 0.0
        %6542 = vmatpush1.xpose.msra.mxu0 0.0
        %6543 = vmatprep.mubr.f32.mxu0 0.0
        %6544 = vmatmul.mubr.f32.gmra.mrb[0].mxu0 %v1461
        %v6545 = vpop.f32.mrb[0].mxu0
        %v6546 = vadd.f32 0.0, %v6545
        %v6547 = vpop.f32.mrb[0].mxu0
        %6548 = vdwg.mxu0
        %v6549 = vmax.f32 %v6546, 1e-30
        %v6550 = vrcp.pop %v6549
        %v6551 = vmul.f32 %v6550, 0.015625
        %v6553 = vsel %vm960, %v6551, 0
        %6555 = vmatprep.subr.mxu0 0.0
        %6556 = vmatpush1.msra.mxu0 %v6440
        %6557 = vmatprep.subr.mxu0 0.0
        %6558 = vmatpush1.msra.mxu0 %v6442
        %6559 = vmatprep.subr.mxu0 0.0
        %6560 = vmatpush1.msra.mxu0 %v6444
        %6561 = vmatprep.subr.mxu0 0.0
        %6562 = vmatpush1.msra.mxu0 %v6446
        %6563 = vmatprep.subr.mxu0 0.0
        %6564 = vmatpush1.msra.mxu0 %v6448
        %6565 = vmatprep.subr.mxu0 0.0
        %6566 = vmatpush1.msra.mxu0 %v6450
        %6567 = vmatprep.subr.mxu0 0.0
        %6568 = vmatpush1.msra.mxu0 %v6452
        %6569 = vmatprep.subr.mxu0 0.0
        %6570 = vmatpush1.msra.mxu0 %v6454
        %6571 = vmatprep.subr.mxu0 0.0
        %6572 = vmatpush1.msra.mxu0 0.0
        %6573 = vmatprep.subr.mxu0 0.0
        %6574 = vmatpush1.msra.mxu0 0.0
        %6575 = vmatprep.subr.mxu0 0.0
        %6576 = vmatpush1.msra.mxu0 0.0
        %6577 = vmatprep.subr.mxu0 0.0
        %6578 = vmatpush1.msra.mxu0 0.0
        %6579 = vmatprep.subr.mxu0 0.0
        %6580 = vmatpush1.msra.mxu0 0.0
        %6581 = vmatprep.subr.mxu0 0.0
        %6582 = vmatpush1.msra.mxu0 0.0
        %6583 = vmatprep.subr.mxu0 0.0
        %6584 = vmatpush1.msra.mxu0 0.0
        %6585 = vmatprep.subr.mxu0 0.0
        %6586 = vmatpush1.msra.mxu0 0.0
        %6587 = vmatprep.subr.mxu0 0.0
        %6588 = vmatpush1.msra.mxu0 0.0
        %6589 = vmatprep.subr.mxu0 0.0
        %6590 = vmatpush1.msra.mxu0 0.0
        %6591 = vmatprep.subr.mxu0 0.0
        %6592 = vmatpush1.msra.mxu0 0.0
        %6593 = vmatprep.subr.mxu0 0.0
        %6594 = vmatpush1.msra.mxu0 0.0
        %6595 = vmatprep.subr.mxu0 0.0
        %6596 = vmatpush1.msra.mxu0 0.0
        %6597 = vmatprep.subr.mxu0 0.0
        %6598 = vmatpush1.msra.mxu0 0.0
        %6599 = vmatprep.subr.mxu0 0.0
        %6600 = vmatpush1.msra.mxu0 0.0
        %6601 = vmatprep.subr.mxu0 0.0
        %6602 = vmatpush1.msra.mxu0 0.0
        %6603 = vmatprep.subr.mxu0 0.0
        %6604 = vmatpush1.msra.mxu0 0.0
        %6605 = vmatprep.subr.mxu0 0.0
        %6606 = vmatpush1.msra.mxu0 0.0
        %6607 = vmatprep.subr.mxu0 0.0
        %6608 = vmatpush1.msra.mxu0 0.0
        %6609 = vmatprep.subr.mxu0 0.0
        %6610 = vmatpush1.msra.mxu0 0.0
        %6611 = vmatprep.subr.mxu0 0.0
        %6612 = vmatpush1.msra.mxu0 0.0
        %6613 = vmatprep.subr.mxu0 0.0
        %6614 = vmatpush1.msra.mxu0 0.0
        %6615 = vmatprep.subr.mxu0 0.0
        %6616 = vmatpush1.msra.mxu0 0.0
        %6617 = vmatprep.subr.mxu0 0.0
        %6618 = vmatpush1.msra.mxu0 0.0
        %6619 = vmatprep.mubr.f32.mxu0 0.0
        %6620 = vmatmul.mubr.f32.gmra.mrb[0].mxu0 %v6553
        %v6621 = vpop.f32.mrb[0].mxu0
        %v6622 = vadd.f32 0.0, %v6621
        %v6623 = vpop.f32.mrb[0].mxu0
        %6624 = vdwg.mxu0
        %v6625 = vmax.f32 %v6622, 1e-30
        %v6626 = vrcp.pop %v6625
        %v6627 = vmul.f32 %v6626, 0.015625
        %v6629 = vsel %vm960, %v6627, 0
        %6631 = vmatprep.subr.mxu0 0.0
        %6632 = vmatpush1.xpose.msra.mxu0 %v6456
        %6633 = vmatprep.subr.mxu0 0.0
        %6634 = vmatpush1.xpose.msra.mxu0 %v6459
        %6635 = vmatprep.subr.mxu0 0.0
        %6636 = vmatpush1.xpose.msra.mxu0 %v6462
        %6637 = vmatprep.subr.mxu0 0.0
        %6638 = vmatpush1.xpose.msra.mxu0 %v6465
        %6639 = vmatprep.subr.mxu0 0.0
        %6640 = vmatpush1.xpose.msra.mxu0 %v6468
        %6641 = vmatprep.subr.mxu0 0.0
        %6642 = vmatpush1.xpose.msra.mxu0 %v6471
        %6643 = vmatprep.subr.mxu0 0.0
        %6644 = vmatpush1.xpose.msra.mxu0 %v6474
        %6645 = vmatprep.subr.mxu0 0.0
        %6646 = vmatpush1.xpose.msra.mxu0 %v6477
        %6647 = vmatprep.subr.mxu0 0.0
        %6648 = vmatpush1.xpose.msra.mxu0 0.0
        %6649 = vmatprep.subr.mxu0 0.0
        %6650 = vmatpush1.xpose.msra.mxu0 0.0
        %6651 = vmatprep.subr.mxu0 0.0
        %6652 = vmatpush1.xpose.msra.mxu0 0.0
        %6653 = vmatprep.subr.mxu0 0.0
        %6654 = vmatpush1.xpose.msra.mxu0 0.0
        %6655 = vmatprep.subr.mxu0 0.0
        %6656 = vmatpush1.xpose.msra.mxu0 0.0
        %6657 = vmatprep.subr.mxu0 0.0
        %6658 = vmatpush1.xpose.msra.mxu0 0.0
        %6659 = vmatprep.subr.mxu0 0.0
        %6660 = vmatpush1.xpose.msra.mxu0 0.0
        %6661 = vmatprep.subr.mxu0 0.0
        %6662 = vmatpush1.xpose.msra.mxu0 0.0
        %6663 = vmatprep.subr.mxu0 0.0
        %6664 = vmatpush1.xpose.msra.mxu0 0.0
        %6665 = vmatprep.subr.mxu0 0.0
        %6666 = vmatpush1.xpose.msra.mxu0 0.0
        %6667 = vmatprep.subr.mxu0 0.0
        %6668 = vmatpush1.xpose.msra.mxu0 0.0
        %6669 = vmatprep.subr.mxu0 0.0
        %6670 = vmatpush1.xpose.msra.mxu0 0.0
        %6671 = vmatprep.subr.mxu0 0.0
        %6672 = vmatpush1.xpose.msra.mxu0 0.0
        %6673 = vmatprep.subr.mxu0 0.0
        %6674 = vmatpush1.xpose.msra.mxu0 0.0
        %6675 = vmatprep.subr.mxu0 0.0
        %6676 = vmatpush1.xpose.msra.mxu0 0.0
        %6677 = vmatprep.subr.mxu0 0.0
        %6678 = vmatpush1.xpose.msra.mxu0 0.0
        %6679 = vmatprep.subr.mxu0 0.0
        %6680 = vmatpush1.xpose.msra.mxu0 0.0
        %6681 = vmatprep.subr.mxu0 0.0
        %6682 = vmatpush1.xpose.msra.mxu0 0.0
        %6683 = vmatprep.subr.mxu0 0.0
        %6684 = vmatpush1.xpose.msra.mxu0 0.0
        %6685 = vmatprep.subr.mxu0 0.0
        %6686 = vmatpush1.xpose.msra.mxu0 0.0
        %6687 = vmatprep.subr.mxu0 0.0
        %6688 = vmatpush1.xpose.msra.mxu0 0.0
        %6689 = vmatprep.subr.mxu0 0.0
        %6690 = vmatpush1.xpose.msra.mxu0 0.0
        %6691 = vmatprep.subr.mxu0 0.0
        %6692 = vmatpush1.xpose.msra.mxu0 0.0
        %6693 = vmatprep.subr.mxu0 0.0
        %6694 = vmatpush1.xpose.msra.mxu0 0.0
        %6695 = vmatprep.mubr.f32.mxu0 0.0
        %6696 = vmatmul.mubr.f32.gmra.mrb[0].mxu0 %v6629
        %v6697 = vpop.f32.mrb[0].mxu0
        %v6698 = vadd.f32 0.0, %v6697
        %v6699 = vpop.f32.mrb[0].mxu0
        %6700 = vdwg.mxu0
        %v6701 = vmax.f32 %v6698, 1e-30
        %v6702 = vrcp.pop %v6701
        %v6703 = vmul.f32 %v6702, 0.015625
        %v6705 = vsel %vm960, %v6703, 0
        %6707 = vmatprep.subr.mxu0 0.0
        %6708 = vmatpush1.msra.mxu0 %v6440
        %6709 = vmatprep.subr.mxu0 0.0
        %6710 = vmatpush1.msra.mxu0 %v6442
        %6711 = vmatprep.subr.mxu0 0.0
        %6712 = vmatpush1.msra.mxu0 %v6444
        %6713 = vmatprep.subr.mxu0 0.0
        %6714 = vmatpush1.msra.mxu0 %v6446
        %6715 = vmatprep.subr.mxu0 0.0
        %6716 = vmatpush1.msra.mxu0 %v6448
        %6717 = vmatprep.subr.mxu0 0.0
        %6718 = vmatpush1.msra.mxu0 %v6450
        %6719 = vmatprep.subr.mxu0 0.0
        %6720 = vmatpush1.msra.mxu0 %v6452
        %6721 = vmatprep.subr.mxu0 0.0
        %6722 = vmatpush1.msra.mxu0 %v6454
        %6723 = vmatprep.subr.mxu0 0.0
        %6724 = vmatpush1.msra.mxu0 0.0
        %6725 = vmatprep.subr.mxu0 0.0
        %6726 = vmatpush1.msra.mxu0 0.0
        %6727 = vmatprep.subr.mxu0 0.0
        %6728 = vmatpush1.msra.mxu0 0.0
        %6729 = vmatprep.subr.mxu0 0.0
        %6730 = vmatpush1.msra.mxu0 0.0
        %6731 = vmatprep.subr.mxu0 0.0
        %6732 = vmatpush1.msra.mxu0 0.0
        %6733 = vmatprep.subr.mxu0 0.0
        %6734 = vmatpush1.msra.mxu0 0.0
        %6735 = vmatprep.subr.mxu0 0.0
        %6736 = vmatpush1.msra.mxu0 0.0
        %6737 = vmatprep.subr.mxu0 0.0
        %6738 = vmatpush1.msra.mxu0 0.0
        %6739 = vmatprep.subr.mxu0 0.0
        %6740 = vmatpush1.msra.mxu0 0.0
        %6741 = vmatprep.subr.mxu0 0.0
        %6742 = vmatpush1.msra.mxu0 0.0
        %6743 = vmatprep.subr.mxu0 0.0
        %6744 = vmatpush1.msra.mxu0 0.0
        %6745 = vmatprep.subr.mxu0 0.0
        %6746 = vmatpush1.msra.mxu0 0.0
        %6747 = vmatprep.subr.mxu0 0.0
        %6748 = vmatpush1.msra.mxu0 0.0
        %6749 = vmatprep.subr.mxu0 0.0
        %6750 = vmatpush1.msra.mxu0 0.0
        %6751 = vmatprep.subr.mxu0 0.0
        %6752 = vmatpush1.msra.mxu0 0.0
        %6753 = vmatprep.subr.mxu0 0.0
        %6754 = vmatpush1.msra.mxu0 0.0
        %6755 = vmatprep.subr.mxu0 0.0
        %6756 = vmatpush1.msra.mxu0 0.0
        %6757 = vmatprep.subr.mxu0 0.0
        %6758 = vmatpush1.msra.mxu0 0.0
        %6759 = vmatprep.subr.mxu0 0.0
        %6760 = vmatpush1.msra.mxu0 0.0
        %6761 = vmatprep.subr.mxu0 0.0
        %6762 = vmatpush1.msra.mxu0 0.0
        %6763 = vmatprep.subr.mxu0 0.0
        %6764 = vmatpush1.msra.mxu0 0.0
        %6765 = vmatprep.subr.mxu0 0.0
        %6766 = vmatpush1.msra.mxu0 0.0
        %6767 = vmatprep.subr.mxu0 0.0
        %6768 = vmatpush1.msra.mxu0 0.0
        %6769 = vmatprep.subr.mxu0 0.0
        %6770 = vmatpush1.msra.mxu0 0.0
        %6771 = vmatprep.mubr.f32.mxu0 0.0
        %6772 = vmatmul.mubr.f32.gmra.mrb[0].mxu0 %v6705
        %v6773 = vpop.f32.mrb[0].mxu0
        %v6774 = vadd.f32 0.0, %v6773
        %v6775 = vpop.f32.mrb[0].mxu0
        %6776 = vdwg.mxu0
        %v6777 = vmax.f32 %v6774, 1e-30
        %v6778 = vrcp.pop %v6777
        %v6779 = vmul.f32 %v6778, 0.015625
        %v6781 = vsel %vm960, %v6779, 0
        %6783 = vmatprep.subr.mxu0 0.0
        %6784 = vmatpush1.xpose.msra.mxu0 %v6456
        %6785 = vmatprep.subr.mxu0 0.0
        %6786 = vmatpush1.xpose.msra.mxu0 %v6459
        %6787 = vmatprep.subr.mxu0 0.0
        %6788 = vmatpush1.xpose.msra.mxu0 %v6462
        %6789 = vmatprep.subr.mxu0 0.0
        %6790 = vmatpush1.xpose.msra.mxu0 %v6465
        %6791 = vmatprep.subr.mxu0 0.0
        %6792 = vmatpush1.xpose.msra.mxu0 %v6468
        %6793 = vmatprep.subr.mxu0 0.0
        %6794 = vmatpush1.xpose.msra.mxu0 %v6471
        %6795 = vmatprep.subr.mxu0 0.0
        %6796 = vmatpush1.xpose.msra.mxu0 %v6474
        %6797 = vmatprep.subr.mxu0 0.0
        %6798 = vmatpush1.xpose.msra.mxu0 %v6477
        %6799 = vmatprep.subr.mxu0 0.0
        %6800 = vmatpush1.xpose.msra.mxu0 0.0
        %6801 = vmatprep.subr.mxu0 0.0
        %6802 = vmatpush1.xpose.msra.mxu0 0.0
        %6803 = vmatprep.subr.mxu0 0.0
        %6804 = vmatpush1.xpose.msra.mxu0 0.0
        %6805 = vmatprep.subr.mxu0 0.0
        %6806 = vmatpush1.xpose.msra.mxu0 0.0
        %6807 = vmatprep.subr.mxu0 0.0
        %6808 = vmatpush1.xpose.msra.mxu0 0.0
        %6809 = vmatprep.subr.mxu0 0.0
        %6810 = vmatpush1.xpose.msra.mxu0 0.0
        %6811 = vmatprep.subr.mxu0 0.0
        %6812 = vmatpush1.xpose.msra.mxu0 0.0
        %6813 = vmatprep.subr.mxu0 0.0
        %6814 = vmatpush1.xpose.msra.mxu0 0.0
        %6815 = vmatprep.subr.mxu0 0.0
        %6816 = vmatpush1.xpose.msra.mxu0 0.0
        %6817 = vmatprep.subr.mxu0 0.0
        %6818 = vmatpush1.xpose.msra.mxu0 0.0
        %6819 = vmatprep.subr.mxu0 0.0
        %6820 = vmatpush1.xpose.msra.mxu0 0.0
        %6821 = vmatprep.subr.mxu0 0.0
        %6822 = vmatpush1.xpose.msra.mxu0 0.0
        %6823 = vmatprep.subr.mxu0 0.0
        %6824 = vmatpush1.xpose.msra.mxu0 0.0
        %6825 = vmatprep.subr.mxu0 0.0
        %6826 = vmatpush1.xpose.msra.mxu0 0.0
        %6827 = vmatprep.subr.mxu0 0.0
        %6828 = vmatpush1.xpose.msra.mxu0 0.0
        %6829 = vmatprep.subr.mxu0 0.0
        %6830 = vmatpush1.xpose.msra.mxu0 0.0
        %6831 = vmatprep.subr.mxu0 0.0
        %6832 = vmatpush1.xpose.msra.mxu0 0.0
        %6833 = vmatprep.subr.mxu0 0.0
        %6834 = vmatpush1.xpose.msra.mxu0 0.0
        %6835 = vmatprep.subr.mxu0 0.0
        %6836 = vmatpush1.xpose.msra.mxu0 0.0
        %6837 = vmatprep.subr.mxu0 0.0
        %6838 = vmatpush1.xpose.msra.mxu0 0.0
        %6839 = vmatprep.subr.mxu0 0.0
        %6840 = vmatpush1.xpose.msra.mxu0 0.0
        %6841 = vmatprep.subr.mxu0 0.0
        %6842 = vmatpush1.xpose.msra.mxu0 0.0
        %6843 = vmatprep.subr.mxu0 0.0
        %6844 = vmatpush1.xpose.msra.mxu0 0.0
        %6845 = vmatprep.subr.mxu0 0.0
        %6846 = vmatpush1.xpose.msra.mxu0 0.0
        %6847 = vmatprep.mubr.f32.mxu0 0.0
        %6848 = vmatmul.mubr.f32.gmra.mrb[0].mxu0 %v6781
        %v6849 = vpop.f32.mrb[0].mxu0
        %v6850 = vadd.f32 0.0, %v6849
        %v6851 = vpop.f32.mrb[0].mxu0
        %6852 = vdwg.mxu0
        %v6853 = vmax.f32 %v6850, 1e-30
        %v6854 = vrcp.pop %v6853
        %v6855 = vmul.f32 %v6854, 0.015625
        %v6857 = vsel %vm960, %v6855, 0
        %6859 = vmatprep.subr.mxu0 0.0
        %6860 = vmatpush1.msra.mxu0 %v6440
        %6861 = vmatprep.subr.mxu0 0.0
        %6862 = vmatpush1.msra.mxu0 %v6442
        %6863 = vmatprep.subr.mxu0 0.0
        %6864 = vmatpush1.msra.mxu0 %v6444
        %6865 = vmatprep.subr.mxu0 0.0
        %6866 = vmatpush1.msra.mxu0 %v6446
        %6867 = vmatprep.subr.mxu0 0.0
        %6868 = vmatpush1.msra.mxu0 %v6448
        %6869 = vmatprep.subr.mxu0 0.0
        %6870 = vmatpush1.msra.mxu0 %v6450
        %6871 = vmatprep.subr.mxu0 0.0
        %6872 = vmatpush1.msra.mxu0 %v6452
        %6873 = vmatprep.subr.mxu0 0.0
        %6874 = vmatpush1.msra.mxu0 %v6454
        %6875 = vmatprep.subr.mxu0 0.0
        %6876 = vmatpush1.msra.mxu0 0.0
        %6877 = vmatprep.subr.mxu0 0.0
        %6878 = vmatpush1.msra.mxu0 0.0
        %6879 = vmatprep.subr.mxu0 0.0
        %6880 = vmatpush1.msra.mxu0 0.0
        %6881 = vmatprep.subr.mxu0 0.0
        %6882 = vmatpush1.msra.mxu0 0.0
        %6883 = vmatprep.subr.mxu0 0.0
        %6884 = vmatpush1.msra.mxu0 0.0
        %6885 = vmatprep.subr.mxu0 0.0
        %6886 = vmatpush1.msra.mxu0 0.0
        %6887 = vmatprep.subr.mxu0 0.0
        %6888 = vmatpush1.msra.mxu0 0.0
        %6889 = vmatprep.subr.mxu0 0.0
        %6890 = vmatpush1.msra.mxu0 0.0
        %6891 = vmatprep.subr.mxu0 0.0
        %6892 = vmatpush1.msra.mxu0 0.0
        %6893 = vmatprep.subr.mxu0 0.0
        %6894 = vmatpush1.msra.mxu0 0.0
        %6895 = vmatprep.subr.mxu0 0.0
        %6896 = vmatpush1.msra.mxu0 0.0
        %6897 = vmatprep.subr.mxu0 0.0
        %6898 = vmatpush1.msra.mxu0 0.0
        %6899 = vmatprep.subr.mxu0 0.0
        %6900 = vmatpush1.msra.mxu0 0.0
        %6901 = vmatprep.subr.mxu0 0.0
        %6902 = vmatpush1.msra.mxu0 0.0
        %6903 = vmatprep.subr.mxu0 0.0
        %6904 = vmatpush1.msra.mxu0 0.0
        %6905 = vmatprep.subr.mxu0 0.0
        %6906 = vmatpush1.msra.mxu0 0.0
        %6907 = vmatprep.subr.mxu0 0.0
        %6908 = vmatpush1.msra.mxu0 0.0
        %6909 = vmatprep.subr.mxu0 0.0
        %6910 = vmatpush1.msra.mxu0 0.0
        %6911 = vmatprep.subr.mxu0 0.0
        %6912 = vmatpush1.msra.mxu0 0.0
        %6913 = vmatprep.subr.mxu0 0.0
        %6914 = vmatpush1.msra.mxu0 0.0
        %6915 = vmatprep.subr.mxu0 0.0
        %6916 = vmatpush1.msra.mxu0 0.0
        %6917 = vmatprep.subr.mxu0 0.0
        %6918 = vmatpush1.msra.mxu0 0.0
        %6919 = vmatprep.subr.mxu0 0.0
        %6920 = vmatpush1.msra.mxu0 0.0
        %6921 = vmatprep.subr.mxu0 0.0
        %6922 = vmatpush1.msra.mxu0 0.0
        %6923 = vmatprep.mubr.f32.mxu0 0.0
        %6924 = vmatmul.mubr.f32.gmra.mrb[0].mxu0 %v6857
        %v6925 = vpop.f32.mrb[0].mxu0
        %v6926 = vadd.f32 0.0, %v6925
        %v6927 = vpop.f32.mrb[0].mxu0
        %6928 = vdwg.mxu0
        %v6929 = vmax.f32 %v6926, 1e-30
        %v6930 = vrcp.pop %v6929
        %v6931 = vmul.f32 %v6930, 0.015625
        %v6933 = vsel %vm960, %v6931, 0
        %6935 = vmatprep.subr.mxu0 0.0
        %6936 = vmatpush1.xpose.msra.mxu0 %v6456
        %6937 = vmatprep.subr.mxu0 0.0
        %6938 = vmatpush1.xpose.msra.mxu0 %v6459
        %6939 = vmatprep.subr.mxu0 0.0
        %6940 = vmatpush1.xpose.msra.mxu0 %v6462
        %6941 = vmatprep.subr.mxu0 0.0
        %6942 = vmatpush1.xpose.msra.mxu0 %v6465
        %6943 = vmatprep.subr.mxu0 0.0
        %6944 = vmatpush1.xpose.msra.mxu0 %v6468
        %6945 = vmatprep.subr.mxu0 0.0
        %6946 = vmatpush1.xpose.msra.mxu0 %v6471
        %6947 = vmatprep.subr.mxu0 0.0
        %6948 = vmatpush1.xpose.msra.mxu0 %v6474
        %6949 = vmatprep.subr.mxu0 0.0
        %6950 = vmatpush1.xpose.msra.mxu0 %v6477
        %6951 = vmatprep.subr.mxu0 0.0
        %6952 = vmatpush1.xpose.msra.mxu0 0.0
        %6953 = vmatprep.subr.mxu0 0.0
        %6954 = vmatpush1.xpose.msra.mxu0 0.0
        %6955 = vmatprep.subr.mxu0 0.0
        %6956 = vmatpush1.xpose.msra.mxu0 0.0
        %6957 = vmatprep.subr.mxu0 0.0
        %6958 = vmatpush1.xpose.msra.mxu0 0.0
        %6959 = vmatprep.subr.mxu0 0.0
        %6960 = vmatpush1.xpose.msra.mxu0 0.0
        %6961 = vmatprep.subr.mxu0 0.0
        %6962 = vmatpush1.xpose.msra.mxu0 0.0
        %6963 = vmatprep.subr.mxu0 0.0
        %6964 = vmatpush1.xpose.msra.mxu0 0.0
        %6965 = vmatprep.subr.mxu0 0.0
        %6966 = vmatpush1.xpose.msra.mxu0 0.0
        %6967 = vmatprep.subr.mxu0 0.0
        %6968 = vmatpush1.xpose.msra.mxu0 0.0
        %6969 = vmatprep.subr.mxu0 0.0
        %6970 = vmatpush1.xpose.msra.mxu0 0.0
        %6971 = vmatprep.subr.mxu0 0.0
        %6972 = vmatpush1.xpose.msra.mxu0 0.0
        %6973 = vmatprep.subr.mxu0 0.0
        %6974 = vmatpush1.xpose.msra.mxu0 0.0
        %6975 = vmatprep.subr.mxu0 0.0
        %6976 = vmatpush1.xpose.msra.mxu0 0.0
        %6977 = vmatprep.subr.mxu0 0.0
        %6978 = vmatpush1.xpose.msra.mxu0 0.0
        %6979 = vmatprep.subr.mxu0 0.0
        %6980 = vmatpush1.xpose.msra.mxu0 0.0
        %6981 = vmatprep.subr.mxu0 0.0
        %6982 = vmatpush1.xpose.msra.mxu0 0.0
        %6983 = vmatprep.subr.mxu0 0.0
        %6984 = vmatpush1.xpose.msra.mxu0 0.0
        %6985 = vmatprep.subr.mxu0 0.0
        %6986 = vmatpush1.xpose.msra.mxu0 0.0
        %6987 = vmatprep.subr.mxu0 0.0
        %6988 = vmatpush1.xpose.msra.mxu0 0.0
        %6989 = vmatprep.subr.mxu0 0.0
        %6990 = vmatpush1.xpose.msra.mxu0 0.0
        %6991 = vmatprep.subr.mxu0 0.0
        %6992 = vmatpush1.xpose.msra.mxu0 0.0
        %6993 = vmatprep.subr.mxu0 0.0
        %6994 = vmatpush1.xpose.msra.mxu0 0.0
        %6995 = vmatprep.subr.mxu0 0.0
        %6996 = vmatpush1.xpose.msra.mxu0 0.0
        %6997 = vmatprep.subr.mxu0 0.0
        %6998 = vmatpush1.xpose.msra.mxu0 0.0
        %6999 = vmatprep.mubr.f32.mxu0 0.0
        %7000 = vmatmul.mubr.f32.gmra.mrb[0].mxu0 %v6933
        %v7001 = vpop.f32.mrb[0].mxu0
        %v7002 = vadd.f32 0.0, %v7001
        %v7003 = vpop.f32.mrb[0].mxu0
        %7004 = vdwg.mxu0
        %v7005 = vmax.f32 %v7002, 1e-30
        %v7006 = vrcp.pop %v7005
        %v7007 = vmul.f32 %v7006, 0.015625
        %v7009 = vsel %vm960, %v7007, 0
        %7011 = vmatprep.subr.mxu0 0.0
        %7012 = vmatpush1.msra.mxu0 %v6440
        %7013 = vmatprep.subr.mxu0 0.0
        %7014 = vmatpush1.msra.mxu0 %v6442
        %7015 = vmatprep.subr.mxu0 0.0
        %7016 = vmatpush1.msra.mxu0 %v6444
        %7017 = vmatprep.subr.mxu0 0.0
        %7018 = vmatpush1.msra.mxu0 %v6446
        %7019 = vmatprep.subr.mxu0 0.0
        %7020 = vmatpush1.msra.mxu0 %v6448
        %7021 = vmatprep.subr.mxu0 0.0
        %7022 = vmatpush1.msra.mxu0 %v6450
        %7023 = vmatprep.subr.mxu0 0.0
        %7024 = vmatpush1.msra.mxu0 %v6452
        %7025 = vmatprep.subr.mxu0 0.0
        %7026 = vmatpush1.msra.mxu0 %v6454
        %7027 = vmatprep.subr.mxu0 0.0
        %7028 = vmatpush1.msra.mxu0 0.0
        %7029 = vmatprep.subr.mxu0 0.0
        %7030 = vmatpush1.msra.mxu0 0.0
        %7031 = vmatprep.subr.mxu0 0.0
        %7032 = vmatpush1.msra.mxu0 0.0
        %7033 = vmatprep.subr.mxu0 0.0
        %7034 = vmatpush1.msra.mxu0 0.0
        %7035 = vmatprep.subr.mxu0 0.0
        %7036 = vmatpush1.msra.mxu0 0.0
        %7037 = vmatprep.subr.mxu0 0.0
        %7038 = vmatpush1.msra.mxu0 0.0
        %7039 = vmatprep.subr.mxu0 0.0
        %7040 = vmatpush1.msra.mxu0 0.0
        %7041 = vmatprep.subr.mxu0 0.0
        %7042 = vmatpush1.msra.mxu0 0.0
        %7043 = vmatprep.subr.mxu0 0.0
        %7044 = vmatpush1.msra.mxu0 0.0
        %7045 = vmatprep.subr.mxu0 0.0
        %7046 = vmatpush1.msra.mxu0 0.0
        %7047 = vmatprep.subr.mxu0 0.0
        %7048 = vmatpush1.msra.mxu0 0.0
        %7049 = vmatprep.subr.mxu0 0.0
        %7050 = vmatpush1.msra.mxu0 0.0
        %7051 = vmatprep.subr.mxu0 0.0
        %7052 = vmatpush1.msra.mxu0 0.0
        %7053 = vmatprep.subr.mxu0 0.0
        %7054 = vmatpush1.msra.mxu0 0.0
        %7055 = vmatprep.subr.mxu0 0.0
        %7056 = vmatpush1.msra.mxu0 0.0
        %7057 = vmatprep.subr.mxu0 0.0
        %7058 = vmatpush1.msra.mxu0 0.0
        %7059 = vmatprep.subr.mxu0 0.0
        %7060 = vmatpush1.msra.mxu0 0.0
        %7061 = vmatprep.subr.mxu0 0.0
        %7062 = vmatpush1.msra.mxu0 0.0
        %7063 = vmatprep.subr.mxu0 0.0
        %7064 = vmatpush1.msra.mxu0 0.0
        %7065 = vmatprep.subr.mxu0 0.0
        %7066 = vmatpush1.msra.mxu0 0.0
        %7067 = vmatprep.subr.mxu0 0.0
        %7068 = vmatpush1.msra.mxu0 0.0
        %7069 = vmatprep.subr.mxu0 0.0
        %7070 = vmatpush1.msra.mxu0 0.0
        %7071 = vmatprep.subr.mxu0 0.0
        %7072 = vmatpush1.msra.mxu0 0.0
        %7073 = vmatprep.subr.mxu0 0.0
        %7074 = vmatpush1.msra.mxu0 0.0
        %7075 = vmatprep.mubr.f32.mxu0 0.0
        %7076 = vmatmul.mubr.f32.gmra.mrb[0].mxu0 %v7009
        %v7077 = vpop.f32.mrb[0].mxu0
        %v7078 = vadd.f32 0.0, %v7077
        %v7079 = vpop.f32.mrb[0].mxu0
        %7080 = vdwg.mxu0
        %v7081 = vmax.f32 %v7078, 1e-30
        %v7082 = vrcp.pop %v7081
        %v7083 = vmul.f32 %v7082, 0.015625
        %v7085 = vsel %vm960, %v7083, 0
        %7087 = vmatprep.subr.mxu0 0.0
        %7088 = vmatpush1.xpose.msra.mxu0 %v6456
        %7089 = vmatprep.subr.mxu0 0.0
        %7090 = vmatpush1.xpose.msra.mxu0 %v6459
        %7091 = vmatprep.subr.mxu0 0.0
        %7092 = vmatpush1.xpose.msra.mxu0 %v6462
        %7093 = vmatprep.subr.mxu0 0.0
        %7094 = vmatpush1.xpose.msra.mxu0 %v6465
        %7095 = vmatprep.subr.mxu0 0.0
        %7096 = vmatpush1.xpose.msra.mxu0 %v6468
        %7097 = vmatprep.subr.mxu0 0.0
        %7098 = vmatpush1.xpose.msra.mxu0 %v6471
        %7099 = vmatprep.subr.mxu0 0.0
        %7100 = vmatpush1.xpose.msra.mxu0 %v6474
        %7101 = vmatprep.subr.mxu0 0.0
        %7102 = vmatpush1.xpose.msra.mxu0 %v6477
        %7103 = vmatprep.subr.mxu0 0.0
        %7104 = vmatpush1.xpose.msra.mxu0 0.0
        %7105 = vmatprep.subr.mxu0 0.0
        %7106 = vmatpush1.xpose.msra.mxu0 0.0
        %7107 = vmatprep.subr.mxu0 0.0
        %7108 = vmatpush1.xpose.msra.mxu0 0.0
        %7109 = vmatprep.subr.mxu0 0.0
        %7110 = vmatpush1.xpose.msra.mxu0 0.0
        %7111 = vmatprep.subr.mxu0 0.0
        %7112 = vmatpush1.xpose.msra.mxu0 0.0
        %7113 = vmatprep.subr.mxu0 0.0
        %7114 = vmatpush1.xpose.msra.mxu0 0.0
        %7115 = vmatprep.subr.mxu0 0.0
        %7116 = vmatpush1.xpose.msra.mxu0 0.0
        %7117 = vmatprep.subr.mxu0 0.0
        %7118 = vmatpush1.xpose.msra.mxu0 0.0
        %7119 = vmatprep.subr.mxu0 0.0
        %7120 = vmatpush1.xpose.msra.mxu0 0.0
        %7121 = vmatprep.subr.mxu0 0.0
        %7122 = vmatpush1.xpose.msra.mxu0 0.0
        %7123 = vmatprep.subr.mxu0 0.0
        %7124 = vmatpush1.xpose.msra.mxu0 0.0
        %7125 = vmatprep.subr.mxu0 0.0
        %7126 = vmatpush1.xpose.msra.mxu0 0.0
        %7127 = vmatprep.subr.mxu0 0.0
        %7128 = vmatpush1.xpose.msra.mxu0 0.0
        %7129 = vmatprep.subr.mxu0 0.0
        %7130 = vmatpush1.xpose.msra.mxu0 0.0
        %7131 = vmatprep.subr.mxu0 0.0
        %7132 = vmatpush1.xpose.msra.mxu0 0.0
        %7133 = vmatprep.subr.mxu0 0.0
        %7134 = vmatpush1.xpose.msra.mxu0 0.0
        %7135 = vmatprep.subr.mxu0 0.0
        %7136 = vmatpush1.xpose.msra.mxu0 0.0
        %7137 = vmatprep.subr.mxu0 0.0
        %7138 = vmatpush1.xpose.msra.mxu0 0.0
        %7139 = vmatprep.subr.mxu0 0.0
        %7140 = vmatpush1.xpose.msra.mxu0 0.0
        %7141 = vmatprep.subr.mxu0 0.0
        %7142 = vmatpush1.xpose.msra.mxu0 0.0
        %7143 = vmatprep.subr.mxu0 0.0
        %7144 = vmatpush1.xpose.msra.mxu0 0.0
        %7145 = vmatprep.subr.mxu0 0.0
        %7146 = vmatpush1.xpose.msra.mxu0 0.0
        %7147 = vmatprep.subr.mxu0 0.0
        %7148 = vmatpush1.xpose.msra.mxu0 0.0
        %7149 = vmatprep.subr.mxu0 0.0
        %7150 = vmatpush1.xpose.msra.mxu0 0.0
        %7151 = vmatprep.mubr.f32.mxu0 0.0
        %7152 = vmatmul.mubr.f32.gmra.mrb[0].mxu0 %v7085
        %v7153 = vpop.f32.mrb[0].mxu0
        %v7154 = vadd.f32 0.0, %v7153
        %v7155 = vpop.f32.mrb[0].mxu0
        %7156 = vdwg.mxu0
        %v7157 = vmax.f32 %v7154, 1e-30
        %v7158 = vrcp.pop %v7157
        %v7159 = vmul.f32 %v7158, 0.015625
        %v7161 = vsel %vm960, %v7159, 0
        %7163 = vmatprep.subr.mxu0 0.0
        %7164 = vmatpush1.msra.mxu0 %v6440
        %7165 = vmatprep.subr.mxu0 0.0
        %7166 = vmatpush1.msra.mxu0 %v6442
        %7167 = vmatprep.subr.mxu0 0.0
        %7168 = vmatpush1.msra.mxu0 %v6444
        %7169 = vmatprep.subr.mxu0 0.0
        %7170 = vmatpush1.msra.mxu0 %v6446
        %7171 = vmatprep.subr.mxu0 0.0
        %7172 = vmatpush1.msra.mxu0 %v6448
        %7173 = vmatprep.subr.mxu0 0.0
        %7174 = vmatpush1.msra.mxu0 %v6450
        %7175 = vmatprep.subr.mxu0 0.0
        %7176 = vmatpush1.msra.mxu0 %v6452
        %7177 = vmatprep.subr.mxu0 0.0
        %7178 = vmatpush1.msra.mxu0 %v6454
        %7179 = vmatprep.subr.mxu0 0.0
        %7180 = vmatpush1.msra.mxu0 0.0
        %7181 = vmatprep.subr.mxu0 0.0
        %7182 = vmatpush1.msra.mxu0 0.0
        %7183 = vmatprep.subr.mxu0 0.0
        %7184 = vmatpush1.msra.mxu0 0.0
        %7185 = vmatprep.subr.mxu0 0.0
        %7186 = vmatpush1.msra.mxu0 0.0
        %7187 = vmatprep.subr.mxu0 0.0
        %7188 = vmatpush1.msra.mxu0 0.0
        %7189 = vmatprep.subr.mxu0 0.0
        %7190 = vmatpush1.msra.mxu0 0.0
        %7191 = vmatprep.subr.mxu0 0.0
        %7192 = vmatpush1.msra.mxu0 0.0
        %7193 = vmatprep.subr.mxu0 0.0
        %7194 = vmatpush1.msra.mxu0 0.0
        %7195 = vmatprep.subr.mxu0 0.0
        %7196 = vmatpush1.msra.mxu0 0.0
        %7197 = vmatprep.subr.mxu0 0.0
        %7198 = vmatpush1.msra.mxu0 0.0
        %7199 = vmatprep.subr.mxu0 0.0
        %7200 = vmatpush1.msra.mxu0 0.0
        %7201 = vmatprep.subr.mxu0 0.0
        %7202 = vmatpush1.msra.mxu0 0.0
        %7203 = vmatprep.subr.mxu0 0.0
        %7204 = vmatpush1.msra.mxu0 0.0
        %7205 = vmatprep.subr.mxu0 0.0
        %7206 = vmatpush1.msra.mxu0 0.0
        %7207 = vmatprep.subr.mxu0 0.0
        %7208 = vmatpush1.msra.mxu0 0.0
        %7209 = vmatprep.subr.mxu0 0.0
        %7210 = vmatpush1.msra.mxu0 0.0
        %7211 = vmatprep.subr.mxu0 0.0
        %7212 = vmatpush1.msra.mxu0 0.0
        %7213 = vmatprep.subr.mxu0 0.0
        %7214 = vmatpush1.msra.mxu0 0.0
        %7215 = vmatprep.subr.mxu0 0.0
        %7216 = vmatpush1.msra.mxu0 0.0
        %7217 = vmatprep.subr.mxu0 0.0
        %7218 = vmatpush1.msra.mxu0 0.0
        %7219 = vmatprep.subr.mxu0 0.0
        %7220 = vmatpush1.msra.mxu0 0.0
        %7221 = vmatprep.subr.mxu0 0.0
        %7222 = vmatpush1.msra.mxu0 0.0
        %7223 = vmatprep.subr.mxu0 0.0
        %7224 = vmatpush1.msra.mxu0 0.0
        %7225 = vmatprep.subr.mxu0 0.0
        %7226 = vmatpush1.msra.mxu0 0.0
        %7227 = vmatprep.mubr.f32.mxu0 0.0
        %7228 = vmatmul.mubr.f32.gmra.mrb[0].mxu0 %v7161
        %v7229 = vpop.f32.mrb[0].mxu0
        %v7230 = vadd.f32 0.0, %v7229
        %v7231 = vpop.f32.mrb[0].mxu0
        %7232 = vdwg.mxu0
        %v7233 = vmax.f32 %v7230, 1e-30
        %v7234 = vrcp.pop %v7233
        %v7235 = vmul.f32 %v7234, 0.015625
        %v7237 = vsel %vm960, %v7235, 0
        %7239 = vmatprep.subr.mxu0 0.0
        %7240 = vmatpush1.xpose.msra.mxu0 %v6456
        %7241 = vmatprep.subr.mxu0 0.0
        %7242 = vmatpush1.xpose.msra.mxu0 %v6459
        %7243 = vmatprep.subr.mxu0 0.0
        %7244 = vmatpush1.xpose.msra.mxu0 %v6462
        %7245 = vmatprep.subr.mxu0 0.0
        %7246 = vmatpush1.xpose.msra.mxu0 %v6465
        %7247 = vmatprep.subr.mxu0 0.0
        %7248 = vmatpush1.xpose.msra.mxu0 %v6468
        %7249 = vmatprep.subr.mxu0 0.0
        %7250 = vmatpush1.xpose.msra.mxu0 %v6471
        %7251 = vmatprep.subr.mxu0 0.0
        %7252 = vmatpush1.xpose.msra.mxu0 %v6474
        %7253 = vmatprep.subr.mxu0 0.0
        %7254 = vmatpush1.xpose.msra.mxu0 %v6477
        %7255 = vmatprep.subr.mxu0 0.0
        %7256 = vmatpush1.xpose.msra.mxu0 0.0
        %7257 = vmatprep.subr.mxu0 0.0
        %7258 = vmatpush1.xpose.msra.mxu0 0.0
        %7259 = vmatprep.subr.mxu0 0.0
        %7260 = vmatpush1.xpose.msra.mxu0 0.0
        %7261 = vmatprep.subr.mxu0 0.0
        %7262 = vmatpush1.xpose.msra.mxu0 0.0
        %7263 = vmatprep.subr.mxu0 0.0
        %7264 = vmatpush1.xpose.msra.mxu0 0.0
        %7265 = vmatprep.subr.mxu0 0.0
        %7266 = vmatpush1.xpose.msra.mxu0 0.0
        %7267 = vmatprep.subr.mxu0 0.0
        %7268 = vmatpush1.xpose.msra.mxu0 0.0
        %7269 = vmatprep.subr.mxu0 0.0
        %7270 = vmatpush1.xpose.msra.mxu0 0.0
        %7271 = vmatprep.subr.mxu0 0.0
        %7272 = vmatpush1.xpose.msra.mxu0 0.0
        %7273 = vmatprep.subr.mxu0 0.0
        %7274 = vmatpush1.xpose.msra.mxu0 0.0
        %7275 = vmatprep.subr.mxu0 0.0
        %7276 = vmatpush1.xpose.msra.mxu0 0.0
        %7277 = vmatprep.subr.mxu0 0.0
        %7278 = vmatpush1.xpose.msra.mxu0 0.0
        %7279 = vmatprep.subr.mxu0 0.0
        %7280 = vmatpush1.xpose.msra.mxu0 0.0
        %7281 = vmatprep.subr.mxu0 0.0
        %7282 = vmatpush1.xpose.msra.mxu0 0.0
        %7283 = vmatprep.subr.mxu0 0.0
        %7284 = vmatpush1.xpose.msra.mxu0 0.0
        %7285 = vmatprep.subr.mxu0 0.0
        %7286 = vmatpush1.xpose.msra.mxu0 0.0
        %7287 = vmatprep.subr.mxu0 0.0
        %7288 = vmatpush1.xpose.msra.mxu0 0.0
        %7289 = vmatprep.subr.mxu0 0.0
        %7290 = vmatpush1.xpose.msra.mxu0 0.0
        %7291 = vmatprep.subr.mxu0 0.0
        %7292 = vmatpush1.xpose.msra.mxu0 0.0
        %7293 = vmatprep.subr.mxu0 0.0
        %7294 = vmatpush1.xpose.msra.mxu0 0.0
        %7295 = vmatprep.subr.mxu0 0.0
        %7296 = vmatpush1.xpose.msra.mxu0 0.0
        %7297 = vmatprep.subr.mxu0 0.0
        %7298 = vmatpush1.xpose.msra.mxu0 0.0
        %7299 = vmatprep.subr.mxu0 0.0
        %7300 = vmatpush1.xpose.msra.mxu0 0.0
        %7301 = vmatprep.subr.mxu0 0.0
        %7302 = vmatpush1.xpose.msra.mxu0 0.0
        %7303 = vmatprep.mubr.f32.mxu0 0.0
        %7304 = vmatmul.mubr.f32.gmra.mrb[0].mxu0 %v7237
        %v7305 = vpop.f32.mrb[0].mxu0
        %v7306 = vadd.f32 0.0, %v7305
        %v7307 = vpop.f32.mrb[0].mxu0
        %7308 = vdwg.mxu0
        %v7309 = vmax.f32 %v7306, 1e-30
        %v7310 = vrcp.pop %v7309
        %v7311 = vmul.f32 %v7310, 0.015625
        %v7313 = vsel %vm960, %v7311, 0
        %7315 = vmatprep.subr.mxu0 0.0
        %7316 = vmatpush1.msra.mxu0 %v6440
        %7317 = vmatprep.subr.mxu0 0.0
        %7318 = vmatpush1.msra.mxu0 %v6442
        %7319 = vmatprep.subr.mxu0 0.0
        %7320 = vmatpush1.msra.mxu0 %v6444
        %7321 = vmatprep.subr.mxu0 0.0
        %7322 = vmatpush1.msra.mxu0 %v6446
        %7323 = vmatprep.subr.mxu0 0.0
        %7324 = vmatpush1.msra.mxu0 %v6448
        %7325 = vmatprep.subr.mxu0 0.0
        %7326 = vmatpush1.msra.mxu0 %v6450
        %7327 = vmatprep.subr.mxu0 0.0
        %7328 = vmatpush1.msra.mxu0 %v6452
        %7329 = vmatprep.subr.mxu0 0.0
        %7330 = vmatpush1.msra.mxu0 %v6454
        %7331 = vmatprep.subr.mxu0 0.0
        %7332 = vmatpush1.msra.mxu0 0.0
        %7333 = vmatprep.subr.mxu0 0.0
        %7334 = vmatpush1.msra.mxu0 0.0
        %7335 = vmatprep.subr.mxu0 0.0
        %7336 = vmatpush1.msra.mxu0 0.0
        %7337 = vmatprep.subr.mxu0 0.0
        %7338 = vmatpush1.msra.mxu0 0.0
        %7339 = vmatprep.subr.mxu0 0.0
        %7340 = vmatpush1.msra.mxu0 0.0
        %7341 = vmatprep.subr.mxu0 0.0
        %7342 = vmatpush1.msra.mxu0 0.0
        %7343 = vmatprep.subr.mxu0 0.0
        %7344 = vmatpush1.msra.mxu0 0.0
        %7345 = vmatprep.subr.mxu0 0.0
        %7346 = vmatpush1.msra.mxu0 0.0
        %7347 = vmatprep.subr.mxu0 0.0
        %7348 = vmatpush1.msra.mxu0 0.0
        %7349 = vmatprep.subr.mxu0 0.0
        %7350 = vmatpush1.msra.mxu0 0.0
        %7351 = vmatprep.subr.mxu0 0.0
        %7352 = vmatpush1.msra.mxu0 0.0
        %7353 = vmatprep.subr.mxu0 0.0
        %7354 = vmatpush1.msra.mxu0 0.0
        %7355 = vmatprep.subr.mxu0 0.0
        %7356 = vmatpush1.msra.mxu0 0.0
        %7357 = vmatprep.subr.mxu0 0.0
        %7358 = vmatpush1.msra.mxu0 0.0
        %7359 = vmatprep.subr.mxu0 0.0
        %7360 = vmatpush1.msra.mxu0 0.0
        %7361 = vmatprep.subr.mxu0 0.0
        %7362 = vmatpush1.msra.mxu0 0.0
        %7363 = vmatprep.subr.mxu0 0.0
        %7364 = vmatpush1.msra.mxu0 0.0
        %7365 = vmatprep.subr.mxu0 0.0
        %7366 = vmatpush1.msra.mxu0 0.0
        %7367 = vmatprep.subr.mxu0 0.0
        %7368 = vmatpush1.msra.mxu0 0.0
        %7369 = vmatprep.subr.mxu0 0.0
        %7370 = vmatpush1.msra.mxu0 0.0
        %7371 = vmatprep.subr.mxu0 0.0
        %7372 = vmatpush1.msra.mxu0 0.0
        %7373 = vmatprep.subr.mxu0 0.0
        %7374 = vmatpush1.msra.mxu0 0.0
        %7375 = vmatprep.subr.mxu0 0.0
        %7376 = vmatpush1.msra.mxu0 0.0
        %7377 = vmatprep.subr.mxu0 0.0
        %7378 = vmatpush1.msra.mxu0 0.0
        %7379 = vmatprep.mubr.f32.mxu0 0.0
        %7380 = vmatmul.mubr.f32.gmra.mrb[0].mxu0 %v7313
        %v7381 = vpop.f32.mrb[0].mxu0
        %v7382 = vadd.f32 0.0, %v7381
        %v7383 = vpop.f32.mrb[0].mxu0
        %7384 = vdwg.mxu0
        %v7385 = vmax.f32 %v7382, 1e-30
        %v7386 = vrcp.pop %v7385
        %v7387 = vmul.f32 %v7386, 0.015625
        %v7389 = vsel %vm960, %v7387, 0
        %7391 = vmatprep.subr.mxu0 0.0
        %7392 = vmatpush1.xpose.msra.mxu0 %v6456
        %7393 = vmatprep.subr.mxu0 0.0
        %7394 = vmatpush1.xpose.msra.mxu0 %v6459
        %7395 = vmatprep.subr.mxu0 0.0
        %7396 = vmatpush1.xpose.msra.mxu0 %v6462
        %7397 = vmatprep.subr.mxu0 0.0
        %7398 = vmatpush1.xpose.msra.mxu0 %v6465
        %7399 = vmatprep.subr.mxu0 0.0
        %7400 = vmatpush1.xpose.msra.mxu0 %v6468
        %7401 = vmatprep.subr.mxu0 0.0
        %7402 = vmatpush1.xpose.msra.mxu0 %v6471
        %7403 = vmatprep.subr.mxu0 0.0
        %7404 = vmatpush1.xpose.msra.mxu0 %v6474
        %7405 = vmatprep.subr.mxu0 0.0
        %7406 = vmatpush1.xpose.msra.mxu0 %v6477
        %7407 = vmatprep.subr.mxu0 0.0
        %7408 = vmatpush1.xpose.msra.mxu0 0.0
        %7409 = vmatprep.subr.mxu0 0.0
        %7410 = vmatpush1.xpose.msra.mxu0 0.0
        %7411 = vmatprep.subr.mxu0 0.0
        %7412 = vmatpush1.xpose.msra.mxu0 0.0
        %7413 = vmatprep.subr.mxu0 0.0
        %7414 = vmatpush1.xpose.msra.mxu0 0.0
        %7415 = vmatprep.subr.mxu0 0.0
        %7416 = vmatpush1.xpose.msra.mxu0 0.0
        %7417 = vmatprep.subr.mxu0 0.0
        %7418 = vmatpush1.xpose.msra.mxu0 0.0
        %7419 = vmatprep.subr.mxu0 0.0
        %7420 = vmatpush1.xpose.msra.mxu0 0.0
        %7421 = vmatprep.subr.mxu0 0.0
        %7422 = vmatpush1.xpose.msra.mxu0 0.0
        %7423 = vmatprep.subr.mxu0 0.0
        %7424 = vmatpush1.xpose.msra.mxu0 0.0
        %7425 = vmatprep.subr.mxu0 0.0
        %7426 = vmatpush1.xpose.msra.mxu0 0.0
        %7427 = vmatprep.subr.mxu0 0.0
        %7428 = vmatpush1.xpose.msra.mxu0 0.0
        %7429 = vmatprep.subr.mxu0 0.0
        %7430 = vmatpush1.xpose.msra.mxu0 0.0
        %7431 = vmatprep.subr.mxu0 0.0
        %7432 = vmatpush1.xpose.msra.mxu0 0.0
        %7433 = vmatprep.subr.mxu0 0.0
        %7434 = vmatpush1.xpose.msra.mxu0 0.0
        %7435 = vmatprep.subr.mxu0 0.0
        %7436 = vmatpush1.xpose.msra.mxu0 0.0
        %7437 = vmatprep.subr.mxu0 0.0
        %7438 = vmatpush1.xpose.msra.mxu0 0.0
        %7439 = vmatprep.subr.mxu0 0.0
        %7440 = vmatpush1.xpose.msra.mxu0 0.0
        %7441 = vmatprep.subr.mxu0 0.0
        %7442 = vmatpush1.xpose.msra.mxu0 0.0
        %7443 = vmatprep.subr.mxu0 0.0
        %7444 = vmatpush1.xpose.msra.mxu0 0.0
        %7445 = vmatprep.subr.mxu0 0.0
        %7446 = vmatpush1.xpose.msra.mxu0 0.0
        %7447 = vmatprep.subr.mxu0 0.0
        %7448 = vmatpush1.xpose.msra.mxu0 0.0
        %7449 = vmatprep.subr.mxu0 0.0
        %7450 = vmatpush1.xpose.msra.mxu0 0.0
        %7451 = vmatprep.subr.mxu0 0.0
        %7452 = vmatpush1.xpose.msra.mxu0 0.0
        %7453 = vmatprep.subr.mxu0 0.0
        %7454 = vmatpush1.xpose.msra.mxu0 0.0
        %7455 = vmatprep.mubr.f32.mxu0 0.0
        %7456 = vmatmul.mubr.f32.gmra.mrb[0].mxu0 %v7389
        %v7457 = vpop.f32.mrb[0].mxu0
        %v7458 = vadd.f32 0.0, %v7457
        %v7459 = vpop.f32.mrb[0].mxu0
        %7460 = vdwg.mxu0
        %v7461 = vmax.f32 %v7458, 1e-30
        %v7462 = vrcp.pop %v7461
        %v7463 = vmul.f32 %v7462, 0.015625
        %v7465 = vsel %vm960, %v7463, 0
        %7467 = vmatprep.subr.mxu0 0.0
        %7468 = vmatpush1.msra.mxu0 %v6440
        %7469 = vmatprep.subr.mxu0 0.0
        %7470 = vmatpush1.msra.mxu0 %v6442
        %7471 = vmatprep.subr.mxu0 0.0
        %7472 = vmatpush1.msra.mxu0 %v6444
        %7473 = vmatprep.subr.mxu0 0.0
        %7474 = vmatpush1.msra.mxu0 %v6446
        %7475 = vmatprep.subr.mxu0 0.0
        %7476 = vmatpush1.msra.mxu0 %v6448
        %7477 = vmatprep.subr.mxu0 0.0
        %7478 = vmatpush1.msra.mxu0 %v6450
        %7479 = vmatprep.subr.mxu0 0.0
        %7480 = vmatpush1.msra.mxu0 %v6452
        %7481 = vmatprep.subr.mxu0 0.0
        %7482 = vmatpush1.msra.mxu0 %v6454
        %7483 = vmatprep.subr.mxu0 0.0
        %7484 = vmatpush1.msra.mxu0 0.0
        %7485 = vmatprep.subr.mxu0 0.0
        %7486 = vmatpush1.msra.mxu0 0.0
        %7487 = vmatprep.subr.mxu0 0.0
        %7488 = vmatpush1.msra.mxu0 0.0
        %7489 = vmatprep.subr.mxu0 0.0
        %7490 = vmatpush1.msra.mxu0 0.0
        %7491 = vmatprep.subr.mxu0 0.0
        %7492 = vmatpush1.msra.mxu0 0.0
        %7493 = vmatprep.subr.mxu0 0.0
        %7494 = vmatpush1.msra.mxu0 0.0
        %7495 = vmatprep.subr.mxu0 0.0
        %7496 = vmatpush1.msra.mxu0 0.0
        %7497 = vmatprep.subr.mxu0 0.0
        %7498 = vmatpush1.msra.mxu0 0.0
        %7499 = vmatprep.subr.mxu0 0.0
        %7500 = vmatpush1.msra.mxu0 0.0
        %7501 = vmatprep.subr.mxu0 0.0
        %7502 = vmatpush1.msra.mxu0 0.0
        %7503 = vmatprep.subr.mxu0 0.0
        %7504 = vmatpush1.msra.mxu0 0.0
        %7505 = vmatprep.subr.mxu0 0.0
        %7506 = vmatpush1.msra.mxu0 0.0
        %7507 = vmatprep.subr.mxu0 0.0
        %7508 = vmatpush1.msra.mxu0 0.0
        %7509 = vmatprep.subr.mxu0 0.0
        %7510 = vmatpush1.msra.mxu0 0.0
        %7511 = vmatprep.subr.mxu0 0.0
        %7512 = vmatpush1.msra.mxu0 0.0
        %7513 = vmatprep.subr.mxu0 0.0
        %7514 = vmatpush1.msra.mxu0 0.0
        %7515 = vmatprep.subr.mxu0 0.0
        %7516 = vmatpush1.msra.mxu0 0.0
        %7517 = vmatprep.subr.mxu0 0.0
        %7518 = vmatpush1.msra.mxu0 0.0
        %7519 = vmatprep.subr.mxu0 0.0
        %7520 = vmatpush1.msra.mxu0 0.0
        %7521 = vmatprep.subr.mxu0 0.0
        %7522 = vmatpush1.msra.mxu0 0.0
        %7523 = vmatprep.subr.mxu0 0.0
        %7524 = vmatpush1.msra.mxu0 0.0
        %7525 = vmatprep.subr.mxu0 0.0
        %7526 = vmatpush1.msra.mxu0 0.0
        %7527 = vmatprep.subr.mxu0 0.0
        %7528 = vmatpush1.msra.mxu0 0.0
        %7529 = vmatprep.subr.mxu0 0.0
        %7530 = vmatpush1.msra.mxu0 0.0
        %7531 = vmatprep.mubr.f32.mxu0 0.0
        %7532 = vmatmul.mubr.f32.gmra.mrb[0].mxu0 %v7465
        %v7533 = vpop.f32.mrb[0].mxu0
        %v7534 = vadd.f32 0.0, %v7533
        %v7535 = vpop.f32.mrb[0].mxu0
        %7536 = vdwg.mxu0
        %v7537 = vmax.f32 %v7534, 1e-30
        %v7538 = vrcp.pop %v7537
        %v7539 = vmul.f32 %v7538, 0.015625
        %v7541 = vsel %vm960, %v7539, 0
        %7543 = vmatprep.subr.mxu0 0.0
        %7544 = vmatpush1.xpose.msra.mxu0 %v6456
        %7545 = vmatprep.subr.mxu0 0.0
        %7546 = vmatpush1.xpose.msra.mxu0 %v6459
        %7547 = vmatprep.subr.mxu0 0.0
        %7548 = vmatpush1.xpose.msra.mxu0 %v6462
        %7549 = vmatprep.subr.mxu0 0.0
        %7550 = vmatpush1.xpose.msra.mxu0 %v6465
        %7551 = vmatprep.subr.mxu0 0.0
        %7552 = vmatpush1.xpose.msra.mxu0 %v6468
        %7553 = vmatprep.subr.mxu0 0.0
        %7554 = vmatpush1.xpose.msra.mxu0 %v6471
        %7555 = vmatprep.subr.mxu0 0.0
        %7556 = vmatpush1.xpose.msra.mxu0 %v6474
        %7557 = vmatprep.subr.mxu0 0.0
        %7558 = vmatpush1.xpose.msra.mxu0 %v6477
        %7559 = vmatprep.subr.mxu0 0.0
        %7560 = vmatpush1.xpose.msra.mxu0 0.0
        %7561 = vmatprep.subr.mxu0 0.0
        %7562 = vmatpush1.xpose.msra.mxu0 0.0
        %7563 = vmatprep.subr.mxu0 0.0
        %7564 = vmatpush1.xpose.msra.mxu0 0.0
        %7565 = vmatprep.subr.mxu0 0.0
        %7566 = vmatpush1.xpose.msra.mxu0 0.0
        %7567 = vmatprep.subr.mxu0 0.0
        %7568 = vmatpush1.xpose.msra.mxu0 0.0
        %7569 = vmatprep.subr.mxu0 0.0
        %7570 = vmatpush1.xpose.msra.mxu0 0.0
        %7571 = vmatprep.subr.mxu0 0.0
        %7572 = vmatpush1.xpose.msra.mxu0 0.0
        %7573 = vmatprep.subr.mxu0 0.0
        %7574 = vmatpush1.xpose.msra.mxu0 0.0
        %7575 = vmatprep.subr.mxu0 0.0
        %7576 = vmatpush1.xpose.msra.mxu0 0.0
        %7577 = vmatprep.subr.mxu0 0.0
        %7578 = vmatpush1.xpose.msra.mxu0 0.0
        %7579 = vmatprep.subr.mxu0 0.0
        %7580 = vmatpush1.xpose.msra.mxu0 0.0
        %7581 = vmatprep.subr.mxu0 0.0
        %7582 = vmatpush1.xpose.msra.mxu0 0.0
        %7583 = vmatprep.subr.mxu0 0.0
        %7584 = vmatpush1.xpose.msra.mxu0 0.0
        %7585 = vmatprep.subr.mxu0 0.0
        %7586 = vmatpush1.xpose.msra.mxu0 0.0
        %7587 = vmatprep.subr.mxu0 0.0
        %7588 = vmatpush1.xpose.msra.mxu0 0.0
        %7589 = vmatprep.subr.mxu0 0.0
        %7590 = vmatpush1.xpose.msra.mxu0 0.0
        %7591 = vmatprep.subr.mxu0 0.0
        %7592 = vmatpush1.xpose.msra.mxu0 0.0
        %7593 = vmatprep.subr.mxu0 0.0
        %7594 = vmatpush1.xpose.msra.mxu0 0.0
        %7595 = vmatprep.subr.mxu0 0.0
        %7596 = vmatpush1.xpose.msra.mxu0 0.0
        %7597 = vmatprep.subr.mxu0 0.0
        %7598 = vmatpush1.xpose.msra.mxu0 0.0
        %7599 = vmatprep.subr.mxu0 0.0
        %7600 = vmatpush1.xpose.msra.mxu0 0.0
        %7601 = vmatprep.subr.mxu0 0.0
        %7602 = vmatpush1.xpose.msra.mxu0 0.0
        %7603 = vmatprep.subr.mxu0 0.0
        %7604 = vmatpush1.xpose.msra.mxu0 0.0
        %7605 = vmatprep.subr.mxu0 0.0
        %7606 = vmatpush1.xpose.msra.mxu0 0.0
        %7607 = vmatprep.mubr.f32.mxu0 0.0
        %7608 = vmatmul.mubr.f32.gmra.mrb[0].mxu0 %v7541
        %v7609 = vpop.f32.mrb[0].mxu0
        %v7610 = vadd.f32 0.0, %v7609
        %v7611 = vpop.f32.mrb[0].mxu0
        %7612 = vdwg.mxu0
        %v7613 = vmax.f32 %v7610, 1e-30
        %v7614 = vrcp.pop %v7613
        %v7615 = vmul.f32 %v7614, 0.015625
        %v7617 = vsel %vm960, %v7615, 0
        %7619 = vmatprep.subr.mxu0 0.0
        %7620 = vmatpush1.msra.mxu0 %v6440
        %7621 = vmatprep.subr.mxu0 0.0
        %7622 = vmatpush1.msra.mxu0 %v6442
        %7623 = vmatprep.subr.mxu0 0.0
        %7624 = vmatpush1.msra.mxu0 %v6444
        %7625 = vmatprep.subr.mxu0 0.0
        %7626 = vmatpush1.msra.mxu0 %v6446
        %7627 = vmatprep.subr.mxu0 0.0
        %7628 = vmatpush1.msra.mxu0 %v6448
        %7629 = vmatprep.subr.mxu0 0.0
        %7630 = vmatpush1.msra.mxu0 %v6450
        %7631 = vmatprep.subr.mxu0 0.0
        %7632 = vmatpush1.msra.mxu0 %v6452
        %7633 = vmatprep.subr.mxu0 0.0
        %7634 = vmatpush1.msra.mxu0 %v6454
        %7635 = vmatprep.subr.mxu0 0.0
        %7636 = vmatpush1.msra.mxu0 0.0
        %7637 = vmatprep.subr.mxu0 0.0
        %7638 = vmatpush1.msra.mxu0 0.0
        %7639 = vmatprep.subr.mxu0 0.0
        %7640 = vmatpush1.msra.mxu0 0.0
        %7641 = vmatprep.subr.mxu0 0.0
        %7642 = vmatpush1.msra.mxu0 0.0
        %7643 = vmatprep.subr.mxu0 0.0
        %7644 = vmatpush1.msra.mxu0 0.0
        %7645 = vmatprep.subr.mxu0 0.0
        %7646 = vmatpush1.msra.mxu0 0.0
        %7647 = vmatprep.subr.mxu0 0.0
        %7648 = vmatpush1.msra.mxu0 0.0
        %7649 = vmatprep.subr.mxu0 0.0
        %7650 = vmatpush1.msra.mxu0 0.0
        %7651 = vmatprep.subr.mxu0 0.0
        %7652 = vmatpush1.msra.mxu0 0.0
        %7653 = vmatprep.subr.mxu0 0.0
        %7654 = vmatpush1.msra.mxu0 0.0
        %7655 = vmatprep.subr.mxu0 0.0
        %7656 = vmatpush1.msra.mxu0 0.0
        %7657 = vmatprep.subr.mxu0 0.0
        %7658 = vmatpush1.msra.mxu0 0.0
        %7659 = vmatprep.subr.mxu0 0.0
        %7660 = vmatpush1.msra.mxu0 0.0
        %7661 = vmatprep.subr.mxu0 0.0
        %7662 = vmatpush1.msra.mxu0 0.0
        %7663 = vmatprep.subr.mxu0 0.0
        %7664 = vmatpush1.msra.mxu0 0.0
        %7665 = vmatprep.subr.mxu0 0.0
        %7666 = vmatpush1.msra.mxu0 0.0
        %7667 = vmatprep.subr.mxu0 0.0
        %7668 = vmatpush1.msra.mxu0 0.0
        %7669 = vmatprep.subr.mxu0 0.0
        %7670 = vmatpush1.msra.mxu0 0.0
        %7671 = vmatprep.subr.mxu0 0.0
        %7672 = vmatpush1.msra.mxu0 0.0
        %7673 = vmatprep.subr.mxu0 0.0
        %7674 = vmatpush1.msra.mxu0 0.0
        %7675 = vmatprep.subr.mxu0 0.0
        %7676 = vmatpush1.msra.mxu0 0.0
        %7677 = vmatprep.subr.mxu0 0.0
        %7678 = vmatpush1.msra.mxu0 0.0
        %7679 = vmatprep.subr.mxu0 0.0
        %7680 = vmatpush1.msra.mxu0 0.0
        %7681 = vmatprep.subr.mxu0 0.0
        %7682 = vmatpush1.msra.mxu0 0.0
        %7683 = vmatprep.mubr.f32.mxu0 0.0
        %7684 = vmatmul.mubr.f32.gmra.mrb[0].mxu0 %v7617
        %v7685 = vpop.f32.mrb[0].mxu0
        %v7686 = vadd.f32 0.0, %v7685
        %v7687 = vpop.f32.mrb[0].mxu0
        %7688 = vdwg.mxu0
        %v7689 = vmax.f32 %v7686, 1e-30
        %v7690 = vrcp.pop %v7689
        %v7691 = vmul.f32 %v7690, 0.015625
        %v7693 = vsel %vm960, %v7691, 0
        %7695 = vmatprep.subr.mxu0 0.0
        %7696 = vmatpush1.xpose.msra.mxu0 %v6456
        %7697 = vmatprep.subr.mxu0 0.0
        %7698 = vmatpush1.xpose.msra.mxu0 %v6459
        %7699 = vmatprep.subr.mxu0 0.0
        %7700 = vmatpush1.xpose.msra.mxu0 %v6462
        %7701 = vmatprep.subr.mxu0 0.0
        %7702 = vmatpush1.xpose.msra.mxu0 %v6465
        %7703 = vmatprep.subr.mxu0 0.0
        %7704 = vmatpush1.xpose.msra.mxu0 %v6468
        %7705 = vmatprep.subr.mxu0 0.0
        %7706 = vmatpush1.xpose.msra.mxu0 %v6471
        %7707 = vmatprep.subr.mxu0 0.0
        %7708 = vmatpush1.xpose.msra.mxu0 %v6474
        %7709 = vmatprep.subr.mxu0 0.0
        %7710 = vmatpush1.xpose.msra.mxu0 %v6477
        %7711 = vmatprep.subr.mxu0 0.0
        %7712 = vmatpush1.xpose.msra.mxu0 0.0
        %7713 = vmatprep.subr.mxu0 0.0
        %7714 = vmatpush1.xpose.msra.mxu0 0.0
        %7715 = vmatprep.subr.mxu0 0.0
        %7716 = vmatpush1.xpose.msra.mxu0 0.0
        %7717 = vmatprep.subr.mxu0 0.0
        %7718 = vmatpush1.xpose.msra.mxu0 0.0
        %7719 = vmatprep.subr.mxu0 0.0
        %7720 = vmatpush1.xpose.msra.mxu0 0.0
        %7721 = vmatprep.subr.mxu0 0.0
        %7722 = vmatpush1.xpose.msra.mxu0 0.0
        %7723 = vmatprep.subr.mxu0 0.0
        %7724 = vmatpush1.xpose.msra.mxu0 0.0
        %7725 = vmatprep.subr.mxu0 0.0
        %7726 = vmatpush1.xpose.msra.mxu0 0.0
        %7727 = vmatprep.subr.mxu0 0.0
        %7728 = vmatpush1.xpose.msra.mxu0 0.0
        %7729 = vmatprep.subr.mxu0 0.0
        %7730 = vmatpush1.xpose.msra.mxu0 0.0
        %7731 = vmatprep.subr.mxu0 0.0
        %7732 = vmatpush1.xpose.msra.mxu0 0.0
        %7733 = vmatprep.subr.mxu0 0.0
        %7734 = vmatpush1.xpose.msra.mxu0 0.0
        %7735 = vmatprep.subr.mxu0 0.0
        %7736 = vmatpush1.xpose.msra.mxu0 0.0
        %7737 = vmatprep.subr.mxu0 0.0
        %7738 = vmatpush1.xpose.msra.mxu0 0.0
        %7739 = vmatprep.subr.mxu0 0.0
        %7740 = vmatpush1.xpose.msra.mxu0 0.0
        %7741 = vmatprep.subr.mxu0 0.0
        %7742 = vmatpush1.xpose.msra.mxu0 0.0
        %7743 = vmatprep.subr.mxu0 0.0
        %7744 = vmatpush1.xpose.msra.mxu0 0.0
        %7745 = vmatprep.subr.mxu0 0.0
        %7746 = vmatpush1.xpose.msra.mxu0 0.0
        %7747 = vmatprep.subr.mxu0 0.0
        %7748 = vmatpush1.xpose.msra.mxu0 0.0
        %7749 = vmatprep.subr.mxu0 0.0
        %7750 = vmatpush1.xpose.msra.mxu0 0.0
        %7751 = vmatprep.subr.mxu0 0.0
        %7752 = vmatpush1.xpose.msra.mxu0 0.0
        %7753 = vmatprep.subr.mxu0 0.0
        %7754 = vmatpush1.xpose.msra.mxu0 0.0
        %7755 = vmatprep.subr.mxu0 0.0
        %7756 = vmatpush1.xpose.msra.mxu0 0.0
        %7757 = vmatprep.subr.mxu0 0.0
        %7758 = vmatpush1.xpose.msra.mxu0 0.0
        %7759 = vmatprep.mubr.f32.mxu0 0.0
        %7760 = vmatmul.mubr.f32.gmra.mrb[0].mxu0 %v7693
        %v7761 = vpop.f32.mrb[0].mxu0
        %v7762 = vadd.f32 0.0, %v7761
        %v7763 = vpop.f32.mrb[0].mxu0
        %7764 = vdwg.mxu0
        %v7765 = vmax.f32 %v7762, 1e-30
        %v7766 = vrcp.pop %v7765
        %v7767 = vmul.f32 %v7766, 0.015625
        %v7769 = vsel %vm960, %v7767, 0
        %7771 = vmatprep.subr.mxu0 0.0
        %7772 = vmatpush1.msra.mxu0 %v6440
        %7773 = vmatprep.subr.mxu0 0.0
        %7774 = vmatpush1.msra.mxu0 %v6442
        %7775 = vmatprep.subr.mxu0 0.0
        %7776 = vmatpush1.msra.mxu0 %v6444
        %7777 = vmatprep.subr.mxu0 0.0
        %7778 = vmatpush1.msra.mxu0 %v6446
        %7779 = vmatprep.subr.mxu0 0.0
        %7780 = vmatpush1.msra.mxu0 %v6448
        %7781 = vmatprep.subr.mxu0 0.0
        %7782 = vmatpush1.msra.mxu0 %v6450
        %7783 = vmatprep.subr.mxu0 0.0
        %7784 = vmatpush1.msra.mxu0 %v6452
        %7785 = vmatprep.subr.mxu0 0.0
        %7786 = vmatpush1.msra.mxu0 %v6454
        %7787 = vmatprep.subr.mxu0 0.0
        %7788 = vmatpush1.msra.mxu0 0.0
        %7789 = vmatprep.subr.mxu0 0.0
        %7790 = vmatpush1.msra.mxu0 0.0
        %7791 = vmatprep.subr.mxu0 0.0
        %7792 = vmatpush1.msra.mxu0 0.0
        %7793 = vmatprep.subr.mxu0 0.0
        %7794 = vmatpush1.msra.mxu0 0.0
        %7795 = vmatprep.subr.mxu0 0.0
        %7796 = vmatpush1.msra.mxu0 0.0
        %7797 = vmatprep.subr.mxu0 0.0
        %7798 = vmatpush1.msra.mxu0 0.0
        %7799 = vmatprep.subr.mxu0 0.0
        %7800 = vmatpush1.msra.mxu0 0.0
        %7801 = vmatprep.subr.mxu0 0.0
        %7802 = vmatpush1.msra.mxu0 0.0
        %7803 = vmatprep.subr.mxu0 0.0
        %7804 = vmatpush1.msra.mxu0 0.0
        %7805 = vmatprep.subr.mxu0 0.0
        %7806 = vmatpush1.msra.mxu0 0.0
        %7807 = vmatprep.subr.mxu0 0.0
        %7808 = vmatpush1.msra.mxu0 0.0
        %7809 = vmatprep.subr.mxu0 0.0
        %7810 = vmatpush1.msra.mxu0 0.0
        %7811 = vmatprep.subr.mxu0 0.0
        %7812 = vmatpush1.msra.mxu0 0.0
        %7813 = vmatprep.subr.mxu0 0.0
        %7814 = vmatpush1.msra.mxu0 0.0
        %7815 = vmatprep.subr.mxu0 0.0
        %7816 = vmatpush1.msra.mxu0 0.0
        %7817 = vmatprep.subr.mxu0 0.0
        %7818 = vmatpush1.msra.mxu0 0.0
        %7819 = vmatprep.subr.mxu0 0.0
        %7820 = vmatpush1.msra.mxu0 0.0
        %7821 = vmatprep.subr.mxu0 0.0
        %7822 = vmatpush1.msra.mxu0 0.0
        %7823 = vmatprep.subr.mxu0 0.0
        %7824 = vmatpush1.msra.mxu0 0.0
        %7825 = vmatprep.subr.mxu0 0.0
        %7826 = vmatpush1.msra.mxu0 0.0
        %7827 = vmatprep.subr.mxu0 0.0
        %7828 = vmatpush1.msra.mxu0 0.0
        %7829 = vmatprep.subr.mxu0 0.0
        %7830 = vmatpush1.msra.mxu0 0.0
        %7831 = vmatprep.subr.mxu0 0.0
        %7832 = vmatpush1.msra.mxu0 0.0
        %7833 = vmatprep.subr.mxu0 0.0
        %7834 = vmatpush1.msra.mxu0 0.0
        %7835 = vmatprep.mubr.f32.mxu0 0.0
        %7836 = vmatmul.mubr.f32.gmra.mrb[0].mxu0 %v7769
        %v7837 = vpop.f32.mrb[0].mxu0
        %v7838 = vadd.f32 0.0, %v7837
        %v7839 = vpop.f32.mrb[0].mxu0
        %7840 = vdwg.mxu0
        %v7841 = vmax.f32 %v7838, 1e-30
        %v7842 = vrcp.pop %v7841
        %v7843 = vmul.f32 %v7842, 0.015625
        %v7845 = vsel %vm960, %v7843, 0
        %7847 = vmatprep.subr.mxu0 0.0
        %7848 = vmatpush1.xpose.msra.mxu0 %v6456
        %7849 = vmatprep.subr.mxu0 0.0
        %7850 = vmatpush1.xpose.msra.mxu0 %v6459
        %7851 = vmatprep.subr.mxu0 0.0
        %7852 = vmatpush1.xpose.msra.mxu0 %v6462
        %7853 = vmatprep.subr.mxu0 0.0
        %7854 = vmatpush1.xpose.msra.mxu0 %v6465
        %7855 = vmatprep.subr.mxu0 0.0
        %7856 = vmatpush1.xpose.msra.mxu0 %v6468
        %7857 = vmatprep.subr.mxu0 0.0
        %7858 = vmatpush1.xpose.msra.mxu0 %v6471
        %7859 = vmatprep.subr.mxu0 0.0
        %7860 = vmatpush1.xpose.msra.mxu0 %v6474
        %7861 = vmatprep.subr.mxu0 0.0
        %7862 = vmatpush1.xpose.msra.mxu0 %v6477
        %7863 = vmatprep.subr.mxu0 0.0
        %7864 = vmatpush1.xpose.msra.mxu0 0.0
        %7865 = vmatprep.subr.mxu0 0.0
        %7866 = vmatpush1.xpose.msra.mxu0 0.0
        %7867 = vmatprep.subr.mxu0 0.0
        %7868 = vmatpush1.xpose.msra.mxu0 0.0
        %7869 = vmatprep.subr.mxu0 0.0
        %7870 = vmatpush1.xpose.msra.mxu0 0.0
        %7871 = vmatprep.subr.mxu0 0.0
        %7872 = vmatpush1.xpose.msra.mxu0 0.0
        %7873 = vmatprep.subr.mxu0 0.0
        %7874 = vmatpush1.xpose.msra.mxu0 0.0
        %7875 = vmatprep.subr.mxu0 0.0
        %7876 = vmatpush1.xpose.msra.mxu0 0.0
        %7877 = vmatprep.subr.mxu0 0.0
        %7878 = vmatpush1.xpose.msra.mxu0 0.0
        %7879 = vmatprep.subr.mxu0 0.0
        %7880 = vmatpush1.xpose.msra.mxu0 0.0
        %7881 = vmatprep.subr.mxu0 0.0
        %7882 = vmatpush1.xpose.msra.mxu0 0.0
        %7883 = vmatprep.subr.mxu0 0.0
        %7884 = vmatpush1.xpose.msra.mxu0 0.0
        %7885 = vmatprep.subr.mxu0 0.0
        %7886 = vmatpush1.xpose.msra.mxu0 0.0
        %7887 = vmatprep.subr.mxu0 0.0
        %7888 = vmatpush1.xpose.msra.mxu0 0.0
        %7889 = vmatprep.subr.mxu0 0.0
        %7890 = vmatpush1.xpose.msra.mxu0 0.0
        %7891 = vmatprep.subr.mxu0 0.0
        %7892 = vmatpush1.xpose.msra.mxu0 0.0
        %7893 = vmatprep.subr.mxu0 0.0
        %7894 = vmatpush1.xpose.msra.mxu0 0.0
        %7895 = vmatprep.subr.mxu0 0.0
        %7896 = vmatpush1.xpose.msra.mxu0 0.0
        %7897 = vmatprep.subr.mxu0 0.0
        %7898 = vmatpush1.xpose.msra.mxu0 0.0
        %7899 = vmatprep.subr.mxu0 0.0
        %7900 = vmatpush1.xpose.msra.mxu0 0.0
        %7901 = vmatprep.subr.mxu0 0.0
        %7902 = vmatpush1.xpose.msra.mxu0 0.0
        %7903 = vmatprep.subr.mxu0 0.0
        %7904 = vmatpush1.xpose.msra.mxu0 0.0
        %7905 = vmatprep.subr.mxu0 0.0
        %7906 = vmatpush1.xpose.msra.mxu0 0.0
        %7907 = vmatprep.subr.mxu0 0.0
        %7908 = vmatpush1.xpose.msra.mxu0 0.0
        %7909 = vmatprep.subr.mxu0 0.0
        %7910 = vmatpush1.xpose.msra.mxu0 0.0
        %7911 = vmatprep.mubr.f32.mxu0 0.0
        %7912 = vmatmul.mubr.f32.gmra.mrb[0].mxu0 %v7845
        %v7913 = vpop.f32.mrb[0].mxu0
        %v7914 = vadd.f32 0.0, %v7913
        %v7915 = vpop.f32.mrb[0].mxu0
        %7916 = vdwg.mxu0
        %v7917 = vmax.f32 %v7914, 1e-30
        %v7918 = vrcp.pop %v7917
        %v7919 = vmul.f32 %v7918, 0.015625
        %v7921 = vsel %vm960, %v7919, 0
        %7923 = vmatprep.subr.mxu0 0.0
        %7924 = vmatpush1.msra.mxu0 %v6440
        %7925 = vmatprep.subr.mxu0 0.0
        %7926 = vmatpush1.msra.mxu0 %v6442
        %7927 = vmatprep.subr.mxu0 0.0
        %7928 = vmatpush1.msra.mxu0 %v6444
        %7929 = vmatprep.subr.mxu0 0.0
        %7930 = vmatpush1.msra.mxu0 %v6446
        %7931 = vmatprep.subr.mxu0 0.0
        %7932 = vmatpush1.msra.mxu0 %v6448
        %7933 = vmatprep.subr.mxu0 0.0
        %7934 = vmatpush1.msra.mxu0 %v6450
        %7935 = vmatprep.subr.mxu0 0.0
        %7936 = vmatpush1.msra.mxu0 %v6452
        %7937 = vmatprep.subr.mxu0 0.0
        %7938 = vmatpush1.msra.mxu0 %v6454
        %7939 = vmatprep.subr.mxu0 0.0
        %7940 = vmatpush1.msra.mxu0 0.0
        %7941 = vmatprep.subr.mxu0 0.0
        %7942 = vmatpush1.msra.mxu0 0.0
        %7943 = vmatprep.subr.mxu0 0.0
        %7944 = vmatpush1.msra.mxu0 0.0
        %7945 = vmatprep.subr.mxu0 0.0
        %7946 = vmatpush1.msra.mxu0 0.0
        %7947 = vmatprep.subr.mxu0 0.0
        %7948 = vmatpush1.msra.mxu0 0.0
        %7949 = vmatprep.subr.mxu0 0.0
        %7950 = vmatpush1.msra.mxu0 0.0
        %7951 = vmatprep.subr.mxu0 0.0
        %7952 = vmatpush1.msra.mxu0 0.0
        %7953 = vmatprep.subr.mxu0 0.0
        %7954 = vmatpush1.msra.mxu0 0.0
        %7955 = vmatprep.subr.mxu0 0.0
        %7956 = vmatpush1.msra.mxu0 0.0
        %7957 = vmatprep.subr.mxu0 0.0
        %7958 = vmatpush1.msra.mxu0 0.0
        %7959 = vmatprep.subr.mxu0 0.0
        %7960 = vmatpush1.msra.mxu0 0.0
        %7961 = vmatprep.subr.mxu0 0.0
        %7962 = vmatpush1.msra.mxu0 0.0
        %7963 = vmatprep.subr.mxu0 0.0
        %7964 = vmatpush1.msra.mxu0 0.0
        %7965 = vmatprep.subr.mxu0 0.0
        %7966 = vmatpush1.msra.mxu0 0.0
        %7967 = vmatprep.subr.mxu0 0.0
        %7968 = vmatpush1.msra.mxu0 0.0
        %7969 = vmatprep.subr.mxu0 0.0
        %7970 = vmatpush1.msra.mxu0 0.0
        %7971 = vmatprep.subr.mxu0 0.0
        %7972 = vmatpush1.msra.mxu0 0.0
        %7973 = vmatprep.subr.mxu0 0.0
        %7974 = vmatpush1.msra.mxu0 0.0
        %7975 = vmatprep.subr.mxu0 0.0
        %7976 = vmatpush1.msra.mxu0 0.0
        %7977 = vmatprep.subr.mxu0 0.0
        %7978 = vmatpush1.msra.mxu0 0.0
        %7979 = vmatprep.subr.mxu0 0.0
        %7980 = vmatpush1.msra.mxu0 0.0
        %7981 = vmatprep.subr.mxu0 0.0
        %7982 = vmatpush1.msra.mxu0 0.0
        %7983 = vmatprep.subr.mxu0 0.0
        %7984 = vmatpush1.msra.mxu0 0.0
        %7985 = vmatprep.subr.mxu0 0.0
        %7986 = vmatpush1.msra.mxu0 0.0
        %7987 = vmatprep.mubr.f32.mxu0 0.0
        %7988 = vmatmul.mubr.f32.gmra.mrb[0].mxu0 %v7921
        %v7989 = vpop.f32.mrb[0].mxu0
        %v7990 = vadd.f32 0.0, %v7989
        %v7991 = vpop.f32.mrb[0].mxu0
        %7992 = vdwg.mxu0
        %v7993 = vmax.f32 %v7990, 1e-30
        %v7994 = vrcp.pop %v7993
        %v7995 = vmul.f32 %v7994, 0.015625
        %v7996 = vmax.f32 %v7919, 1e-30
        %v7997 = vlog2.pop %v7996
        %v7998 = vmul.f32 %v7997, 0.6931472
        %7999 = vxpose.xlu0.b32.start [1/16] %v7998, 128
        %8000 = vxpose.xlu0.b32.cont [2/16] 0.0, 128
        %8001 = vxpose.xlu0.b32.cont [3/16] 0.0, 128
        %8002 = vxpose.xlu0.b32.cont [4/16] 0.0, 128
        %8003 = vxpose.xlu0.b32.cont [5/16] 0.0, 128
        %8004 = vxpose.xlu0.b32.cont [6/16] 0.0, 128
        %8005 = vxpose.xlu0.b32.cont [7/16] 0.0, 128
        %8006 = vxpose.xlu0.b32.cont [8/16] 0.0, 128
        %8007 = vxpose.xlu0.b32.cont [9/16] 0.0, 128
        %8008 = vxpose.xlu0.b32.cont [10/16] 0.0, 128
        %8009 = vxpose.xlu0.b32.cont [11/16] 0.0, 128
        %8010 = vxpose.xlu0.b32.cont [12/16] 0.0, 128
        %8011 = vxpose.xlu0.b32.cont [13/16] 0.0, 128
        %8012 = vxpose.xlu0.b32.cont [14/16] 0.0, 128
        %8013 = vxpose.xlu0.b32.cont [15/16] 0.0, 128
        %8014 = vxpose.xlu0.b32.end [16/16] 0.0, 128
        %v8015 = vpop.trf.xlu0
        %v8016 = vpop.trf.xlu0
        %v8017 = vpop.trf.xlu0
        %v8018 = vpop.trf.xlu0
        %v8019 = vpop.trf.xlu0
        %v8020 = vpop.trf.xlu0
        %v8021 = vpop.trf.xlu0
        %v8022 = vpop.trf.xlu0
        %v8023 = vpop.trf.xlu0
        %v8024 = vpop.trf.xlu0
        %v8025 = vpop.trf.xlu0
        %v8026 = vpop.trf.xlu0
        %v8027 = vpop.trf.xlu0
        %v8028 = vpop.trf.xlu0
        %v8029 = vpop.trf.xlu0
        %v8030 = vpop.trf.xlu0
        %v8031 = vadd.f32 %v6367, %v8015
        %v8032 = vadd.f32 %v6368, %v8016
        %v8033 = vadd.f32 %v6369, %v8017
        %v8034 = vadd.f32 %v6370, %v8018
        %v8035 = vadd.f32 %v6371, %v8019
        %v8036 = vadd.f32 %v6372, %v8020
        %v8037 = vadd.f32 %v6373, %v8021
        %v8038 = vadd.f32 %v6374, %v8022
        %v8039 = vmax.f32 %v7995, 1e-30
        %v8040 = vlog2.pop %v8039
        %v8041 = vmul.f32 %v8040, 0.6931472
        %v8042 = vadd.f32 %v6378, %v8041
        %8044 = vset.pattern.permute.xlu0 0
        %8045 = vperm.xlu0 %8044, %v8031
        %v8046 = vpop.permute.xlu0 %8045
        %8049 = vset.pattern.permute.xlu0 0
        %8050 = vperm.xlu0 %8049, %v8032
        %v8051 = vpop.permute.xlu0 %8050
        %8054 = vset.pattern.permute.xlu0 0
        %8055 = vperm.xlu0 %8054, %v8033
        %v8056 = vpop.permute.xlu0 %8055
        %8059 = vset.pattern.permute.xlu0 0
        %8060 = vperm.xlu0 %8059, %v8034
        %v8061 = vpop.permute.xlu0 %8060
        %8064 = vset.pattern.permute.xlu0 0
        %8065 = vperm.xlu0 %8064, %v8035
        %v8066 = vpop.permute.xlu0 %8065
        %8069 = vset.pattern.permute.xlu0 0
        %8070 = vperm.xlu0 %8069, %v8036
        %v8071 = vpop.permute.xlu0 %8070
        %8074 = vset.pattern.permute.xlu0 0
        %8075 = vperm.xlu0 %8074, %v8037
        %v8076 = vpop.permute.xlu0 %8075
        %8079 = vset.pattern.permute.xlu0 0
        %8080 = vperm.xlu0 %8079, %v8038
        %v8081 = vpop.permute.xlu0 %8080
        %v8083 = vlaneseq
        %v8084 = vshrl.u32 %v8083, 7
        %v8085 = vsub.s32 0, %v8084
        %v8086 = vrot.slane %v8042, %v8085
        %v8087 = vadd.f32 %v8046, %v8086
        %v8088 = vadd.f32 %v8051, %v8086
        %v8089 = vadd.f32 %v8056, %v8086
        %v8090 = vadd.f32 %v8061, %v8086
        %v8091 = vadd.f32 %v8066, %v8086
        %v8092 = vadd.f32 %v8071, %v8086
        %v8093 = vadd.f32 %v8076, %v8086
        %v8094 = vadd.f32 %v8081, %v8086
        %v8095 = vsub.f32 %v8087, %v1040
        %v8096 = vsub.f32 %v8088, %v1041
        %v8097 = vsub.f32 %v8089, %v1042
        %v8098 = vsub.f32 %v8090, %v1043
        %v8099 = vsub.f32 %v8091, %v1044
        %v8100 = vsub.f32 %v8092, %v1045
        %v8101 = vsub.f32 %v8093, %v1046
        %v8102 = vsub.f32 %v8094, %v1047
        %v8103 = vmul.f32 %v8095, 1.442695
        %v8104 = vpow.pop %v8103
        %v8105 = vmul.f32 %v8096, 1.442695
        %v8106 = vpow.pop %v8105
        %v8107 = vmul.f32 %v8097, 1.442695
        %v8108 = vpow.pop %v8107
        %v8109 = vmul.f32 %v8098, 1.442695
        %v8110 = vpow.pop %v8109
        %v8111 = vmul.f32 %v8099, 1.442695
        %v8112 = vpow.pop %v8111
        %v8113 = vmul.f32 %v8100, 1.442695
        %v8114 = vpow.pop %v8113
        %v8115 = vmul.f32 %v8101, 1.442695
        %v8116 = vpow.pop %v8115
        %v8117 = vmul.f32 %v8102, 1.442695
        %v8118 = vpow.pop %v8117
        %v8120 = vsel %vm960, %v8104, 0
        %v8123 = vsel %vm960, %v8106, 0
        %v8126 = vsel %vm960, %v8108, 0
        %v8129 = vsel %vm960, %v8110, 0
        %v8132 = vsel %vm960, %v8112, 0
        %v8135 = vsel %vm960, %v8114, 0
        %v8138 = vsel %vm960, %v8116, 0
        %v8141 = vsel %vm960, %v8118, 0
        %8143 = vmatprep.subr.mxu0 0.0
        %8144 = vmatpush1.msra.mxu0 %v340
        %8145 = vmatprep.subr.mxu0 0.0
        %8146 = vmatpush1.msra.mxu0 %v341
        %8147 = vmatprep.subr.mxu0 0.0
        %8148 = vmatpush1.msra.mxu0 %v342
        %8149 = vmatprep.subr.mxu0 0.0
        %8150 = vmatpush1.msra.mxu0 %v343
        %8151 = vmatprep.subr.mxu0 0.0
        %8152 = vmatpush1.msra.mxu0 %v344
        %8153 = vmatprep.subr.mxu0 0.0
        %8154 = vmatpush1.msra.mxu0 %v345
        %8155 = vmatprep.subr.mxu0 0.0
        %8156 = vmatpush1.msra.mxu0 %v346
        %8157 = vmatprep.subr.mxu0 0.0
        %8158 = vmatpush1.msra.mxu0 %v347
        %8159 = vmatprep.subr.mxu0 0.0
        %8160 = vmatpush1.msra.mxu0 0.0
        %8161 = vmatprep.subr.mxu0 0.0
        %8162 = vmatpush1.msra.mxu0 0.0
        %8163 = vmatprep.subr.mxu0 0.0
        %8164 = vmatpush1.msra.mxu0 0.0
        %8165 = vmatprep.subr.mxu0 0.0
        %8166 = vmatpush1.msra.mxu0 0.0
        %8167 = vmatprep.subr.mxu0 0.0
        %8168 = vmatpush1.msra.mxu0 0.0
        %8169 = vmatprep.subr.mxu0 0.0
        %8170 = vmatpush1.msra.mxu0 0.0
        %8171 = vmatprep.subr.mxu0 0.0
        %8172 = vmatpush1.msra.mxu0 0.0
        %8173 = vmatprep.subr.mxu0 0.0
        %8174 = vmatpush1.msra.mxu0 0.0
        %8175 = vmatprep.subr.mxu0 0.0
        %8176 = vmatpush1.msra.mxu0 0.0
        %8177 = vmatprep.subr.mxu0 0.0
        %8178 = vmatpush1.msra.mxu0 0.0
        %8179 = vmatprep.subr.mxu0 0.0
        %8180 = vmatpush1.msra.mxu0 0.0
        %8181 = vmatprep.subr.mxu0 0.0
        %8182 = vmatpush1.msra.mxu0 0.0
        %8183 = vmatprep.subr.mxu0 0.0
        %8184 = vmatpush1.msra.mxu0 0.0
        %8185 = vmatprep.subr.mxu0 0.0
        %8186 = vmatpush1.msra.mxu0 0.0
        %8187 = vmatprep.subr.mxu0 0.0
        %8188 = vmatpush1.msra.mxu0 0.0
        %8189 = vmatprep.subr.mxu0 0.0
        %8190 = vmatpush1.msra.mxu0 0.0
        %8191 = vmatprep.subr.mxu0 0.0
        %8192 = vmatpush1.msra.mxu0 0.0
        %8193 = vmatprep.subr.mxu0 0.0
        %8194 = vmatpush1.msra.mxu0 0.0
        %8195 = vmatprep.subr.mxu0 0.0
        %8196 = vmatpush1.msra.mxu0 0.0
        %8197 = vmatprep.subr.mxu0 0.0
        %8198 = vmatpush1.msra.mxu0 0.0
        %8199 = vmatprep.subr.mxu0 0.0
        %8200 = vmatpush1.msra.mxu0 0.0
        %8201 = vmatprep.subr.mxu0 0.0
        %8202 = vmatpush1.msra.mxu0 0.0
        %8203 = vmatprep.subr.mxu0 0.0
        %8204 = vmatpush1.msra.mxu0 0.0
        %8205 = vmatprep.subr.mxu0 0.0
        %8206 = vmatpush1.msra.mxu0 0.0
        %8207 = vmatprep.mubr.f32.mxu0 0.0
        %8208 = vmatmul.mubr.f32.gmra.mrb[0].mxu0 %v8120
        %v8209 = vpop.f32.mrb[0].mxu0
        %v8210 = vadd.f32 0.0, %v8209
        %v8211 = vpop.f32.mrb[0].mxu0
        %8212 = vmatprep.mubr.f32.mxu0 0.0
        %8213 = vmatmul.mubr.f32.gmra.mrb[0].mxu0 %v8123
        %v8214 = vpop.f32.mrb[0].mxu0
        %v8215 = vadd.f32 0.0, %v8214
        %v8216 = vpop.f32.mrb[0].mxu0
        %8217 = vmatprep.mubr.f32.mxu0 0.0
        %8218 = vmatmul.mubr.f32.gmra.mrb[0].mxu0 %v8126
        %v8219 = vpop.f32.mrb[0].mxu0
        %v8220 = vadd.f32 0.0, %v8219
        %v8221 = vpop.f32.mrb[0].mxu0
        %8222 = vmatprep.mubr.f32.mxu0 0.0
        %8223 = vmatmul.mubr.f32.gmra.mrb[0].mxu0 %v8129
        %v8224 = vpop.f32.mrb[0].mxu0
        %v8225 = vadd.f32 0.0, %v8224
        %v8226 = vpop.f32.mrb[0].mxu0
        %8227 = vmatprep.mubr.f32.mxu0 0.0
        %8228 = vmatmul.mubr.f32.gmra.mrb[0].mxu0 %v8132
        %v8229 = vpop.f32.mrb[0].mxu0
        %v8230 = vadd.f32 0.0, %v8229
        %v8231 = vpop.f32.mrb[0].mxu0
        %8232 = vmatprep.mubr.f32.mxu0 0.0
        %8233 = vmatmul.mubr.f32.gmra.mrb[0].mxu0 %v8135
        %v8234 = vpop.f32.mrb[0].mxu0
        %v8235 = vadd.f32 0.0, %v8234
        %v8236 = vpop.f32.mrb[0].mxu0
        %8237 = vmatprep.mubr.f32.mxu0 0.0
        %8238 = vmatmul.mubr.f32.gmra.mrb[0].mxu0 %v8138
        %v8239 = vpop.f32.mrb[0].mxu0
        %v8240 = vadd.f32 0.0, %v8239
        %v8241 = vpop.f32.mrb[0].mxu0
        %8242 = vmatprep.mubr.f32.mxu0 0.0
        %8243 = vmatmul.mubr.f32.gmra.mrb[0].mxu0 %v8141
        %v8244 = vpop.f32.mrb[0].mxu0
        %v8245 = vadd.f32 0.0, %v8244
        %v8246 = vpop.f32.mrb[0].mxu0
        %8247 = vdwg.mxu0
        %v8256 = vmul.f32 %v8210, %v740
        %v8257 = vmul.f32 %v8215, %v742
        %v8258 = vmul.f32 %v8220, %v744
        %v8259 = vmul.f32 %v8225, %v746
        %v8260 = vmul.f32 %v8230, %v748
        %v8261 = vmul.f32 %v8235, %v750
        %v8262 = vmul.f32 %v8240, %v752
        %v8263 = vmul.f32 %v8245, %v754
        %v8264 = vsel %vm376, %v667, 0.0
        %v8265 = vsel %vm376, %v668, 0.0
        %v8266 = vadd.f32 %v8264, %v8265
        %v8267 = vsel %vm376, %v669, 0.0
        %v8268 = vadd.f32 %v8266, %v8267
        %v8269 = vsel %vm376, %v670, 0.0
        %v8270 = vadd.f32 %v8268, %v8269
        %v8271 = vsel %vm376, %v671, 0.0
        %v8272 = vadd.f32 %v8270, %v8271
        %v8273 = vsel %vm376, %v672, 0.0
        %v8274 = vadd.f32 %v8272, %v8273
        %v8275 = vsel %vm376, %v673, 0.0
        %v8276 = vadd.f32 %v8274, %v8275
        %v8277 = vsel %vm376, %v674, 0.0
        %v8278 = vadd.f32 %v8276, %v8277
        %v8279 = vrot.slane %v8278, 4
        %v8280 = vadd.f32 %v8278, %v8279
        %v8281 = vrot.slane %v8280, 2
        %v8282 = vadd.f32 %v8280, %v8281
        %v8283 = vrot.slane %v8282, 1
        %v8284 = vadd.f32 %v8282, %v8283
        %v8285 = vmax.f32 %v8284, 1e-24
        %v8286 = vrsqrt.pop %v8285
        %vm8287 = vcmask 523520
        %v8288 = vsel %vm8287, %v667, 0.0
        %v8289 = vsel %vm8287, %v668, 0.0
        %v8290 = vadd.f32 %v8288, %v8289
        %v8291 = vsel %vm8287, %v669, 0.0
        %v8292 = vadd.f32 %v8290, %v8291
        %v8293 = vsel %vm8287, %v670, 0.0
        %v8294 = vadd.f32 %v8292, %v8293
        %v8295 = vsel %vm8287, %v671, 0.0
        %v8296 = vadd.f32 %v8294, %v8295
        %v8297 = vsel %vm8287, %v672, 0.0
        %v8298 = vadd.f32 %v8296, %v8297
        %v8299 = vsel %vm8287, %v673, 0.0
        %v8300 = vadd.f32 %v8298, %v8299
        %v8301 = vsel %vm8287, %v674, 0.0
        %v8302 = vadd.f32 %v8300, %v8301
        %v8303 = vrot.slane %v8302, 4
        %v8304 = vadd.f32 %v8302, %v8303
        %v8305 = vrot.slane %v8304, 2
        %v8306 = vadd.f32 %v8304, %v8305
        %v8307 = vrot.slane %v8306, 1
        %v8308 = vadd.f32 %v8306, %v8307
        %v8309 = vmax.f32 %v8308, 1e-24
        %v8310 = vrsqrt.pop %v8309
        %8311 = vrot.lane.b32.xlu0 %v597, 96
        %v8312 = vpop.permute.xlu0 %8311
        %8313 = vrot.lane.b32.xlu0 %v602, 96
        %v8314 = vpop.permute.xlu0 %8313
        %8315 = vrot.lane.b32.xlu0 %v607, 96
        %v8316 = vpop.permute.xlu0 %8315
        %8317 = vrot.lane.b32.xlu0 %v612, 96
        %v8318 = vpop.permute.xlu0 %8317
        %8319 = vrot.lane.b32.xlu0 %v617, 96
        %v8320 = vpop.permute.xlu0 %8319
        %8321 = vrot.lane.b32.xlu0 %v622, 96
        %v8322 = vpop.permute.xlu0 %8321
        %8323 = vrot.lane.b32.xlu0 %v627, 96
        %v8324 = vpop.permute.xlu0 %8323
        %8325 = vrot.lane.b32.xlu0 %v632, 96
        %v8326 = vpop.permute.xlu0 %8325
        %8335 = vxpose.xlu0.b32.start [1/16] %v8312, 128
        %8336 = vxpose.xlu0.b32.cont [2/16] %v8314, 128
        %8337 = vxpose.xlu0.b32.cont [3/16] %v8316, 128
        %8338 = vxpose.xlu0.b32.cont [4/16] %v8318, 128
        %8339 = vxpose.xlu0.b32.cont [5/16] %v8320, 128
        %8340 = vxpose.xlu0.b32.cont [6/16] %v8322, 128
        %8341 = vxpose.xlu0.b32.cont [7/16] %v8324, 128
        %8342 = vxpose.xlu0.b32.cont [8/16] %v8326, 128
        %8343 = vxpose.xlu0.b32.cont [9/16] 0.0, 128
        %8344 = vxpose.xlu0.b32.cont [10/16] 0.0, 128
        %8345 = vxpose.xlu0.b32.cont [11/16] 0.0, 128
        %8346 = vxpose.xlu0.b32.cont [12/16] 0.0, 128
        %8347 = vxpose.xlu0.b32.cont [13/16] 0.0, 128
        %8348 = vxpose.xlu0.b32.cont [14/16] 0.0, 128
        %8349 = vxpose.xlu0.b32.cont [15/16] 0.0, 128
        %8350 = vxpose.xlu0.b32.end [16/16] 0.0, 128
        %v8351 = vpop.trf.xlu0
        %v8352 = vpop.trf.xlu0
        %v8353 = vpop.trf.xlu0
        %v8354 = vpop.trf.xlu0
        %v8355 = vpop.trf.xlu0
        %v8356 = vpop.trf.xlu0
        %v8357 = vpop.trf.xlu0
        %v8358 = vpop.trf.xlu0
        %v8359 = vpop.trf.xlu0
        %v8360 = vpop.trf.xlu0
        %v8361 = vpop.trf.xlu0
        %v8362 = vpop.trf.xlu0
        %v8363 = vpop.trf.xlu0
        %v8364 = vpop.trf.xlu0
        %v8365 = vpop.trf.xlu0
        %v8366 = vpop.trf.xlu0
        %v8368 = vsel %vm960, %v8351, 0
        %v8371 = vsel %vm960, %v8352, 0
        %v8374 = vsel %vm960, %v8353, 0
        %v8377 = vsel %vm960, %v8354, 0
        %8379 = vmatprep.subr.mxu0 0.0
        %8380 = vmatpush1.msra.mxu0 %v597
        %8381 = vmatprep.subr.mxu0 0.0
        %8382 = vmatpush1.msra.mxu0 %v602
        %8383 = vmatprep.subr.mxu0 0.0
        %8384 = vmatpush1.msra.mxu0 %v607
        %8385 = vmatprep.subr.mxu0 0.0
        %8386 = vmatpush1.msra.mxu0 %v612
        %8387 = vmatprep.subr.mxu0 0.0
        %8388 = vmatpush1.msra.mxu0 %v617
        %8389 = vmatprep.subr.mxu0 0.0
        %8390 = vmatpush1.msra.mxu0 %v622
        %8391 = vmatprep.subr.mxu0 0.0
        %8392 = vmatpush1.msra.mxu0 %v627
        %8393 = vmatprep.subr.mxu0 0.0
        %8394 = vmatpush1.msra.mxu0 %v632
        %8395 = vmatprep.subr.mxu0 0.0
        %8396 = vmatpush1.msra.mxu0 0.0
        %8397 = vmatprep.subr.mxu0 0.0
        %8398 = vmatpush1.msra.mxu0 0.0
        %8399 = vmatprep.subr.mxu0 0.0
        %8400 = vmatpush1.msra.mxu0 0.0
        %8401 = vmatprep.subr.mxu0 0.0
        %8402 = vmatpush1.msra.mxu0 0.0
        %8403 = vmatprep.subr.mxu0 0.0
        %8404 = vmatpush1.msra.mxu0 0.0
        %8405 = vmatprep.subr.mxu0 0.0
        %8406 = vmatpush1.msra.mxu0 0.0
        %8407 = vmatprep.subr.mxu0 0.0
        %8408 = vmatpush1.msra.mxu0 0.0
        %8409 = vmatprep.subr.mxu0 0.0
        %8410 = vmatpush1.msra.mxu0 0.0
        %8411 = vmatprep.subr.mxu0 0.0
        %8412 = vmatpush1.msra.mxu0 0.0
        %8413 = vmatprep.subr.mxu0 0.0
        %8414 = vmatpush1.msra.mxu0 0.0
        %8415 = vmatprep.subr.mxu0 0.0
        %8416 = vmatpush1.msra.mxu0 0.0
        %8417 = vmatprep.subr.mxu0 0.0
        %8418 = vmatpush1.msra.mxu0 0.0
        %8419 = vmatprep.subr.mxu0 0.0
        %8420 = vmatpush1.msra.mxu0 0.0
        %8421 = vmatprep.subr.mxu0 0.0
        %8422 = vmatpush1.msra.mxu0 0.0
        %8423 = vmatprep.subr.mxu0 0.0
        %8424 = vmatpush1.msra.mxu0 0.0
        %8425 = vmatprep.subr.mxu0 0.0
        %8426 = vmatpush1.msra.mxu0 0.0
        %8427 = vmatprep.subr.mxu0 0.0
        %8428 = vmatpush1.msra.mxu0 0.0
        %8429 = vmatprep.subr.mxu0 0.0
        %8430 = vmatpush1.msra.mxu0 0.0
        %8431 = vmatprep.subr.mxu0 0.0
        %8432 = vmatpush1.msra.mxu0 0.0
        %8433 = vmatprep.subr.mxu0 0.0
        %8434 = vmatpush1.msra.mxu0 0.0
        %8435 = vmatprep.subr.mxu0 0.0
        %8436 = vmatpush1.msra.mxu0 0.0
        %8437 = vmatprep.subr.mxu0 0.0
        %8438 = vmatpush1.msra.mxu0 0.0
        %8439 = vmatprep.subr.mxu0 0.0
        %8440 = vmatpush1.msra.mxu0 0.0
        %8441 = vmatprep.subr.mxu0 0.0
        %8442 = vmatpush1.msra.mxu0 0.0
        %8443 = vmatprep.mubr.f32.mxu0 0.0
        %8444 = vmatmul.mubr.f32.gmra.mrb[0].mxu0 %v8368
        %v8445 = vpop.f32.mrb[0].mxu0
        %v8446 = vadd.f32 0.0, %v8445
        %v8447 = vpop.f32.mrb[0].mxu0
        %8448 = vmatprep.mubr.f32.mxu0 0.0
        %8449 = vmatmul.mubr.f32.gmra.mrb[0].mxu0 %v8371
        %v8450 = vpop.f32.mrb[0].mxu0
        %v8451 = vadd.f32 0.0, %v8450
        %v8452 = vpop.f32.mrb[0].mxu0
        %8453 = vmatprep.mubr.f32.mxu0 0.0
        %8454 = vmatmul.mubr.f32.gmra.mrb[0].mxu0 %v8374
        %v8455 = vpop.f32.mrb[0].mxu0
        %v8456 = vadd.f32 0.0, %v8455
        %v8457 = vpop.f32.mrb[0].mxu0
        %8458 = vmatprep.mubr.f32.mxu0 0.0
        %8459 = vmatmul.mubr.f32.gmra.mrb[0].mxu0 %v8377
        %v8460 = vpop.f32.mrb[0].mxu0
        %v8461 = vadd.f32 0.0, %v8460
        %v8462 = vpop.f32.mrb[0].mxu0
        %8463 = vdwg.mxu0
        %8465 = vrot.lane.b32.xlu0 %v8310, 96
        %v8466 = vpop.permute.xlu0 %8465
        %8468 = vxpose.xlu0.b32.start [1/16] %v8466, 128
        %8469 = vxpose.xlu0.b32.cont [2/16] 0.0, 128
        %8470 = vxpose.xlu0.b32.cont [3/16] 0.0, 128
        %8471 = vxpose.xlu0.b32.cont [4/16] 0.0, 128
        %8472 = vxpose.xlu0.b32.cont [5/16] 0.0, 128
        %8473 = vxpose.xlu0.b32.cont [6/16] 0.0, 128
        %8474 = vxpose.xlu0.b32.cont [7/16] 0.0, 128
        %8475 = vxpose.xlu0.b32.cont [8/16] 0.0, 128
        %8476 = vxpose.xlu0.b32.cont [9/16] 0.0, 128
        %8477 = vxpose.xlu0.b32.cont [10/16] 0.0, 128
        %8478 = vxpose.xlu0.b32.cont [11/16] 0.0, 128
        %8479 = vxpose.xlu0.b32.cont [12/16] 0.0, 128
        %8480 = vxpose.xlu0.b32.cont [13/16] 0.0, 128
        %8481 = vxpose.xlu0.b32.cont [14/16] 0.0, 128
        %8482 = vxpose.xlu0.b32.cont [15/16] 0.0, 128
        %8483 = vxpose.xlu0.b32.end [16/16] 0.0, 128
        %v8484 = vpop.trf.xlu0
        %v8485 = vpop.trf.xlu0
        %v8486 = vpop.trf.xlu0
        %v8487 = vpop.trf.xlu0
        %v8488 = vpop.trf.xlu0
        %v8489 = vpop.trf.xlu0
        %v8490 = vpop.trf.xlu0
        %v8491 = vpop.trf.xlu0
        %v8492 = vpop.trf.xlu0
        %v8493 = vpop.trf.xlu0
        %v8494 = vpop.trf.xlu0
        %v8495 = vpop.trf.xlu0
        %v8496 = vpop.trf.xlu0
        %v8497 = vpop.trf.xlu0
        %v8498 = vpop.trf.xlu0
        %v8499 = vpop.trf.xlu0
        %v8500 = vstv %s375
        %v8501 = vmul.f32 %v8286, %v8500
        %8503 = vset.pattern.permute.xlu0 0
        %8504 = vperm.xlu0 %8503, %v8484
        %v8505 = vpop.permute.xlu0 %8504
        %8508 = vset.pattern.permute.xlu0 0
        %8509 = vperm.xlu0 %8508, %v8485
        %v8510 = vpop.permute.xlu0 %8509
        %8513 = vset.pattern.permute.xlu0 0
        %8514 = vperm.xlu0 %8513, %v8486
        %v8515 = vpop.permute.xlu0 %8514
        %8518 = vset.pattern.permute.xlu0 0
        %8519 = vperm.xlu0 %8518, %v8487
        %v8520 = vpop.permute.xlu0 %8519
        %v8522 = vmul.f32 %v8505, %v8501
        %v8523 = vmul.f32 %v8510, %v8501
        %v8524 = vmul.f32 %v8515, %v8501
        %v8525 = vmul.f32 %v8520, %v8501
        %v8526 = vmul.f32 %v8446, %v8522
        %v8527 = vmul.f32 %v8451, %v8523
        %v8528 = vmul.f32 %v8456, %v8524
        %v8529 = vmul.f32 %v8461, %v8525
        %v8530 = vsel %vm376, %v8526, -inf
        %8531 = vmax.xlane.f32.xlu0 %v8530
        %v8532 = vpop.xlane.xlu0 %8531
        %v8533 = vsel %vm376, %v8527, -inf
        %8534 = vmax.xlane.f32.xlu0 %v8533
        %v8535 = vpop.xlane.xlu0 %8534
        %v8536 = vsel %vm376, %v8528, -inf
        %8537 = vmax.xlane.f32.xlu0 %v8536
        %v8538 = vpop.xlane.xlu0 %8537
        %v8539 = vsel %vm376, %v8529, -inf
        %8540 = vmax.xlane.f32.xlu0 %v8539
        %v8541 = vpop.xlane.xlu0 %8540
        %v8542 = vsub.f32 %v8526, %v8532
        %v8543 = vsub.f32 %v8527, %v8535
        %v8544 = vsub.f32 %v8528, %v8538
        %v8545 = vsub.f32 %v8529, %v8541
        %v8546 = vmul.f32 %v8542, 1.442695
        %v8547 = vpow.pop %v8546
        %v8548 = vmul.f32 %v8543, 1.442695
        %v8549 = vpow.pop %v8548
        %v8550 = vmul.f32 %v8544, 1.442695
        %v8551 = vpow.pop %v8550
        %v8552 = vmul.f32 %v8545, 1.442695
        %v8553 = vpow.pop %v8552
        %v8554 = vsel %vm376, %v8547, 0.0
        %8555 = vadd.xlane.f32.xlu0 %v8554
        %v8556 = vpop.xlane.xlu0 %8555
        %v8557 = vsel %vm376, %v8549, 0.0
        %8558 = vadd.xlane.f32.xlu0 %v8557
        %v8559 = vpop.xlane.xlu0 %8558
        %v8560 = vsel %vm376, %v8551, 0.0
        %8561 = vadd.xlane.f32.xlu0 %v8560
        %v8562 = vpop.xlane.xlu0 %8561
        %v8563 = vsel %vm376, %v8553, 0.0
        %8564 = vadd.xlane.f32.xlu0 %v8563
        %v8565 = vpop.xlane.xlu0 %8564
        %v8566 = vrcp.pop %v8556
        %v8567 = vrcp.pop %v8559
        %v8568 = vrcp.pop %v8562
        %v8569 = vrcp.pop %v8565
        %v8570 = vmul.f32 %v8547, %v8566
        %v8571 = vmul.f32 %v8549, %v8567
        %v8572 = vmul.f32 %v8551, %v8568
        %v8573 = vmul.f32 %v8553, %v8569
        %v8575 = vsel %vm376, %v8256, 0
        %v8578 = vsel %vm376, %v8257, 0
        %v8581 = vsel %vm376, %v8258, 0
        %v8584 = vsel %vm376, %v8259, 0
        %v8587 = vsel %vm376, %v8260, 0
        %v8590 = vsel %vm376, %v8261, 0
        %v8593 = vsel %vm376, %v8262, 0
        %v8596 = vsel %vm376, %v8263, 0
        %v8599 = vsel %vm376, %v8570, 0
        %v8602 = vsel %vm376, %v8571, 0
        %v8605 = vsel %vm376, %v8572, 0
        %v8608 = vsel %vm376, %v8573, 0
        %8610 = vmatprep.subr.mxu0 0.0
        %8611 = vmatpush1.xpose.msra.mxu0 %v8599
        %8612 = vmatprep.subr.mxu0 0.0
        %8613 = vmatpush1.xpose.msra.mxu0 %v8602
        %8614 = vmatprep.subr.mxu0 0.0
        %8615 = vmatpush1.xpose.msra.mxu0 %v8605
        %8616 = vmatprep.subr.mxu0 0.0
        %8617 = vmatpush1.xpose.msra.mxu0 %v8608
        %8618 = vmatprep.subr.mxu0 0.0
        %8619 = vmatpush1.xpose.msra.mxu0 0.0
        %8620 = vmatprep.subr.mxu0 0.0
        %8621 = vmatpush1.xpose.msra.mxu0 0.0
        %8622 = vmatprep.subr.mxu0 0.0
        %8623 = vmatpush1.xpose.msra.mxu0 0.0
        %8624 = vmatprep.subr.mxu0 0.0
        %8625 = vmatpush1.xpose.msra.mxu0 0.0
        %8626 = vmatprep.subr.mxu0 0.0
        %8627 = vmatpush1.xpose.msra.mxu0 0.0
        %8628 = vmatprep.subr.mxu0 0.0
        %8629 = vmatpush1.xpose.msra.mxu0 0.0
        %8630 = vmatprep.subr.mxu0 0.0
        %8631 = vmatpush1.xpose.msra.mxu0 0.0
        %8632 = vmatprep.subr.mxu0 0.0
        %8633 = vmatpush1.xpose.msra.mxu0 0.0
        %8634 = vmatprep.subr.mxu0 0.0
        %8635 = vmatpush1.xpose.msra.mxu0 0.0
        %8636 = vmatprep.subr.mxu0 0.0
        %8637 = vmatpush1.xpose.msra.mxu0 0.0
        %8638 = vmatprep.subr.mxu0 0.0
        %8639 = vmatpush1.xpose.msra.mxu0 0.0
        %8640 = vmatprep.subr.mxu0 0.0
        %8641 = vmatpush1.xpose.msra.mxu0 0.0
        %8642 = vmatprep.subr.mxu0 0.0
        %8643 = vmatpush1.xpose.msra.mxu0 0.0
        %8644 = vmatprep.subr.mxu0 0.0
        %8645 = vmatpush1.xpose.msra.mxu0 0.0
        %8646 = vmatprep.subr.mxu0 0.0
        %8647 = vmatpush1.xpose.msra.mxu0 0.0
        %8648 = vmatprep.subr.mxu0 0.0
        %8649 = vmatpush1.xpose.msra.mxu0 0.0
        %8650 = vmatprep.subr.mxu0 0.0
        %8651 = vmatpush1.xpose.msra.mxu0 0.0
        %8652 = vmatprep.subr.mxu0 0.0
        %8653 = vmatpush1.xpose.msra.mxu0 0.0
        %8654 = vmatprep.subr.mxu0 0.0
        %8655 = vmatpush1.xpose.msra.mxu0 0.0
        %8656 = vmatprep.subr.mxu0 0.0
        %8657 = vmatpush1.xpose.msra.mxu0 0.0
        %8658 = vmatprep.subr.mxu0 0.0
        %8659 = vmatpush1.xpose.msra.mxu0 0.0
        %8660 = vmatprep.subr.mxu0 0.0
        %8661 = vmatpush1.xpose.msra.mxu0 0.0
        %8662 = vmatprep.subr.mxu0 0.0
        %8663 = vmatpush1.xpose.msra.mxu0 0.0
        %8664 = vmatprep.subr.mxu0 0.0
        %8665 = vmatpush1.xpose.msra.mxu0 0.0
        %8666 = vmatprep.subr.mxu0 0.0
        %8667 = vmatpush1.xpose.msra.mxu0 0.0
        %8668 = vmatprep.subr.mxu0 0.0
        %8669 = vmatpush1.xpose.msra.mxu0 0.0
        %8670 = vmatprep.subr.mxu0 0.0
        %8671 = vmatpush1.xpose.msra.mxu0 0.0
        %8672 = vmatprep.subr.mxu0 0.0
        %8673 = vmatpush1.xpose.msra.mxu0 0.0
        %8674 = vmatprep.mubr.f32.mxu0 0.0
        %8675 = vmatmul.mubr.f32.gmra.mrb[0].mxu0 %v8575
        %v8676 = vpop.f32.mrb[0].mxu0
        %v8677 = vadd.f32 0.0, %v8676
        %v8678 = vpop.f32.mrb[0].mxu0
        %8679 = vmatprep.mubr.f32.mxu0 0.0
        %8680 = vmatmul.mubr.f32.gmra.mrb[0].mxu0 %v8578
        %v8681 = vpop.f32.mrb[0].mxu0
        %v8682 = vadd.f32 0.0, %v8681
        %v8683 = vpop.f32.mrb[0].mxu0
        %8684 = vmatprep.mubr.f32.mxu0 0.0
        %8685 = vmatmul.mubr.f32.gmra.mrb[0].mxu0 %v8581
        %v8686 = vpop.f32.mrb[0].mxu0
        %v8687 = vadd.f32 0.0, %v8686
        %v8688 = vpop.f32.mrb[0].mxu0
        %8689 = vmatprep.mubr.f32.mxu0 0.0
        %8690 = vmatmul.mubr.f32.gmra.mrb[0].mxu0 %v8584
        %v8691 = vpop.f32.mrb[0].mxu0
        %v8692 = vadd.f32 0.0, %v8691
        %v8693 = vpop.f32.mrb[0].mxu0
        %8694 = vmatprep.mubr.f32.mxu0 0.0
        %8695 = vmatmul.mubr.f32.gmra.mrb[0].mxu0 %v8587
        %v8696 = vpop.f32.mrb[0].mxu0
        %v8697 = vadd.f32 0.0, %v8696
        %v8698 = vpop.f32.mrb[0].mxu0
        %8699 = vmatprep.mubr.f32.mxu0 0.0
        %8700 = vmatmul.mubr.f32.gmra.mrb[0].mxu0 %v8590
        %v8701 = vpop.f32.mrb[0].mxu0
        %v8702 = vadd.f32 0.0, %v8701
        %v8703 = vpop.f32.mrb[0].mxu0
        %8704 = vmatprep.mubr.f32.mxu0 0.0
        %8705 = vmatmul.mubr.f32.gmra.mrb[0].mxu0 %v8593
        %v8706 = vpop.f32.mrb[0].mxu0
        %v8707 = vadd.f32 0.0, %v8706
        %v8708 = vpop.f32.mrb[0].mxu0
        %8709 = vmatprep.mubr.f32.mxu0 0.0
        %8710 = vmatmul.mubr.f32.gmra.mrb[0].mxu0 %v8596
        %v8711 = vpop.f32.mrb[0].mxu0
        %v8712 = vadd.f32 0.0, %v8711
        %v8713 = vpop.f32.mrb[0].mxu0
        %8714 = vdwg.mxu0
        %v8715 = vlaneseq
        %v8716 = vshrl.u32 %v8715, 7
        %v8717 = vsub.s32 2, %v8716
        %v8718 = vrot.slane %v372, %v8717
        %v8720 = vsel %vm376, %v8677, 0
        %v8723 = vsel %vm376, %v8682, 0
        %v8726 = vsel %vm376, %v8687, 0
        %v8729 = vsel %vm376, %v8692, 0
        %v8732 = vsel %vm376, %v8697, 0
        %v8735 = vsel %vm376, %v8702, 0
        %v8738 = vsel %vm376, %v8707, 0
        %v8741 = vsel %vm376, %v8712, 0
        %8743 = vmatprep.subr.mxu0 0.0
        %8744 = vmatpush1.msra.mxu0 %v352
        %8745 = vmatprep.subr.mxu0 0.0
        %8746 = vmatpush1.msra.mxu0 %v353
        %8747 = vmatprep.subr.mxu0 0.0
        %8748 = vmatpush1.msra.mxu0 %v354
        %8749 = vmatprep.subr.mxu0 0.0
        %8750 = vmatpush1.msra.mxu0 %v355
        %8751 = vmatprep.subr.mxu0 0.0
        %8752 = vmatpush1.msra.mxu0 0.0
        %8753 = vmatprep.subr.mxu0 0.0
        %8754 = vmatpush1.msra.mxu0 0.0
        %8755 = vmatprep.subr.mxu0 0.0
        %8756 = vmatpush1.msra.mxu0 0.0
        %8757 = vmatprep.subr.mxu0 0.0
        %8758 = vmatpush1.msra.mxu0 0.0
        %8759 = vmatprep.subr.mxu0 0.0
        %8760 = vmatpush1.msra.mxu0 0.0
        %8761 = vmatprep.subr.mxu0 0.0
        %8762 = vmatpush1.msra.mxu0 0.0
        %8763 = vmatprep.subr.mxu0 0.0
        %8764 = vmatpush1.msra.mxu0 0.0
        %8765 = vmatprep.subr.mxu0 0.0
        %8766 = vmatpush1.msra.mxu0 0.0
        %8767 = vmatprep.subr.mxu0 0.0
        %8768 = vmatpush1.msra.mxu0 0.0
        %8769 = vmatprep.subr.mxu0 0.0
        %8770 = vmatpush1.msra.mxu0 0.0
        %8771 = vmatprep.subr.mxu0 0.0
        %8772 = vmatpush1.msra.mxu0 0.0
        %8773 = vmatprep.subr.mxu0 0.0
        %8774 = vmatpush1.msra.mxu0 0.0
        %8775 = vmatprep.subr.mxu0 0.0
        %8776 = vmatpush1.msra.mxu0 0.0
        %8777 = vmatprep.subr.mxu0 0.0
        %8778 = vmatpush1.msra.mxu0 0.0
        %8779 = vmatprep.subr.mxu0 0.0
        %8780 = vmatpush1.msra.mxu0 0.0
        %8781 = vmatprep.subr.mxu0 0.0
        %8782 = vmatpush1.msra.mxu0 0.0
        %8783 = vmatprep.subr.mxu0 0.0
        %8784 = vmatpush1.msra.mxu0 0.0
        %8785 = vmatprep.subr.mxu0 0.0
        %8786 = vmatpush1.msra.mxu0 0.0
        %8787 = vmatprep.subr.mxu0 0.0
        %8788 = vmatpush1.msra.mxu0 0.0
        %8789 = vmatprep.subr.mxu0 0.0
        %8790 = vmatpush1.msra.mxu0 0.0
        %8791 = vmatprep.subr.mxu0 0.0
        %8792 = vmatpush1.msra.mxu0 0.0
        %8793 = vmatprep.subr.mxu0 0.0
        %8794 = vmatpush1.msra.mxu0 0.0
        %8795 = vmatprep.subr.mxu0 0.0
        %8796 = vmatpush1.msra.mxu0 0.0
        %8797 = vmatprep.subr.mxu0 0.0
        %8798 = vmatpush1.msra.mxu0 0.0
        %8799 = vmatprep.subr.mxu0 0.0
        %8800 = vmatpush1.msra.mxu0 0.0
        %8801 = vmatprep.subr.mxu0 0.0
        %8802 = vmatpush1.msra.mxu0 0.0
        %8803 = vmatprep.subr.mxu0 0.0
        %8804 = vmatpush1.msra.mxu0 0.0
        %8805 = vmatprep.subr.mxu0 0.0
        %8806 = vmatpush1.msra.mxu0 0.0
        %8807 = vmatprep.mubr.f32.mxu0 0.0
        %8808 = vmatmul.mubr.f32.gmra.mrb[0].mxu0 %v8720
        %v8809 = vpop.f32.mrb[0].mxu0
        %v8810 = vadd.f32 %v8718, %v8809
        %v8811 = vpop.f32.mrb[0].mxu0
        %8812 = vmatprep.mubr.f32.mxu0 0.0
        %8813 = vmatmul.mubr.f32.gmra.mrb[0].mxu0 %v8723
        %v8814 = vpop.f32.mrb[0].mxu0
        %v8815 = vadd.f32 %v8718, %v8814
        %v8816 = vpop.f32.mrb[0].mxu0
        %8817 = vmatprep.mubr.f32.mxu0 0.0
        %8818 = vmatmul.mubr.f32.gmra.mrb[0].mxu0 %v8726
        %v8819 = vpop.f32.mrb[0].mxu0
        %v8820 = vadd.f32 %v8718, %v8819
        %v8821 = vpop.f32.mrb[0].mxu0
        %8822 = vmatprep.mubr.f32.mxu0 0.0
        %8823 = vmatmul.mubr.f32.gmra.mrb[0].mxu0 %v8729
        %v8824 = vpop.f32.mrb[0].mxu0
        %v8825 = vadd.f32 %v8718, %v8824
        %v8826 = vpop.f32.mrb[0].mxu0
        %8827 = vmatprep.mubr.f32.mxu0 0.0
        %8828 = vmatmul.mubr.f32.gmra.mrb[0].mxu0 %v8732
        %v8829 = vpop.f32.mrb[0].mxu0
        %v8830 = vadd.f32 %v8718, %v8829
        %v8831 = vpop.f32.mrb[0].mxu0
        %8832 = vmatprep.mubr.f32.mxu0 0.0
        %8833 = vmatmul.mubr.f32.gmra.mrb[0].mxu0 %v8735
        %v8834 = vpop.f32.mrb[0].mxu0
        %v8835 = vadd.f32 %v8718, %v8834
        %v8836 = vpop.f32.mrb[0].mxu0
        %8837 = vmatprep.mubr.f32.mxu0 0.0
        %8838 = vmatmul.mubr.f32.gmra.mrb[0].mxu0 %v8738
        %v8839 = vpop.f32.mrb[0].mxu0
        %v8840 = vadd.f32 %v8718, %v8839
        %v8841 = vpop.f32.mrb[0].mxu0
        %8842 = vmatprep.mubr.f32.mxu0 0.0
        %8843 = vmatmul.mubr.f32.gmra.mrb[0].mxu0 %v8741
        %v8844 = vpop.f32.mrb[0].mxu0
        %v8845 = vadd.f32 %v8718, %v8844
        %v8846 = vpop.f32.mrb[0].mxu0
        %8847 = vdwg.mxu0
        %v8848 = vlaneseq
        %v8849 = vshrl.u32 %v8848, 7
        %v8850 = vsub.s32 3, %v8849
        %v8851 = vrot.slane %v372, %v8850
        %8852 = vmatprep.subr.mxu0 0.0
        %8853 = vmatpush1.msra.mxu0 %v356
        %8854 = vmatprep.subr.mxu0 0.0
        %8855 = vmatpush1.msra.mxu0 %v357
        %8856 = vmatprep.subr.mxu0 0.0
        %8857 = vmatpush1.msra.mxu0 %v358
        %8858 = vmatprep.subr.mxu0 0.0
        %8859 = vmatpush1.msra.mxu0 %v359
        %8860 = vmatprep.subr.mxu0 0.0
        %8861 = vmatpush1.msra.mxu0 0.0
        %8862 = vmatprep.subr.mxu0 0.0
        %8863 = vmatpush1.msra.mxu0 0.0
        %8864 = vmatprep.subr.mxu0 0.0
        %8865 = vmatpush1.msra.mxu0 0.0
        %8866 = vmatprep.subr.mxu0 0.0
        %8867 = vmatpush1.msra.mxu0 0.0
        %8868 = vmatprep.subr.mxu0 0.0
        %8869 = vmatpush1.msra.mxu0 0.0
        %8870 = vmatprep.subr.mxu0 0.0
        %8871 = vmatpush1.msra.mxu0 0.0
        %8872 = vmatprep.subr.mxu0 0.0
        %8873 = vmatpush1.msra.mxu0 0.0
        %8874 = vmatprep.subr.mxu0 0.0
        %8875 = vmatpush1.msra.mxu0 0.0
        %8876 = vmatprep.subr.mxu0 0.0
        %8877 = vmatpush1.msra.mxu0 0.0
        %8878 = vmatprep.subr.mxu0 0.0
        %8879 = vmatpush1.msra.mxu0 0.0
        %8880 = vmatprep.subr.mxu0 0.0
        %8881 = vmatpush1.msra.mxu0 0.0
        %8882 = vmatprep.subr.mxu0 0.0
        %8883 = vmatpush1.msra.mxu0 0.0
        %8884 = vmatprep.subr.mxu0 0.0
        %8885 = vmatpush1.msra.mxu0 0.0
        %8886 = vmatprep.subr.mxu0 0.0
        %8887 = vmatpush1.msra.mxu0 0.0
        %8888 = vmatprep.subr.mxu0 0.0
        %8889 = vmatpush1.msra.mxu0 0.0
        %8890 = vmatprep.subr.mxu0 0.0
        %8891 = vmatpush1.msra.mxu0 0.0
        %8892 = vmatprep.subr.mxu0 0.0
        %8893 = vmatpush1.msra.mxu0 0.0
        %8894 = vmatprep.subr.mxu0 0.0
        %8895 = vmatpush1.msra.mxu0 0.0
        %8896 = vmatprep.subr.mxu0 0.0
        %8897 = vmatpush1.msra.mxu0 0.0
        %8898 = vmatprep.subr.mxu0 0.0
        %8899 = vmatpush1.msra.mxu0 0.0
        %8900 = vmatprep.subr.mxu0 0.0
        %8901 = vmatpush1.msra.mxu0 0.0
        %8902 = vmatprep.subr.mxu0 0.0
        %8903 = vmatpush1.msra.mxu0 0.0
        %8904 = vmatprep.subr.mxu0 0.0
        %8905 = vmatpush1.msra.mxu0 0.0
        %8906 = vmatprep.subr.mxu0 0.0
        %8907 = vmatpush1.msra.mxu0 0.0
        %8908 = vmatprep.subr.mxu0 0.0
        %8909 = vmatpush1.msra.mxu0 0.0
        %8910 = vmatprep.subr.mxu0 0.0
        %8911 = vmatpush1.msra.mxu0 0.0
        %8912 = vmatprep.subr.mxu0 0.0
        %8913 = vmatpush1.msra.mxu0 0.0
        %8914 = vmatprep.subr.mxu0 0.0
        %8915 = vmatpush1.msra.mxu0 0.0
        %8916 = vmatprep.mubr.f32.mxu0 0.0
        %8917 = vmatmul.mubr.f32.gmra.mrb[0].mxu0 %v779
        %v8918 = vpop.f32.mrb[0].mxu0
        %v8919 = vadd.f32 %v8851, %v8918
        %v8920 = vpop.f32.mrb[0].mxu0
        %8921 = vmatprep.mubr.f32.mxu0 0.0
        %8922 = vmatmul.mubr.f32.gmra.mrb[0].mxu0 %v781
        %v8923 = vpop.f32.mrb[0].mxu0
        %v8924 = vadd.f32 %v8851, %v8923
        %v8925 = vpop.f32.mrb[0].mxu0
        %8926 = vmatprep.mubr.f32.mxu0 0.0
        %8927 = vmatmul.mubr.f32.gmra.mrb[0].mxu0 %v783
        %v8928 = vpop.f32.mrb[0].mxu0
        %v8929 = vadd.f32 %v8851, %v8928
        %v8930 = vpop.f32.mrb[0].mxu0
        %8931 = vmatprep.mubr.f32.mxu0 0.0
        %8932 = vmatmul.mubr.f32.gmra.mrb[0].mxu0 %v785
        %v8933 = vpop.f32.mrb[0].mxu0
        %v8934 = vadd.f32 %v8851, %v8933
        %v8935 = vpop.f32.mrb[0].mxu0
        %8936 = vmatprep.mubr.f32.mxu0 0.0
        %8937 = vmatmul.mubr.f32.gmra.mrb[0].mxu0 %v787
        %v8938 = vpop.f32.mrb[0].mxu0
        %v8939 = vadd.f32 %v8851, %v8938
        %v8940 = vpop.f32.mrb[0].mxu0
        %8941 = vmatprep.mubr.f32.mxu0 0.0
        %8942 = vmatmul.mubr.f32.gmra.mrb[0].mxu0 %v789
        %v8943 = vpop.f32.mrb[0].mxu0
        %v8944 = vadd.f32 %v8851, %v8943
        %v8945 = vpop.f32.mrb[0].mxu0
        %8946 = vmatprep.mubr.f32.mxu0 0.0
        %8947 = vmatmul.mubr.f32.gmra.mrb[0].mxu0 %v791
        %v8948 = vpop.f32.mrb[0].mxu0
        %v8949 = vadd.f32 %v8851, %v8948
        %v8950 = vpop.f32.mrb[0].mxu0
        %8951 = vmatprep.mubr.f32.mxu0 0.0
        %8952 = vmatmul.mubr.f32.gmra.mrb[0].mxu0 %v793
        %v8953 = vpop.f32.mrb[0].mxu0
        %v8954 = vadd.f32 %v8851, %v8953
        %v8955 = vpop.f32.mrb[0].mxu0
        %8956 = vdwg.mxu0
        %v8957 = vmul.f32 %v8919, 0.5
        %v8958 = vmul.f32 %v8924, 0.5
        %v8959 = vmul.f32 %v8929, 0.5
        %v8960 = vmul.f32 %v8934, 0.5
        %v8961 = vmul.f32 %v8939, 0.5
        %v8962 = vmul.f32 %v8944, 0.5
        %v8963 = vmul.f32 %v8949, 0.5
        %v8964 = vmul.f32 %v8954, 0.5
        %v8965 = vmul.f32 %v8919, 0.70710677
        %v8966 = vmul.f32 %v8924, 0.70710677
        %v8967 = vmul.f32 %v8929, 0.70710677
        %v8968 = vmul.f32 %v8934, 0.70710677
        %v8969 = vmul.f32 %v8939, 0.70710677
        %v8970 = vmul.f32 %v8944, 0.70710677
        %v8971 = vmul.f32 %v8949, 0.70710677
        %v8972 = vmul.f32 %v8954, 0.70710677
        %v8973 = verf.f32.pop %v8965
        %v8974 = verf.f32.pop %v8966
        %v8975 = verf.f32.pop %v8967
        %v8976 = verf.f32.pop %v8968
        %v8977 = verf.f32.pop %v8969
        %v8978 = verf.f32.pop %v8970
        %v8979 = verf.f32.pop %v8971
        %v8980 = verf.f32.pop %v8972
        %v8981 = vadd.f32 %v8973, 1.0
        %v8982 = vadd.f32 %v8974, 1.0
        %v8983 = vadd.f32 %v8975, 1.0
        %v8984 = vadd.f32 %v8976, 1.0
        %v8985 = vadd.f32 %v8977, 1.0
        %v8986 = vadd.f32 %v8978, 1.0
        %v8987 = vadd.f32 %v8979, 1.0
        %v8988 = vadd.f32 %v8980, 1.0
        %v8989 = vmul.f32 %v8957, %v8981
        %v8990 = vmul.f32 %v8958, %v8982
        %v8991 = vmul.f32 %v8959, %v8983
        %v8992 = vmul.f32 %v8960, %v8984
        %v8993 = vmul.f32 %v8961, %v8985
        %v8994 = vmul.f32 %v8962, %v8986
        %v8995 = vmul.f32 %v8963, %v8987
        %v8996 = vmul.f32 %v8964, %v8988
        %v8997 = vlaneseq
        %v8998 = vshrl.u32 %v8997, 7
        %v8999 = vsub.s32 4, %v8998
        %v9000 = vrot.slane %v372, %v8999
        %v9002 = vsel %vm376, %v8989, 0
        %v9005 = vsel %vm376, %v8990, 0
        %v9008 = vsel %vm376, %v8991, 0
        %v9011 = vsel %vm376, %v8992, 0
        %v9014 = vsel %vm376, %v8993, 0
        %v9017 = vsel %vm376, %v8994, 0
        %v9020 = vsel %vm376, %v8995, 0
        %v9023 = vsel %vm376, %v8996, 0
        %9025 = vmatprep.subr.mxu0 0.0
        %9026 = vmatpush1.msra.mxu0 %v360
        %9027 = vmatprep.subr.mxu0 0.0
        %9028 = vmatpush1.msra.mxu0 %v361
        %9029 = vmatprep.subr.mxu0 0.0
        %9030 = vmatpush1.msra.mxu0 %v362
        %9031 = vmatprep.subr.mxu0 0.0
        %9032 = vmatpush1.msra.mxu0 %v363
        %9033 = vmatprep.subr.mxu0 0.0
        %9034 = vmatpush1.msra.mxu0 0.0
        %9035 = vmatprep.subr.mxu0 0.0
        %9036 = vmatpush1.msra.mxu0 0.0
        %9037 = vmatprep.subr.mxu0 0.0
        %9038 = vmatpush1.msra.mxu0 0.0
        %9039 = vmatprep.subr.mxu0 0.0
        %9040 = vmatpush1.msra.mxu0 0.0
        %9041 = vmatprep.subr.mxu0 0.0
        %9042 = vmatpush1.msra.mxu0 0.0
        %9043 = vmatprep.subr.mxu0 0.0
        %9044 = vmatpush1.msra.mxu0 0.0
        %9045 = vmatprep.subr.mxu0 0.0
        %9046 = vmatpush1.msra.mxu0 0.0
        %9047 = vmatprep.subr.mxu0 0.0
        %9048 = vmatpush1.msra.mxu0 0.0
        %9049 = vmatprep.subr.mxu0 0.0
        %9050 = vmatpush1.msra.mxu0 0.0
        %9051 = vmatprep.subr.mxu0 0.0
        %9052 = vmatpush1.msra.mxu0 0.0
        %9053 = vmatprep.subr.mxu0 0.0
        %9054 = vmatpush1.msra.mxu0 0.0
        %9055 = vmatprep.subr.mxu0 0.0
        %9056 = vmatpush1.msra.mxu0 0.0
        %9057 = vmatprep.subr.mxu0 0.0
        %9058 = vmatpush1.msra.mxu0 0.0
        %9059 = vmatprep.subr.mxu0 0.0
        %9060 = vmatpush1.msra.mxu0 0.0
        %9061 = vmatprep.subr.mxu0 0.0
        %9062 = vmatpush1.msra.mxu0 0.0
        %9063 = vmatprep.subr.mxu0 0.0
        %9064 = vmatpush1.msra.mxu0 0.0
        %9065 = vmatprep.subr.mxu0 0.0
        %9066 = vmatpush1.msra.mxu0 0.0
        %9067 = vmatprep.subr.mxu0 0.0
        %9068 = vmatpush1.msra.mxu0 0.0
        %9069 = vmatprep.subr.mxu0 0.0
        %9070 = vmatpush1.msra.mxu0 0.0
        %9071 = vmatprep.subr.mxu0 0.0
        %9072 = vmatpush1.msra.mxu0 0.0
        %9073 = vmatprep.subr.mxu0 0.0
        %9074 = vmatpush1.msra.mxu0 0.0
        %9075 = vmatprep.subr.mxu0 0.0
        %9076 = vmatpush1.msra.mxu0 0.0
        %9077 = vmatprep.subr.mxu0 0.0
        %9078 = vmatpush1.msra.mxu0 0.0
        %9079 = vmatprep.subr.mxu0 0.0
        %9080 = vmatpush1.msra.mxu0 0.0
        %9081 = vmatprep.subr.mxu0 0.0
        %9082 = vmatpush1.msra.mxu0 0.0
        %9083 = vmatprep.subr.mxu0 0.0
        %9084 = vmatpush1.msra.mxu0 0.0
        %9085 = vmatprep.subr.mxu0 0.0
        %9086 = vmatpush1.msra.mxu0 0.0
        %9087 = vmatprep.subr.mxu0 0.0
        %9088 = vmatpush1.msra.mxu0 0.0
        %9089 = vmatprep.mubr.f32.mxu0 0.0
        %9090 = vmatmul.mubr.f32.gmra.mrb[0].mxu0 %v9002
        %v9091 = vpop.f32.mrb[0].mxu0
        %v9092 = vadd.f32 %v9000, %v9091
        %v9093 = vpop.f32.mrb[0].mxu0
        %9094 = vmatprep.mubr.f32.mxu0 0.0
        %9095 = vmatmul.mubr.f32.gmra.mrb[0].mxu0 %v9005
        %v9096 = vpop.f32.mrb[0].mxu0
        %v9097 = vadd.f32 %v9000, %v9096
        %v9098 = vpop.f32.mrb[0].mxu0
        %9099 = vmatprep.mubr.f32.mxu0 0.0
        %9100 = vmatmul.mubr.f32.gmra.mrb[0].mxu0 %v9008
        %v9101 = vpop.f32.mrb[0].mxu0
        %v9102 = vadd.f32 %v9000, %v9101
        %v9103 = vpop.f32.mrb[0].mxu0
        %9104 = vmatprep.mubr.f32.mxu0 0.0
        %9105 = vmatmul.mubr.f32.gmra.mrb[0].mxu0 %v9011
        %v9106 = vpop.f32.mrb[0].mxu0
        %v9107 = vadd.f32 %v9000, %v9106
        %v9108 = vpop.f32.mrb[0].mxu0
        %9109 = vmatprep.mubr.f32.mxu0 0.0
        %9110 = vmatmul.mubr.f32.gmra.mrb[0].mxu0 %v9014
        %v9111 = vpop.f32.mrb[0].mxu0
        %v9112 = vadd.f32 %v9000, %v9111
        %v9113 = vpop.f32.mrb[0].mxu0
        %9114 = vmatprep.mubr.f32.mxu0 0.0
        %9115 = vmatmul.mubr.f32.gmra.mrb[0].mxu0 %v9017
        %v9116 = vpop.f32.mrb[0].mxu0
        %v9117 = vadd.f32 %v9000, %v9116
        %v9118 = vpop.f32.mrb[0].mxu0
        %9119 = vmatprep.mubr.f32.mxu0 0.0
        %9120 = vmatmul.mubr.f32.gmra.mrb[0].mxu0 %v9020
        %v9121 = vpop.f32.mrb[0].mxu0
        %v9122 = vadd.f32 %v9000, %v9121
        %v9123 = vpop.f32.mrb[0].mxu0
        %9124 = vmatprep.mubr.f32.mxu0 0.0
        %9125 = vmatmul.mubr.f32.gmra.mrb[0].mxu0 %v9023
        %v9126 = vpop.f32.mrb[0].mxu0
        %v9127 = vadd.f32 %v9000, %v9126
        %v9128 = vpop.f32.mrb[0].mxu0
        %9129 = vdwg.mxu0
        %v9130 = vadd.f32 %v332, %v8810
        %v9131 = vadd.f32 %v333, %v8815
        %v9132 = vadd.f32 %v334, %v8820
        %v9133 = vadd.f32 %v335, %v8825
        %v9134 = vadd.f32 %v336, %v8830
        %v9135 = vadd.f32 %v337, %v8835
        %v9136 = vadd.f32 %v338, %v8840
        %v9137 = vadd.f32 %v339, %v8845
        %v9138 = vadd.f32 %v9130, %v9092
        %v9139 = vadd.f32 %v9131, %v9097
        %v9140 = vadd.f32 %v9132, %v9102
        %v9141 = vadd.f32 %v9133, %v9107
        %v9142 = vadd.f32 %v9134, %v9112
        %v9143 = vadd.f32 %v9135, %v9117
        %v9144 = vadd.f32 %v9136, %v9122
        %v9145 = vadd.f32 %v9137, %v9127
        %v9146 = vsel %vm376, %v9138, 0.0
        %9147 = vadd.xlane.f32.xlu0 %v9146
        %v9148 = vpop.xlane.xlu0 %9147
        %v9149 = vsel %vm376, %v9139, 0.0
        %9150 = vadd.xlane.f32.xlu0 %v9149
        %v9151 = vpop.xlane.xlu0 %9150
        %v9152 = vsel %vm376, %v9140, 0.0
        %9153 = vadd.xlane.f32.xlu0 %v9152
        %v9154 = vpop.xlane.xlu0 %9153
        %v9155 = vsel %vm376, %v9141, 0.0
        %9156 = vadd.xlane.f32.xlu0 %v9155
        %v9157 = vpop.xlane.xlu0 %9156
        %v9158 = vsel %vm376, %v9142, 0.0
        %9159 = vadd.xlane.f32.xlu0 %v9158
        %v9160 = vpop.xlane.xlu0 %9159
        %v9161 = vsel %vm376, %v9143, 0.0
        %9162 = vadd.xlane.f32.xlu0 %v9161
        %v9163 = vpop.xlane.xlu0 %9162
        %v9164 = vsel %vm376, %v9144, 0.0
        %9165 = vadd.xlane.f32.xlu0 %v9164
        %v9166 = vpop.xlane.xlu0 %9165
        %v9167 = vsel %vm376, %v9145, 0.0
        %9168 = vadd.xlane.f32.xlu0 %v9167
        %v9169 = vpop.xlane.xlu0 %9168
        %v9170 = vmul.f32 %v9148, %v401
        %v9171 = vmul.f32 %v9151, %v401
        %v9172 = vmul.f32 %v9154, %v401
        %v9173 = vmul.f32 %v9157, %v401
        %v9174 = vmul.f32 %v9160, %v401
        %v9175 = vmul.f32 %v9163, %v401
        %v9176 = vmul.f32 %v9166, %v401
        %v9177 = vmul.f32 %v9169, %v401
        %v9178 = vsub.f32 %v9138, %v9170
        %v9179 = vsub.f32 %v9139, %v9171
        %v9180 = vsub.f32 %v9140, %v9172
        %v9181 = vsub.f32 %v9141, %v9173
        %v9182 = vsub.f32 %v9142, %v9174
        %v9183 = vsub.f32 %v9143, %v9175
        %v9184 = vsub.f32 %v9144, %v9176
        %v9185 = vsub.f32 %v9145, %v9177
        %v9186 = vmul.f32 %v9178, %v9178
        %v9187 = vmul.f32 %v9179, %v9179
        %v9188 = vmul.f32 %v9180, %v9180
        %v9189 = vmul.f32 %v9181, %v9181
        %v9190 = vmul.f32 %v9182, %v9182
        %v9191 = vmul.f32 %v9183, %v9183
        %v9192 = vmul.f32 %v9184, %v9184
        %v9193 = vmul.f32 %v9185, %v9185
        %v9194 = vsel %vm376, %v9186, 0.0
        %9195 = vadd.xlane.f32.xlu0 %v9194
        %v9196 = vpop.xlane.xlu0 %9195
        %v9197 = vsel %vm376, %v9187, 0.0
        %9198 = vadd.xlane.f32.xlu0 %v9197
        %v9199 = vpop.xlane.xlu0 %9198
        %v9200 = vsel %vm376, %v9188, 0.0
        %9201 = vadd.xlane.f32.xlu0 %v9200
        %v9202 = vpop.xlane.xlu0 %9201
        %v9203 = vsel %vm376, %v9189, 0.0
        %9204 = vadd.xlane.f32.xlu0 %v9203
        %v9205 = vpop.xlane.xlu0 %9204
        %v9206 = vsel %vm376, %v9190, 0.0
        %9207 = vadd.xlane.f32.xlu0 %v9206
        %v9208 = vpop.xlane.xlu0 %9207
        %v9209 = vsel %vm376, %v9191, 0.0
        %9210 = vadd.xlane.f32.xlu0 %v9209
        %v9211 = vpop.xlane.xlu0 %9210
        %v9212 = vsel %vm376, %v9192, 0.0
        %9213 = vadd.xlane.f32.xlu0 %v9212
        %v9214 = vpop.xlane.xlu0 %9213
        %v9215 = vsel %vm376, %v9193, 0.0
        %9216 = vadd.xlane.f32.xlu0 %v9215
        %v9217 = vpop.xlane.xlu0 %9216
        %v9218 = vmul.f32 %v9196, %v401
        %v9219 = vmul.f32 %v9199, %v401
        %v9220 = vmul.f32 %v9202, %v401
        %v9221 = vmul.f32 %v9205, %v401
        %v9222 = vmul.f32 %v9208, %v401
        %v9223 = vmul.f32 %v9211, %v401
        %v9224 = vmul.f32 %v9214, %v401
        %v9225 = vmul.f32 %v9217, %v401
        %v9226 = vadd.f32 %v9218, 1e-05
        %v9227 = vadd.f32 %v9219, 1e-05
        %v9228 = vadd.f32 %v9220, 1e-05
        %v9229 = vadd.f32 %v9221, 1e-05
        %v9230 = vadd.f32 %v9222, 1e-05
        %v9231 = vadd.f32 %v9223, 1e-05
        %v9232 = vadd.f32 %v9224, 1e-05
        %v9233 = vadd.f32 %v9225, 1e-05
        %v9234 = vrsqrt.pop %v9226
        %v9235 = vrsqrt.pop %v9227
        %v9236 = vrsqrt.pop %v9228
        %v9237 = vrsqrt.pop %v9229
        %v9238 = vrsqrt.pop %v9230
        %v9239 = vrsqrt.pop %v9231
        %v9240 = vrsqrt.pop %v9232
        %v9241 = vrsqrt.pop %v9233
        %v9242 = vmul.f32 %v9178, %v9234
        %v9243 = vmul.f32 %v9179, %v9235
        %v9244 = vmul.f32 %v9180, %v9236
        %v9245 = vmul.f32 %v9181, %v9237
        %v9246 = vmul.f32 %v9182, %v9238
        %v9247 = vmul.f32 %v9183, %v9239
        %v9248 = vmul.f32 %v9184, %v9240
        %v9249 = vmul.f32 %v9185, %v9241
        %v9250 = vlaneseq
        %v9251 = vshrl.u32 %v9250, 7
        %v9252 = vsub.s32 5, %v9251
        %v9253 = vrot.slane %v372, %v9252
        %v9254 = vmul.f32 %v9242, %v9253
        %v9255 = vmul.f32 %v9243, %v9253
        %v9256 = vmul.f32 %v9244, %v9253
        %v9257 = vmul.f32 %v9245, %v9253
        %v9258 = vmul.f32 %v9246, %v9253
        %v9259 = vmul.f32 %v9247, %v9253
        %v9260 = vmul.f32 %v9248, %v9253
        %v9261 = vmul.f32 %v9249, %v9253
        %v9262 = vlaneseq
        %v9263 = vshrl.u32 %v9262, 7
        %v9264 = vsub.s32 6, %v9263
        %v9265 = vrot.slane %v372, %v9264
        %v9266 = vadd.f32 %v9254, %v9265
        %v9267 = vadd.f32 %v9255, %v9265
        %v9268 = vadd.f32 %v9256, %v9265
        %v9269 = vadd.f32 %v9257, %v9265
        %v9270 = vadd.f32 %v9258, %v9265
        %v9271 = vadd.f32 %v9259, %v9265
        %v9272 = vadd.f32 %v9260, %v9265
        %v9273 = vadd.f32 %v9261, %v9265
        %v9274 = vlaneseq
        %v9275 = vshrl.u32 %v9274, 7
        %v9276 = vsub.s32 7, %v9275
        %v9277 = vrot.slane %v372, %v9276
        %v9279 = vsel %vm376, %v9266, 0
        %v9282 = vsel %vm376, %v9267, 0
        %v9285 = vsel %vm376, %v9268, 0
        %v9288 = vsel %vm376, %v9269, 0
        %v9291 = vsel %vm376, %v9270, 0
        %v9294 = vsel %vm376, %v9271, 0
        %v9297 = vsel %vm376, %v9272, 0
        %v9300 = vsel %vm376, %v9273, 0
        %9302 = vmatprep.subr.mxu0 0.0
        %9303 = vmatpush1.msra.mxu0 %v364
        %9304 = vmatprep.subr.mxu0 0.0
        %9305 = vmatpush1.msra.mxu0 %v365
        %9306 = vmatprep.subr.mxu0 0.0
        %9307 = vmatpush1.msra.mxu0 %v366
        %9308 = vmatprep.subr.mxu0 0.0
        %9309 = vmatpush1.msra.mxu0 %v367
        %9310 = vmatprep.subr.mxu0 0.0
        %9311 = vmatpush1.msra.mxu0 0.0
        %9312 = vmatprep.subr.mxu0 0.0
        %9313 = vmatpush1.msra.mxu0 0.0
        %9314 = vmatprep.subr.mxu0 0.0
        %9315 = vmatpush1.msra.mxu0 0.0
        %9316 = vmatprep.subr.mxu0 0.0
        %9317 = vmatpush1.msra.mxu0 0.0
        %9318 = vmatprep.subr.mxu0 0.0
        %9319 = vmatpush1.msra.mxu0 0.0
        %9320 = vmatprep.subr.mxu0 0.0
        %9321 = vmatpush1.msra.mxu0 0.0
        %9322 = vmatprep.subr.mxu0 0.0
        %9323 = vmatpush1.msra.mxu0 0.0
        %9324 = vmatprep.subr.mxu0 0.0
        %9325 = vmatpush1.msra.mxu0 0.0
        %9326 = vmatprep.subr.mxu0 0.0
        %9327 = vmatpush1.msra.mxu0 0.0
        %9328 = vmatprep.subr.mxu0 0.0
        %9329 = vmatpush1.msra.mxu0 0.0
        %9330 = vmatprep.subr.mxu0 0.0
        %9331 = vmatpush1.msra.mxu0 0.0
        %9332 = vmatprep.subr.mxu0 0.0
        %9333 = vmatpush1.msra.mxu0 0.0
        %9334 = vmatprep.subr.mxu0 0.0
        %9335 = vmatpush1.msra.mxu0 0.0
        %9336 = vmatprep.subr.mxu0 0.0
        %9337 = vmatpush1.msra.mxu0 0.0
        %9338 = vmatprep.subr.mxu0 0.0
        %9339 = vmatpush1.msra.mxu0 0.0
        %9340 = vmatprep.subr.mxu0 0.0
        %9341 = vmatpush1.msra.mxu0 0.0
        %9342 = vmatprep.subr.mxu0 0.0
        %9343 = vmatpush1.msra.mxu0 0.0
        %9344 = vmatprep.subr.mxu0 0.0
        %9345 = vmatpush1.msra.mxu0 0.0
        %9346 = vmatprep.subr.mxu0 0.0
        %9347 = vmatpush1.msra.mxu0 0.0
        %9348 = vmatprep.subr.mxu0 0.0
        %9349 = vmatpush1.msra.mxu0 0.0
        %9350 = vmatprep.subr.mxu0 0.0
        %9351 = vmatpush1.msra.mxu0 0.0
        %9352 = vmatprep.subr.mxu0 0.0
        %9353 = vmatpush1.msra.mxu0 0.0
        %9354 = vmatprep.subr.mxu0 0.0
        %9355 = vmatpush1.msra.mxu0 0.0
        %9356 = vmatprep.subr.mxu0 0.0
        %9357 = vmatpush1.msra.mxu0 0.0
        %9358 = vmatprep.subr.mxu0 0.0
        %9359 = vmatpush1.msra.mxu0 0.0
        %9360 = vmatprep.subr.mxu0 0.0
        %9361 = vmatpush1.msra.mxu0 0.0
        %9362 = vmatprep.subr.mxu0 0.0
        %9363 = vmatpush1.msra.mxu0 0.0
        %9364 = vmatprep.subr.mxu0 0.0
        %9365 = vmatpush1.msra.mxu0 0.0
        %9366 = vmatprep.mubr.f32.mxu0 0.0
        %9367 = vmatmul.mubr.f32.gmra.mrb[0].mxu0 %v9279
        %v9368 = vpop.f32.mrb[0].mxu0
        %v9369 = vadd.f32 %v9277, %v9368
        %v9370 = vpop.f32.mrb[0].mxu0
        %9371 = vmatprep.mubr.f32.mxu0 0.0
        %9372 = vmatmul.mubr.f32.gmra.mrb[0].mxu0 %v9282
        %v9373 = vpop.f32.mrb[0].mxu0
        %v9374 = vadd.f32 %v9277, %v9373
        %v9375 = vpop.f32.mrb[0].mxu0
        %9376 = vmatprep.mubr.f32.mxu0 0.0
        %9377 = vmatmul.mubr.f32.gmra.mrb[0].mxu0 %v9285
        %v9378 = vpop.f32.mrb[0].mxu0
        %v9379 = vadd.f32 %v9277, %v9378
        %v9380 = vpop.f32.mrb[0].mxu0
        %9381 = vmatprep.mubr.f32.mxu0 0.0
        %9382 = vmatmul.mubr.f32.gmra.mrb[0].mxu0 %v9288
        %v9383 = vpop.f32.mrb[0].mxu0
        %v9384 = vadd.f32 %v9277, %v9383
        %v9385 = vpop.f32.mrb[0].mxu0
        %9386 = vmatprep.mubr.f32.mxu0 0.0
        %9387 = vmatmul.mubr.f32.gmra.mrb[0].mxu0 %v9291
        %v9388 = vpop.f32.mrb[0].mxu0
        %v9389 = vadd.f32 %v9277, %v9388
        %v9390 = vpop.f32.mrb[0].mxu0
        %9391 = vmatprep.mubr.f32.mxu0 0.0
        %9392 = vmatmul.mubr.f32.gmra.mrb[0].mxu0 %v9294
        %v9393 = vpop.f32.mrb[0].mxu0
        %v9394 = vadd.f32 %v9277, %v9393
        %v9395 = vpop.f32.mrb[0].mxu0
        %9396 = vmatprep.mubr.f32.mxu0 0.0
        %9397 = vmatmul.mubr.f32.gmra.mrb[0].mxu0 %v9297
        %v9398 = vpop.f32.mrb[0].mxu0
        %v9399 = vadd.f32 %v9277, %v9398
        %v9400 = vpop.f32.mrb[0].mxu0
        %9401 = vmatprep.mubr.f32.mxu0 0.0
        %9402 = vmatmul.mubr.f32.gmra.mrb[0].mxu0 %v9300
        %v9403 = vpop.f32.mrb[0].mxu0
        %v9404 = vadd.f32 %v9277, %v9403
        %v9405 = vpop.f32.mrb[0].mxu0
        %9406 = vdwg.mxu0
        %v9407 = vmul.f32 %v9369, 0.5
        %v9408 = vmul.f32 %v9374, 0.5
        %v9409 = vmul.f32 %v9379, 0.5
        %v9410 = vmul.f32 %v9384, 0.5
        %v9411 = vmul.f32 %v9389, 0.5
        %v9412 = vmul.f32 %v9394, 0.5
        %v9413 = vmul.f32 %v9399, 0.5
        %v9414 = vmul.f32 %v9404, 0.5
        %v9415 = vmul.f32 %v9369, 0.70710677
        %v9416 = vmul.f32 %v9374, 0.70710677
        %v9417 = vmul.f32 %v9379, 0.70710677
        %v9418 = vmul.f32 %v9384, 0.70710677
        %v9419 = vmul.f32 %v9389, 0.70710677
        %v9420 = vmul.f32 %v9394, 0.70710677
        %v9421 = vmul.f32 %v9399, 0.70710677
        %v9422 = vmul.f32 %v9404, 0.70710677
        %v9423 = verf.f32.pop %v9415
        %v9424 = verf.f32.pop %v9416
        %v9425 = verf.f32.pop %v9417
        %v9426 = verf.f32.pop %v9418
        %v9427 = verf.f32.pop %v9419
        %v9428 = verf.f32.pop %v9420
        %v9429 = verf.f32.pop %v9421
        %v9430 = verf.f32.pop %v9422
        %v9431 = vadd.f32 %v9423, 1.0
        %v9432 = vadd.f32 %v9424, 1.0
        %v9433 = vadd.f32 %v9425, 1.0
        %v9434 = vadd.f32 %v9426, 1.0
        %v9435 = vadd.f32 %v9427, 1.0
        %v9436 = vadd.f32 %v9428, 1.0
        %v9437 = vadd.f32 %v9429, 1.0
        %v9438 = vadd.f32 %v9430, 1.0
        %v9439 = vmul.f32 %v9407, %v9431
        %v9440 = vmul.f32 %v9408, %v9432
        %v9441 = vmul.f32 %v9409, %v9433
        %v9442 = vmul.f32 %v9410, %v9434
        %v9443 = vmul.f32 %v9411, %v9435
        %v9444 = vmul.f32 %v9412, %v9436
        %v9445 = vmul.f32 %v9413, %v9437
        %v9446 = vmul.f32 %v9414, %v9438
        %v9447 = vlaneseq
        %v9448 = vshrl.u32 %v9447, 7
        %v9449 = vsub.s32 0, %v9448
        %v9450 = vrot.slane %v373, %v9449
        %v9452 = vsel %vm376, %v9439, 0
        %v9455 = vsel %vm376, %v9440, 0
        %v9458 = vsel %vm376, %v9441, 0
        %v9461 = vsel %vm376, %v9442, 0
        %v9464 = vsel %vm376, %v9443, 0
        %v9467 = vsel %vm376, %v9444, 0
        %v9470 = vsel %vm376, %v9445, 0
        %v9473 = vsel %vm376, %v9446, 0
        %9475 = vmatprep.subr.mxu0 0.0
        %9476 = vmatpush1.msra.mxu0 %v368
        %9477 = vmatprep.subr.mxu0 0.0
        %9478 = vmatpush1.msra.mxu0 %v369
        %9479 = vmatprep.subr.mxu0 0.0
        %9480 = vmatpush1.msra.mxu0 %v370
        %9481 = vmatprep.subr.mxu0 0.0
        %9482 = vmatpush1.msra.mxu0 %v371
        %9483 = vmatprep.subr.mxu0 0.0
        %9484 = vmatpush1.msra.mxu0 0.0
        %9485 = vmatprep.subr.mxu0 0.0
        %9486 = vmatpush1.msra.mxu0 0.0
        %9487 = vmatprep.subr.mxu0 0.0
        %9488 = vmatpush1.msra.mxu0 0.0
        %9489 = vmatprep.subr.mxu0 0.0
        %9490 = vmatpush1.msra.mxu0 0.0
        %9491 = vmatprep.subr.mxu0 0.0
        %9492 = vmatpush1.msra.mxu0 0.0
        %9493 = vmatprep.subr.mxu0 0.0
        %9494 = vmatpush1.msra.mxu0 0.0
        %9495 = vmatprep.subr.mxu0 0.0
        %9496 = vmatpush1.msra.mxu0 0.0
        %9497 = vmatprep.subr.mxu0 0.0
        %9498 = vmatpush1.msra.mxu0 0.0
        %9499 = vmatprep.subr.mxu0 0.0
        %9500 = vmatpush1.msra.mxu0 0.0
        %9501 = vmatprep.subr.mxu0 0.0
        %9502 = vmatpush1.msra.mxu0 0.0
        %9503 = vmatprep.subr.mxu0 0.0
        %9504 = vmatpush1.msra.mxu0 0.0
        %9505 = vmatprep.subr.mxu0 0.0
        %9506 = vmatpush1.msra.mxu0 0.0
        %9507 = vmatprep.subr.mxu0 0.0
        %9508 = vmatpush1.msra.mxu0 0.0
        %9509 = vmatprep.subr.mxu0 0.0
        %9510 = vmatpush1.msra.mxu0 0.0
        %9511 = vmatprep.subr.mxu0 0.0
        %9512 = vmatpush1.msra.mxu0 0.0
        %9513 = vmatprep.subr.mxu0 0.0
        %9514 = vmatpush1.msra.mxu0 0.0
        %9515 = vmatprep.subr.mxu0 0.0
        %9516 = vmatpush1.msra.mxu0 0.0
        %9517 = vmatprep.subr.mxu0 0.0
        %9518 = vmatpush1.msra.mxu0 0.0
        %9519 = vmatprep.subr.mxu0 0.0
        %9520 = vmatpush1.msra.mxu0 0.0
        %9521 = vmatprep.subr.mxu0 0.0
        %9522 = vmatpush1.msra.mxu0 0.0
        %9523 = vmatprep.subr.mxu0 0.0
        %9524 = vmatpush1.msra.mxu0 0.0
        %9525 = vmatprep.subr.mxu0 0.0
        %9526 = vmatpush1.msra.mxu0 0.0
        %9527 = vmatprep.subr.mxu0 0.0
        %9528 = vmatpush1.msra.mxu0 0.0
        %9529 = vmatprep.subr.mxu0 0.0
        %9530 = vmatpush1.msra.mxu0 0.0
        %9531 = vmatprep.subr.mxu0 0.0
        %9532 = vmatpush1.msra.mxu0 0.0
        %9533 = vmatprep.subr.mxu0 0.0
        %9534 = vmatpush1.msra.mxu0 0.0
        %9535 = vmatprep.subr.mxu0 0.0
        %9536 = vmatpush1.msra.mxu0 0.0
        %9537 = vmatprep.subr.mxu0 0.0
        %9538 = vmatpush1.msra.mxu0 0.0
        %9539 = vmatprep.mubr.f32.mxu0 0.0
        %9540 = vmatmul.mubr.f32.gmra.mrb[0].mxu0 %v9452
        %v9541 = vpop.f32.mrb[0].mxu0
        %v9542 = vadd.f32 %v9450, %v9541
        %v9543 = vpop.f32.mrb[0].mxu0
        %9544 = vmatprep.mubr.f32.mxu0 0.0
        %9545 = vmatmul.mubr.f32.gmra.mrb[0].mxu0 %v9455
        %v9546 = vpop.f32.mrb[0].mxu0
        %v9547 = vadd.f32 %v9450, %v9546
        %v9548 = vpop.f32.mrb[0].mxu0
        %9549 = vmatprep.mubr.f32.mxu0 0.0
        %9550 = vmatmul.mubr.f32.gmra.mrb[0].mxu0 %v9458
        %v9551 = vpop.f32.mrb[0].mxu0
        %v9552 = vadd.f32 %v9450, %v9551
        %v9553 = vpop.f32.mrb[0].mxu0
        %9554 = vmatprep.mubr.f32.mxu0 0.0
        %9555 = vmatmul.mubr.f32.gmra.mrb[0].mxu0 %v9461
        %v9556 = vpop.f32.mrb[0].mxu0
        %v9557 = vadd.f32 %v9450, %v9556
        %v9558 = vpop.f32.mrb[0].mxu0
        %9559 = vmatprep.mubr.f32.mxu0 0.0
        %9560 = vmatmul.mubr.f32.gmra.mrb[0].mxu0 %v9464
        %v9561 = vpop.f32.mrb[0].mxu0
        %v9562 = vadd.f32 %v9450, %v9561
        %v9563 = vpop.f32.mrb[0].mxu0
        %9564 = vmatprep.mubr.f32.mxu0 0.0
        %9565 = vmatmul.mubr.f32.gmra.mrb[0].mxu0 %v9467
        %v9566 = vpop.f32.mrb[0].mxu0
        %v9567 = vadd.f32 %v9450, %v9566
        %v9568 = vpop.f32.mrb[0].mxu0
        %9569 = vmatprep.mubr.f32.mxu0 0.0
        %9570 = vmatmul.mubr.f32.gmra.mrb[0].mxu0 %v9470
        %v9571 = vpop.f32.mrb[0].mxu0
        %v9572 = vadd.f32 %v9450, %v9571
        %v9573 = vpop.f32.mrb[0].mxu0
        %9574 = vmatprep.mubr.f32.mxu0 0.0
        %9575 = vmatmul.mubr.f32.gmra.mrb[0].mxu0 %v9473
        %v9576 = vpop.f32.mrb[0].mxu0
        %v9577 = vadd.f32 %v9450, %v9576
        %v9578 = vpop.f32.mrb[0].mxu0
        %9579 = vdwg.mxu0
        %v9580 = vadd.f32 %v9138, %v9542
        %v9581 = vadd.f32 %v9139, %v9547
        %v9582 = vadd.f32 %v9140, %v9552
        %v9583 = vadd.f32 %v9141, %v9557
        %v9584 = vadd.f32 %v9142, %v9562
        %v9585 = vadd.f32 %v9143, %v9567
        %v9586 = vadd.f32 %v9144, %v9572
        %v9587 = vadd.f32 %v9145, %v9577
        %9588 = vst.msk [vmem:[%s6] sm:$0xff] %vm376, %v9580
        %9589 = vst.msk [vmem:[%s6 + $0x8] sm:$0xff] %vm376, %v9581
        %9590 = vst.msk [vmem:[%s6 + $0x10] sm:$0xff] %vm376, %v9582
        %9591 = vst.msk [vmem:[%s6 + $0x18] sm:$0xff] %vm376, %v9583
        %9592 = vst.msk [vmem:[%s6 + $0x20] sm:$0xff] %vm376, %v9584
        %9593 = vst.msk [vmem:[%s6 + $0x28] sm:$0xff] %vm376, %v9585
        %9594 = vst.msk [vmem:[%s6 + $0x30] sm:$0xff] %vm376, %v9586
        %9595 = vst.msk [vmem:[%s6 + $0x38] sm:$0xff] %vm376, %v9587
        // Predicated region
        $region57: #{tpu_custom_call.1} parent=43 // pred_check
          %p9596 = pneg %p175
        $region58: #{tpu_custom_call.1} parent=43 // pred_check_branch
          %9598 = sbr.rel (%p9596) target = $region60
        $region59: #{tpu_custom_call.1} parent=43 // pred_region
          _
        $region60: #{tpu_custom_call.1} parent=43 // pred_fallthru
          _
        // Predicated region
        $region61: #{tpu_custom_call.1} parent=43 // pred_check
          %p9599 = pneg %p175
        $region62: #{tpu_custom_call.1} parent=43 // pred_check_branch
          %9601 = sbr.rel (%p9599) target = $region64
        $region63: #{tpu_custom_call.1} parent=43 // pred_region
          _
        $region64: #{tpu_custom_call.1} parent=43 // pred_fallthru
          _
      $region44: #{tpu_custom_call.1} parent=5 // pred_fallthru
        _
      %p9602 = scmp.le.s32.totalorder 2, %s16
      // Predicated region
      $region65: #{tpu_custom_call.1} parent=5 // pred_check
        %p9603 = pneg %p9602
      $region66: #{tpu_custom_call.1} parent=5 // pred_check_branch
        %9605 = sbr.rel (%p9603) target = $region68
      $region67: #{tpu_custom_call.1} parent=5 // pred_region
        %s9606 = ssub.s32 %s16, 2
      $region68: #{tpu_custom_call.1} parent=5 // pred_fallthru
        _
    $region6: #{tpu_custom_call.1} parent=1 // loop_footer
      %s20 = sadd.s32 1, %s16
    $region7: #{tpu_custom_call.1} parent=1 // loop_footer_branch
      %15 = sbr.rel target = $region3
    $region8: #{tpu_custom_call.1} parent=1 // loop_exit
      _
    %9607 = vsyncpa [#allocation3], 1
    %s9608 = scalar_lea.sflag [#allocation3], 1
    %9609 = vsyncpa %s9608, 1
    %9610 = vsyncpa [#allocation4], 1
    %s9611 = scalar_lea.sflag [#allocation4], 1
    %9612 = vsyncpa %s9611, 1

</llo_original>
